<compile_context>
chip_gen: v5e
topology: v5e:2x2
jax: 0.10.0
libtpu: 0.0.40
codegen_flags: <defaults>
</compile_context>

<pallas_src>
import functools
import math

import jax
import jax.numpy as jnp
from jax.experimental import pallas as pl
from jax.experimental.pallas import tpu as pltpu

# <= ~48 MiB scoped VMEM: safe on v5e/v6e (128 MiB physical) and v7x (64 MiB).
VMEM_LIMIT_BYTES = 48 * 1024 * 1024


# ----------------------------------------------------------------------------
# Tiling helpers
# ----------------------------------------------------------------------------
def _round_up(x, m):
    return ((x + m - 1) // m) * m


def _divisor_tile(dim, pref, align):
    """Largest legal tile <= pref that divides dim; full dim if dim is small."""
    if dim <= pref:
        return dim
    if dim % pref == 0:
        return pref
    t = (pref // align) * align
    while t >= align:
        if dim % t == 0:
            return t
        t -= align
    return dim  # TODO(synk): only attention seq dims can hit this (pad instead).


def _tile_and_pad(dim, pref, align):
    """Return (tile, padded_dim): tile divides padded_dim and is alignment-legal."""
    if dim <= pref:
        return dim, dim                      # full dim is always a legal block
    if dim % pref == 0:
        return pref, dim
    t = (pref // align) * align
    while t >= align:
        if dim % t == 0:
            return t, dim
        t -= align
    return pref, _round_up(dim, pref)        # pad up (e.g. odd vocab sizes)


@functools.lru_cache(maxsize=1)
def _tile_prefs():
    """Per-generation tile preferences (collapse to full dims at small shapes)."""
    try:
        kind = jax.devices()[0].device_kind.lower()
    except Exception:
        kind = ""
    if "v5" in kind:   # 4x128x128 MXU; 128-class tiles, f32 elementwise math
        return dict(tm=128, tn=256, tk=512, tq=128, tkv=256, cores=1)
    if "v7" in kind:   # 64 MiB VMEM but working set is tiny: keep v6e-class tiles
        return dict(tm=256, tn=512, tk=512, tq=256, tkv=256, cores=2)
    return dict(tm=256, tn=512, tk=512, tq=256, tkv=256, cores=1)   # v6e-class


# ----------------------------------------------------------------------------
# Fused linear kernel: out = act(x @ w + b)   (bf16 MXU operands, f32 accum)
# ----------------------------------------------------------------------------
def _linear_kernel(x_ref, w_ref, b_ref, o_ref, acc_ref, *, activation):
    kk = pl.program_id(2)

    @pl.when(kk == 0)
    def _():
        acc_ref[...] = jnp.zeros_like(acc_ref)

    acc_ref[...] += jnp.dot(x_ref[...].astype(jnp.bfloat16),
                            w_ref[...].astype(jnp.bfloat16),
                            preferred_element_type=jnp.float32)

    @pl.when(kk == pl.num_programs(2) - 1)
    def _():
        out = acc_ref[...] + b_ref[...].astype(jnp.float32)
        if activation == "relu":
            out = jnp.maximum(out, 0.0)
        o_ref[...] = out.astype(o_ref.dtype)


def linear(x, w, b, activation=None):
    """x: [M, K] @ w: [K, N] + b: [N]; pads non-divisible dims instead of
    exploding the tile to the full dimension."""
    M, K = x.shape
    _, N = w.shape
    prefs = _tile_prefs()
    tm, Mp = _tile_and_pad(M, prefs["tm"], 8)
    tn, Np = _tile_and_pad(N, prefs["tn"], 128)
    tk, Kp = _tile_and_pad(K, prefs["tk"], 128)
    # v7x has 2 TensorCores: don't let both parallel axes collapse to one block.
    if prefs["cores"] > 1 and Mp // tm == 1 and Np // tn == 1 and tm % 16 == 0:
        tm //= 2
    if Mp != M or Kp != K:
        x = jnp.pad(x, ((0, Mp - M), (0, Kp - K)))
    if Kp != K or Np != N:
        w = jnp.pad(w, ((0, Kp - K), (0, Np - N)))
    if Np != N:
        b = jnp.pad(b, (0, Np - N))
    grid = (Mp // tm, Np // tn, Kp // tk)
    kernel = functools.partial(_linear_kernel, activation=activation)
    out = pl.pallas_call(
        kernel,
        out_shape=jax.ShapeDtypeStruct((Mp, Np), x.dtype),
        grid_spec=pltpu.PrefetchScalarGridSpec(
            num_scalar_prefetch=0,
            grid=grid,
            in_specs=[
                pl.BlockSpec((tm, tk), lambda i, j, k: (i, k)),
                pl.BlockSpec((tk, tn), lambda i, j, k: (k, j)),
                pl.BlockSpec((1, tn), lambda i, j, k: (0, j)),
            ],
            out_specs=pl.BlockSpec((tm, tn), lambda i, j, k: (i, j)),
            scratch_shapes=[pltpu.VMEM((tm, tn), jnp.float32)],
        ),
        compiler_params=pltpu.CompilerParams(
            dimension_semantics=("parallel", "parallel", "arbitrary"),
            vmem_limit_bytes=VMEM_LIMIT_BYTES,
        ),
    )(x, w, b.reshape(1, Np))
    if Mp != M or Np != N:
        out = out[:M, :N]
    return out


# ----------------------------------------------------------------------------
# Fused linear + residual-add + LayerNorm (epilogue LN, N = d_model untiled)
# ----------------------------------------------------------------------------
def _linear_ln_kernel(x_ref, w_ref, b_ref, r_ref, g_ref, bb_ref, o_ref, acc_ref,
                      *, eps):
    kk = pl.program_id(1)

    @pl.when(kk == 0)
    def _():
        acc_ref[...] = jnp.zeros_like(acc_ref)

    acc_ref[...] += jnp.dot(x_ref[...].astype(jnp.bfloat16),
                            w_ref[...].astype(jnp.bfloat16),
                            preferred_element_type=jnp.float32)

    @pl.when(kk == pl.num_programs(1) - 1)
    def _():
        y = (acc_ref[...] + b_ref[...].astype(jnp.float32)
             + r_ref[...].astype(jnp.float32))
        mean = jnp.mean(y, axis=-1, keepdims=True)
        yc = y - mean
        var = jnp.mean(yc * yc, axis=-1, keepdims=True)
        inv = jax.lax.rsqrt(var + eps)
        o_ref[...] = (yc * inv * g_ref[...].astype(jnp.float32)
                      + bb_ref[...].astype(jnp.float32)).astype(o_ref.dtype)


def linear_residual_layernorm(x, w, b, resid, gamma, beta, eps=1e-5):
    """out = LayerNorm(x @ w + b + resid); x: [M, K], w: [K, D], resid: [M, D]."""
    M, K = x.shape
    _, N = w.shape
    prefs = _tile_prefs()
    tm, Mp = _tile_and_pad(M, prefs["tm"], 8)
    tk, Kp = _tile_and_pad(K, prefs["tk"], 128)
    if prefs["cores"] > 1 and Mp // tm == 1 and tm % 16 == 0:
        tm //= 2
    if Mp != M or Kp != K:
        x = jnp.pad(x, ((0, Mp - M), (0, Kp - K)))
    if Kp != K:
        w = jnp.pad(w, ((0, Kp - K), (0, 0)))
    if Mp != M:
        resid = jnp.pad(resid, ((0, Mp - M), (0, 0)))
    grid = (Mp // tm, Kp // tk)
    kernel = functools.partial(_linear_ln_kernel, eps=eps)
    out = pl.pallas_call(
        kernel,
        out_shape=jax.ShapeDtypeStruct((Mp, N), x.dtype),
        grid_spec=pltpu.PrefetchScalarGridSpec(
            num_scalar_prefetch=0,
            grid=grid,
            in_specs=[
                pl.BlockSpec((tm, tk), lambda i, k: (i, k)),
                pl.BlockSpec((tk, N), lambda i, k: (k, 0)),
                pl.BlockSpec((1, N), lambda i, k: (0, 0)),
                pl.BlockSpec((tm, N), lambda i, k: (i, 0)),   # residual (fetched once per i)
                pl.BlockSpec((1, N), lambda i, k: (0, 0)),
                pl.BlockSpec((1, N), lambda i, k: (0, 0)),
            ],
            out_specs=pl.BlockSpec((tm, N), lambda i, k: (i, 0)),
            scratch_shapes=[pltpu.VMEM((tm, N), jnp.float32)],
        ),
        compiler_params=pltpu.CompilerParams(
            dimension_semantics=("parallel", "arbitrary"),
            vmem_limit_bytes=VMEM_LIMIT_BYTES,
        ),
    )(x, w, b.reshape(1, N), resid, gamma.reshape(1, N), beta.reshape(1, N))
    if Mp != M:
        out = out[:M]
    return out


# ----------------------------------------------------------------------------
# Flash-style attention with the module's multiplicative triu mask
# ----------------------------------------------------------------------------
def _flash_kernel(q_ref, k_ref, v_ref, o_ref, m_sc, l_sc, acc_sc, *,
                  scale, mult_triu_mask, tq, tkv):
    ki = pl.program_id(3)

    @pl.when(ki == 0)
    def _():
        m_sc[...] = jnp.full(m_sc.shape, -jnp.inf, jnp.float32)
        l_sc[...] = jnp.zeros(l_sc.shape, jnp.float32)
        acc_sc[...] = jnp.zeros(acc_sc.shape, jnp.float32)

    # Fold 1/sqrt(Dh) into the (tq, Dh) Q tile (cheaper than scaling (tq, tkv)).
    q = (q_ref[...].astype(jnp.float32) * scale).astype(jnp.bfloat16)   # (tq, Dh)
    k = k_ref[...].astype(jnp.bfloat16)                                  # (tkv, Dh)
    v = v_ref[...]                                                       # (tkv, Dh)

    def scores():
        return jnp.dot(q, k.T, preferred_element_type=jnp.float32)      # (tq, tkv)

    def update(s):
        m_prev = m_sc[...]
        m_new = jnp.maximum(m_prev, s.max(axis=-1, keepdims=True))
        alpha = jnp.exp(m_prev - m_new)
        p = jnp.exp(s - m_new)
        l_sc[...] = alpha * l_sc[...] + p.sum(axis=-1, keepdims=True)
        acc_sc[...] = alpha * acc_sc[...] + jnp.dot(
            p.astype(jnp.bfloat16), v.astype(jnp.bfloat16),
            preferred_element_type=jnp.float32)
        m_sc[...] = m_new

    if mult_triu_mask:
        # torch.triu(ones) applied *multiplicatively*: scores with col < row
        # become exactly 0 but still participate in the softmax.
        qi = pl.program_id(2)
        row0 = qi * tq
        col0 = ki * tkv
        full_zero = col0 + tkv <= row0           # every col < every row
        full_keep = col0 >= row0 + tq - 1        # every col >= every row

        @pl.when(full_zero)
        def _():
            # All scores are exactly 0: skip QK^T and PV, add exp(-m) terms.
            m_prev = m_sc[...]
            m_new = jnp.maximum(m_prev, 0.0)
            alpha = jnp.exp(m_prev - m_new)
            pz = jnp.exp(-m_new)                                     # (tq, 1)
            l_sc[...] = alpha * l_sc[...] + tkv * pz
            v_sum = jnp.sum(v.astype(jnp.float32), axis=0, keepdims=True)  # (1, Dh)
            acc_sc[...] = alpha * acc_sc[...] + pz * v_sum
            m_sc[...] = m_new

        @pl.when(jnp.logical_and(jnp.logical_not(full_zero), full_keep))
        def _():
            update(scores())

        @pl.when(jnp.logical_and(jnp.logical_not(full_zero),
                                 jnp.logical_not(full_keep)))
        def _():
            s = scores()
            row = row0 + jax.lax.broadcasted_iota(jnp.int32, (tq, tkv), 0)
            col = col0 + jax.lax.broadcasted_iota(jnp.int32, (tq, tkv), 1)
            update(jnp.where(col >= row, s, 0.0))
    else:
        update(scores())

    @pl.when(ki == pl.num_programs(3) - 1)
    def _():
        inv_l = pl.reciprocal(l_sc[...], approx=True)
        o_ref[...] = (acc_sc[...] * inv_l).astype(o_ref.dtype)


def flash_attention_slab(q_slab, kv_slab, *, n_heads, d_head, q_head_off,
                         k_head_off, v_head_off, mult_triu_mask):
    """Fast path (d_head % 128 == 0).
    q_slab: [B, Sq, *], kv_slab: [B, Skv, *]; head h's Q/K/V occupy Dh-wide
    column blocks q_head_off+h / k_head_off+h / v_head_off+h of the slabs.
    Output: [B, Sq, n_heads*d_head], heads written lane-dense (no JAX concat)."""
    B, Sq, _ = q_slab.shape
    Skv = kv_slab.shape[1]
    prefs = _tile_prefs()
    tq = _divisor_tile(Sq, prefs["tq"], 8)
    tkv = _divisor_tile(Skv, prefs["tkv"], 8)
    grid = (B, n_heads, Sq // tq, Skv // tkv)
    kernel = functools.partial(_flash_kernel, scale=1.0 / math.sqrt(d_head),
                               mult_triu_mask=mult_triu_mask, tq=tq, tkv=tkv)
    return pl.pallas_call(
        kernel,
        out_shape=jax.ShapeDtypeStruct((B, Sq, n_heads * d_head), q_slab.dtype),
        grid_spec=pltpu.PrefetchScalarGridSpec(
            num_scalar_prefetch=0,
            grid=grid,
            in_specs=[
                pl.BlockSpec((None, tq, d_head),
                             lambda b, h, qi, ki: (b, qi, q_head_off + h)),
                pl.BlockSpec((None, tkv, d_head),
                             lambda b, h, qi, ki: (b, ki, k_head_off + h)),
                pl.BlockSpec((None, tkv, d_head),
                             lambda b, h, qi, ki: (b, ki, v_head_off + h)),
            ],
            out_specs=pl.BlockSpec((None, tq, d_head),
                                   lambda b, h, qi, ki: (b, qi, h)),
            scratch_shapes=[
                pltpu.VMEM((tq, 1), jnp.float32),      # running max m
                pltpu.VMEM((tq, 1), jnp.float32),      # running denom l
                pltpu.VMEM((tq, d_head), jnp.float32), # running PV accumulator
            ],
        ),
        compiler_params=pltpu.CompilerParams(
            dimension_semantics=("parallel", "parallel", "parallel", "arbitrary"),
            vmem_limit_bytes=VMEM_LIMIT_BYTES,
        ),
    )(q_slab, kv_slab, kv_slab)


def _flash_bhsd(q4, k4, v4, *, mult_triu_mask):
    """Fallback path for d_head % 128 != 0: q/k/v laid out [B, H, S, Dh]."""
    B, H, Sq, Dh = q4.shape
    Skv = k4.shape[2]
    prefs = _tile_prefs()
    tq = _divisor_tile(Sq, prefs["tq"], 8)
    tkv = _divisor_tile(Skv, prefs["tkv"], 8)
    grid = (B, H, Sq // tq, Skv // tkv)
    kernel = functools.partial(_flash_kernel, scale=1.0 / math.sqrt(Dh),
                               mult_triu_mask=mult_triu_mask, tq=tq, tkv=tkv)
    return pl.pallas_call(
        kernel,
        out_shape=jax.ShapeDtypeStruct((B, H, Sq, Dh), q4.dtype),
        grid_spec=pltpu.PrefetchScalarGridSpec(
            num_scalar_prefetch=0,
            grid=grid,
            in_specs=[
                pl.BlockSpec((None, None, tq, Dh), lambda b, h, qi, ki: (b, h, qi, 0)),
                pl.BlockSpec((None, None, tkv, Dh), lambda b, h, qi, ki: (b, h, ki, 0)),
                pl.BlockSpec((None, None, tkv, Dh), lambda b, h, qi, ki: (b, h, ki, 0)),
            ],
            out_specs=pl.BlockSpec((None, None, tq, Dh),
                                   lambda b, h, qi, ki: (b, h, qi, 0)),
            scratch_shapes=[
                pltpu.VMEM((tq, 1), jnp.float32),
                pltpu.VMEM((tq, 1), jnp.float32),
                pltpu.VMEM((tq, Dh), jnp.float32),
            ],
        ),
        compiler_params=pltpu.CompilerParams(
            dimension_semantics=("parallel", "parallel", "parallel", "arbitrary"),
            vmem_limit_bytes=VMEM_LIMIT_BYTES,
        ),
    )(q4, k4, v4)


# ----------------------------------------------------------------------------
# Attention wrappers (projection slabs feed flash directly; no head transposes)
# ----------------------------------------------------------------------------
def _split_heads(x, n_heads):
    B, S, D = x.shape
    Dh = D // n_heads
    return x.reshape(B, S, n_heads, Dh).transpose(0, 2, 1, 3)


def self_attention(x, p, *, n_heads, mult_triu_mask):
    """Fused QKV projection + flash; returns [B, S, D] head-concat output,
    *before* the output projection (which is fused with residual+LN)."""
    B, S, D = x.shape
    Dh = D // n_heads
    qkv = linear(x.reshape(B * S, D), p["wqkv"], p["bqkv"])          # [M, 3D]
    if Dh % 128 == 0:
        slab = qkv.reshape(B, S, 3 * D)
        return flash_attention_slab(slab, slab, n_heads=n_heads, d_head=Dh,
                                    q_head_off=0, k_head_off=n_heads,
                                    v_head_off=2 * n_heads,
                                    mult_triu_mask=mult_triu_mask)
    # TODO(synk): lane-dense slab path needs Dh % 128 == 0; BHSD fallback otherwise.
    qkv = qkv.reshape(B, S, 3 * D)
    q4 = _split_heads(qkv[..., :D], n_heads)
    k4 = _split_heads(qkv[..., D:2 * D], n_heads)
    v4 = _split_heads(qkv[..., 2 * D:], n_heads)
    o4 = _flash_bhsd(q4, k4, v4, mult_triu_mask=mult_triu_mask)
    return o4.transpose(0, 2, 1, 3).reshape(B, S, D)


def cross_attention(x_q, x_kv, p, *, n_heads):
    B, Sq, D = x_q.shape
    Skv = x_kv.shape[1]
    Dh = D // n_heads
    q = linear(x_q.reshape(B * Sq, D), p["wq"], p["bq"])             # [Mq, D]
    kv = linear(x_kv.reshape(B * Skv, D), p["wkv"], p["bkv"])        # [Mkv, 2D]
    if Dh % 128 == 0:
        return flash_attention_slab(q.reshape(B, Sq, D), kv.reshape(B, Skv, 2 * D),
                                    n_heads=n_heads, d_head=Dh, q_head_off=0,
                                    k_head_off=0, v_head_off=n_heads,
                                    mult_triu_mask=False)
    q4 = _split_heads(q.reshape(B, Sq, D), n_heads)
    kv = kv.reshape(B, Skv, 2 * D)
    k4 = _split_heads(kv[..., :D], n_heads)
    v4 = _split_heads(kv[..., D:], n_heads)
    o4 = _flash_bhsd(q4, k4, v4, mult_triu_mask=False)
    return o4.transpose(0, 2, 1, 3).reshape(B, Sq, D)


# ----------------------------------------------------------------------------
# Model glue (mirrors the PyTorch module structure)
# ----------------------------------------------------------------------------
def encoder_layer(x, p, *, n_heads):
    B, S, D = x.shape
    resid = x.reshape(B * S, D)
    a = self_attention(x, p["attn"], n_heads=n_heads, mult_triu_mask=False)
    h = linear_residual_layernorm(a.reshape(B * S, D), p["attn"]["wo"],
                                  p["attn"]["bo"], resid, p["ln1_g"], p["ln1_b"])
    f = linear(h, p["ff"]["w1"], p["ff"]["b1"], activation="relu")
    h = linear_residual_layernorm(f, p["ff"]["w2"], p["ff"]["b2"],
                                  h, p["ln2_g"], p["ln2_b"])
    return h.reshape(B, S, D)


def decoder_layer(x, enc_out, p, *, n_heads):
    B, S, D = x.shape
    resid = x.reshape(B * S, D)
    a = self_attention(x, p["self_attn"], n_heads=n_heads, mult_triu_mask=True)
    h = linear_residual_layernorm(a.reshape(B * S, D), p["self_attn"]["wo"],
                                  p["self_attn"]["bo"], resid,
                                  p["ln1_g"], p["ln1_b"])
    a = cross_attention(h.reshape(B, S, D), enc_out, p["cross_attn"],
                        n_heads=n_heads)
    h = linear_residual_layernorm(a.reshape(B * S, D), p["cross_attn"]["wo"],
                                  p["cross_attn"]["bo"], h,
                                  p["ln2_g"], p["ln2_b"])
    f = linear(h, p["ff"]["w1"], p["ff"]["b1"], activation="relu")
    h = linear_residual_layernorm(f, p["ff"]["w2"], p["ff"]["b2"],
                                  h, p["ln3_g"], p["ln3_b"])
    return h.reshape(B, S, D)


def transformer_forward(params, enc_tokens, dec_tokens, *, n_heads):
    emb, pos = params["embedding"], params["pos_embedding"]
    # TODO(synk): embedding + positional gathers stay as JAX glue (sparse gather).
    enc_x = emb[enc_tokens] + pos[jnp.arange(enc_tokens.shape[1])][None, :, :]
    dec_x = emb[dec_tokens] + pos[jnp.arange(dec_tokens.shape[1])][None, :, :]
    # TODO(synk): layer loop stays Python-level (no stacked-weight scan / cross-call prefetch yet).
    for lp in params["encoder_layers"]:
        enc_x = encoder_layer(enc_x, lp, n_heads=n_heads)
    for lp in params["decoder_layers"]:
        dec_x = decoder_layer(dec_x, enc_x, lp, n_heads=n_heads)
    B, S, D = dec_x.shape
    logits = linear(dec_x.reshape(B * S, D), params["w_out"], params["b_out"])
    return logits.reshape(B, S, -1)


# ----------------------------------------------------------------------------
# Parameter init (fused per-head weights, equivalent to the ModuleList linears)
# ----------------------------------------------------------------------------
def init_params(key, *, vocab_size, d_model, n_layers, n_heads, d_ff, max_length,
                dtype=jnp.float32):
    def dense(k, fan_in, fan_out):
        kw, kb = jax.random.split(k)
        return (jax.random.normal(kw, (fan_in, fan_out), dtype) * 0.02,
                jax.random.normal(kb, (fan_out,), dtype) * 0.02)

    def self_attn_params(k):
        k1, k2 = jax.random.split(k)
        wqkv, bqkv = dense(k1, d_model, 3 * d_model)   # H per-head Q|K|V, fused
        wo, bo = dense(k2, d_model, d_model)
        return dict(wqkv=wqkv, bqkv=bqkv, wo=wo, bo=bo)

    def cross_attn_params(k):
        k1, k2, k3 = jax.random.split(k, 3)
        wq, bq = dense(k1, d_model, d_model)
        wkv, bkv = dense(k2, d_model, 2 * d_model)
        wo, bo = dense(k3, d_model, d_model)
        return dict(wq=wq, bq=bq, wkv=wkv, bkv=bkv, wo=wo, bo=bo)

    def ff_params(k):
        k1, k2 = jax.random.split(k)
        w1, b1 = dense(k1, d_model, d_ff)
        w2, b2 = dense(k2, d_ff, d_model)
        return dict(w1=w1, b1=b1, w2=w2, b2=b2)

    keys = jax.random.split(key, 4 + 2 * n_layers)
    params = dict(
        embedding=jax.random.normal(keys[0], (vocab_size, d_model), dtype) * 0.02,
        pos_embedding=jax.random.normal(keys[1], (max_length, d_model), dtype) * 0.02,
        encoder_layers=[], decoder_layers=[],
    )
    params["w_out"], params["b_out"] = dense(keys[2], d_model, vocab_size)
    ones = jnp.ones((d_model,), dtype)
    zeros = jnp.zeros((d_model,), dtype)
    for i in range(n_layers):
        ka, kf = jax.random.split(keys[4 + i])
        params["encoder_layers"].append(dict(
            attn=self_attn_params(ka), ff=ff_params(kf),
            ln1_g=ones, ln1_b=zeros, ln2_g=ones, ln2_b=zeros))
    for i in range(n_layers):
        k1, k2, kf = jax.random.split(keys[4 + n_layers + i], 3)
        params["decoder_layers"].append(dict(
            self_attn=self_attn_params(k1), cross_attn=cross_attn_params(k2),
            ff=ff_params(kf),
            ln1_g=ones, ln1_b=zeros, ln2_g=ones, ln2_b=zeros,
            ln3_g=ones, ln3_b=zeros))
    return params


# ----------------------------------------------------------------------------
# Pure-JAX reference (mirrors the PyTorch module semantics exactly)
# ----------------------------------------------------------------------------
def reference_forward(params, enc_tokens, dec_tokens, *, n_heads):
    HI = jax.lax.Precision.HIGHEST

    def dense(x, w, b):
        return jnp.dot(x, w, precision=HI) + b

    def mha(xq, xkv, p, mask):
        B, Sq, D = xq.shape
        Skv = xkv.shape[1]
        Dh = D // n_heads
        if "wqkv" in p:
            qkv = dense(xq, p["wqkv"], p["bqkv"])
            q, k, v = qkv[..., :D], qkv[..., D:2 * D], qkv[..., 2 * D:]
        else:
            q = dense(xq, p["wq"], p["bq"])
            kv = dense(xkv, p["wkv"], p["bkv"])
            k, v = kv[..., :D], kv[..., D:]
        q = q.reshape(B, Sq, n_heads, Dh).transpose(0, 2, 1, 3)
        k = k.reshape(B, Skv, n_heads, Dh).transpose(0, 2, 1, 3)
        v = v.reshape(B, Skv, n_heads, Dh).transpose(0, 2, 1, 3)
        s = jnp.einsum("bhqd,bhkd->bhqk", q, k, precision=HI) / math.sqrt(Dh)
        if mask is not None:
            s = mask * s                      # multiplicative mask, as in the module
        a = jax.nn.softmax(s, axis=-1)
        o = jnp.einsum("bhqk,bhkd->bhqd", a, v, precision=HI)
        o = o.transpose(0, 2, 1, 3).reshape(B, Sq, D)
        return dense(o, p["wo"], p["bo"])

    def layer_norm(x, g, b, eps=1e-5):
        mu = x.mean(-1, keepdims=True)
        var = ((x - mu) ** 2).mean(-1, keepdims=True)
        return (x - mu) / jnp.sqrt(var + eps) * g + b

    def ffn(x, p):
        return dense(jnp.maximum(dense(x, p["w1"], p["b1"]), 0.0), p["w2"], p["b2"])

    emb, pos = params["embedding"], params["pos_embedding"]
    enc_x = emb[enc_tokens] + pos[jnp.arange(enc_tokens.shape[1])][None]
    dec_x = emb[dec_tokens] + pos[jnp.arange(dec_tokens.shape[1])][None]
    for p in params["encoder_layers"]:
        enc_x = layer_norm(enc_x + mha(enc_x, enc_x, p["attn"], None), p["ln1_g"], p["ln1_b"])
        enc_x = layer_norm(enc_x + ffn(enc_x, p["ff"]), p["ln2_g"], p["ln2_b"])
    Sd = dec_tokens.shape[1]
    mask = jnp.triu(jnp.ones((Sd, Sd), jnp.float32))
    for p in params["decoder_layers"]:
        dec_x = layer_norm(dec_x + mha(dec_x, dec_x, p["self_attn"], mask), p["ln1_g"], p["ln1_b"])
        dec_x = layer_norm(dec_x + mha(dec_x, enc_x, p["cross_attn"], None), p["ln2_g"], p["ln2_b"])
        dec_x = layer_norm(dec_x + ffn(dec_x, p["ff"]), p["ln3_g"], p["ln3_b"])
    return dense(dec_x, params["w_out"], params["b_out"])


# ----------------------------------------------------------------------------
if __name__ == "__main__":
    VOCAB, D_MODEL, N_LAYERS, N_HEADS, D_FF, MAX_LEN = 128, 256, 2, 2, 512, 64
    B, S_ENC, S_DEC = 2, 16, 16

    root = jax.random.PRNGKey(0)
    kp, ke, kd = jax.random.split(root, 3)
    params = init_params(kp, vocab_size=VOCAB, d_model=D_MODEL, n_layers=N_LAYERS,
                         n_heads=N_HEADS, d_ff=D_FF, max_length=MAX_LEN)
    enc_tokens = jax.random.randint(ke, (B, S_ENC), 0, VOCAB, dtype=jnp.int32)
    dec_tokens = jax.random.randint(kd, (B, S_DEC), 0, VOCAB, dtype=jnp.int32)

    fwd = jax.jit(functools.partial(transformer_forward, n_heads=N_HEADS))
    logits = jax.block_until_ready(fwd(params, enc_tokens, dec_tokens))

    ref = reference_forward(params, enc_tokens, dec_tokens, n_heads=N_HEADS)
    err = float(jnp.max(jnp.abs(logits - ref)))
    if not (bool(jnp.all(jnp.isfinite(logits))) and err < 5e-2):
        raise AssertionError(f"Pallas output mismatch vs reference (max abs err = {err})")
    print("KERNEL_OK")
</pallas_src>

<mosaic_0001>
module attributes {stable_mosaic.version = 11 : i64} {
  func.func @_linear_kernel(%arg0: i32, %arg1: i32, %arg2: i32, %arg3: memref<32x256xf32, #tpu.memory_space<vmem>>, %arg4: memref<256x384xf32, #tpu.memory_space<vmem>>, %arg5: memref<1x384xf32, #tpu.memory_space<vmem>>, %arg6: memref<32x384xf32, #tpu.memory_space<vmem>>, %arg7: memref<32x384xf32, #tpu.memory_space<vmem>>) attributes {dimension_semantics = [#tpu.dimension_semantics<parallel>, #tpu.dimension_semantics<parallel>, #tpu.dimension_semantics<arbitrary>], iteration_bounds = array<i64: 1, 2, 1>, scalar_prefetch = 0 : i64, scratch_operands = 1 : i64, tpu.core_type = #tpu.core_type<tc>, window_params = [{transform_indices = @transform_0, window_bounds = array<i64: 32, 256>}, {transform_indices = @transform_1, window_bounds = array<i64: 256, 384>}, {transform_indices = @transform_2, window_bounds = array<i64: 1, 384>}, {transform_indices = @transform_3, window_bounds = array<i64: 32, 384>}]} {
    %c0_i32 = arith.constant 0 : i32
    %0 = arith.cmpi eq, %arg2, %c0_i32 : i32
    %1 = arith.extui %0 : i1 to i32
    %c0_i32_0 = arith.constant 0 : i32
    %2 = arith.cmpi ne, %1, %c0_i32_0 : i32
    scf.if %2 {
      %cst_10 = arith.constant 0.000000e+00 : f32
      %14 = vector.broadcast %cst_10 : f32 to vector<32x384xf32>
      %c0_11 = arith.constant 0 : index
      %c0_12 = arith.constant 0 : index
      %15 = vector.load %arg7[%c0_11, %c0_12] : memref<32x384xf32, #tpu.memory_space<vmem>>, vector<32x384xf32>
      tpu.vector_store %arg7[%c0_11, %c0_12], %14 {strides = array<i32>} : memref<32x384xf32, #tpu.memory_space<vmem>>, vector<32x384xf32>,
    } else {
    }
    %c0 = arith.constant 0 : index
    %c0_1 = arith.constant 0 : index
    %3 = vector.load %arg7[%c0, %c0_1] : memref<32x384xf32, #tpu.memory_space<vmem>>, vector<32x384xf32>
    %c0_2 = arith.constant 0 : index
    %c0_3 = arith.constant 0 : index
    %4 = vector.load %arg3[%c0_2, %c0_3] : memref<32x256xf32, #tpu.memory_space<vmem>>, vector<32x256xf32>
    %5 = arith.truncf %4 : vector<32x256xf32> to vector<32x256xbf16>
    %c0_4 = arith.constant 0 : index
    %c0_5 = arith.constant 0 : index
    %6 = vector.load %arg4[%c0_4, %c0_5] : memref<256x384xf32, #tpu.memory_space<vmem>>, vector<256x384xf32>
    %7 = arith.truncf %6 : vector<256x384xf32> to vector<256x384xbf16>
    %cst = arith.constant dense<0.000000e+00> : vector<32x384xf32>
    %8 = tpu.matmul %5, %7, %cst {dimension_numbers = #tpu.dot_dimension_numbers<[1], [0], [0], [1], [0, 0, 1, 1], [], []>} : vector<32x256xbf16>, vector<256x384xbf16>, vector<32x384xf32> -> vector<32x384xf32>
    %9 = arith.addf %3, %8 : vector<32x384xf32>
    %c0_6 = arith.constant 0 : index
    %c0_7 = arith.constant 0 : index
    %10 = vector.load %arg7[%c0_6, %c0_7] : memref<32x384xf32, #tpu.memory_space<vmem>>, vector<32x384xf32>
    tpu.vector_store %arg7[%c0_6, %c0_7], %9 {strides = array<i32>} : memref<32x384xf32, #tpu.memory_space<vmem>>, vector<32x384xf32>,
    %c0_i32_8 = arith.constant 0 : i32
    %11 = arith.cmpi eq, %arg2, %c0_i32_8 : i32
    %12 = arith.extui %11 : i1 to i32
    %c0_i32_9 = arith.constant 0 : i32
    %13 = arith.cmpi ne, %12, %c0_i32_9 : i32
    scf.if %13 {
      %c0_10 = arith.constant 0 : index
      %c0_11 = arith.constant 0 : index
      %14 = vector.load %arg7[%c0_10, %c0_11] : memref<32x384xf32, #tpu.memory_space<vmem>>, vector<32x384xf32>
      %c0_12 = arith.constant 0 : index
      %c0_13 = arith.constant 0 : index
      %15 = vector.load %arg5[%c0_12, %c0_13] : memref<1x384xf32, #tpu.memory_space<vmem>>, vector<1x384xf32>
      %16 = vector.broadcast %15 : vector<1x384xf32> to vector<32x384xf32>
      %17 = arith.addf %14, %16 : vector<32x384xf32>
      %c0_14 = arith.constant 0 : index
      %c0_15 = arith.constant 0 : index
      %18 = vector.load %arg6[%c0_14, %c0_15] : memref<32x384xf32, #tpu.memory_space<vmem>>, vector<32x384xf32>
      tpu.vector_store %arg6[%c0_14, %c0_15], %17 {strides = array<i32>} : memref<32x384xf32, #tpu.memory_space<vmem>>, vector<32x384xf32>,
    } else {
    }
    return
  }
  func.func @transform_0(%arg0: i32, %arg1: i32, %arg2: i32) -> (i32, i32) {
    %c0_i32 = arith.constant 0 : i32
    return %arg0, %arg2 : i32, i32
  }
  func.func @transform_1(%arg0: i32, %arg1: i32, %arg2: i32) -> (i32, i32) {
    %c0_i32 = arith.constant 0 : i32
    return %arg2, %arg1 : i32, i32
  }
  func.func @transform_2(%arg0: i32, %arg1: i32, %arg2: i32) -> (i32, i32) {
    %c0_i32 = arith.constant 0 : i32
    %c0_i32_0 = arith.constant 0 : i32
    return %c0_i32, %arg1 : i32, i32
  }
  func.func @transform_3(%arg0: i32, %arg1: i32, %arg2: i32) -> (i32, i32) {
    %c0_i32 = arith.constant 0 : i32
    return %arg0, %arg1 : i32, i32
  }
}

module attributes {stable_mosaic.version = 11 : i64} {
  func.func @_linear_kernel(%arg0: i32, %arg1: i32, %arg2: i32, %arg3: memref<32x256xf32, #tpu.memory_space<vmem>>, %arg4: memref<256x256xf32, #tpu.memory_space<vmem>>, %arg5: memref<1x256xf32, #tpu.memory_space<vmem>>, %arg6: memref<32x256xf32, #tpu.memory_space<vmem>>, %arg7: memref<32x256xf32, #tpu.memory_space<vmem>>) attributes {dimension_semantics = [#tpu.dimension_semantics<parallel>, #tpu.dimension_semantics<parallel>, #tpu.dimension_semantics<arbitrary>], iteration_bounds = array<i64: 1, 1, 1>, scalar_prefetch = 0 : i64, scratch_operands = 1 : i64, tpu.core_type = #tpu.core_type<tc>, window_params = [{transform_indices = @transform_0, window_bounds = array<i64: 32, 256>}, {transform_indices = @transform_1, window_bounds = array<i64: 256, 256>}, {transform_indices = @transform_2, window_bounds = array<i64: 1, 256>}, {transform_indices = @transform_3, window_bounds = array<i64: 32, 256>}]} {
    %c0_i32 = arith.constant 0 : i32
    %0 = arith.cmpi eq, %arg2, %c0_i32 : i32
    %1 = arith.extui %0 : i1 to i32
    %c0_i32_0 = arith.constant 0 : i32
    %2 = arith.cmpi ne, %1, %c0_i32_0 : i32
    scf.if %2 {
      %cst_10 = arith.constant 0.000000e+00 : f32
      %14 = vector.broadcast %cst_10 : f32 to vector<32x256xf32>
      %c0_11 = arith.constant 0 : index
      %c0_12 = arith.constant 0 : index
      %15 = vector.load %arg7[%c0_11, %c0_12] : memref<32x256xf32, #tpu.memory_space<vmem>>, vector<32x256xf32>
      tpu.vector_store %arg7[%c0_11, %c0_12], %14 {strides = array<i32>} : memref<32x256xf32, #tpu.memory_space<vmem>>, vector<32x256xf32>,
    } else {
    }
    %c0 = arith.constant 0 : index
    %c0_1 = arith.constant 0 : index
    %3 = vector.load %arg7[%c0, %c0_1] : memref<32x256xf32, #tpu.memory_space<vmem>>, vector<32x256xf32>
    %c0_2 = arith.constant 0 : index
    %c0_3 = arith.constant 0 : index
    %4 = vector.load %arg3[%c0_2, %c0_3] : memref<32x256xf32, #tpu.memory_space<vmem>>, vector<32x256xf32>
    %5 = arith.truncf %4 : vector<32x256xf32> to vector<32x256xbf16>
    %c0_4 = arith.constant 0 : index
    %c0_5 = arith.constant 0 : index
    %6 = vector.load %arg4[%c0_4, %c0_5] : memref<256x256xf32, #tpu.memory_space<vmem>>, vector<256x256xf32>
    %7 = arith.truncf %6 : vector<256x256xf32> to vector<256x256xbf16>
    %cst = arith.constant dense<0.000000e+00> : vector<32x256xf32>
    %8 = tpu.matmul %5, %7, %cst {dimension_numbers = #tpu.dot_dimension_numbers<[1], [0], [0], [1], [0, 0, 1, 1], [], []>} : vector<32x256xbf16>, vector<256x256xbf16>, vector<32x256xf32> -> vector<32x256xf32>
    %9 = arith.addf %3, %8 : vector<32x256xf32>
    %c0_6 = arith.constant 0 : index
    %c0_7 = arith.constant 0 : index
    %10 = vector.load %arg7[%c0_6, %c0_7] : memref<32x256xf32, #tpu.memory_space<vmem>>, vector<32x256xf32>
    tpu.vector_store %arg7[%c0_6, %c0_7], %9 {strides = array<i32>} : memref<32x256xf32, #tpu.memory_space<vmem>>, vector<32x256xf32>,
    %c0_i32_8 = arith.constant 0 : i32
    %11 = arith.cmpi eq, %arg2, %c0_i32_8 : i32
    %12 = arith.extui %11 : i1 to i32
    %c0_i32_9 = arith.constant 0 : i32
    %13 = arith.cmpi ne, %12, %c0_i32_9 : i32
    scf.if %13 {
      %c0_10 = arith.constant 0 : index
      %c0_11 = arith.constant 0 : index
      %14 = vector.load %arg7[%c0_10, %c0_11] : memref<32x256xf32, #tpu.memory_space<vmem>>, vector<32x256xf32>
      %c0_12 = arith.constant 0 : index
      %c0_13 = arith.constant 0 : index
      %15 = vector.load %arg5[%c0_12, %c0_13] : memref<1x256xf32, #tpu.memory_space<vmem>>, vector<1x256xf32>
      %16 = vector.broadcast %15 : vector<1x256xf32> to vector<32x256xf32>
      %17 = arith.addf %14, %16 : vector<32x256xf32>
      %c0_14 = arith.constant 0 : index
      %c0_15 = arith.constant 0 : index
      %18 = vector.load %arg6[%c0_14, %c0_15] : memref<32x256xf32, #tpu.memory_space<vmem>>, vector<32x256xf32>
      tpu.vector_store %arg6[%c0_14, %c0_15], %17 {strides = array<i32>} : memref<32x256xf32, #tpu.memory_space<vmem>>, vector<32x256xf32>,
    } else {
    }
    return
  }
  func.func @transform_0(%arg0: i32, %arg1: i32, %arg2: i32) -> (i32, i32) {
    %c0_i32 = arith.constant 0 : i32
    return %arg0, %arg2 : i32, i32
  }
  func.func @transform_1(%arg0: i32, %arg1: i32, %arg2: i32) -> (i32, i32) {
    %c0_i32 = arith.constant 0 : i32
    return %arg2, %arg1 : i32, i32
  }
  func.func @transform_2(%arg0: i32, %arg1: i32, %arg2: i32) -> (i32, i32) {
    %c0_i32 = arith.constant 0 : i32
    %c0_i32_0 = arith.constant 0 : i32
    return %c0_i32, %arg1 : i32, i32
  }
  func.func @transform_3(%arg0: i32, %arg1: i32, %arg2: i32) -> (i32, i32) {
    %c0_i32 = arith.constant 0 : i32
    return %arg0, %arg1 : i32, i32
  }
}

module attributes {stable_mosaic.version = 11 : i64} {
  func.func @_linear_ln_kernel(%arg0: i32, %arg1: i32, %arg2: memref<32x256xf32, #tpu.memory_space<vmem>>, %arg3: memref<256x256xf32, #tpu.memory_space<vmem>>, %arg4: memref<1x256xf32, #tpu.memory_space<vmem>>, %arg5: memref<32x256xf32, #tpu.memory_space<vmem>>, %arg6: memref<1x256xf32, #tpu.memory_space<vmem>>, %arg7: memref<1x256xf32, #tpu.memory_space<vmem>>, %arg8: memref<32x256xf32, #tpu.memory_space<vmem>>, %arg9: memref<32x256xf32, #tpu.memory_space<vmem>>) attributes {dimension_semantics = [#tpu.dimension_semantics<parallel>, #tpu.dimension_semantics<arbitrary>], iteration_bounds = array<i64: 1, 1>, scalar_prefetch = 0 : i64, scratch_operands = 1 : i64, tpu.core_type = #tpu.core_type<tc>, window_params = [{transform_indices = @transform_0, window_bounds = array<i64: 32, 256>}, {transform_indices = @transform_1, window_bounds = array<i64: 256, 256>}, {pipeline_mode = #tpu.pipeline_mode<synchronous>, transform_indices = @transform_2, window_bounds = array<i64: 1, 256>}, {transform_indices = @transform_3, window_bounds = array<i64: 32, 256>}, {pipeline_mode = #tpu.pipeline_mode<synchronous>, transform_indices = @transform_4, window_bounds = array<i64: 1, 256>}, {pipeline_mode = #tpu.pipeline_mode<synchronous>, transform_indices = @transform_5, window_bounds = array<i64: 1, 256>}, {transform_indices = @transform_6, window_bounds = array<i64: 32, 256>}]} {
    %c0_i32 = arith.constant 0 : i32
    %0 = arith.cmpi eq, %arg1, %c0_i32 : i32
    %1 = arith.extui %0 : i1 to i32
    %c0_i32_0 = arith.constant 0 : i32
    %2 = arith.cmpi ne, %1, %c0_i32_0 : i32
    scf.if %2 {
      %cst_10 = arith.constant 0.000000e+00 : f32
      %14 = vector.broadcast %cst_10 : f32 to vector<32x256xf32>
      %c0_11 = arith.constant 0 : index
      %c0_12 = arith.constant 0 : index
      %15 = vector.load %arg9[%c0_11, %c0_12] : memref<32x256xf32, #tpu.memory_space<vmem>>, vector<32x256xf32>
      tpu.vector_store %arg9[%c0_11, %c0_12], %14 {strides = array<i32>} : memref<32x256xf32, #tpu.memory_space<vmem>>, vector<32x256xf32>,
    } else {
    }
    %c0 = arith.constant 0 : index
    %c0_1 = arith.constant 0 : index
    %3 = vector.load %arg9[%c0, %c0_1] : memref<32x256xf32, #tpu.memory_space<vmem>>, vector<32x256xf32>
    %c0_2 = arith.constant 0 : index
    %c0_3 = arith.constant 0 : index
    %4 = vector.load %arg2[%c0_2, %c0_3] : memref<32x256xf32, #tpu.memory_space<vmem>>, vector<32x256xf32>
    %5 = arith.truncf %4 : vector<32x256xf32> to vector<32x256xbf16>
    %c0_4 = arith.constant 0 : index
    %c0_5 = arith.constant 0 : index
    %6 = vector.load %arg3[%c0_4, %c0_5] : memref<256x256xf32, #tpu.memory_space<vmem>>, vector<256x256xf32>
    %7 = arith.truncf %6 : vector<256x256xf32> to vector<256x256xbf16>
    %cst = arith.constant dense<0.000000e+00> : vector<32x256xf32>
    %8 = tpu.matmul %5, %7, %cst {dimension_numbers = #tpu.dot_dimension_numbers<[1], [0], [0], [1], [0, 0, 1, 1], [], []>} : vector<32x256xbf16>, vector<256x256xbf16>, vector<32x256xf32> -> vector<32x256xf32>
    %9 = arith.addf %3, %8 : vector<32x256xf32>
    %c0_6 = arith.constant 0 : index
    %c0_7 = arith.constant 0 : index
    %10 = vector.load %arg9[%c0_6, %c0_7] : memref<32x256xf32, #tpu.memory_space<vmem>>, vector<32x256xf32>
    tpu.vector_store %arg9[%c0_6, %c0_7], %9 {strides = array<i32>} : memref<32x256xf32, #tpu.memory_space<vmem>>, vector<32x256xf32>,
    %c0_i32_8 = arith.constant 0 : i32
    %11 = arith.cmpi eq, %arg1, %c0_i32_8 : i32
    %12 = arith.extui %11 : i1 to i32
    %c0_i32_9 = arith.constant 0 : i32
    %13 = arith.cmpi ne, %12, %c0_i32_9 : i32
    scf.if %13 {
      %c0_10 = arith.constant 0 : index
      %c0_11 = arith.constant 0 : index
      %14 = vector.load %arg9[%c0_10, %c0_11] : memref<32x256xf32, #tpu.memory_space<vmem>>, vector<32x256xf32>
      %c0_12 = arith.constant 0 : index
      %c0_13 = arith.constant 0 : index
      %15 = vector.load %arg4[%c0_12, %c0_13] : memref<1x256xf32, #tpu.memory_space<vmem>>, vector<1x256xf32>
      %16 = vector.broadcast %15 : vector<1x256xf32> to vector<32x256xf32>
      %17 = arith.addf %14, %16 : vector<32x256xf32>
      %c0_14 = arith.constant 0 : index
      %c0_15 = arith.constant 0 : index
      %18 = vector.load %arg5[%c0_14, %c0_15] : memref<32x256xf32, #tpu.memory_space<vmem>>, vector<32x256xf32>
      %19 = arith.addf %17, %18 : vector<32x256xf32>
      %cst_16 = arith.constant dense<0.000000e+00> : vector<32xf32>
      %20 = vector.multi_reduction <add>, %19, %cst_16 [1] : vector<32x256xf32> to vector<32xf32>
      %21 = vector.shape_cast %20 : vector<32xf32> to vector<32x1xf32>
      %cst_17 = arith.constant 2.560000e+02 : f32
      %22 = vector.broadcast %cst_17 : f32 to vector<32x1xf32>
      %23 = arith.divf %21, %22 : vector<32x1xf32>
      %24 = vector.broadcast %23 : vector<32x1xf32> to vector<32x256xf32>
      %25 = arith.subf %19, %24 : vector<32x256xf32>
      %26 = arith.mulf %25, %25 : vector<32x256xf32>
      %cst_18 = arith.constant dense<0.000000e+00> : vector<32xf32>
      %27 = vector.multi_reduction <add>, %26, %cst_18 [1] : vector<32x256xf32> to vector<32xf32>
      %28 = vector.shape_cast %27 : vector<32xf32> to vector<32x1xf32>
      %cst_19 = arith.constant 2.560000e+02 : f32
      %29 = vector.broadcast %cst_19 : f32 to vector<32x1xf32>
      %30 = arith.divf %28, %29 : vector<32x1xf32>
      %cst_20 = arith.constant 9.99999974E-6 : f32
      %31 = vector.broadcast %cst_20 : f32 to vector<32x1xf32>
      %32 = arith.addf %30, %31 : vector<32x1xf32>
      %33 = math.rsqrt %32 : vector<32x1xf32>
      %34 = vector.broadcast %33 : vector<32x1xf32> to vector<32x256xf32>
      %35 = arith.mulf %25, %34 : vector<32x256xf32>
      %c0_21 = arith.constant 0 : index
      %c0_22 = arith.constant 0 : index
      %36 = vector.load %arg6[%c0_21, %c0_22] : memref<1x256xf32, #tpu.memory_space<vmem>>, vector<1x256xf32>
      %37 = vector.broadcast %36 : vector<1x256xf32> to vector<32x256xf32>
      %38 = arith.mulf %35, %37 : vector<32x256xf32>
      %c0_23 = arith.constant 0 : index
      %c0_24 = arith.constant 0 : index
      %39 = vector.load %arg7[%c0_23, %c0_24] : memref<1x256xf32, #tpu.memory_space<vmem>>, vector<1x256xf32>
      %40 = vector.broadcast %39 : vector<1x256xf32> to vector<32x256xf32>
      %41 = arith.addf %38, %40 : vector<32x256xf32>
      %c0_25 = arith.constant 0 : index
      %c0_26 = arith.constant 0 : index
      %42 = vector.load %arg8[%c0_25, %c0_26] : memref<32x256xf32, #tpu.memory_space<vmem>>, vector<32x256xf32>
      tpu.vector_store %arg8[%c0_25, %c0_26], %41 {strides = array<i32>} : memref<32x256xf32, #tpu.memory_space<vmem>>, vector<32x256xf32>,
    } else {
    }
    return
  }
  func.func @transform_0(%arg0: i32, %arg1: i32) -> (i32, i32) {
    %c0_i32 = arith.constant 0 : i32
    return %arg0, %arg1 : i32, i32
  }
  func.func @transform_1(%arg0: i32, %arg1: i32) -> (i32, i32) {
    %c0_i32 = arith.constant 0 : i32
    %c0_i32_0 = arith.constant 0 : i32
    return %arg1, %c0_i32 : i32, i32
  }
  func.func @transform_2(%arg0: i32, %arg1: i32) -> (i32, i32) {
    %c0_i32 = arith.constant 0 : i32
    %c0_i32_0 = arith.constant 0 : i32
    %c0_i32_1 = arith.constant 0 : i32
    return %c0_i32, %c0_i32_0 : i32, i32
  }
  func.func @transform_3(%arg0: i32, %arg1: i32) -> (i32, i32) {
    %c0_i32 = arith.constant 0 : i32
    %c0_i32_0 = arith.constant 0 : i32
    return %arg0, %c0_i32 : i32, i32
  }
  func.func @transform_4(%arg0: i32, %arg1: i32) -> (i32, i32) {
    %c0_i32 = arith.constant 0 : i32
    %c0_i32_0 = arith.constant 0 : i32
    %c0_i32_1 = arith.constant 0 : i32
    return %c0_i32, %c0_i32_0 : i32, i32
  }
  func.func @transform_5(%arg0: i32, %arg1: i32) -> (i32, i32) {
    %c0_i32 = arith.constant 0 : i32
    %c0_i32_0 = arith.constant 0 : i32
    %c0_i32_1 = arith.constant 0 : i32
    return %c0_i32, %c0_i32_0 : i32, i32
  }
  func.func @transform_6(%arg0: i32, %arg1: i32) -> (i32, i32) {
    %c0_i32 = arith.constant 0 : i32
    %c0_i32_0 = arith.constant 0 : i32
    return %arg0, %c0_i32 : i32, i32
  }
}

module attributes {stable_mosaic.version = 11 : i64} {
  func.func @_flash_kernel(%arg0: i32, %arg1: i32, %arg2: i32, %arg3: i32, %arg4: memref<1x16x128xf32, #tpu.memory_space<vmem>>, %arg5: memref<1x16x128xf32, #tpu.memory_space<vmem>>, %arg6: memref<1x16x128xf32, #tpu.memory_space<vmem>>, %arg7: memref<1x16x128xf32, #tpu.memory_space<vmem>>, %arg8: memref<16x1xf32, #tpu.memory_space<vmem>>, %arg9: memref<16x1xf32, #tpu.memory_space<vmem>>, %arg10: memref<16x128xf32, #tpu.memory_space<vmem>>) attributes {dimension_semantics = [#tpu.dimension_semantics<parallel>, #tpu.dimension_semantics<parallel>, #tpu.dimension_semantics<parallel>, #tpu.dimension_semantics<arbitrary>], iteration_bounds = array<i64: 2, 2, 1, 1>, scalar_prefetch = 0 : i64, scratch_operands = 3 : i64, tpu.core_type = #tpu.core_type<tc>, window_params = [{transform_indices = @transform_0, window_bounds = array<i64: 1, 16, 128>}, {transform_indices = @transform_1, window_bounds = array<i64: 1, 16, 128>}, {transform_indices = @transform_2, window_bounds = array<i64: 1, 16, 128>}, {transform_indices = @transform_3, window_bounds = array<i64: 1, 16, 128>}]} {
    %c0_i32 = arith.constant 0 : i32
    %0 = arith.cmpi eq, %arg3, %c0_i32 : i32
    %1 = arith.extui %0 : i1 to i32
    %c0_i32_0 = arith.constant 0 : i32
    %2 = arith.cmpi ne, %1, %c0_i32_0 : i32
    scf.if %2 {
      %cst_19 = arith.constant 0xFF800000 : f32
      %34 = vector.broadcast %cst_19 : f32 to vector<16x1xf32>
      %c0_20 = arith.constant 0 : index
      %c0_21 = arith.constant 0 : index
      %35 = vector.load %arg8[%c0_20, %c0_21] : memref<16x1xf32, #tpu.memory_space<vmem>>, vector<16x1xf32>
      tpu.vector_store %arg8[%c0_20, %c0_21], %34 {strides = array<i32>} : memref<16x1xf32, #tpu.memory_space<vmem>>, vector<16x1xf32>,
      %cst_22 = arith.constant 0.000000e+00 : f32
      %36 = vector.broadcast %cst_22 : f32 to vector<16x1xf32>
      %c0_23 = arith.constant 0 : index
      %c0_24 = arith.constant 0 : index
      %37 = vector.load %arg9[%c0_23, %c0_24] : memref<16x1xf32, #tpu.memory_space<vmem>>, vector<16x1xf32>
      tpu.vector_store %arg9[%c0_23, %c0_24], %36 {strides = array<i32>} : memref<16x1xf32, #tpu.memory_space<vmem>>, vector<16x1xf32>,
      %cst_25 = arith.constant 0.000000e+00 : f32
      %38 = vector.broadcast %cst_25 : f32 to vector<16x128xf32>
      %c0_26 = arith.constant 0 : index
      %c0_27 = arith.constant 0 : index
      %39 = vector.load %arg10[%c0_26, %c0_27] : memref<16x128xf32, #tpu.memory_space<vmem>>, vector<16x128xf32>
      tpu.vector_store %arg10[%c0_26, %c0_27], %38 {strides = array<i32>} : memref<16x128xf32, #tpu.memory_space<vmem>>, vector<16x128xf32>,
    } else {
    }
    %c0 = arith.constant 0 : index
    %c0_1 = arith.constant 0 : index
    %c0_2 = arith.constant 0 : index
    %3 = vector.load %arg4[%c0, %c0_1, %c0_2] : memref<1x16x128xf32, #tpu.memory_space<vmem>>, vector<1x16x128xf32>
    %4 = vector.shape_cast %3 : vector<1x16x128xf32> to vector<16x128xf32>
    %cst = arith.constant 0.0883883461 : f32
    %5 = vector.broadcast %cst : f32 to vector<16x128xf32>
    %6 = arith.mulf %4, %5 : vector<16x128xf32>
    %7 = arith.truncf %6 : vector<16x128xf32> to vector<16x128xbf16>
    %c0_3 = arith.constant 0 : index
    %c0_4 = arith.constant 0 : index
    %c0_5 = arith.constant 0 : index
    %8 = vector.load %arg5[%c0_3, %c0_4, %c0_5] : memref<1x16x128xf32, #tpu.memory_space<vmem>>, vector<1x16x128xf32>
    %9 = vector.shape_cast %8 : vector<1x16x128xf32> to vector<16x128xf32>
    %10 = arith.truncf %9 : vector<16x128xf32> to vector<16x128xbf16>
    %c0_6 = arith.constant 0 : index
    %c0_7 = arith.constant 0 : index
    %c0_8 = arith.constant 0 : index
    %11 = vector.load %arg6[%c0_6, %c0_7, %c0_8] : memref<1x16x128xf32, #tpu.memory_space<vmem>>, vector<1x16x128xf32>
    %12 = vector.shape_cast %11 : vector<1x16x128xf32> to vector<16x128xf32>
    %c16_i32 = arith.constant 16 : i32
    %13 = arith.muli %arg2, %c16_i32 : i32
    %c16_i32_9 = arith.constant 16 : i32
    %14 = arith.muli %arg3, %c16_i32_9 : i32
    %c16_i32_10 = arith.constant 16 : i32
    %15 = arith.addi %14, %c16_i32_10 : i32
    %16 = arith.cmpi sle, %15, %13 : i32
    %c16_i32_11 = arith.constant 16 : i32
    %17 = arith.addi %13, %c16_i32_11 : i32
    %c1_i32 = arith.constant 1 : i32
    %18 = arith.subi %17, %c1_i32 : i32
    %19 = arith.cmpi sge, %14, %18 : i32
    %20 = arith.extui %16 : i1 to i32
    %c0_i32_12 = arith.constant 0 : i32
    %21 = arith.cmpi ne, %20, %c0_i32_12 : i32
    scf.if %21 {
      %c0_19 = arith.constant 0 : index
      %c0_20 = arith.constant 0 : index
      %34 = vector.load %arg8[%c0_19, %c0_20] : memref<16x1xf32, #tpu.memory_space<vmem>>, vector<16x1xf32>
      %cst_21 = arith.constant 0.000000e+00 : f32
      %35 = vector.broadcast %cst_21 : f32 to vector<16x1xf32>
      %36 = arith.maximumf %34, %35 : vector<16x1xf32>
      %37 = arith.subf %34, %36 : vector<16x1xf32>
      %38 = math.exp %37 : vector<16x1xf32>
      %cst_22 = arith.constant 0.000000e+00 : f32
      %39 = vector.broadcast %cst_22 : f32 to vector<16x1xf32>
      %40 = arith.subf %39, %36 : vector<16x1xf32>
      %41 = math.exp %40 : vector<16x1xf32>
      %c0_23 = arith.constant 0 : index
      %c0_24 = arith.constant 0 : index
      %42 = vector.load %arg9[%c0_23, %c0_24] : memref<16x1xf32, #tpu.memory_space<vmem>>, vector<16x1xf32>
      %43 = arith.mulf %38, %42 : vector<16x1xf32>
      %cst_25 = arith.constant 1.600000e+01 : f32
      %44 = vector.broadcast %cst_25 : f32 to vector<16x1xf32>
      %45 = arith.mulf %44, %41 : vector<16x1xf32>
      %46 = arith.addf %43, %45 : vector<16x1xf32>
      %c0_26 = arith.constant 0 : index
      %c0_27 = arith.constant 0 : index
      %47 = vector.load %arg9[%c0_26, %c0_27] : memref<16x1xf32, #tpu.memory_space<vmem>>, vector<16x1xf32>
      tpu.vector_store %arg9[%c0_26, %c0_27], %46 {strides = array<i32>} : memref<16x1xf32, #tpu.memory_space<vmem>>, vector<16x1xf32>,
      %cst_28 = arith.constant dense<0.000000e+00> : vector<128xf32>
      %48 = vector.multi_reduction <add>, %12, %cst_28 [0] : vector<16x128xf32> to vector<128xf32>
      %49 = vector.shape_cast %48 : vector<128xf32> to vector<1x128xf32>
      %c0_29 = arith.constant 0 : index
      %c0_30 = arith.constant 0 : index
      %50 = vector.load %arg10[%c0_29, %c0_30] : memref<16x128xf32, #tpu.memory_space<vmem>>, vector<16x128xf32>
      %51 = vector.broadcast %38 : vector<16x1xf32> to vector<16x128xf32>
      %52 = arith.mulf %51, %50 : vector<16x128xf32>
      %53 = vector.broadcast %41 : vector<16x1xf32> to vector<16x128xf32>
      %54 = vector.broadcast %49 : vector<1x128xf32> to vector<16x128xf32>
      %55 = arith.mulf %53, %54 : vector<16x128xf32>
      %56 = arith.addf %52, %55 : vector<16x128xf32>
      %c0_31 = arith.constant 0 : index
      %c0_32 = arith.constant 0 : index
      %57 = vector.load %arg10[%c0_31, %c0_32] : memref<16x128xf32, #tpu.memory_space<vmem>>, vector<16x128xf32>
      tpu.vector_store %arg10[%c0_31, %c0_32], %56 {strides = array<i32>} : memref<16x128xf32, #tpu.memory_space<vmem>>, vector<16x128xf32>,
      %c0_33 = arith.constant 0 : index
      %c0_34 = arith.constant 0 : index
      %58 = vector.load %arg8[%c0_33, %c0_34] : memref<16x1xf32, #tpu.memory_space<vmem>>, vector<16x1xf32>
      tpu.vector_store %arg8[%c0_33, %c0_34], %36 {strides = array<i32>} : memref<16x1xf32, #tpu.memory_space<vmem>>, vector<16x1xf32>,
    } else {
    }
    %true = arith.constant true
    %22 = arith.xori %16, %true : i1
    %23 = arith.andi %22, %19 : i1
    %24 = arith.extui %23 : i1 to i32
    %c0_i32_13 = arith.constant 0 : i32
    %25 = arith.cmpi ne, %24, %c0_i32_13 : i32
    scf.if %25 {
      %34 = tpu.transpose %10, [1, 0] : vector<16x128xbf16> -> vector<128x16xbf16>
      %cst_19 = arith.constant dense<0.000000e+00> : vector<16x16xf32>
      %35 = tpu.matmul %7, %34, %cst_19 {dimension_numbers = #tpu.dot_dimension_numbers<[1], [0], [0], [1], [0, 0, 1, 1], [], []>} : vector<16x128xbf16>, vector<128x16xbf16>, vector<16x16xf32> -> vector<16x16xf32>
      %c0_20 = arith.constant 0 : index
      %c0_21 = arith.constant 0 : index
      %36 = vector.load %arg8[%c0_20, %c0_21] : memref<16x1xf32, #tpu.memory_space<vmem>>, vector<16x1xf32>
      %cst_22 = arith.constant dense<0xFF800000> : vector<16xf32>
      %37 = vector.multi_reduction <maximumf>, %35, %cst_22 [1] : vector<16x16xf32> to vector<16xf32>
      %38 = vector.shape_cast %37 : vector<16xf32> to vector<16x1xf32>
      %39 = arith.maximumf %36, %38 : vector<16x1xf32>
      %40 = arith.subf %36, %39 : vector<16x1xf32>
      %41 = math.exp %40 : vector<16x1xf32>
      %42 = vector.broadcast %39 : vector<16x1xf32> to vector<16x16xf32>
      %43 = arith.subf %35, %42 : vector<16x16xf32>
      %44 = math.exp %43 : vector<16x16xf32>
      %c0_23 = arith.constant 0 : index
      %c0_24 = arith.constant 0 : index
      %45 = vector.load %arg9[%c0_23, %c0_24] : memref<16x1xf32, #tpu.memory_space<vmem>>, vector<16x1xf32>
      %46 = arith.mulf %41, %45 : vector<16x1xf32>
      %cst_25 = arith.constant dense<0.000000e+00> : vector<16xf32>
      %47 = vector.multi_reduction <add>, %44, %cst_25 [1] : vector<16x16xf32> to vector<16xf32>
      %48 = vector.shape_cast %47 : vector<16xf32> to vector<16x1xf32>
      %49 = arith.addf %46, %48 : vector<16x1xf32>
      %c0_26 = arith.constant 0 : index
      %c0_27 = arith.constant 0 : index
      %50 = vector.load %arg9[%c0_26, %c0_27] : memref<16x1xf32, #tpu.memory_space<vmem>>, vector<16x1xf32>
      tpu.vector_store %arg9[%c0_26, %c0_27], %49 {strides = array<i32>} : memref<16x1xf32, #tpu.memory_space<vmem>>, vector<16x1xf32>,
      %c0_28 = arith.constant 0 : index
      %c0_29 = arith.constant 0 : index
      %51 = vector.load %arg10[%c0_28, %c0_29] : memref<16x128xf32, #tpu.memory_space<vmem>>, vector<16x128xf32>
      %52 = vector.broadcast %41 : vector<16x1xf32> to vector<16x128xf32>
      %53 = arith.mulf %52, %51 : vector<16x128xf32>
      %54 = arith.truncf %44 : vector<16x16xf32> to vector<16x16xbf16>
      %55 = arith.truncf %12 : vector<16x128xf32> to vector<16x128xbf16>
      %cst_30 = arith.constant dense<0.000000e+00> : vector<16x128xf32>
      %56 = tpu.matmul %54, %55, %cst_30 {dimension_numbers = #tpu.dot_dimension_numbers<[1], [0], [0], [1], [0, 0, 1, 1], [], []>} : vector<16x16xbf16>, vector<16x128xbf16>, vector<16x128xf32> -> vector<16x128xf32>
      %57 = arith.addf %53, %56 : vector<16x128xf32>
      %c0_31 = arith.constant 0 : index
      %c0_32 = arith.constant 0 : index
      %58 = vector.load %arg10[%c0_31, %c0_32] : memref<16x128xf32, #tpu.memory_space<vmem>>, vector<16x128xf32>
      tpu.vector_store %arg10[%c0_31, %c0_32], %57 {strides = array<i32>} : memref<16x128xf32, #tpu.memory_space<vmem>>, vector<16x128xf32>,
      %c0_33 = arith.constant 0 : index
      %c0_34 = arith.constant 0 : index
      %59 = vector.load %arg8[%c0_33, %c0_34] : memref<16x1xf32, #tpu.memory_space<vmem>>, vector<16x1xf32>
      tpu.vector_store %arg8[%c0_33, %c0_34], %39 {strides = array<i32>} : memref<16x1xf32, #tpu.memory_space<vmem>>, vector<16x1xf32>,
    } else {
    }
    %true_14 = arith.constant true
    %26 = arith.xori %16, %true_14 : i1
    %true_15 = arith.constant true
    %27 = arith.xori %19, %true_15 : i1
    %28 = arith.andi %26, %27 : i1
    %29 = arith.extui %28 : i1 to i32
    %c0_i32_16 = arith.constant 0 : i32
    %30 = arith.cmpi ne, %29, %c0_i32_16 : i32
    scf.if %30 {
      %34 = tpu.transpose %10, [1, 0] : vector<16x128xbf16> -> vector<128x16xbf16>
      %cst_19 = arith.constant dense<0.000000e+00> : vector<16x16xf32>
      %35 = tpu.matmul %7, %34, %cst_19 {dimension_numbers = #tpu.dot_dimension_numbers<[1], [0], [0], [1], [0, 0, 1, 1], [], []>} : vector<16x128xbf16>, vector<128x16xbf16>, vector<16x16xf32> -> vector<16x16xf32>
      %36 = tpu.iota {dimensions = array<i32: 0>} : vector<16x16xi32>
      %37 = vector.broadcast %13 : i32 to vector<16x16xi32>
      %38 = arith.addi %37, %36 : vector<16x16xi32>
      %39 = tpu.iota {dimensions = array<i32: 1>} : vector<16x16xi32>
      %40 = vector.broadcast %14 : i32 to vector<16x16xi32>
      %41 = arith.addi %40, %39 : vector<16x16xi32>
      %42 = arith.cmpi sge, %41, %38 : vector<16x16xi32>
      %cst_20 = arith.constant 0.000000e+00 : f32
      %43 = vector.broadcast %cst_20 : f32 to vector<16x16xf32>
      %44 = arith.select %42, %35, %43 : vector<16x16xi1>, vector<16x16xf32>
      %c0_21 = arith.constant 0 : index
      %c0_22 = arith.constant 0 : index
      %45 = vector.load %arg8[%c0_21, %c0_22] : memref<16x1xf32, #tpu.memory_space<vmem>>, vector<16x1xf32>
      %cst_23 = arith.constant dense<0xFF800000> : vector<16xf32>
      %46 = vector.multi_reduction <maximumf>, %44, %cst_23 [1] : vector<16x16xf32> to vector<16xf32>
      %47 = vector.shape_cast %46 : vector<16xf32> to vector<16x1xf32>
      %48 = arith.maximumf %45, %47 : vector<16x1xf32>
      %49 = arith.subf %45, %48 : vector<16x1xf32>
      %50 = math.exp %49 : vector<16x1xf32>
      %51 = vector.broadcast %48 : vector<16x1xf32> to vector<16x16xf32>
      %52 = arith.subf %44, %51 : vector<16x16xf32>
      %53 = math.exp %52 : vector<16x16xf32>
      %c0_24 = arith.constant 0 : index
      %c0_25 = arith.constant 0 : index
      %54 = vector.load %arg9[%c0_24, %c0_25] : memref<16x1xf32, #tpu.memory_space<vmem>>, vector<16x1xf32>
      %55 = arith.mulf %50, %54 : vector<16x1xf32>
      %cst_26 = arith.constant dense<0.000000e+00> : vector<16xf32>
      %56 = vector.multi_reduction <add>, %53, %cst_26 [1] : vector<16x16xf32> to vector<16xf32>
      %57 = vector.shape_cast %56 : vector<16xf32> to vector<16x1xf32>
      %58 = arith.addf %55, %57 : vector<16x1xf32>
      %c0_27 = arith.constant 0 : index
      %c0_28 = arith.constant 0 : index
      %59 = vector.load %arg9[%c0_27, %c0_28] : memref<16x1xf32, #tpu.memory_space<vmem>>, vector<16x1xf32>
      tpu.vector_store %arg9[%c0_27, %c0_28], %58 {strides = array<i32>} : memref<16x1xf32, #tpu.memory_space<vmem>>, vector<16x1xf32>,
      %c0_29 = arith.constant 0 : index
      %c0_30 = arith.constant 0 : index
      %60 = vector.load %arg10[%c0_29, %c0_30] : memref<16x128xf32, #tpu.memory_space<vmem>>, vector<16x128xf32>
      %61 = vector.broadcast %50 : vector<16x1xf32> to vector<16x128xf32>
      %62 = arith.mulf %61, %60 : vector<16x128xf32>
      %63 = arith.truncf %53 : vector<16x16xf32> to vector<16x16xbf16>
      %64 = arith.truncf %12 : vector<16x128xf32> to vector<16x128xbf16>
      %cst_31 = arith.constant dense<0.000000e+00> : vector<16x128xf32>
      %65 = tpu.matmul %63, %64, %cst_31 {dimension_numbers = #tpu.dot_dimension_numbers<[1], [0], [0], [1], [0, 0, 1, 1], [], []>} : vector<16x16xbf16>, vector<16x128xbf16>, vector<16x128xf32> -> vector<16x128xf32>
      %66 = arith.addf %62, %65 : vector<16x128xf32>
      %c0_32 = arith.constant 0 : index
      %c0_33 = arith.constant 0 : index
      %67 = vector.load %arg10[%c0_32, %c0_33] : memref<16x128xf32, #tpu.memory_space<vmem>>, vector<16x128xf32>
      tpu.vector_store %arg10[%c0_32, %c0_33], %66 {strides = array<i32>} : memref<16x128xf32, #tpu.memory_space<vmem>>, vector<16x128xf32>,
      %c0_34 = arith.constant 0 : index
      %c0_35 = arith.constant 0 : index
      %68 = vector.load %arg8[%c0_34, %c0_35] : memref<16x1xf32, #tpu.memory_space<vmem>>, vector<16x1xf32>
      tpu.vector_store %arg8[%c0_34, %c0_35], %48 {strides = array<i32>} : memref<16x1xf32, #tpu.memory_space<vmem>>, vector<16x1xf32>,
    } else {
    }
    %c0_i32_17 = arith.constant 0 : i32
    %31 = arith.cmpi eq, %arg3, %c0_i32_17 : i32
    %32 = arith.extui %31 : i1 to i32
    %c0_i32_18 = arith.constant 0 : i32
    %33 = arith.cmpi ne, %32, %c0_i32_18 : i32
    scf.if %33 {
      %c0_19 = arith.constant 0 : index
      %c0_20 = arith.constant 0 : index
      %34 = vector.load %arg9[%c0_19, %c0_20] : memref<16x1xf32, #tpu.memory_space<vmem>>, vector<16x1xf32>
      %35 = tpu.reciprocal %34 {approx = true} : vector<16x1xf32> -> vector<16x1xf32>
      %c0_21 = arith.constant 0 : index
      %c0_22 = arith.constant 0 : index
      %36 = vector.load %arg10[%c0_21, %c0_22] : memref<16x128xf32, #tpu.memory_space<vmem>>, vector<16x128xf32>
      %37 = vector.broadcast %35 : vector<16x1xf32> to vector<16x128xf32>
      %38 = arith.mulf %36, %37 : vector<16x128xf32>
      %c0_23 = arith.constant 0 : index
      %c0_24 = arith.constant 0 : index
      %c0_25 = arith.constant 0 : index
      %39 = vector.load %arg7[%c0_23, %c0_24, %c0_25] : memref<1x16x128xf32, #tpu.memory_space<vmem>>, vector<1x16x128xf32>
      %40 = vector.shape_cast %39 : vector<1x16x128xf32> to vector<16x128xf32>
      %41 = vector.shape_cast %38 : vector<16x128xf32> to vector<1x16x128xf32>
      tpu.vector_store %arg7[%c0_23, %c0_24, %c0_25], %41 {strides = array<i32>} : memref<1x16x128xf32, #tpu.memory_space<vmem>>, vector<1x16x128xf32>,
    } else {
    }
    return
  }
  func.func @transform_0(%arg0: i32, %arg1: i32, %arg2: i32, %arg3: i32) -> (i32, i32, i32) {
    %c0_i32 = arith.constant 0 : i32
    %0 = arith.addi %c0_i32, %arg1 : i32
    %c0_i32_0 = arith.constant 0 : i32
    return %arg0, %arg2, %0 : i32, i32, i32
  }
  func.func @transform_1(%arg0: i32, %arg1: i32, %arg2: i32, %arg3: i32) -> (i32, i32, i32) {
    %c2_i32 = arith.constant 2 : i32
    %0 = arith.addi %c2_i32, %arg1 : i32
    %c0_i32 = arith.constant 0 : i32
    return %arg0, %arg3, %0 : i32, i32, i32
  }
  func.func @transform_2(%arg0: i32, %arg1: i32, %arg2: i32, %arg3: i32) -> (i32, i32, i32) {
    %c4_i32 = arith.constant 4 : i32
    %0 = arith.addi %c4_i32, %arg1 : i32
    %c0_i32 = arith.constant 0 : i32
    return %arg0, %arg3, %0 : i32, i32, i32
  }
  func.func @transform_3(%arg0: i32, %arg1: i32, %arg2: i32, %arg3: i32) -> (i32, i32, i32) {
    %c0_i32 = arith.constant 0 : i32
    return %arg0, %arg2, %arg1 : i32, i32, i32
  }
}

module attributes {stable_mosaic.version = 11 : i64} {
  func.func @_flash_kernel(%arg0: i32, %arg1: i32, %arg2: i32, %arg3: i32, %arg4: memref<1x16x128xf32, #tpu.memory_space<vmem>>, %arg5: memref<1x16x128xf32, #tpu.memory_space<vmem>>, %arg6: memref<1x16x128xf32, #tpu.memory_space<vmem>>, %arg7: memref<1x16x128xf32, #tpu.memory_space<vmem>>, %arg8: memref<16x1xf32, #tpu.memory_space<vmem>>, %arg9: memref<16x1xf32, #tpu.memory_space<vmem>>, %arg10: memref<16x128xf32, #tpu.memory_space<vmem>>) attributes {dimension_semantics = [#tpu.dimension_semantics<parallel>, #tpu.dimension_semantics<parallel>, #tpu.dimension_semantics<parallel>, #tpu.dimension_semantics<arbitrary>], iteration_bounds = array<i64: 2, 2, 1, 1>, scalar_prefetch = 0 : i64, scratch_operands = 3 : i64, tpu.core_type = #tpu.core_type<tc>, window_params = [{transform_indices = @transform_0, window_bounds = array<i64: 1, 16, 128>}, {transform_indices = @transform_1, window_bounds = array<i64: 1, 16, 128>}, {transform_indices = @transform_2, window_bounds = array<i64: 1, 16, 128>}, {transform_indices = @transform_3, window_bounds = array<i64: 1, 16, 128>}]} {
    %c0_i32 = arith.constant 0 : i32
    %0 = arith.cmpi eq, %arg3, %c0_i32 : i32
    %1 = arith.extui %0 : i1 to i32
    %c0_i32_0 = arith.constant 0 : i32
    %2 = arith.cmpi ne, %1, %c0_i32_0 : i32
    scf.if %2 {
      %cst_27 = arith.constant 0xFF800000 : f32
      %42 = vector.broadcast %cst_27 : f32 to vector<16x1xf32>
      %c0_28 = arith.constant 0 : index
      %c0_29 = arith.constant 0 : index
      %43 = vector.load %arg8[%c0_28, %c0_29] : memref<16x1xf32, #tpu.memory_space<vmem>>, vector<16x1xf32>
      tpu.vector_store %arg8[%c0_28, %c0_29], %42 {strides = array<i32>} : memref<16x1xf32, #tpu.memory_space<vmem>>, vector<16x1xf32>,
      %cst_30 = arith.constant 0.000000e+00 : f32
      %44 = vector.broadcast %cst_30 : f32 to vector<16x1xf32>
      %c0_31 = arith.constant 0 : index
      %c0_32 = arith.constant 0 : index
      %45 = vector.load %arg9[%c0_31, %c0_32] : memref<16x1xf32, #tpu.memory_space<vmem>>, vector<16x1xf32>
      tpu.vector_store %arg9[%c0_31, %c0_32], %44 {strides = array<i32>} : memref<16x1xf32, #tpu.memory_space<vmem>>, vector<16x1xf32>,
      %cst_33 = arith.constant 0.000000e+00 : f32
      %46 = vector.broadcast %cst_33 : f32 to vector<16x128xf32>
      %c0_34 = arith.constant 0 : index
      %c0_35 = arith.constant 0 : index
      %47 = vector.load %arg10[%c0_34, %c0_35] : memref<16x128xf32, #tpu.memory_space<vmem>>, vector<16x128xf32>
      tpu.vector_store %arg10[%c0_34, %c0_35], %46 {strides = array<i32>} : memref<16x128xf32, #tpu.memory_space<vmem>>, vector<16x128xf32>,
    } else {
    }
    %c0 = arith.constant 0 : index
    %c0_1 = arith.constant 0 : index
    %c0_2 = arith.constant 0 : index
    %3 = vector.load %arg4[%c0, %c0_1, %c0_2] : memref<1x16x128xf32, #tpu.memory_space<vmem>>, vector<1x16x128xf32>
    %4 = vector.shape_cast %3 : vector<1x16x128xf32> to vector<16x128xf32>
    %cst = arith.constant 0.0883883461 : f32
    %5 = vector.broadcast %cst : f32 to vector<16x128xf32>
    %6 = arith.mulf %4, %5 : vector<16x128xf32>
    %7 = arith.truncf %6 : vector<16x128xf32> to vector<16x128xbf16>
    %c0_3 = arith.constant 0 : index
    %c0_4 = arith.constant 0 : index
    %c0_5 = arith.constant 0 : index
    %8 = vector.load %arg5[%c0_3, %c0_4, %c0_5] : memref<1x16x128xf32, #tpu.memory_space<vmem>>, vector<1x16x128xf32>
    %9 = vector.shape_cast %8 : vector<1x16x128xf32> to vector<16x128xf32>
    %10 = arith.truncf %9 : vector<16x128xf32> to vector<16x128xbf16>
    %c0_6 = arith.constant 0 : index
    %c0_7 = arith.constant 0 : index
    %c0_8 = arith.constant 0 : index
    %11 = vector.load %arg6[%c0_6, %c0_7, %c0_8] : memref<1x16x128xf32, #tpu.memory_space<vmem>>, vector<1x16x128xf32>
    %12 = vector.shape_cast %11 : vector<1x16x128xf32> to vector<16x128xf32>
    %13 = tpu.transpose %10, [1, 0] : vector<16x128xbf16> -> vector<128x16xbf16>
    %cst_9 = arith.constant dense<0.000000e+00> : vector<16x16xf32>
    %14 = tpu.matmul %7, %13, %cst_9 {dimension_numbers = #tpu.dot_dimension_numbers<[1], [0], [0], [1], [0, 0, 1, 1], [], []>} : vector<16x128xbf16>, vector<128x16xbf16>, vector<16x16xf32> -> vector<16x16xf32>
    %c0_10 = arith.constant 0 : index
    %c0_11 = arith.constant 0 : index
    %15 = vector.load %arg8[%c0_10, %c0_11] : memref<16x1xf32, #tpu.memory_space<vmem>>, vector<16x1xf32>
    %cst_12 = arith.constant dense<0xFF800000> : vector<16xf32>
    %16 = vector.multi_reduction <maximumf>, %14, %cst_12 [1] : vector<16x16xf32> to vector<16xf32>
    %17 = vector.shape_cast %16 : vector<16xf32> to vector<16x1xf32>
    %18 = arith.maximumf %15, %17 : vector<16x1xf32>
    %19 = arith.subf %15, %18 : vector<16x1xf32>
    %20 = math.exp %19 : vector<16x1xf32>
    %21 = vector.broadcast %18 : vector<16x1xf32> to vector<16x16xf32>
    %22 = arith.subf %14, %21 : vector<16x16xf32>
    %23 = math.exp %22 : vector<16x16xf32>
    %c0_13 = arith.constant 0 : index
    %c0_14 = arith.constant 0 : index
    %24 = vector.load %arg9[%c0_13, %c0_14] : memref<16x1xf32, #tpu.memory_space<vmem>>, vector<16x1xf32>
    %25 = arith.mulf %20, %24 : vector<16x1xf32>
    %cst_15 = arith.constant dense<0.000000e+00> : vector<16xf32>
    %26 = vector.multi_reduction <add>, %23, %cst_15 [1] : vector<16x16xf32> to vector<16xf32>
    %27 = vector.shape_cast %26 : vector<16xf32> to vector<16x1xf32>
    %28 = arith.addf %25, %27 : vector<16x1xf32>
    %c0_16 = arith.constant 0 : index
    %c0_17 = arith.constant 0 : index
    %29 = vector.load %arg9[%c0_16, %c0_17] : memref<16x1xf32, #tpu.memory_space<vmem>>, vector<16x1xf32>
    tpu.vector_store %arg9[%c0_16, %c0_17], %28 {strides = array<i32>} : memref<16x1xf32, #tpu.memory_space<vmem>>, vector<16x1xf32>,
    %c0_18 = arith.constant 0 : index
    %c0_19 = arith.constant 0 : index
    %30 = vector.load %arg10[%c0_18, %c0_19] : memref<16x128xf32, #tpu.memory_space<vmem>>, vector<16x128xf32>
    %31 = vector.broadcast %20 : vector<16x1xf32> to vector<16x128xf32>
    %32 = arith.mulf %31, %30 : vector<16x128xf32>
    %33 = arith.truncf %23 : vector<16x16xf32> to vector<16x16xbf16>
    %34 = arith.truncf %12 : vector<16x128xf32> to vector<16x128xbf16>
    %cst_20 = arith.constant dense<0.000000e+00> : vector<16x128xf32>
    %35 = tpu.matmul %33, %34, %cst_20 {dimension_numbers = #tpu.dot_dimension_numbers<[1], [0], [0], [1], [0, 0, 1, 1], [], []>} : vector<16x16xbf16>, vector<16x128xbf16>, vector<16x128xf32> -> vector<16x128xf32>
    %36 = arith.addf %32, %35 : vector<16x128xf32>
    %c0_21 = arith.constant 0 : index
    %c0_22 = arith.constant 0 : index
    %37 = vector.load %arg10[%c0_21, %c0_22] : memref<16x128xf32, #tpu.memory_space<vmem>>, vector<16x128xf32>
    tpu.vector_store %arg10[%c0_21, %c0_22], %36 {strides = array<i32>} : memref<16x128xf32, #tpu.memory_space<vmem>>, vector<16x128xf32>,
    %c0_23 = arith.constant 0 : index
    %c0_24 = arith.constant 0 : index
    %38 = vector.load %arg8[%c0_23, %c0_24] : memref<16x1xf32, #tpu.memory_space<vmem>>, vector<16x1xf32>
    tpu.vector_store %arg8[%c0_23, %c0_24], %18 {strides = array<i32>} : memref<16x1xf32, #tpu.memory_space<vmem>>, vector<16x1xf32>,
    %c0_i32_25 = arith.constant 0 : i32
    %39 = arith.cmpi eq, %arg3, %c0_i32_25 : i32
    %40 = arith.extui %39 : i1 to i32
    %c0_i32_26 = arith.constant 0 : i32
    %41 = arith.cmpi ne, %40, %c0_i32_26 : i32
    scf.if %41 {
      %c0_27 = arith.constant 0 : index
      %c0_28 = arith.constant 0 : index
      %42 = vector.load %arg9[%c0_27, %c0_28] : memref<16x1xf32, #tpu.memory_space<vmem>>, vector<16x1xf32>
      %43 = tpu.reciprocal %42 {approx = true} : vector<16x1xf32> -> vector<16x1xf32>
      %c0_29 = arith.constant 0 : index
      %c0_30 = arith.constant 0 : index
      %44 = vector.load %arg10[%c0_29, %c0_30] : memref<16x128xf32, #tpu.memory_space<vmem>>, vector<16x128xf32>
      %45 = vector.broadcast %43 : vector<16x1xf32> to vector<16x128xf32>
      %46 = arith.mulf %44, %45 : vector<16x128xf32>
      %c0_31 = arith.constant 0 : index
      %c0_32 = arith.constant 0 : index
      %c0_33 = arith.constant 0 : index
      %47 = vector.load %arg7[%c0_31, %c0_32, %c0_33] : memref<1x16x128xf32, #tpu.memory_space<vmem>>, vector<1x16x128xf32>
      %48 = vector.shape_cast %47 : vector<1x16x128xf32> to vector<16x128xf32>
      %49 = vector.shape_cast %46 : vector<16x128xf32> to vector<1x16x128xf32>
      tpu.vector_store %arg7[%c0_31, %c0_32, %c0_33], %49 {strides = array<i32>} : memref<1x16x128xf32, #tpu.memory_space<vmem>>, vector<1x16x128xf32>,
    } else {
    }
    return
  }
  func.func @transform_0(%arg0: i32, %arg1: i32, %arg2: i32, %arg3: i32) -> (i32, i32, i32) {
    %c0_i32 = arith.constant 0 : i32
    %0 = arith.addi %c0_i32, %arg1 : i32
    %c0_i32_0 = arith.constant 0 : i32
    return %arg0, %arg2, %0 : i32, i32, i32
  }
  func.func @transform_1(%arg0: i32, %arg1: i32, %arg2: i32, %arg3: i32) -> (i32, i32, i32) {
    %c2_i32 = arith.constant 2 : i32
    %0 = arith.addi %c2_i32, %arg1 : i32
    %c0_i32 = arith.constant 0 : i32
    return %arg0, %arg3, %0 : i32, i32, i32
  }
  func.func @transform_2(%arg0: i32, %arg1: i32, %arg2: i32, %arg3: i32) -> (i32, i32, i32) {
    %c4_i32 = arith.constant 4 : i32
    %0 = arith.addi %c4_i32, %arg1 : i32
    %c0_i32 = arith.constant 0 : i32
    return %arg0, %arg3, %0 : i32, i32, i32
  }
  func.func @transform_3(%arg0: i32, %arg1: i32, %arg2: i32, %arg3: i32) -> (i32, i32, i32) {
    %c0_i32 = arith.constant 0 : i32
    return %arg0, %arg2, %arg1 : i32, i32, i32
  }
}

module attributes {stable_mosaic.version = 11 : i64} {
  func.func @_linear_ln_kernel(%arg0: i32, %arg1: i32, %arg2: memref<32x256xf32, #tpu.memory_space<vmem>>, %arg3: memref<256x256xf32, #tpu.memory_space<vmem>>, %arg4: memref<1x256xf32, #tpu.memory_space<vmem>>, %arg5: memref<32x256xf32, #tpu.memory_space<vmem>>, %arg6: memref<1x256xf32, #tpu.memory_space<vmem>>, %arg7: memref<1x256xf32, #tpu.memory_space<vmem>>, %arg8: memref<32x256xf32, #tpu.memory_space<vmem>>, %arg9: memref<32x256xf32, #tpu.memory_space<vmem>>) attributes {dimension_semantics = [#tpu.dimension_semantics<parallel>, #tpu.dimension_semantics<arbitrary>], iteration_bounds = array<i64: 1, 1>, scalar_prefetch = 0 : i64, scratch_operands = 1 : i64, tpu.core_type = #tpu.core_type<tc>, window_params = [{transform_indices = @transform_0, window_bounds = array<i64: 32, 256>}, {transform_indices = @transform_1, window_bounds = array<i64: 256, 256>}, {pipeline_mode = #tpu.pipeline_mode<synchronous>, transform_indices = @transform_2, window_bounds = array<i64: 1, 256>}, {transform_indices = @transform_3, window_bounds = array<i64: 32, 256>}, {pipeline_mode = #tpu.pipeline_mode<synchronous>, transform_indices = @transform_4, window_bounds = array<i64: 1, 256>}, {pipeline_mode = #tpu.pipeline_mode<synchronous>, transform_indices = @transform_5, window_bounds = array<i64: 1, 256>}, {transform_indices = @transform_6, window_bounds = array<i64: 32, 256>}]} {
    %c0_i32 = arith.constant 0 : i32
    %0 = arith.cmpi eq, %arg1, %c0_i32 : i32
    %1 = arith.extui %0 : i1 to i32
    %c0_i32_0 = arith.constant 0 : i32
    %2 = arith.cmpi ne, %1, %c0_i32_0 : i32
    scf.if %2 {
      %cst_10 = arith.constant 0.000000e+00 : f32
      %14 = vector.broadcast %cst_10 : f32 to vector<32x256xf32>
      %c0_11 = arith.constant 0 : index
      %c0_12 = arith.constant 0 : index
      %15 = vector.load %arg9[%c0_11, %c0_12] : memref<32x256xf32, #tpu.memory_space<vmem>>, vector<32x256xf32>
      tpu.vector_store %arg9[%c0_11, %c0_12], %14 {strides = array<i32>} : memref<32x256xf32, #tpu.memory_space<vmem>>, vector<32x256xf32>,
    } else {
    }
    %c0 = arith.constant 0 : index
    %c0_1 = arith.constant 0 : index
    %3 = vector.load %arg9[%c0, %c0_1] : memref<32x256xf32, #tpu.memory_space<vmem>>, vector<32x256xf32>
    %c0_2 = arith.constant 0 : index
    %c0_3 = arith.constant 0 : index
    %4 = vector.load %arg2[%c0_2, %c0_3] : memref<32x256xf32, #tpu.memory_space<vmem>>, vector<32x256xf32>
    %5 = arith.truncf %4 : vector<32x256xf32> to vector<32x256xbf16>
    %c0_4 = arith.constant 0 : index
    %c0_5 = arith.constant 0 : index
    %6 = vector.load %arg3[%c0_4, %c0_5] : memref<256x256xf32, #tpu.memory_space<vmem>>, vector<256x256xf32>
    %7 = arith.truncf %6 : vector<256x256xf32> to vector<256x256xbf16>
    %cst = arith.constant dense<0.000000e+00> : vector<32x256xf32>
    %8 = tpu.matmul %5, %7, %cst {dimension_numbers = #tpu.dot_dimension_numbers<[1], [0], [0], [1], [0, 0, 1, 1], [], []>} : vector<32x256xbf16>, vector<256x256xbf16>, vector<32x256xf32> -> vector<32x256xf32>
    %9 = arith.addf %3, %8 : vector<32x256xf32>
    %c0_6 = arith.constant 0 : index
    %c0_7 = arith.constant 0 : index
    %10 = vector.load %arg9[%c0_6, %c0_7] : memref<32x256xf32, #tpu.memory_space<vmem>>, vector<32x256xf32>
    tpu.vector_store %arg9[%c0_6, %c0_7], %9 {strides = array<i32>} : memref<32x256xf32, #tpu.memory_space<vmem>>, vector<32x256xf32>,
    %c0_i32_8 = arith.constant 0 : i32
    %11 = arith.cmpi eq, %arg1, %c0_i32_8 : i32
    %12 = arith.extui %11 : i1 to i32
    %c0_i32_9 = arith.constant 0 : i32
    %13 = arith.cmpi ne, %12, %c0_i32_9 : i32
    scf.if %13 {
      %c0_10 = arith.constant 0 : index
      %c0_11 = arith.constant 0 : index
      %14 = vector.load %arg9[%c0_10, %c0_11] : memref<32x256xf32, #tpu.memory_space<vmem>>, vector<32x256xf32>
      %c0_12 = arith.constant 0 : index
      %c0_13 = arith.constant 0 : index
      %15 = vector.load %arg4[%c0_12, %c0_13] : memref<1x256xf32, #tpu.memory_space<vmem>>, vector<1x256xf32>
      %16 = vector.broadcast %15 : vector<1x256xf32> to vector<32x256xf32>
      %17 = arith.addf %14, %16 : vector<32x256xf32>
      %c0_14 = arith.constant 0 : index
      %c0_15 = arith.constant 0 : index
      %18 = vector.load %arg5[%c0_14, %c0_15] : memref<32x256xf32, #tpu.memory_space<vmem>>, vector<32x256xf32>
      %19 = arith.addf %17, %18 : vector<32x256xf32>
      %cst_16 = arith.constant dense<0.000000e+00> : vector<32xf32>
      %20 = vector.multi_reduction <add>, %19, %cst_16 [1] : vector<32x256xf32> to vector<32xf32>
      %21 = vector.shape_cast %20 : vector<32xf32> to vector<32x1xf32>
      %cst_17 = arith.constant 2.560000e+02 : f32
      %22 = vector.broadcast %cst_17 : f32 to vector<32x1xf32>
      %23 = arith.divf %21, %22 : vector<32x1xf32>
      %24 = vector.broadcast %23 : vector<32x1xf32> to vector<32x256xf32>
      %25 = arith.subf %19, %24 : vector<32x256xf32>
      %26 = arith.mulf %25, %25 : vector<32x256xf32>
      %cst_18 = arith.constant dense<0.000000e+00> : vector<32xf32>
      %27 = vector.multi_reduction <add>, %26, %cst_18 [1] : vector<32x256xf32> to vector<32xf32>
      %28 = vector.shape_cast %27 : vector<32xf32> to vector<32x1xf32>
      %cst_19 = arith.constant 2.560000e+02 : f32
      %29 = vector.broadcast %cst_19 : f32 to vector<32x1xf32>
      %30 = arith.divf %28, %29 : vector<32x1xf32>
      %cst_20 = arith.constant 9.99999974E-6 : f32
      %31 = vector.broadcast %cst_20 : f32 to vector<32x1xf32>
      %32 = arith.addf %30, %31 : vector<32x1xf32>
      %33 = math.rsqrt %32 : vector<32x1xf32>
      %34 = vector.broadcast %33 : vector<32x1xf32> to vector<32x256xf32>
      %35 = arith.mulf %25, %34 : vector<32x256xf32>
      %c0_21 = arith.constant 0 : index
      %c0_22 = arith.constant 0 : index
      %36 = vector.load %arg6[%c0_21, %c0_22] : memref<1x256xf32, #tpu.memory_space<vmem>>, vector<1x256xf32>
      %37 = vector.broadcast %36 : vector<1x256xf32> to vector<32x256xf32>
      %38 = arith.mulf %35, %37 : vector<32x256xf32>
      %c0_23 = arith.constant 0 : index
      %c0_24 = arith.constant 0 : index
      %39 = vector.load %arg7[%c0_23, %c0_24] : memref<1x256xf32, #tpu.memory_space<vmem>>, vector<1x256xf32>
      %40 = vector.broadcast %39 : vector<1x256xf32> to vector<32x256xf32>
      %41 = arith.addf %38, %40 : vector<32x256xf32>
      %c0_25 = arith.constant 0 : index
      %c0_26 = arith.constant 0 : index
      %42 = vector.load %arg8[%c0_25, %c0_26] : memref<32x256xf32, #tpu.memory_space<vmem>>, vector<32x256xf32>
      tpu.vector_store %arg8[%c0_25, %c0_26], %41 {strides = array<i32>} : memref<32x256xf32, #tpu.memory_space<vmem>>, vector<32x256xf32>,
    } else {
    }
    return
  }
  func.func @transform_0(%arg0: i32, %arg1: i32) -> (i32, i32) {
    %c0_i32 = arith.constant 0 : i32
    return %arg0, %arg1 : i32, i32
  }
  func.func @transform_1(%arg0: i32, %arg1: i32) -> (i32, i32) {
    %c0_i32 = arith.constant 0 : i32
    %c0_i32_0 = arith.constant 0 : i32
    return %arg1, %c0_i32 : i32, i32
  }
  func.func @transform_2(%arg0: i32, %arg1: i32) -> (i32, i32) {
    %c0_i32 = arith.constant 0 : i32
    %c0_i32_0 = arith.constant 0 : i32
    %c0_i32_1 = arith.constant 0 : i32
    return %c0_i32, %c0_i32_0 : i32, i32
  }
  func.func @transform_3(%arg0: i32, %arg1: i32) -> (i32, i32) {
    %c0_i32 = arith.constant 0 : i32
    %c0_i32_0 = arith.constant 0 : i32
    return %arg0, %c0_i32 : i32, i32
  }
  func.func @transform_4(%arg0: i32, %arg1: i32) -> (i32, i32) {
    %c0_i32 = arith.constant 0 : i32
    %c0_i32_0 = arith.constant 0 : i32
    %c0_i32_1 = arith.constant 0 : i32
    return %c0_i32, %c0_i32_0 : i32, i32
  }
  func.func @transform_5(%arg0: i32, %arg1: i32) -> (i32, i32) {
    %c0_i32 = arith.constant 0 : i32
    %c0_i32_0 = arith.constant 0 : i32
    %c0_i32_1 = arith.constant 0 : i32
    return %c0_i32, %c0_i32_0 : i32, i32
  }
  func.func @transform_6(%arg0: i32, %arg1: i32) -> (i32, i32) {
    %c0_i32 = arith.constant 0 : i32
    %c0_i32_0 = arith.constant 0 : i32
    return %arg0, %c0_i32 : i32, i32
  }
}

module attributes {stable_mosaic.version = 11 : i64} {
  func.func @_linear_kernel(%arg0: i32, %arg1: i32, %arg2: i32, %arg3: memref<32x256xf32, #tpu.memory_space<vmem>>, %arg4: memref<256x512xf32, #tpu.memory_space<vmem>>, %arg5: memref<1x512xf32, #tpu.memory_space<vmem>>, %arg6: memref<32x512xf32, #tpu.memory_space<vmem>>, %arg7: memref<32x512xf32, #tpu.memory_space<vmem>>) attributes {dimension_semantics = [#tpu.dimension_semantics<parallel>, #tpu.dimension_semantics<parallel>, #tpu.dimension_semantics<arbitrary>], iteration_bounds = array<i64: 1, 1, 1>, scalar_prefetch = 0 : i64, scratch_operands = 1 : i64, tpu.core_type = #tpu.core_type<tc>, window_params = [{transform_indices = @transform_0, window_bounds = array<i64: 32, 256>}, {transform_indices = @transform_1, window_bounds = array<i64: 256, 512>}, {transform_indices = @transform_2, window_bounds = array<i64: 1, 512>}, {transform_indices = @transform_3, window_bounds = array<i64: 32, 512>}]} {
    %c0_i32 = arith.constant 0 : i32
    %0 = arith.cmpi eq, %arg2, %c0_i32 : i32
    %1 = arith.extui %0 : i1 to i32
    %c0_i32_0 = arith.constant 0 : i32
    %2 = arith.cmpi ne, %1, %c0_i32_0 : i32
    scf.if %2 {
      %cst_10 = arith.constant 0.000000e+00 : f32
      %14 = vector.broadcast %cst_10 : f32 to vector<32x512xf32>
      %c0_11 = arith.constant 0 : index
      %c0_12 = arith.constant 0 : index
      %15 = vector.load %arg7[%c0_11, %c0_12] : memref<32x512xf32, #tpu.memory_space<vmem>>, vector<32x512xf32>
      tpu.vector_store %arg7[%c0_11, %c0_12], %14 {strides = array<i32>} : memref<32x512xf32, #tpu.memory_space<vmem>>, vector<32x512xf32>,
    } else {
    }
    %c0 = arith.constant 0 : index
    %c0_1 = arith.constant 0 : index
    %3 = vector.load %arg7[%c0, %c0_1] : memref<32x512xf32, #tpu.memory_space<vmem>>, vector<32x512xf32>
    %c0_2 = arith.constant 0 : index
    %c0_3 = arith.constant 0 : index
    %4 = vector.load %arg3[%c0_2, %c0_3] : memref<32x256xf32, #tpu.memory_space<vmem>>, vector<32x256xf32>
    %5 = arith.truncf %4 : vector<32x256xf32> to vector<32x256xbf16>
    %c0_4 = arith.constant 0 : index
    %c0_5 = arith.constant 0 : index
    %6 = vector.load %arg4[%c0_4, %c0_5] : memref<256x512xf32, #tpu.memory_space<vmem>>, vector<256x512xf32>
    %7 = arith.truncf %6 : vector<256x512xf32> to vector<256x512xbf16>
    %cst = arith.constant dense<0.000000e+00> : vector<32x512xf32>
    %8 = tpu.matmul %5, %7, %cst {dimension_numbers = #tpu.dot_dimension_numbers<[1], [0], [0], [1], [0, 0, 1, 1], [], []>} : vector<32x256xbf16>, vector<256x512xbf16>, vector<32x512xf32> -> vector<32x512xf32>
    %9 = arith.addf %3, %8 : vector<32x512xf32>
    %c0_6 = arith.constant 0 : index
    %c0_7 = arith.constant 0 : index
    %10 = vector.load %arg7[%c0_6, %c0_7] : memref<32x512xf32, #tpu.memory_space<vmem>>, vector<32x512xf32>
    tpu.vector_store %arg7[%c0_6, %c0_7], %9 {strides = array<i32>} : memref<32x512xf32, #tpu.memory_space<vmem>>, vector<32x512xf32>,
    %c0_i32_8 = arith.constant 0 : i32
    %11 = arith.cmpi eq, %arg2, %c0_i32_8 : i32
    %12 = arith.extui %11 : i1 to i32
    %c0_i32_9 = arith.constant 0 : i32
    %13 = arith.cmpi ne, %12, %c0_i32_9 : i32
    scf.if %13 {
      %c0_10 = arith.constant 0 : index
      %c0_11 = arith.constant 0 : index
      %14 = vector.load %arg7[%c0_10, %c0_11] : memref<32x512xf32, #tpu.memory_space<vmem>>, vector<32x512xf32>
      %c0_12 = arith.constant 0 : index
      %c0_13 = arith.constant 0 : index
      %15 = vector.load %arg5[%c0_12, %c0_13] : memref<1x512xf32, #tpu.memory_space<vmem>>, vector<1x512xf32>
      %16 = vector.broadcast %15 : vector<1x512xf32> to vector<32x512xf32>
      %17 = arith.addf %14, %16 : vector<32x512xf32>
      %cst_14 = arith.constant 0.000000e+00 : f32
      %18 = vector.broadcast %cst_14 : f32 to vector<32x512xf32>
      %19 = arith.maximumf %17, %18 : vector<32x512xf32>
      %c0_15 = arith.constant 0 : index
      %c0_16 = arith.constant 0 : index
      %20 = vector.load %arg6[%c0_15, %c0_16] : memref<32x512xf32, #tpu.memory_space<vmem>>, vector<32x512xf32>
      tpu.vector_store %arg6[%c0_15, %c0_16], %19 {strides = array<i32>} : memref<32x512xf32, #tpu.memory_space<vmem>>, vector<32x512xf32>,
    } else {
    }
    return
  }
  func.func @transform_0(%arg0: i32, %arg1: i32, %arg2: i32) -> (i32, i32) {
    %c0_i32 = arith.constant 0 : i32
    return %arg0, %arg2 : i32, i32
  }
  func.func @transform_1(%arg0: i32, %arg1: i32, %arg2: i32) -> (i32, i32) {
    %c0_i32 = arith.constant 0 : i32
    return %arg2, %arg1 : i32, i32
  }
  func.func @transform_2(%arg0: i32, %arg1: i32, %arg2: i32) -> (i32, i32) {
    %c0_i32 = arith.constant 0 : i32
    %c0_i32_0 = arith.constant 0 : i32
    return %c0_i32, %arg1 : i32, i32
  }
  func.func @transform_3(%arg0: i32, %arg1: i32, %arg2: i32) -> (i32, i32) {
    %c0_i32 = arith.constant 0 : i32
    return %arg0, %arg1 : i32, i32
  }
}

module attributes {stable_mosaic.version = 11 : i64} {
  func.func @_linear_ln_kernel(%arg0: i32, %arg1: i32, %arg2: memref<32x512xf32, #tpu.memory_space<vmem>>, %arg3: memref<512x256xf32, #tpu.memory_space<vmem>>, %arg4: memref<1x256xf32, #tpu.memory_space<vmem>>, %arg5: memref<32x256xf32, #tpu.memory_space<vmem>>, %arg6: memref<1x256xf32, #tpu.memory_space<vmem>>, %arg7: memref<1x256xf32, #tpu.memory_space<vmem>>, %arg8: memref<32x256xf32, #tpu.memory_space<vmem>>, %arg9: memref<32x256xf32, #tpu.memory_space<vmem>>) attributes {dimension_semantics = [#tpu.dimension_semantics<parallel>, #tpu.dimension_semantics<arbitrary>], iteration_bounds = array<i64: 1, 1>, scalar_prefetch = 0 : i64, scratch_operands = 1 : i64, tpu.core_type = #tpu.core_type<tc>, window_params = [{transform_indices = @transform_0, window_bounds = array<i64: 32, 512>}, {transform_indices = @transform_1, window_bounds = array<i64: 512, 256>}, {pipeline_mode = #tpu.pipeline_mode<synchronous>, transform_indices = @transform_2, window_bounds = array<i64: 1, 256>}, {transform_indices = @transform_3, window_bounds = array<i64: 32, 256>}, {pipeline_mode = #tpu.pipeline_mode<synchronous>, transform_indices = @transform_4, window_bounds = array<i64: 1, 256>}, {pipeline_mode = #tpu.pipeline_mode<synchronous>, transform_indices = @transform_5, window_bounds = array<i64: 1, 256>}, {transform_indices = @transform_6, window_bounds = array<i64: 32, 256>}]} {
    %c0_i32 = arith.constant 0 : i32
    %0 = arith.cmpi eq, %arg1, %c0_i32 : i32
    %1 = arith.extui %0 : i1 to i32
    %c0_i32_0 = arith.constant 0 : i32
    %2 = arith.cmpi ne, %1, %c0_i32_0 : i32
    scf.if %2 {
      %cst_10 = arith.constant 0.000000e+00 : f32
      %14 = vector.broadcast %cst_10 : f32 to vector<32x256xf32>
      %c0_11 = arith.constant 0 : index
      %c0_12 = arith.constant 0 : index
      %15 = vector.load %arg9[%c0_11, %c0_12] : memref<32x256xf32, #tpu.memory_space<vmem>>, vector<32x256xf32>
      tpu.vector_store %arg9[%c0_11, %c0_12], %14 {strides = array<i32>} : memref<32x256xf32, #tpu.memory_space<vmem>>, vector<32x256xf32>,
    } else {
    }
    %c0 = arith.constant 0 : index
    %c0_1 = arith.constant 0 : index
    %3 = vector.load %arg9[%c0, %c0_1] : memref<32x256xf32, #tpu.memory_space<vmem>>, vector<32x256xf32>
    %c0_2 = arith.constant 0 : index
    %c0_3 = arith.constant 0 : index
    %4 = vector.load %arg2[%c0_2, %c0_3] : memref<32x512xf32, #tpu.memory_space<vmem>>, vector<32x512xf32>
    %5 = arith.truncf %4 : vector<32x512xf32> to vector<32x512xbf16>
    %c0_4 = arith.constant 0 : index
    %c0_5 = arith.constant 0 : index
    %6 = vector.load %arg3[%c0_4, %c0_5] : memref<512x256xf32, #tpu.memory_space<vmem>>, vector<512x256xf32>
    %7 = arith.truncf %6 : vector<512x256xf32> to vector<512x256xbf16>
    %cst = arith.constant dense<0.000000e+00> : vector<32x256xf32>
    %8 = tpu.matmul %5, %7, %cst {dimension_numbers = #tpu.dot_dimension_numbers<[1], [0], [0], [1], [0, 0, 1, 1], [], []>} : vector<32x512xbf16>, vector<512x256xbf16>, vector<32x256xf32> -> vector<32x256xf32>
    %9 = arith.addf %3, %8 : vector<32x256xf32>
    %c0_6 = arith.constant 0 : index
    %c0_7 = arith.constant 0 : index
    %10 = vector.load %arg9[%c0_6, %c0_7] : memref<32x256xf32, #tpu.memory_space<vmem>>, vector<32x256xf32>
    tpu.vector_store %arg9[%c0_6, %c0_7], %9 {strides = array<i32>} : memref<32x256xf32, #tpu.memory_space<vmem>>, vector<32x256xf32>,
    %c0_i32_8 = arith.constant 0 : i32
    %11 = arith.cmpi eq, %arg1, %c0_i32_8 : i32
    %12 = arith.extui %11 : i1 to i32
    %c0_i32_9 = arith.constant 0 : i32
    %13 = arith.cmpi ne, %12, %c0_i32_9 : i32
    scf.if %13 {
      %c0_10 = arith.constant 0 : index
      %c0_11 = arith.constant 0 : index
      %14 = vector.load %arg9[%c0_10, %c0_11] : memref<32x256xf32, #tpu.memory_space<vmem>>, vector<32x256xf32>
      %c0_12 = arith.constant 0 : index
      %c0_13 = arith.constant 0 : index
      %15 = vector.load %arg4[%c0_12, %c0_13] : memref<1x256xf32, #tpu.memory_space<vmem>>, vector<1x256xf32>
      %16 = vector.broadcast %15 : vector<1x256xf32> to vector<32x256xf32>
      %17 = arith.addf %14, %16 : vector<32x256xf32>
      %c0_14 = arith.constant 0 : index
      %c0_15 = arith.constant 0 : index
      %18 = vector.load %arg5[%c0_14, %c0_15] : memref<32x256xf32, #tpu.memory_space<vmem>>, vector<32x256xf32>
      %19 = arith.addf %17, %18 : vector<32x256xf32>
      %cst_16 = arith.constant dense<0.000000e+00> : vector<32xf32>
      %20 = vector.multi_reduction <add>, %19, %cst_16 [1] : vector<32x256xf32> to vector<32xf32>
      %21 = vector.shape_cast %20 : vector<32xf32> to vector<32x1xf32>
      %cst_17 = arith.constant 2.560000e+02 : f32
      %22 = vector.broadcast %cst_17 : f32 to vector<32x1xf32>
      %23 = arith.divf %21, %22 : vector<32x1xf32>
      %24 = vector.broadcast %23 : vector<32x1xf32> to vector<32x256xf32>
      %25 = arith.subf %19, %24 : vector<32x256xf32>
      %26 = arith.mulf %25, %25 : vector<32x256xf32>
      %cst_18 = arith.constant dense<0.000000e+00> : vector<32xf32>
      %27 = vector.multi_reduction <add>, %26, %cst_18 [1] : vector<32x256xf32> to vector<32xf32>
      %28 = vector.shape_cast %27 : vector<32xf32> to vector<32x1xf32>
      %cst_19 = arith.constant 2.560000e+02 : f32
      %29 = vector.broadcast %cst_19 : f32 to vector<32x1xf32>
      %30 = arith.divf %28, %29 : vector<32x1xf32>
      %cst_20 = arith.constant 9.99999974E-6 : f32
      %31 = vector.broadcast %cst_20 : f32 to vector<32x1xf32>
      %32 = arith.addf %30, %31 : vector<32x1xf32>
      %33 = math.rsqrt %32 : vector<32x1xf32>
      %34 = vector.broadcast %33 : vector<32x1xf32> to vector<32x256xf32>
      %35 = arith.mulf %25, %34 : vector<32x256xf32>
      %c0_21 = arith.constant 0 : index
      %c0_22 = arith.constant 0 : index
      %36 = vector.load %arg6[%c0_21, %c0_22] : memref<1x256xf32, #tpu.memory_space<vmem>>, vector<1x256xf32>
      %37 = vector.broadcast %36 : vector<1x256xf32> to vector<32x256xf32>
      %38 = arith.mulf %35, %37 : vector<32x256xf32>
      %c0_23 = arith.constant 0 : index
      %c0_24 = arith.constant 0 : index
      %39 = vector.load %arg7[%c0_23, %c0_24] : memref<1x256xf32, #tpu.memory_space<vmem>>, vector<1x256xf32>
      %40 = vector.broadcast %39 : vector<1x256xf32> to vector<32x256xf32>
      %41 = arith.addf %38, %40 : vector<32x256xf32>
      %c0_25 = arith.constant 0 : index
      %c0_26 = arith.constant 0 : index
      %42 = vector.load %arg8[%c0_25, %c0_26] : memref<32x256xf32, #tpu.memory_space<vmem>>, vector<32x256xf32>
      tpu.vector_store %arg8[%c0_25, %c0_26], %41 {strides = array<i32>} : memref<32x256xf32, #tpu.memory_space<vmem>>, vector<32x256xf32>,
    } else {
    }
    return
  }
  func.func @transform_0(%arg0: i32, %arg1: i32) -> (i32, i32) {
    %c0_i32 = arith.constant 0 : i32
    return %arg0, %arg1 : i32, i32
  }
  func.func @transform_1(%arg0: i32, %arg1: i32) -> (i32, i32) {
    %c0_i32 = arith.constant 0 : i32
    %c0_i32_0 = arith.constant 0 : i32
    return %arg1, %c0_i32 : i32, i32
  }
  func.func @transform_2(%arg0: i32, %arg1: i32) -> (i32, i32) {
    %c0_i32 = arith.constant 0 : i32
    %c0_i32_0 = arith.constant 0 : i32
    %c0_i32_1 = arith.constant 0 : i32
    return %c0_i32, %c0_i32_0 : i32, i32
  }
  func.func @transform_3(%arg0: i32, %arg1: i32) -> (i32, i32) {
    %c0_i32 = arith.constant 0 : i32
    %c0_i32_0 = arith.constant 0 : i32
    return %arg0, %c0_i32 : i32, i32
  }
  func.func @transform_4(%arg0: i32, %arg1: i32) -> (i32, i32) {
    %c0_i32 = arith.constant 0 : i32
    %c0_i32_0 = arith.constant 0 : i32
    %c0_i32_1 = arith.constant 0 : i32
    return %c0_i32, %c0_i32_0 : i32, i32
  }
  func.func @transform_5(%arg0: i32, %arg1: i32) -> (i32, i32) {
    %c0_i32 = arith.constant 0 : i32
    %c0_i32_0 = arith.constant 0 : i32
    %c0_i32_1 = arith.constant 0 : i32
    return %c0_i32, %c0_i32_0 : i32, i32
  }
  func.func @transform_6(%arg0: i32, %arg1: i32) -> (i32, i32) {
    %c0_i32 = arith.constant 0 : i32
    %c0_i32_0 = arith.constant 0 : i32
    return %arg0, %c0_i32 : i32, i32
  }
}

module attributes {stable_mosaic.version = 11 : i64} {
  func.func @_linear_kernel(%arg0: i32, %arg1: i32, %arg2: i32, %arg3: memref<32x256xf32, #tpu.memory_space<vmem>>, %arg4: memref<256x512xf32, #tpu.memory_space<vmem>>, %arg5: memref<1x512xf32, #tpu.memory_space<vmem>>, %arg6: memref<32x512xf32, #tpu.memory_space<vmem>>, %arg7: memref<32x512xf32, #tpu.memory_space<vmem>>) attributes {dimension_semantics = [#tpu.dimension_semantics<parallel>, #tpu.dimension_semantics<parallel>, #tpu.dimension_semantics<arbitrary>], iteration_bounds = array<i64: 1, 1, 1>, scalar_prefetch = 0 : i64, scratch_operands = 1 : i64, tpu.core_type = #tpu.core_type<tc>, window_params = [{transform_indices = @transform_0, window_bounds = array<i64: 32, 256>}, {transform_indices = @transform_1, window_bounds = array<i64: 256, 512>}, {transform_indices = @transform_2, window_bounds = array<i64: 1, 512>}, {transform_indices = @transform_3, window_bounds = array<i64: 32, 512>}]} {
    %c0_i32 = arith.constant 0 : i32
    %0 = arith.cmpi eq, %arg2, %c0_i32 : i32
    %1 = arith.extui %0 : i1 to i32
    %c0_i32_0 = arith.constant 0 : i32
    %2 = arith.cmpi ne, %1, %c0_i32_0 : i32
    scf.if %2 {
      %cst_10 = arith.constant 0.000000e+00 : f32
      %14 = vector.broadcast %cst_10 : f32 to vector<32x512xf32>
      %c0_11 = arith.constant 0 : index
      %c0_12 = arith.constant 0 : index
      %15 = vector.load %arg7[%c0_11, %c0_12] : memref<32x512xf32, #tpu.memory_space<vmem>>, vector<32x512xf32>
      tpu.vector_store %arg7[%c0_11, %c0_12], %14 {strides = array<i32>} : memref<32x512xf32, #tpu.memory_space<vmem>>, vector<32x512xf32>,
    } else {
    }
    %c0 = arith.constant 0 : index
    %c0_1 = arith.constant 0 : index
    %3 = vector.load %arg7[%c0, %c0_1] : memref<32x512xf32, #tpu.memory_space<vmem>>, vector<32x512xf32>
    %c0_2 = arith.constant 0 : index
    %c0_3 = arith.constant 0 : index
    %4 = vector.load %arg3[%c0_2, %c0_3] : memref<32x256xf32, #tpu.memory_space<vmem>>, vector<32x256xf32>
    %5 = arith.truncf %4 : vector<32x256xf32> to vector<32x256xbf16>
    %c0_4 = arith.constant 0 : index
    %c0_5 = arith.constant 0 : index
    %6 = vector.load %arg4[%c0_4, %c0_5] : memref<256x512xf32, #tpu.memory_space<vmem>>, vector<256x512xf32>
    %7 = arith.truncf %6 : vector<256x512xf32> to vector<256x512xbf16>
    %cst = arith.constant dense<0.000000e+00> : vector<32x512xf32>
    %8 = tpu.matmul %5, %7, %cst {dimension_numbers = #tpu.dot_dimension_numbers<[1], [0], [0], [1], [0, 0, 1, 1], [], []>} : vector<32x256xbf16>, vector<256x512xbf16>, vector<32x512xf32> -> vector<32x512xf32>
    %9 = arith.addf %3, %8 : vector<32x512xf32>
    %c0_6 = arith.constant 0 : index
    %c0_7 = arith.constant 0 : index
    %10 = vector.load %arg7[%c0_6, %c0_7] : memref<32x512xf32, #tpu.memory_space<vmem>>, vector<32x512xf32>
    tpu.vector_store %arg7[%c0_6, %c0_7], %9 {strides = array<i32>} : memref<32x512xf32, #tpu.memory_space<vmem>>, vector<32x512xf32>,
    %c0_i32_8 = arith.constant 0 : i32
    %11 = arith.cmpi eq, %arg2, %c0_i32_8 : i32
    %12 = arith.extui %11 : i1 to i32
    %c0_i32_9 = arith.constant 0 : i32
    %13 = arith.cmpi ne, %12, %c0_i32_9 : i32
    scf.if %13 {
      %c0_10 = arith.constant 0 : index
      %c0_11 = arith.constant 0 : index
      %14 = vector.load %arg7[%c0_10, %c0_11] : memref<32x512xf32, #tpu.memory_space<vmem>>, vector<32x512xf32>
      %c0_12 = arith.constant 0 : index
      %c0_13 = arith.constant 0 : index
      %15 = vector.load %arg5[%c0_12, %c0_13] : memref<1x512xf32, #tpu.memory_space<vmem>>, vector<1x512xf32>
      %16 = vector.broadcast %15 : vector<1x512xf32> to vector<32x512xf32>
      %17 = arith.addf %14, %16 : vector<32x512xf32>
      %cst_14 = arith.constant 0.000000e+00 : f32
      %18 = vector.broadcast %cst_14 : f32 to vector<32x512xf32>
      %19 = arith.maximumf %17, %18 : vector<32x512xf32>
      %c0_15 = arith.constant 0 : index
      %c0_16 = arith.constant 0 : index
      %20 = vector.load %arg6[%c0_15, %c0_16] : memref<32x512xf32, #tpu.memory_space<vmem>>, vector<32x512xf32>
      tpu.vector_store %arg6[%c0_15, %c0_16], %19 {strides = array<i32>} : memref<32x512xf32, #tpu.memory_space<vmem>>, vector<32x512xf32>,
    } else {
    }
    return
  }
  func.func @transform_0(%arg0: i32, %arg1: i32, %arg2: i32) -> (i32, i32) {
    %c0_i32 = arith.constant 0 : i32
    return %arg0, %arg2 : i32, i32
  }
  func.func @transform_1(%arg0: i32, %arg1: i32, %arg2: i32) -> (i32, i32) {
    %c0_i32 = arith.constant 0 : i32
    return %arg2, %arg1 : i32, i32
  }
  func.func @transform_2(%arg0: i32, %arg1: i32, %arg2: i32) -> (i32, i32) {
    %c0_i32 = arith.constant 0 : i32
    %c0_i32_0 = arith.constant 0 : i32
    return %c0_i32, %arg1 : i32, i32
  }
  func.func @transform_3(%arg0: i32, %arg1: i32, %arg2: i32) -> (i32, i32) {
    %c0_i32 = arith.constant 0 : i32
    return %arg0, %arg1 : i32, i32
  }
}

module attributes {stable_mosaic.version = 11 : i64} {
  func.func @_linear_kernel(%arg0: i32, %arg1: i32, %arg2: i32, %arg3: memref<32x256xf32, #tpu.memory_space<vmem>>, %arg4: memref<256x512xf32, #tpu.memory_space<vmem>>, %arg5: memref<1x512xf32, #tpu.memory_space<vmem>>, %arg6: memref<32x512xf32, #tpu.memory_space<vmem>>, %arg7: memref<32x512xf32, #tpu.memory_space<vmem>>) attributes {dimension_semantics = [#tpu.dimension_semantics<parallel>, #tpu.dimension_semantics<parallel>, #tpu.dimension_semantics<arbitrary>], iteration_bounds = array<i64: 1, 1, 1>, scalar_prefetch = 0 : i64, scratch_operands = 1 : i64, tpu.core_type = #tpu.core_type<tc>, window_params = [{transform_indices = @transform_0, window_bounds = array<i64: 32, 256>}, {transform_indices = @transform_1, window_bounds = array<i64: 256, 512>}, {transform_indices = @transform_2, window_bounds = array<i64: 1, 512>}, {transform_indices = @transform_3, window_bounds = array<i64: 32, 512>}]} {
    %c0_i32 = arith.constant 0 : i32
    %0 = arith.cmpi eq, %arg2, %c0_i32 : i32
    %1 = arith.extui %0 : i1 to i32
    %c0_i32_0 = arith.constant 0 : i32
    %2 = arith.cmpi ne, %1, %c0_i32_0 : i32
    scf.if %2 {
      %cst_10 = arith.constant 0.000000e+00 : f32
      %14 = vector.broadcast %cst_10 : f32 to vector<32x512xf32>
      %c0_11 = arith.constant 0 : index
      %c0_12 = arith.constant 0 : index
      %15 = vector.load %arg7[%c0_11, %c0_12] : memref<32x512xf32, #tpu.memory_space<vmem>>, vector<32x512xf32>
      tpu.vector_store %arg7[%c0_11, %c0_12], %14 {strides = array<i32>} : memref<32x512xf32, #tpu.memory_space<vmem>>, vector<32x512xf32>,
    } else {
    }
    %c0 = arith.constant 0 : index
    %c0_1 = arith.constant 0 : index
    %3 = vector.load %arg7[%c0, %c0_1] : memref<32x512xf32, #tpu.memory_space<vmem>>, vector<32x512xf32>
    %c0_2 = arith.constant 0 : index
    %c0_3 = arith.constant 0 : index
    %4 = vector.load %arg3[%c0_2, %c0_3] : memref<32x256xf32, #tpu.memory_space<vmem>>, vector<32x256xf32>
    %5 = arith.truncf %4 : vector<32x256xf32> to vector<32x256xbf16>
    %c0_4 = arith.constant 0 : index
    %c0_5 = arith.constant 0 : index
    %6 = vector.load %arg4[%c0_4, %c0_5] : memref<256x512xf32, #tpu.memory_space<vmem>>, vector<256x512xf32>
    %7 = arith.truncf %6 : vector<256x512xf32> to vector<256x512xbf16>
    %cst = arith.constant dense<0.000000e+00> : vector<32x512xf32>
    %8 = tpu.matmul %5, %7, %cst {dimension_numbers = #tpu.dot_dimension_numbers<[1], [0], [0], [1], [0, 0, 1, 1], [], []>} : vector<32x256xbf16>, vector<256x512xbf16>, vector<32x512xf32> -> vector<32x512xf32>
    %9 = arith.addf %3, %8 : vector<32x512xf32>
    %c0_6 = arith.constant 0 : index
    %c0_7 = arith.constant 0 : index
    %10 = vector.load %arg7[%c0_6, %c0_7] : memref<32x512xf32, #tpu.memory_space<vmem>>, vector<32x512xf32>
    tpu.vector_store %arg7[%c0_6, %c0_7], %9 {strides = array<i32>} : memref<32x512xf32, #tpu.memory_space<vmem>>, vector<32x512xf32>,
    %c0_i32_8 = arith.constant 0 : i32
    %11 = arith.cmpi eq, %arg2, %c0_i32_8 : i32
    %12 = arith.extui %11 : i1 to i32
    %c0_i32_9 = arith.constant 0 : i32
    %13 = arith.cmpi ne, %12, %c0_i32_9 : i32
    scf.if %13 {
      %c0_10 = arith.constant 0 : index
      %c0_11 = arith.constant 0 : index
      %14 = vector.load %arg7[%c0_10, %c0_11] : memref<32x512xf32, #tpu.memory_space<vmem>>, vector<32x512xf32>
      %c0_12 = arith.constant 0 : index
      %c0_13 = arith.constant 0 : index
      %15 = vector.load %arg5[%c0_12, %c0_13] : memref<1x512xf32, #tpu.memory_space<vmem>>, vector<1x512xf32>
      %16 = vector.broadcast %15 : vector<1x512xf32> to vector<32x512xf32>
      %17 = arith.addf %14, %16 : vector<32x512xf32>
      %c0_14 = arith.constant 0 : index
      %c0_15 = arith.constant 0 : index
      %18 = vector.load %arg6[%c0_14, %c0_15] : memref<32x512xf32, #tpu.memory_space<vmem>>, vector<32x512xf32>
      tpu.vector_store %arg6[%c0_14, %c0_15], %17 {strides = array<i32>} : memref<32x512xf32, #tpu.memory_space<vmem>>, vector<32x512xf32>,
    } else {
    }
    return
  }
  func.func @transform_0(%arg0: i32, %arg1: i32, %arg2: i32) -> (i32, i32) {
    %c0_i32 = arith.constant 0 : i32
    return %arg0, %arg2 : i32, i32
  }
  func.func @transform_1(%arg0: i32, %arg1: i32, %arg2: i32) -> (i32, i32) {
    %c0_i32 = arith.constant 0 : i32
    return %arg2, %arg1 : i32, i32
  }
  func.func @transform_2(%arg0: i32, %arg1: i32, %arg2: i32) -> (i32, i32) {
    %c0_i32 = arith.constant 0 : i32
    %c0_i32_0 = arith.constant 0 : i32
    return %c0_i32, %arg1 : i32, i32
  }
  func.func @transform_3(%arg0: i32, %arg1: i32, %arg2: i32) -> (i32, i32) {
    %c0_i32 = arith.constant 0 : i32
    return %arg0, %arg1 : i32, i32
  }
}

module attributes {stable_mosaic.version = 11 : i64} {
  func.func @_flash_kernel(%arg0: i32, %arg1: i32, %arg2: i32, %arg3: i32, %arg4: memref<1x16x128xf32, #tpu.memory_space<vmem>>, %arg5: memref<1x16x128xf32, #tpu.memory_space<vmem>>, %arg6: memref<1x16x128xf32, #tpu.memory_space<vmem>>, %arg7: memref<1x16x128xf32, #tpu.memory_space<vmem>>, %arg8: memref<16x1xf32, #tpu.memory_space<vmem>>, %arg9: memref<16x1xf32, #tpu.memory_space<vmem>>, %arg10: memref<16x128xf32, #tpu.memory_space<vmem>>) attributes {dimension_semantics = [#tpu.dimension_semantics<parallel>, #tpu.dimension_semantics<parallel>, #tpu.dimension_semantics<parallel>, #tpu.dimension_semantics<arbitrary>], iteration_bounds = array<i64: 2, 2, 1, 1>, scalar_prefetch = 0 : i64, scratch_operands = 3 : i64, tpu.core_type = #tpu.core_type<tc>, window_params = [{transform_indices = @transform_0, window_bounds = array<i64: 1, 16, 128>}, {transform_indices = @transform_1, window_bounds = array<i64: 1, 16, 128>}, {transform_indices = @transform_2, window_bounds = array<i64: 1, 16, 128>}, {transform_indices = @transform_3, window_bounds = array<i64: 1, 16, 128>}]} {
    %c0_i32 = arith.constant 0 : i32
    %0 = arith.cmpi eq, %arg3, %c0_i32 : i32
    %1 = arith.extui %0 : i1 to i32
    %c0_i32_0 = arith.constant 0 : i32
    %2 = arith.cmpi ne, %1, %c0_i32_0 : i32
    scf.if %2 {
      %cst_27 = arith.constant 0xFF800000 : f32
      %42 = vector.broadcast %cst_27 : f32 to vector<16x1xf32>
      %c0_28 = arith.constant 0 : index
      %c0_29 = arith.constant 0 : index
      %43 = vector.load %arg8[%c0_28, %c0_29] : memref<16x1xf32, #tpu.memory_space<vmem>>, vector<16x1xf32>
      tpu.vector_store %arg8[%c0_28, %c0_29], %42 {strides = array<i32>} : memref<16x1xf32, #tpu.memory_space<vmem>>, vector<16x1xf32>,
      %cst_30 = arith.constant 0.000000e+00 : f32
      %44 = vector.broadcast %cst_30 : f32 to vector<16x1xf32>
      %c0_31 = arith.constant 0 : index
      %c0_32 = arith.constant 0 : index
      %45 = vector.load %arg9[%c0_31, %c0_32] : memref<16x1xf32, #tpu.memory_space<vmem>>, vector<16x1xf32>
      tpu.vector_store %arg9[%c0_31, %c0_32], %44 {strides = array<i32>} : memref<16x1xf32, #tpu.memory_space<vmem>>, vector<16x1xf32>,
      %cst_33 = arith.constant 0.000000e+00 : f32
      %46 = vector.broadcast %cst_33 : f32 to vector<16x128xf32>
      %c0_34 = arith.constant 0 : index
      %c0_35 = arith.constant 0 : index
      %47 = vector.load %arg10[%c0_34, %c0_35] : memref<16x128xf32, #tpu.memory_space<vmem>>, vector<16x128xf32>
      tpu.vector_store %arg10[%c0_34, %c0_35], %46 {strides = array<i32>} : memref<16x128xf32, #tpu.memory_space<vmem>>, vector<16x128xf32>,
    } else {
    }
    %c0 = arith.constant 0 : index
    %c0_1 = arith.constant 0 : index
    %c0_2 = arith.constant 0 : index
    %3 = vector.load %arg4[%c0, %c0_1, %c0_2] : memref<1x16x128xf32, #tpu.memory_space<vmem>>, vector<1x16x128xf32>
    %4 = vector.shape_cast %3 : vector<1x16x128xf32> to vector<16x128xf32>
    %cst = arith.constant 0.0883883461 : f32
    %5 = vector.broadcast %cst : f32 to vector<16x128xf32>
    %6 = arith.mulf %4, %5 : vector<16x128xf32>
    %7 = arith.truncf %6 : vector<16x128xf32> to vector<16x128xbf16>
    %c0_3 = arith.constant 0 : index
    %c0_4 = arith.constant 0 : index
    %c0_5 = arith.constant 0 : index
    %8 = vector.load %arg5[%c0_3, %c0_4, %c0_5] : memref<1x16x128xf32, #tpu.memory_space<vmem>>, vector<1x16x128xf32>
    %9 = vector.shape_cast %8 : vector<1x16x128xf32> to vector<16x128xf32>
    %10 = arith.truncf %9 : vector<16x128xf32> to vector<16x128xbf16>
    %c0_6 = arith.constant 0 : index
    %c0_7 = arith.constant 0 : index
    %c0_8 = arith.constant 0 : index
    %11 = vector.load %arg6[%c0_6, %c0_7, %c0_8] : memref<1x16x128xf32, #tpu.memory_space<vmem>>, vector<1x16x128xf32>
    %12 = vector.shape_cast %11 : vector<1x16x128xf32> to vector<16x128xf32>
    %13 = tpu.transpose %10, [1, 0] : vector<16x128xbf16> -> vector<128x16xbf16>
    %cst_9 = arith.constant dense<0.000000e+00> : vector<16x16xf32>
    %14 = tpu.matmul %7, %13, %cst_9 {dimension_numbers = #tpu.dot_dimension_numbers<[1], [0], [0], [1], [0, 0, 1, 1], [], []>} : vector<16x128xbf16>, vector<128x16xbf16>, vector<16x16xf32> -> vector<16x16xf32>
    %c0_10 = arith.constant 0 : index
    %c0_11 = arith.constant 0 : index
    %15 = vector.load %arg8[%c0_10, %c0_11] : memref<16x1xf32, #tpu.memory_space<vmem>>, vector<16x1xf32>
    %cst_12 = arith.constant dense<0xFF800000> : vector<16xf32>
    %16 = vector.multi_reduction <maximumf>, %14, %cst_12 [1] : vector<16x16xf32> to vector<16xf32>
    %17 = vector.shape_cast %16 : vector<16xf32> to vector<16x1xf32>
    %18 = arith.maximumf %15, %17 : vector<16x1xf32>
    %19 = arith.subf %15, %18 : vector<16x1xf32>
    %20 = math.exp %19 : vector<16x1xf32>
    %21 = vector.broadcast %18 : vector<16x1xf32> to vector<16x16xf32>
    %22 = arith.subf %14, %21 : vector<16x16xf32>
    %23 = math.exp %22 : vector<16x16xf32>
    %c0_13 = arith.constant 0 : index
    %c0_14 = arith.constant 0 : index
    %24 = vector.load %arg9[%c0_13, %c0_14] : memref<16x1xf32, #tpu.memory_space<vmem>>, vector<16x1xf32>
    %25 = arith.mulf %20, %24 : vector<16x1xf32>
    %cst_15 = arith.constant dense<0.000000e+00> : vector<16xf32>
    %26 = vector.multi_reduction <add>, %23, %cst_15 [1] : vector<16x16xf32> to vector<16xf32>
    %27 = vector.shape_cast %26 : vector<16xf32> to vector<16x1xf32>
    %28 = arith.addf %25, %27 : vector<16x1xf32>
    %c0_16 = arith.constant 0 : index
    %c0_17 = arith.constant 0 : index
    %29 = vector.load %arg9[%c0_16, %c0_17] : memref<16x1xf32, #tpu.memory_space<vmem>>, vector<16x1xf32>
    tpu.vector_store %arg9[%c0_16, %c0_17], %28 {strides = array<i32>} : memref<16x1xf32, #tpu.memory_space<vmem>>, vector<16x1xf32>,
    %c0_18 = arith.constant 0 : index
    %c0_19 = arith.constant 0 : index
    %30 = vector.load %arg10[%c0_18, %c0_19] : memref<16x128xf32, #tpu.memory_space<vmem>>, vector<16x128xf32>
    %31 = vector.broadcast %20 : vector<16x1xf32> to vector<16x128xf32>
    %32 = arith.mulf %31, %30 : vector<16x128xf32>
    %33 = arith.truncf %23 : vector<16x16xf32> to vector<16x16xbf16>
    %34 = arith.truncf %12 : vector<16x128xf32> to vector<16x128xbf16>
    %cst_20 = arith.constant dense<0.000000e+00> : vector<16x128xf32>
    %35 = tpu.matmul %33, %34, %cst_20 {dimension_numbers = #tpu.dot_dimension_numbers<[1], [0], [0], [1], [0, 0, 1, 1], [], []>} : vector<16x16xbf16>, vector<16x128xbf16>, vector<16x128xf32> -> vector<16x128xf32>
    %36 = arith.addf %32, %35 : vector<16x128xf32>
    %c0_21 = arith.constant 0 : index
    %c0_22 = arith.constant 0 : index
    %37 = vector.load %arg10[%c0_21, %c0_22] : memref<16x128xf32, #tpu.memory_space<vmem>>, vector<16x128xf32>
    tpu.vector_store %arg10[%c0_21, %c0_22], %36 {strides = array<i32>} : memref<16x128xf32, #tpu.memory_space<vmem>>, vector<16x128xf32>,
    %c0_23 = arith.constant 0 : index
    %c0_24 = arith.constant 0 : index
    %38 = vector.load %arg8[%c0_23, %c0_24] : memref<16x1xf32, #tpu.memory_space<vmem>>, vector<16x1xf32>
    tpu.vector_store %arg8[%c0_23, %c0_24], %18 {strides = array<i32>} : memref<16x1xf32, #tpu.memory_space<vmem>>, vector<16x1xf32>,
    %c0_i32_25 = arith.constant 0 : i32
    %39 = arith.cmpi eq, %arg3, %c0_i32_25 : i32
    %40 = arith.extui %39 : i1 to i32
    %c0_i32_26 = arith.constant 0 : i32
    %41 = arith.cmpi ne, %40, %c0_i32_26 : i32
    scf.if %41 {
      %c0_27 = arith.constant 0 : index
      %c0_28 = arith.constant 0 : index
      %42 = vector.load %arg9[%c0_27, %c0_28] : memref<16x1xf32, #tpu.memory_space<vmem>>, vector<16x1xf32>
      %43 = tpu.reciprocal %42 {approx = true} : vector<16x1xf32> -> vector<16x1xf32>
      %c0_29 = arith.constant 0 : index
      %c0_30 = arith.constant 0 : index
      %44 = vector.load %arg10[%c0_29, %c0_30] : memref<16x128xf32, #tpu.memory_space<vmem>>, vector<16x128xf32>
      %45 = vector.broadcast %43 : vector<16x1xf32> to vector<16x128xf32>
      %46 = arith.mulf %44, %45 : vector<16x128xf32>
      %c0_31 = arith.constant 0 : index
      %c0_32 = arith.constant 0 : index
      %c0_33 = arith.constant 0 : index
      %47 = vector.load %arg7[%c0_31, %c0_32, %c0_33] : memref<1x16x128xf32, #tpu.memory_space<vmem>>, vector<1x16x128xf32>
      %48 = vector.shape_cast %47 : vector<1x16x128xf32> to vector<16x128xf32>
      %49 = vector.shape_cast %46 : vector<16x128xf32> to vector<1x16x128xf32>
      tpu.vector_store %arg7[%c0_31, %c0_32, %c0_33], %49 {strides = array<i32>} : memref<1x16x128xf32, #tpu.memory_space<vmem>>, vector<1x16x128xf32>,
    } else {
    }
    return
  }
  func.func @transform_0(%arg0: i32, %arg1: i32, %arg2: i32, %arg3: i32) -> (i32, i32, i32) {
    %c0_i32 = arith.constant 0 : i32
    %0 = arith.addi %c0_i32, %arg1 : i32
    %c0_i32_0 = arith.constant 0 : i32
    return %arg0, %arg2, %0 : i32, i32, i32
  }
  func.func @transform_1(%arg0: i32, %arg1: i32, %arg2: i32, %arg3: i32) -> (i32, i32, i32) {
    %c0_i32 = arith.constant 0 : i32
    %0 = arith.addi %c0_i32, %arg1 : i32
    %c0_i32_0 = arith.constant 0 : i32
    return %arg0, %arg3, %0 : i32, i32, i32
  }
  func.func @transform_2(%arg0: i32, %arg1: i32, %arg2: i32, %arg3: i32) -> (i32, i32, i32) {
    %c2_i32 = arith.constant 2 : i32
    %0 = arith.addi %c2_i32, %arg1 : i32
    %c0_i32 = arith.constant 0 : i32
    return %arg0, %arg3, %0 : i32, i32, i32
  }
  func.func @transform_3(%arg0: i32, %arg1: i32, %arg2: i32, %arg3: i32) -> (i32, i32, i32) {
    %c0_i32 = arith.constant 0 : i32
    return %arg0, %arg2, %arg1 : i32, i32, i32
  }
}

module attributes {stable_mosaic.version = 11 : i64} {
  func.func @_linear_kernel(%arg0: i32, %arg1: i32, %arg2: i32, %arg3: memref<32x256xf32, #tpu.memory_space<vmem>>, %arg4: memref<256x128xf32, #tpu.memory_space<vmem>>, %arg5: memref<1x128xf32, #tpu.memory_space<vmem>>, %arg6: memref<32x128xf32, #tpu.memory_space<vmem>>, %arg7: memref<32x128xf32, #tpu.memory_space<vmem>>) attributes {dimension_semantics = [#tpu.dimension_semantics<parallel>, #tpu.dimension_semantics<parallel>, #tpu.dimension_semantics<arbitrary>], iteration_bounds = array<i64: 1, 1, 1>, scalar_prefetch = 0 : i64, scratch_operands = 1 : i64, tpu.core_type = #tpu.core_type<tc>, window_params = [{transform_indices = @transform_0, window_bounds = array<i64: 32, 256>}, {transform_indices = @transform_1, window_bounds = array<i64: 256, 128>}, {transform_indices = @transform_2, window_bounds = array<i64: 1, 128>}, {transform_indices = @transform_3, window_bounds = array<i64: 32, 128>}]} {
    %c0_i32 = arith.constant 0 : i32
    %0 = arith.cmpi eq, %arg2, %c0_i32 : i32
    %1 = arith.extui %0 : i1 to i32
    %c0_i32_0 = arith.constant 0 : i32
    %2 = arith.cmpi ne, %1, %c0_i32_0 : i32
    scf.if %2 {
      %cst_10 = arith.constant 0.000000e+00 : f32
      %14 = vector.broadcast %cst_10 : f32 to vector<32x128xf32>
      %c0_11 = arith.constant 0 : index
      %c0_12 = arith.constant 0 : index
      %15 = vector.load %arg7[%c0_11, %c0_12] : memref<32x128xf32, #tpu.memory_space<vmem>>, vector<32x128xf32>
      tpu.vector_store %arg7[%c0_11, %c0_12], %14 {strides = array<i32>} : memref<32x128xf32, #tpu.memory_space<vmem>>, vector<32x128xf32>,
    } else {
    }
    %c0 = arith.constant 0 : index
    %c0_1 = arith.constant 0 : index
    %3 = vector.load %arg7[%c0, %c0_1] : memref<32x128xf32, #tpu.memory_space<vmem>>, vector<32x128xf32>
    %c0_2 = arith.constant 0 : index
    %c0_3 = arith.constant 0 : index
    %4 = vector.load %arg3[%c0_2, %c0_3] : memref<32x256xf32, #tpu.memory_space<vmem>>, vector<32x256xf32>
    %5 = arith.truncf %4 : vector<32x256xf32> to vector<32x256xbf16>
    %c0_4 = arith.constant 0 : index
    %c0_5 = arith.constant 0 : index
    %6 = vector.load %arg4[%c0_4, %c0_5] : memref<256x128xf32, #tpu.memory_space<vmem>>, vector<256x128xf32>
    %7 = arith.truncf %6 : vector<256x128xf32> to vector<256x128xbf16>
    %cst = arith.constant dense<0.000000e+00> : vector<32x128xf32>
    %8 = tpu.matmul %5, %7, %cst {dimension_numbers = #tpu.dot_dimension_numbers<[1], [0], [0], [1], [0, 0, 1, 1], [], []>} : vector<32x256xbf16>, vector<256x128xbf16>, vector<32x128xf32> -> vector<32x128xf32>
    %9 = arith.addf %3, %8 : vector<32x128xf32>
    %c0_6 = arith.constant 0 : index
    %c0_7 = arith.constant 0 : index
    %10 = vector.load %arg7[%c0_6, %c0_7] : memref<32x128xf32, #tpu.memory_space<vmem>>, vector<32x128xf32>
    tpu.vector_store %arg7[%c0_6, %c0_7], %9 {strides = array<i32>} : memref<32x128xf32, #tpu.memory_space<vmem>>, vector<32x128xf32>,
    %c0_i32_8 = arith.constant 0 : i32
    %11 = arith.cmpi eq, %arg2, %c0_i32_8 : i32
    %12 = arith.extui %11 : i1 to i32
    %c0_i32_9 = arith.constant 0 : i32
    %13 = arith.cmpi ne, %12, %c0_i32_9 : i32
    scf.if %13 {
      %c0_10 = arith.constant 0 : index
      %c0_11 = arith.constant 0 : index
      %14 = vector.load %arg7[%c0_10, %c0_11] : memref<32x128xf32, #tpu.memory_space<vmem>>, vector<32x128xf32>
      %c0_12 = arith.constant 0 : index
      %c0_13 = arith.constant 0 : index
      %15 = vector.load %arg5[%c0_12, %c0_13] : memref<1x128xf32, #tpu.memory_space<vmem>>, vector<1x128xf32>
      %16 = vector.broadcast %15 : vector<1x128xf32> to vector<32x128xf32>
      %17 = arith.addf %14, %16 : vector<32x128xf32>
      %c0_14 = arith.constant 0 : index
      %c0_15 = arith.constant 0 : index
      %18 = vector.load %arg6[%c0_14, %c0_15] : memref<32x128xf32, #tpu.memory_space<vmem>>, vector<32x128xf32>
      tpu.vector_store %arg6[%c0_14, %c0_15], %17 {strides = array<i32>} : memref<32x128xf32, #tpu.memory_space<vmem>>, vector<32x128xf32>,
    } else {
    }
    return
  }
  func.func @transform_0(%arg0: i32, %arg1: i32, %arg2: i32) -> (i32, i32) {
    %c0_i32 = arith.constant 0 : i32
    return %arg0, %arg2 : i32, i32
  }
  func.func @transform_1(%arg0: i32, %arg1: i32, %arg2: i32) -> (i32, i32) {
    %c0_i32 = arith.constant 0 : i32
    return %arg2, %arg1 : i32, i32
  }
  func.func @transform_2(%arg0: i32, %arg1: i32, %arg2: i32) -> (i32, i32) {
    %c0_i32 = arith.constant 0 : i32
    %c0_i32_0 = arith.constant 0 : i32
    return %c0_i32, %arg1 : i32, i32
  }
  func.func @transform_3(%arg0: i32, %arg1: i32, %arg2: i32) -> (i32, i32) {
    %c0_i32 = arith.constant 0 : i32
    return %arg0, %arg1 : i32, i32
  }
}

</mosaic_0001>

<llo_original>
// kernel: transformer_forward.42
$region0: #{transformer_forward.42}
  #allocation0 [shape = 'u32[]', space=smem, size = 0x4, offset = 0x4, fixed_abs, tag = 'smem constant byte address 0x4 - core index']
  #allocation1 [shape = 'u32[72,128]{1,0:T(1,128)}', space=vmem, size = 0x9000, scoped, tag = 'internal scratch']
  #allocation2 [shape = 'f32[32,256]{1,0:T(8,128)}', space=vmem, size = 0x8000, scoped, tag = 'scratch operand']
  %s0 = inlined_call_operand.vmem [shape: f32[32,256], index: 0, kind: input, shape index: {}]
  %s1 = inlined_call_operand.hbm [shape: f32[256,256], index: 1, kind: input, shape index: {}]
  %s2 = inlined_call_operand.vmem [shape: f32[1,256], index: 2, kind: input, shape index: {}]
  %s3 = inlined_call_operand.vmem [shape: f32[32,256], index: 3, kind: output, shape index: {}]
  %s4 = sld [smem:[#allocation0]]
  $region34: #{transformer_forward.42} parent=0
    _
  %s6 = ssub.s32 1, %s4
  %s7 = scalar_select 0, %s6, %s4
  $region1: #{transformer_forward.42} parent=0
    #allocation3 [shape = 'u8[262144]{0}', space=vmem, size = 0x40000, scoped, tag = 'input window, operand 1, single buffered']
    #allocation4 [shape = 's32[1]{0}', space=sflag, size = 0x4, scoped, tag = 'scoped memory for transformer_forward.42']
    %8 = vsyncpa [#allocation4], 0
    // Predicated region
    $region2: #{transformer_forward.42} parent=1 // pred_check
      _
    $region3: #{transformer_forward.42} parent=1 // pred_check_branch
      %10 = sbr.rel (0) target = $region5
    $region4: #{transformer_forward.42} parent=1 // pred_region
      _
    $region5: #{transformer_forward.42} parent=1 // pred_fallthru
      _
    // Predicated region
    $region6: #{transformer_forward.42} parent=1 // pred_check
      _
    $region7: #{transformer_forward.42} parent=1 // pred_check_branch
      %12 = sbr.rel (0) target = $region9
    $region8: #{transformer_forward.42} parent=1 // pred_region
      %14 = vsyncadd [#allocation4], 0
      %s15 = sshll.u32 %s1, 4
      %s16 = int_to_ptr.hbm [resolvable:$true] %s15
      %s17 = sshll.u32 [#allocation3], 4
      %s18 = int_to_ptr.vmem [resolvable:$true] %s17
      %23 = dma.hbm_to_vmem [thread:$0]  %s16, 8192, %s18, [#allocation4], 256, 256, 16
    $region9: #{transformer_forward.42} parent=1 // pred_fallthru
      _
    // Predicated region
    $region10: #{transformer_forward.42} parent=1 // pred_check
      _
    $region11: #{transformer_forward.42} parent=1 // pred_check_branch
      %25 = sbr.rel (0) target = $region13
    $region12: #{transformer_forward.42} parent=1 // pred_region
      _
    $region13: #{transformer_forward.42} parent=1 // pred_fallthru
      _
    // Predicated region
    $region14: #{transformer_forward.42} parent=1 // pred_check
      _
    $region15: #{transformer_forward.42} parent=1 // pred_check_branch
      %27 = sbr.rel (0) target = $region17
    $region16: #{transformer_forward.42} parent=1 // pred_region
      %29 = dma.done [#allocation4], 8192
    $region17: #{transformer_forward.42} parent=1 // pred_fallthru
      _
    %p30 = scmp.eq.s32.totalorder 0, 0
    // Predicated region
    $region18: #{transformer_forward.42} parent=1 // pred_check
      %p31 = pneg %p30
    $region19: #{transformer_forward.42} parent=1 // pred_check_branch
      %33 = sbr.rel (%p31) target = $region21
    $region20: #{transformer_forward.42} parent=1 // pred_region
      %34 = vst [vmem:[#allocation2] sm:$0xff] 0.0
      %35 = vst [vmem:[#allocation2 + $0x8] sm:$0xff] 0.0
      %36 = vst [vmem:[#allocation2 + $0x10] sm:$0xff] 0.0
      %37 = vst [vmem:[#allocation2 + $0x18] sm:$0xff] 0.0
      %38 = vst [vmem:[#allocation2 + $0x20] sm:$0xff] 0.0
      %39 = vst [vmem:[#allocation2 + $0x28] sm:$0xff] 0.0
      %40 = vst [vmem:[#allocation2 + $0x30] sm:$0xff] 0.0
      %41 = vst [vmem:[#allocation2 + $0x38] sm:$0xff] 0.0
    $region21: #{transformer_forward.42} parent=1 // pred_fallthru
      _
    %v42 = vld [vmem:[#allocation2] sm:$0xff]
    %v43 = vld [vmem:[#allocation2 + $0x8] sm:$0xff]
    %v44 = vld [vmem:[#allocation2 + $0x10] sm:$0xff]
    %v45 = vld [vmem:[#allocation2 + $0x18] sm:$0xff]
    %v46 = vld [vmem:[#allocation2 + $0x20] sm:$0xff]
    %v47 = vld [vmem:[#allocation2 + $0x28] sm:$0xff]
    %v48 = vld [vmem:[#allocation2 + $0x30] sm:$0xff]
    %v49 = vld [vmem:[#allocation2 + $0x38] sm:$0xff]
    %v50 = vld [vmem:[%s0] sm:$0xff]
    %v51 = vld [vmem:[%s0 + $0x8] sm:$0xff]
    %v52 = vld [vmem:[%s0 + $0x10] sm:$0xff]
    %v53 = vld [vmem:[%s0 + $0x18] sm:$0xff]
    %v54 = vld [vmem:[%s0 + $0x20] sm:$0xff]
    %v55 = vld [vmem:[%s0 + $0x28] sm:$0xff]
    %v56 = vld [vmem:[%s0 + $0x30] sm:$0xff]
    %v57 = vld [vmem:[%s0 + $0x38] sm:$0xff]
    %v58 = vpack.c.bf16 %v52, %v50
    %v59 = vpack.c.bf16 %v53, %v51
    %v60 = vpack.c.bf16 %v56, %v54
    %v61 = vpack.c.bf16 %v57, %v55
    %v62 = vld [vmem:[#allocation3] sm:$0xff]
    %v63 = vld [vmem:[#allocation3 + $0x8] sm:$0xff]
    %v64 = vld [vmem:[#allocation3 + $0x10] sm:$0xff]
    %v65 = vld [vmem:[#allocation3 + $0x18] sm:$0xff]
    %v66 = vld [vmem:[#allocation3 + $0x20] sm:$0xff]
    %v67 = vld [vmem:[#allocation3 + $0x28] sm:$0xff]
    %v68 = vld [vmem:[#allocation3 + $0x30] sm:$0xff]
    %v69 = vld [vmem:[#allocation3 + $0x38] sm:$0xff]
    %v70 = vld [vmem:[#allocation3 + $0x40] sm:$0xff]
    %v71 = vld [vmem:[#allocation3 + $0x48] sm:$0xff]
    %v72 = vld [vmem:[#allocation3 + $0x50] sm:$0xff]
    %v73 = vld [vmem:[#allocation3 + $0x58] sm:$0xff]
    %v74 = vld [vmem:[#allocation3 + $0x60] sm:$0xff]
    %v75 = vld [vmem:[#allocation3 + $0x68] sm:$0xff]
    %v76 = vld [vmem:[#allocation3 + $0x70] sm:$0xff]
    %v77 = vld [vmem:[#allocation3 + $0x78] sm:$0xff]
    %v78 = vld [vmem:[#allocation3 + $0x80] sm:$0xff]
    %v79 = vld [vmem:[#allocation3 + $0x88] sm:$0xff]
    %v80 = vld [vmem:[#allocation3 + $0x90] sm:$0xff]
    %v81 = vld [vmem:[#allocation3 + $0x98] sm:$0xff]
    %v82 = vld [vmem:[#allocation3 + $0xa0] sm:$0xff]
    %v83 = vld [vmem:[#allocation3 + $0xa8] sm:$0xff]
    %v84 = vld [vmem:[#allocation3 + $0xb0] sm:$0xff]
    %v85 = vld [vmem:[#allocation3 + $0xb8] sm:$0xff]
    %v86 = vld [vmem:[#allocation3 + $0xc0] sm:$0xff]
    %v87 = vld [vmem:[#allocation3 + $0xc8] sm:$0xff]
    %v88 = vld [vmem:[#allocation3 + $0xd0] sm:$0xff]
    %v89 = vld [vmem:[#allocation3 + $0xd8] sm:$0xff]
    %v90 = vld [vmem:[#allocation3 + $0xe0] sm:$0xff]
    %v91 = vld [vmem:[#allocation3 + $0xe8] sm:$0xff]
    %v92 = vld [vmem:[#allocation3 + $0xf0] sm:$0xff]
    %v93 = vld [vmem:[#allocation3 + $0xf8] sm:$0xff]
    %v94 = vld [vmem:[#allocation3 + $0x100] sm:$0xff]
    %v95 = vld [vmem:[#allocation3 + $0x108] sm:$0xff]
    %v96 = vld [vmem:[#allocation3 + $0x110] sm:$0xff]
    %v97 = vld [vmem:[#allocation3 + $0x118] sm:$0xff]
    %v98 = vld [vmem:[#allocation3 + $0x120] sm:$0xff]
    %v99 = vld [vmem:[#allocation3 + $0x128] sm:$0xff]
    %v100 = vld [vmem:[#allocation3 + $0x130] sm:$0xff]
    %v101 = vld [vmem:[#allocation3 + $0x138] sm:$0xff]
    %v102 = vld [vmem:[#allocation3 + $0x140] sm:$0xff]
    %v103 = vld [vmem:[#allocation3 + $0x148] sm:$0xff]
    %v104 = vld [vmem:[#allocation3 + $0x150] sm:$0xff]
    %v105 = vld [vmem:[#allocation3 + $0x158] sm:$0xff]
    %v106 = vld [vmem:[#allocation3 + $0x160] sm:$0xff]
    %v107 = vld [vmem:[#allocation3 + $0x168] sm:$0xff]
    %v108 = vld [vmem:[#allocation3 + $0x170] sm:$0xff]
    %v109 = vld [vmem:[#allocation3 + $0x178] sm:$0xff]
    %v110 = vld [vmem:[#allocation3 + $0x180] sm:$0xff]
    %v111 = vld [vmem:[#allocation3 + $0x188] sm:$0xff]
    %v112 = vld [vmem:[#allocation3 + $0x190] sm:$0xff]
    %v113 = vld [vmem:[#allocation3 + $0x198] sm:$0xff]
    %v114 = vld [vmem:[#allocation3 + $0x1a0] sm:$0xff]
    %v115 = vld [vmem:[#allocation3 + $0x1a8] sm:$0xff]
    %v116 = vld [vmem:[#allocation3 + $0x1b0] sm:$0xff]
    %v117 = vld [vmem:[#allocation3 + $0x1b8] sm:$0xff]
    %v118 = vld [vmem:[#allocation3 + $0x1c0] sm:$0xff]
    %v119 = vld [vmem:[#allocation3 + $0x1c8] sm:$0xff]
    %v120 = vld [vmem:[#allocation3 + $0x1d0] sm:$0xff]
    %v121 = vld [vmem:[#allocation3 + $0x1d8] sm:$0xff]
    %v122 = vld [vmem:[#allocation3 + $0x1e0] sm:$0xff]
    %v123 = vld [vmem:[#allocation3 + $0x1e8] sm:$0xff]
    %v124 = vld [vmem:[#allocation3 + $0x1f0] sm:$0xff]
    %v125 = vld [vmem:[#allocation3 + $0x1f8] sm:$0xff]
    %v126 = vpack.c.bf16 %v64, %v62
    %v127 = vpack.c.bf16 %v65, %v63
    %v128 = vpack.c.bf16 %v68, %v66
    %v129 = vpack.c.bf16 %v69, %v67
    %v130 = vpack.c.bf16 %v72, %v70
    %v131 = vpack.c.bf16 %v73, %v71
    %v132 = vpack.c.bf16 %v76, %v74
    %v133 = vpack.c.bf16 %v77, %v75
    %v134 = vpack.c.bf16 %v80, %v78
    %v135 = vpack.c.bf16 %v81, %v79
    %v136 = vpack.c.bf16 %v84, %v82
    %v137 = vpack.c.bf16 %v85, %v83
    %v138 = vpack.c.bf16 %v88, %v86
    %v139 = vpack.c.bf16 %v89, %v87
    %v140 = vpack.c.bf16 %v92, %v90
    %v141 = vpack.c.bf16 %v93, %v91
    %v142 = vpack.c.bf16 %v96, %v94
    %v143 = vpack.c.bf16 %v97, %v95
    %v144 = vpack.c.bf16 %v100, %v98
    %v145 = vpack.c.bf16 %v101, %v99
    %v146 = vpack.c.bf16 %v104, %v102
    %v147 = vpack.c.bf16 %v105, %v103
    %v148 = vpack.c.bf16 %v108, %v106
    %v149 = vpack.c.bf16 %v109, %v107
    %v150 = vpack.c.bf16 %v112, %v110
    %v151 = vpack.c.bf16 %v113, %v111
    %v152 = vpack.c.bf16 %v116, %v114
    %v153 = vpack.c.bf16 %v117, %v115
    %v154 = vpack.c.bf16 %v120, %v118
    %v155 = vpack.c.bf16 %v121, %v119
    %v156 = vpack.c.bf16 %v124, %v122
    %v157 = vpack.c.bf16 %v125, %v123
    %158 = vmatpush.bf16.msra.mxu0 %v140
    %159 = vmatpush.bf16.msra.mxu0 %v138
    %160 = vmatpush.bf16.msra.mxu0 %v136
    %161 = vmatpush.bf16.msra.mxu0 %v134
    %162 = vmatpush.bf16.msra.mxu0 %v132
    %163 = vmatpush.bf16.msra.mxu0 %v130
    %164 = vmatpush.bf16.msra.mxu0 %v128
    %165 = vmatpush.bf16.msra.mxu0 %v126
    %166 = vmatmul.bf16.gmra.mxu0 %v58
    %v167 = vpop.f32.mrf.mxu0
    %v168 = vadd.f32 0.0, %v167
    %v169 = vpop.f32.mrf.mxu0
    %v170 = vadd.f32 0.0, %v169
    %171 = vmatmul.bf16.gmra.mxu0 %v60
    %v172 = vpop.f32.mrf.mxu0
    %v173 = vadd.f32 0.0, %v172
    %v174 = vpop.f32.mrf.mxu0
    %v175 = vadd.f32 0.0, %v174
    %176 = vdwg.mxu0
    %177 = vmatpush.bf16.msra.mxu0 %v156
    %178 = vmatpush.bf16.msra.mxu0 %v154
    %179 = vmatpush.bf16.msra.mxu0 %v152
    %180 = vmatpush.bf16.msra.mxu0 %v150
    %181 = vmatpush.bf16.msra.mxu0 %v148
    %182 = vmatpush.bf16.msra.mxu0 %v146
    %183 = vmatpush.bf16.msra.mxu0 %v144
    %184 = vmatpush.bf16.msra.mxu0 %v142
    %185 = vmatmul.bf16.gmra.mxu0 %v59
    %v186 = vpop.f32.mrf.mxu0
    %v187 = vadd.f32 %v168, %v186
    %v188 = vpop.f32.mrf.mxu0
    %v189 = vadd.f32 %v170, %v188
    %190 = vmatmul.bf16.gmra.mxu0 %v61
    %v191 = vpop.f32.mrf.mxu0
    %v192 = vadd.f32 %v173, %v191
    %v193 = vpop.f32.mrf.mxu0
    %v194 = vadd.f32 %v175, %v193
    %195 = vdwg.mxu0
    %196 = vmatpush.bf16.msra.mxu0 %v141
    %197 = vmatpush.bf16.msra.mxu0 %v139
    %198 = vmatpush.bf16.msra.mxu0 %v137
    %199 = vmatpush.bf16.msra.mxu0 %v135
    %200 = vmatpush.bf16.msra.mxu0 %v133
    %201 = vmatpush.bf16.msra.mxu0 %v131
    %202 = vmatpush.bf16.msra.mxu0 %v129
    %203 = vmatpush.bf16.msra.mxu0 %v127
    %204 = vmatmul.bf16.gmra.mxu0 %v58
    %v205 = vpop.f32.mrf.mxu0
    %v206 = vadd.f32 0.0, %v205
    %v207 = vpop.f32.mrf.mxu0
    %v208 = vadd.f32 0.0, %v207
    %209 = vmatmul.bf16.gmra.mxu0 %v60
    %v210 = vpop.f32.mrf.mxu0
    %v211 = vadd.f32 0.0, %v210
    %v212 = vpop.f32.mrf.mxu0
    %v213 = vadd.f32 0.0, %v212
    %214 = vdwg.mxu0
    %215 = vmatpush.bf16.msra.mxu0 %v157
    %216 = vmatpush.bf16.msra.mxu0 %v155
    %217 = vmatpush.bf16.msra.mxu0 %v153
    %218 = vmatpush.bf16.msra.mxu0 %v151
    %219 = vmatpush.bf16.msra.mxu0 %v149
    %220 = vmatpush.bf16.msra.mxu0 %v147
    %221 = vmatpush.bf16.msra.mxu0 %v145
    %222 = vmatpush.bf16.msra.mxu0 %v143
    %223 = vmatmul.bf16.gmra.mxu0 %v59
    %v224 = vpop.f32.mrf.mxu0
    %v225 = vadd.f32 %v206, %v224
    %v226 = vpop.f32.mrf.mxu0
    %v227 = vadd.f32 %v208, %v226
    %228 = vmatmul.bf16.gmra.mxu0 %v61
    %v229 = vpop.f32.mrf.mxu0
    %v230 = vadd.f32 %v211, %v229
    %v231 = vpop.f32.mrf.mxu0
    %v232 = vadd.f32 %v213, %v231
    %233 = vdwg.mxu0
    %v234 = vadd.f32 %v42, %v187
    %v235 = vadd.f32 %v43, %v225
    %v236 = vadd.f32 %v44, %v189
    %v237 = vadd.f32 %v45, %v227
    %v238 = vadd.f32 %v46, %v192
    %v239 = vadd.f32 %v47, %v230
    %v240 = vadd.f32 %v48, %v194
    %v241 = vadd.f32 %v49, %v232
    %242 = vst [vmem:[#allocation2] sm:$0xff] %v234
    %243 = vst [vmem:[#allocation2 + $0x8] sm:$0xff] %v235
    %244 = vst [vmem:[#allocation2 + $0x10] sm:$0xff] %v236
    %245 = vst [vmem:[#allocation2 + $0x18] sm:$0xff] %v237
    %246 = vst [vmem:[#allocation2 + $0x20] sm:$0xff] %v238
    %247 = vst [vmem:[#allocation2 + $0x28] sm:$0xff] %v239
    %248 = vst [vmem:[#allocation2 + $0x30] sm:$0xff] %v240
    %249 = vst [vmem:[#allocation2 + $0x38] sm:$0xff] %v241
    // Predicated region
    $region22: #{transformer_forward.42} parent=1 // pred_check
      %p250 = pneg %p30
    $region23: #{transformer_forward.42} parent=1 // pred_check_branch
      %252 = sbr.rel (%p250) target = $region25
    $region24: #{transformer_forward.42} parent=1 // pred_region
      %v253 = vld [vmem:[#allocation2] sm:$0xff]
      %v254 = vld [vmem:[#allocation2 + $0x8] sm:$0xff]
      %v255 = vld [vmem:[#allocation2 + $0x10] sm:$0xff]
      %v256 = vld [vmem:[#allocation2 + $0x18] sm:$0xff]
      %v257 = vld [vmem:[#allocation2 + $0x20] sm:$0xff]
      %v258 = vld [vmem:[#allocation2 + $0x28] sm:$0xff]
      %v259 = vld [vmem:[#allocation2 + $0x30] sm:$0xff]
      %v260 = vld [vmem:[#allocation2 + $0x38] sm:$0xff]
      %v261 = vld [vmem:[%s2] sm:$0x3]
      %v263 = vperm.slane %v261, 0
      %v264 = vperm.slane %v261, 1
      %v267 = vadd.f32 %v253, %v263
      %v268 = vadd.f32 %v254, %v264
      %v269 = vadd.f32 %v255, %v263
      %v270 = vadd.f32 %v256, %v264
      %v271 = vadd.f32 %v257, %v263
      %v272 = vadd.f32 %v258, %v264
      %v273 = vadd.f32 %v259, %v263
      %v274 = vadd.f32 %v260, %v264
      %275 = vst [vmem:[%s3] sm:$0xff] %v267
      %276 = vst [vmem:[%s3 + $0x8] sm:$0xff] %v268
      %277 = vst [vmem:[%s3 + $0x10] sm:$0xff] %v269
      %278 = vst [vmem:[%s3 + $0x18] sm:$0xff] %v270
      %279 = vst [vmem:[%s3 + $0x20] sm:$0xff] %v271
      %280 = vst [vmem:[%s3 + $0x28] sm:$0xff] %v272
      %281 = vst [vmem:[%s3 + $0x30] sm:$0xff] %v273
      %282 = vst [vmem:[%s3 + $0x38] sm:$0xff] %v274
    $region25: #{transformer_forward.42} parent=1 // pred_fallthru
      _
    // Predicated region
    $region26: #{transformer_forward.42} parent=1 // pred_check
      _
    $region27: #{transformer_forward.42} parent=1 // pred_check_branch
      %284 = sbr.rel (0) target = $region29
    $region28: #{transformer_forward.42} parent=1 // pred_region
      _
    $region29: #{transformer_forward.42} parent=1 // pred_fallthru
      _
    // Predicated region
    $region30: #{transformer_forward.42} parent=1 // pred_check
      _
    $region31: #{transformer_forward.42} parent=1 // pred_check_branch
      %286 = sbr.rel (0) target = $region33
    $region32: #{transformer_forward.42} parent=1 // pred_region
      _
    $region33: #{transformer_forward.42} parent=1 // pred_fallthru
      _
    %287 = vsyncpa [#allocation4], 1

// kernel: transformer_forward.39
$region0: #{transformer_forward.39}
  #allocation0 [shape = 'u32[]', space=smem, size = 0x4, offset = 0x4, fixed_abs, tag = 'smem constant byte address 0x4 - core index']
  #allocation1 [shape = 'u32[72,128]{1,0:T(1,128)}', space=vmem, size = 0x9000, scoped, tag = 'internal scratch']
  #allocation2 [shape = 'f32[32,384]{1,0:T(8,128)}', space=vmem, size = 0xc000, scoped, tag = 'scratch operand']
  %s0 = inlined_call_operand.vmem [shape: f32[32,256], index: 0, kind: input, shape index: {}]
  %s1 = inlined_call_operand.hbm [shape: f32[256,768], index: 1, kind: input, shape index: {}]
  %s2 = inlined_call_operand.vmem [shape: f32[1,768], index: 2, kind: input, shape index: {}]
  %s3 = inlined_call_operand.vmem [shape: f32[32,768], index: 3, kind: output, shape index: {}]
  %s4 = sld [smem:[#allocation0]]
  $region76: #{transformer_forward.39} parent=0
    _
  %s6 = ssub.s32 1, %s4
  %s7 = scalar_select 0, %s6, %s4
  $region1: #{transformer_forward.39} parent=0
    #allocation3 [shape = 'u8[786432]{0}', space=vmem, size = 0xc0000, scoped, tag = 'input window, operand 1']
    #allocation4 [shape = 's32[2]{0}', space=sflag, size = 0x8, scoped, tag = 'scoped memory for transformer_forward.39']
    #allocation5 [shape = 'u8[98304]{0}', space=vmem, size = 0x18000, scoped, tag = 'output window, operand 0']
    %8 = vsyncpa [#allocation4], 0
    %s9 = scalar_lea.sflag [#allocation4], 1
    %10 = vsyncpa %s9, 0
    loop: start=0, step=1, limit=4
    $region2: #{transformer_forward.39} parent=1 // loop_pre_header
      _
    $region3: #{transformer_forward.39} parent=1 // loop_header
      %s12 = sphi 0, %s16
      %p13 = scmp.ge.s32.totalorder %s12, 4
      %s19 = sphi 0, %s38
      %s20 = sphi 0, %s34
      %s21 = sphi 0, %s30
      %s22 = sphi 0, %s19
      %s23 = sphi 0, %s20
      %s24 = sphi 0, %s21
      %s25 = sphi 0, %s22
      %s26 = sphi 0, %s23
      %s27 = sphi 0, %s24
      %s43 = sphi 0, %s45
      %s46 = sphi 0, %s43
      %s47 = sphi 0, %s46
      %s63 = sphi 0, %s47
      %s71 = sphi 0, %s73
      %s74 = sphi 0, %s71
      %s75 = sphi 0, %s74
      %s91 = sphi 0, %s75
      %s97 = sphi 0, %s99
      %s100 = sphi 0, %s97
      %s101 = sphi 0, %s100
      %s117 = sphi 0, %s101
      %s125 = sphi 0, %s127
      %s128 = sphi 0, %s125
      %s129 = sphi 0, %s128
      %s145 = sphi 0, %s129
    $region4: #{transformer_forward.39} parent=1 // loop_header_branch
      %15 = sbr.rel (%p13) target = $region8
    $region5: #{transformer_forward.39} parent=1 // loop_body
      %s17 = ssub.s32 %s12, 1
      %s18 = ssub.s32 %s12, 2
      %s28 = sadd.s32 1, %s21
      %p29 = scmp.ge.s32.totalorder %s28, 1
      %s30 = scalar_select %p29, 0, %s28
      %s31 = sadd.s32 1, %s20
      %s32 = scalar_select %p29, %s31, %s20
      %p33 = scmp.ge.s32.totalorder %s32, 2
      %s34 = scalar_select %p33, 0, %s32
      %s35 = sadd.s32 1, %s19
      %s36 = scalar_select %p33, %s35, %s19
      %p37 = scmp.ge.s32.totalorder %s36, 1
      %s38 = scalar_select %p37, 0, %s36
      %s39 = ssub.s32 %s19, %s38
      %s40 = ssub.s32 %s21, %s30
      %s41 = sor.u32 %s39, %s40
      %p42 = scmp.eq.s32.totalorder %s41, 0
      %s44 = sadd.s32 %s43, 1
      %s45 = scalar_select %p42, %s43, %s44
      %p48 = pneg %p42
      %p49 = scmp.eq.s32.totalorder %s12, 1
      %p50 = por %p48, %p49
      %p51 = scmp.ne.s32.totalorder %s43, %s46
      %p52 = scmp.eq.s32.totalorder %s12, 0
      %p53 = por %p51, %p52
      %p54 = scmp.ne.s32.totalorder %s43, %s46
      %p55 = scmp.eq.s32.totalorder %s17, 1
      %p56 = por %p54, %p55
      %p57 = scmp.ne.s32.totalorder %s46, %s47
      %p58 = scmp.eq.s32.totalorder %s17, 0
      %p59 = por %p57, %p58
      %p60 = scmp.ne.s32.totalorder %s46, %s47
      %p61 = scmp.eq.s32.totalorder %s18, 1
      %p62 = por %p60, %p61
      %p64 = scmp.ne.s32.totalorder %s47, %s63
      %p65 = scmp.eq.s32.totalorder %s18, 0
      %p66 = por %p64, %p65
      %s67 = ssub.s32 %s21, %s30
      %s68 = ssub.s32 %s20, %s34
      %s69 = sor.u32 %s67, %s68
      %p70 = scmp.eq.s32.totalorder %s69, 0
      %s72 = sadd.s32 %s71, 1
      %s73 = scalar_select %p70, %s71, %s72
      %p76 = pneg %p70
      %p77 = scmp.eq.s32.totalorder %s12, 1
      %p78 = por %p76, %p77
      %p79 = scmp.ne.s32.totalorder %s71, %s74
      %p80 = scmp.eq.s32.totalorder %s12, 0
      %p81 = por %p79, %p80
      %p82 = scmp.ne.s32.totalorder %s71, %s74
      %p83 = scmp.eq.s32.totalorder %s17, 1
      %p84 = por %p82, %p83
      %p85 = scmp.ne.s32.totalorder %s74, %s75
      %p86 = scmp.eq.s32.totalorder %s17, 0
      %p87 = por %p85, %p86
      %p88 = scmp.ne.s32.totalorder %s74, %s75
      %p89 = scmp.eq.s32.totalorder %s18, 1
      %p90 = por %p88, %p89
      %p92 = scmp.ne.s32.totalorder %s75, %s91
      %p93 = scmp.eq.s32.totalorder %s18, 0
      %p94 = por %p92, %p93
      %s95 = ssub.s32 %s20, %s34
      %p96 = scmp.eq.s32.totalorder %s95, 0
      %s98 = sadd.s32 %s97, 1
      %s99 = scalar_select %p96, %s97, %s98
      %p102 = pneg %p96
      %p103 = scmp.eq.s32.totalorder %s12, 1
      %p104 = por %p102, %p103
      %p105 = scmp.ne.s32.totalorder %s97, %s100
      %p106 = scmp.eq.s32.totalorder %s12, 0
      %p107 = por %p105, %p106
      %p108 = scmp.ne.s32.totalorder %s97, %s100
      %p109 = scmp.eq.s32.totalorder %s17, 1
      %p110 = por %p108, %p109
      %p111 = scmp.ne.s32.totalorder %s100, %s101
      %p112 = scmp.eq.s32.totalorder %s17, 0
      %p113 = por %p111, %p112
      %p114 = scmp.ne.s32.totalorder %s100, %s101
      %p115 = scmp.eq.s32.totalorder %s18, 1
      %p116 = por %p114, %p115
      %p118 = scmp.ne.s32.totalorder %s101, %s117
      %p119 = scmp.eq.s32.totalorder %s18, 0
      %p120 = por %p118, %p119
      %s121 = ssub.s32 %s19, %s38
      %s122 = ssub.s32 %s20, %s34
      %s123 = sor.u32 %s121, %s122
      %p124 = scmp.eq.s32.totalorder %s123, 0
      %s126 = sadd.s32 %s125, 1
      %s127 = scalar_select %p124, %s125, %s126
      %p130 = pneg %p124
      %p131 = scmp.eq.s32.totalorder %s12, 1
      %p132 = por %p130, %p131
      %p133 = scmp.ne.s32.totalorder %s125, %s128
      %p134 = scmp.eq.s32.totalorder %s12, 0
      %p135 = por %p133, %p134
      %p136 = scmp.ne.s32.totalorder %s125, %s128
      %p137 = scmp.eq.s32.totalorder %s17, 1
      %p138 = por %p136, %p137
      %p139 = scmp.ne.s32.totalorder %s128, %s129
      %p140 = scmp.eq.s32.totalorder %s17, 0
      %p141 = por %p139, %p140
      %p142 = scmp.ne.s32.totalorder %s128, %s129
      %p143 = scmp.eq.s32.totalorder %s18, 1
      %p144 = por %p142, %p143
      %p146 = scmp.ne.s32.totalorder %s129, %s145
      %p147 = scmp.eq.s32.totalorder %s18, 0
      %p148 = por %p146, %p147
      %p149 = scmp.le.s32.totalorder 1, %s12
      %p150 = scmp.lt.s32.totalorder %s12, 3
      %p151 = pnand %p149, %p150
      %p152 = pneg %p151
      // Predicated region
      $region9: #{transformer_forward.39} parent=5 // pred_check
        _
      $region10: #{transformer_forward.39} parent=5 // pred_check_branch
        %154 = sbr.rel (%p151) target = $region12
      $region11: #{transformer_forward.39} parent=5 // pred_region
        %s155 = ssub.s32 %s12, 1
        // Predicated region
        $region13: #{transformer_forward.39} parent=11 // pred_check
          %p156 = pneg %p59
        $region14: #{transformer_forward.39} parent=11 // pred_check_branch
          %158 = sbr.rel (%p156) target = $region16
        $region15: #{transformer_forward.39} parent=11 // pred_region
          %s159 = smul.u32 4, %s22
          %s160 = smul.u32 2, %s24
          %p161 = scmp.lt.s32.totalorder %s159, 3
          %s162 = scalar_select %p161, %s159, 3
          %p163 = scmp.lt.s32.totalorder %s160, 1
          %s164 = scalar_select %p163, %s160, 1
          %s165 = smul.addr %s162, 2
          %s166 = sadd.s32 %s164, %s165
          %s167 = smul.addr %s166, 8
          %s168 = scalar_lea.vmem %s0, %s167
          %s169 = smul.u32 4, %s22
          %s170 = smul.u32 2, %s24
        $region16: #{transformer_forward.39} parent=11 // pred_fallthru
          _
      $region12: #{transformer_forward.39} parent=5 // pred_fallthru
        _
      %p171 = scmp.lt.s32.totalorder %s12, 2
      // Predicated region
      $region17: #{transformer_forward.39} parent=5 // pred_check
        %p172 = pneg %p171
      $region18: #{transformer_forward.39} parent=5 // pred_check_branch
        %174 = sbr.rel (%p172) target = $region20
      $region19: #{transformer_forward.39} parent=5 // pred_region
        // Predicated region
        $region21: #{transformer_forward.39} parent=19 // pred_check
          %p175 = pneg %p81
        $region22: #{transformer_forward.39} parent=19 // pred_check_branch
          %177 = sbr.rel (%p175) target = $region24
        $region23: #{transformer_forward.39} parent=19 // pred_region
          %s178 = sand.u32 %s71, 1
          %s179 = scalar_lea.sflag [#allocation4], %s178
          %s180 = sand.u32 %s71, 1
          %s181 = smul.addr %s180, 768
          %s182 = scalar_lea.vmem [#allocation3], %s181
          %s183 = smul.u32 32, %s21
          %s184 = smul.u32 3, %s20
          %186 = vsyncadd %s179, 0
          %s187 = smul.addr %s183, 6
          %s188 = sadd.s32 %s184, %s187
          %s189 = smul.addr %s188, 8
          %s190 = scalar_lea.hbm %s1, %s189
          %s191 = sshll.u32 %s190, 4
          %s192 = int_to_ptr.hbm [resolvable:$true] %s191
          %s193 = sshll.u32 %s182, 4
          %s194 = int_to_ptr.vmem [resolvable:$true] %s193
          %199 = dma.hbm_to_vmem [thread:$0]  %s192, 12288, %s194, %s179, 768, 384, 24
        $region24: #{transformer_forward.39} parent=19 // pred_fallthru
          _
        // Predicated region
        $region25: #{transformer_forward.39} parent=19 // pred_check
          %p200 = pneg %p107
        $region26: #{transformer_forward.39} parent=19 // pred_check_branch
          %202 = sbr.rel (%p200) target = $region28
        $region27: #{transformer_forward.39} parent=19 // pred_region
          %s203 = smul.u32 3, %s20
          %p204 = scmp.lt.s32.totalorder %s203, 5
          %s205 = scalar_select %p204, %s203, 5
          %s206 = scalar_lea.vmem %s2, %s205
          %s207 = smul.u32 3, %s20
        $region28: #{transformer_forward.39} parent=19 // pred_fallthru
          _
      $region20: #{transformer_forward.39} parent=5 // pred_fallthru
        _
      %p208 = scmp.le.s32.totalorder 1, %s12
      %p209 = scmp.lt.s32.totalorder %s12, 3
      %p210 = pnand %p208, %p209
      %p211 = pneg %p210
      // Predicated region
      $region29: #{transformer_forward.39} parent=5 // pred_check
        _
      $region30: #{transformer_forward.39} parent=5 // pred_check_branch
        %213 = sbr.rel (%p210) target = $region32
      $region31: #{transformer_forward.39} parent=5 // pred_region
        %s214 = ssub.s32 %s12, 1
        %s215 = sand.u32 %s74, 1
        %s216 = scalar_lea.sflag [#allocation4], %s215
        %s217 = sand.u32 %s74, 1
        %s218 = smul.addr %s217, 768
        %s219 = scalar_lea.vmem [#allocation3], %s218
        // Predicated region
        $region33: #{transformer_forward.39} parent=31 // pred_check
          %p220 = pneg %p87
        $region34: #{transformer_forward.39} parent=31 // pred_check_branch
          %222 = sbr.rel (%p220) target = $region36
        $region35: #{transformer_forward.39} parent=31 // pred_region
          %224 = dma.done %s216, 12288
        $region36: #{transformer_forward.39} parent=31 // pred_fallthru
          _
        %s225 = smul.u32 4, %s22
        %s226 = smul.u32 2, %s24
        %p227 = scmp.lt.s32.totalorder %s225, 3
        %s228 = scalar_select %p227, %s225, 3
        %p229 = scmp.lt.s32.totalorder %s226, 1
        %s230 = scalar_select %p229, %s226, 1
        %s231 = smul.addr %s228, 2
        %s232 = sadd.s32 %s230, %s231
        %s233 = smul.addr %s232, 8
        %s234 = scalar_lea.vmem %s0, %s233
        %p235 = pneg %p59
        %p236 = pneg %p56
        %s237 = sand.u32 %s74, 1
        %s238 = scalar_lea.sflag [#allocation4], %s237
        %s239 = sand.u32 %s74, 1
        %s240 = smul.addr %s239, 768
        %s241 = scalar_lea.vmem [#allocation3], %s240
        %p242 = pneg %p87
        %p243 = pneg %p84
        %s244 = smul.u32 3, %s23
        %p245 = scmp.lt.s32.totalorder %s244, 5
        %s246 = scalar_select %p245, %s244, 5
        %s247 = scalar_lea.vmem %s2, %s246
        %p248 = pneg %p113
        %p249 = pneg %p110
        %p250 = pneg %p141
        %p251 = pneg %p138
        %s252 = sand.u32 %s128, 1
        %s253 = sand.u32 %s128, 1
        %s254 = smul.addr %s253, 96
        %s255 = scalar_lea.vmem [#allocation5], %s254
        %s256 = smul.u32 4, %s22
        %s257 = smul.u32 2, %s24
        %p258 = scmp.lt.s32.totalorder %s256, 3
        %s259 = scalar_select %p258, %s256, 3
        %p260 = scmp.lt.s32.totalorder %s257, 1
        %s261 = scalar_select %p260, %s257, 1
        %s262 = smul.addr %s259, 2
        %s263 = sadd.s32 %s261, %s262
        %s264 = smul.addr %s263, 8
        %s265 = scalar_lea.vmem %s0, %s264
        %s266 = smul.u32 4, %s22
        %s267 = smul.u32 2, %s24
        %s268 = smul.u32 32, %s24
        %s269 = smul.u32 3, %s23
        %s270 = smul.u32 3, %s23
        %p271 = scmp.lt.s32.totalorder %s270, 5
        %s272 = scalar_select %p271, %s270, 5
        %s273 = scalar_lea.vmem %s2, %s272
        %s274 = smul.u32 3, %s23
        %s275 = smul.u32 4, %s22
        %s276 = smul.u32 3, %s23
        %p277 = scmp.eq.s32.totalorder %s24, 0
        // Predicated region
        $region37: #{transformer_forward.39} parent=31 // pred_check
          %p278 = pneg %p277
        $region38: #{transformer_forward.39} parent=31 // pred_check_branch
          %280 = sbr.rel (%p278) target = $region40
        $region39: #{transformer_forward.39} parent=31 // pred_region
          %281 = vst [vmem:[#allocation2] sm:$0xff] 0.0
          %282 = vst [vmem:[#allocation2 + $0x8] sm:$0xff] 0.0
          %283 = vst [vmem:[#allocation2 + $0x10] sm:$0xff] 0.0
          %284 = vst [vmem:[#allocation2 + $0x18] sm:$0xff] 0.0
          %285 = vst [vmem:[#allocation2 + $0x20] sm:$0xff] 0.0
          %286 = vst [vmem:[#allocation2 + $0x28] sm:$0xff] 0.0
          %287 = vst [vmem:[#allocation2 + $0x30] sm:$0xff] 0.0
          %288 = vst [vmem:[#allocation2 + $0x38] sm:$0xff] 0.0
          %289 = vst [vmem:[#allocation2 + $0x40] sm:$0xff] 0.0
          %290 = vst [vmem:[#allocation2 + $0x48] sm:$0xff] 0.0
          %291 = vst [vmem:[#allocation2 + $0x50] sm:$0xff] 0.0
          %292 = vst [vmem:[#allocation2 + $0x58] sm:$0xff] 0.0
        $region40: #{transformer_forward.39} parent=31 // pred_fallthru
          _
        %v293 = vld [vmem:[#allocation2] sm:$0xff]
        %v294 = vld [vmem:[#allocation2 + $0x8] sm:$0xff]
        %v295 = vld [vmem:[#allocation2 + $0x10] sm:$0xff]
        %v296 = vld [vmem:[#allocation2 + $0x18] sm:$0xff]
        %v297 = vld [vmem:[#allocation2 + $0x20] sm:$0xff]
        %v298 = vld [vmem:[#allocation2 + $0x28] sm:$0xff]
        %v299 = vld [vmem:[#allocation2 + $0x30] sm:$0xff]
        %v300 = vld [vmem:[#allocation2 + $0x38] sm:$0xff]
        %v301 = vld [vmem:[#allocation2 + $0x40] sm:$0xff]
        %v302 = vld [vmem:[#allocation2 + $0x48] sm:$0xff]
        %v303 = vld [vmem:[#allocation2 + $0x50] sm:$0xff]
        %v304 = vld [vmem:[#allocation2 + $0x58] sm:$0xff]
        %v305 = vld [vmem:[%s265] sm:$0xff]
        %v306 = vld [vmem:[%s265 + $0x8] sm:$0xff]
        %v307 = vld [vmem:[%s265 + $0x10] sm:$0xff]
        %v308 = vld [vmem:[%s265 + $0x18] sm:$0xff]
        %v309 = vld [vmem:[%s265 + $0x20] sm:$0xff]
        %v310 = vld [vmem:[%s265 + $0x28] sm:$0xff]
        %v311 = vld [vmem:[%s265 + $0x30] sm:$0xff]
        %v312 = vld [vmem:[%s265 + $0x38] sm:$0xff]
        %v313 = vpack.c.bf16 %v307, %v305
        %v314 = vpack.c.bf16 %v308, %v306
        %v315 = vpack.c.bf16 %v311, %v309
        %v316 = vpack.c.bf16 %v312, %v310
        %v317 = vld [vmem:[%s219] sm:$0xff]
        %v318 = vld [vmem:[%s219 + $0x8] sm:$0xff]
        %v319 = vld [vmem:[%s219 + $0x10] sm:$0xff]
        %v320 = vld [vmem:[%s219 + $0x18] sm:$0xff]
        %v321 = vld [vmem:[%s219 + $0x20] sm:$0xff]
        %v322 = vld [vmem:[%s219 + $0x28] sm:$0xff]
        %v323 = vld [vmem:[%s219 + $0x30] sm:$0xff]
        %v324 = vld [vmem:[%s219 + $0x38] sm:$0xff]
        %v325 = vld [vmem:[%s219 + $0x40] sm:$0xff]
        %v326 = vld [vmem:[%s219 + $0x48] sm:$0xff]
        %v327 = vld [vmem:[%s219 + $0x50] sm:$0xff]
        %v328 = vld [vmem:[%s219 + $0x58] sm:$0xff]
        %v329 = vld [vmem:[%s219 + $0x60] sm:$0xff]
        %v330 = vld [vmem:[%s219 + $0x68] sm:$0xff]
        %v331 = vld [vmem:[%s219 + $0x70] sm:$0xff]
        %v332 = vld [vmem:[%s219 + $0x78] sm:$0xff]
        %v333 = vld [vmem:[%s219 + $0x80] sm:$0xff]
        %v334 = vld [vmem:[%s219 + $0x88] sm:$0xff]
        %v335 = vld [vmem:[%s219 + $0x90] sm:$0xff]
        %v336 = vld [vmem:[%s219 + $0x98] sm:$0xff]
        %v337 = vld [vmem:[%s219 + $0xa0] sm:$0xff]
        %v338 = vld [vmem:[%s219 + $0xa8] sm:$0xff]
        %v339 = vld [vmem:[%s219 + $0xb0] sm:$0xff]
        %v340 = vld [vmem:[%s219 + $0xb8] sm:$0xff]
        %v341 = vld [vmem:[%s219 + $0xc0] sm:$0xff]
        %v342 = vld [vmem:[%s219 + $0xc8] sm:$0xff]
        %v343 = vld [vmem:[%s219 + $0xd0] sm:$0xff]
        %v344 = vld [vmem:[%s219 + $0xd8] sm:$0xff]
        %v345 = vld [vmem:[%s219 + $0xe0] sm:$0xff]
        %v346 = vld [vmem:[%s219 + $0xe8] sm:$0xff]
        %v347 = vld [vmem:[%s219 + $0xf0] sm:$0xff]
        %v348 = vld [vmem:[%s219 + $0xf8] sm:$0xff]
        %v349 = vld [vmem:[%s219 + $0x100] sm:$0xff]
        %v350 = vld [vmem:[%s219 + $0x108] sm:$0xff]
        %v351 = vld [vmem:[%s219 + $0x110] sm:$0xff]
        %v352 = vld [vmem:[%s219 + $0x118] sm:$0xff]
        %v353 = vld [vmem:[%s219 + $0x120] sm:$0xff]
        %v354 = vld [vmem:[%s219 + $0x128] sm:$0xff]
        %v355 = vld [vmem:[%s219 + $0x130] sm:$0xff]
        %v356 = vld [vmem:[%s219 + $0x138] sm:$0xff]
        %v357 = vld [vmem:[%s219 + $0x140] sm:$0xff]
        %v358 = vld [vmem:[%s219 + $0x148] sm:$0xff]
        %v359 = vld [vmem:[%s219 + $0x150] sm:$0xff]
        %v360 = vld [vmem:[%s219 + $0x158] sm:$0xff]
        %v361 = vld [vmem:[%s219 + $0x160] sm:$0xff]
        %v362 = vld [vmem:[%s219 + $0x168] sm:$0xff]
        %v363 = vld [vmem:[%s219 + $0x170] sm:$0xff]
        %v364 = vld [vmem:[%s219 + $0x178] sm:$0xff]
        %v365 = vld [vmem:[%s219 + $0x180] sm:$0xff]
        %v366 = vld [vmem:[%s219 + $0x188] sm:$0xff]
        %v367 = vld [vmem:[%s219 + $0x190] sm:$0xff]
        %v368 = vld [vmem:[%s219 + $0x198] sm:$0xff]
        %v369 = vld [vmem:[%s219 + $0x1a0] sm:$0xff]
        %v370 = vld [vmem:[%s219 + $0x1a8] sm:$0xff]
        %v371 = vld [vmem:[%s219 + $0x1b0] sm:$0xff]
        %v372 = vld [vmem:[%s219 + $0x1b8] sm:$0xff]
        %v373 = vld [vmem:[%s219 + $0x1c0] sm:$0xff]
        %v374 = vld [vmem:[%s219 + $0x1c8] sm:$0xff]
        %v375 = vld [vmem:[%s219 + $0x1d0] sm:$0xff]
        %v376 = vld [vmem:[%s219 + $0x1d8] sm:$0xff]
        %v377 = vld [vmem:[%s219 + $0x1e0] sm:$0xff]
        %v378 = vld [vmem:[%s219 + $0x1e8] sm:$0xff]
        %v379 = vld [vmem:[%s219 + $0x1f0] sm:$0xff]
        %v380 = vld [vmem:[%s219 + $0x1f8] sm:$0xff]
        %v381 = vld [vmem:[%s219 + $0x200] sm:$0xff]
        %v382 = vld [vmem:[%s219 + $0x208] sm:$0xff]
        %v383 = vld [vmem:[%s219 + $0x210] sm:$0xff]
        %v384 = vld [vmem:[%s219 + $0x218] sm:$0xff]
        %v385 = vld [vmem:[%s219 + $0x220] sm:$0xff]
        %v386 = vld [vmem:[%s219 + $0x228] sm:$0xff]
        %v387 = vld [vmem:[%s219 + $0x230] sm:$0xff]
        %v388 = vld [vmem:[%s219 + $0x238] sm:$0xff]
        %v389 = vld [vmem:[%s219 + $0x240] sm:$0xff]
        %v390 = vld [vmem:[%s219 + $0x248] sm:$0xff]
        %v391 = vld [vmem:[%s219 + $0x250] sm:$0xff]
        %v392 = vld [vmem:[%s219 + $0x258] sm:$0xff]
        %v393 = vld [vmem:[%s219 + $0x260] sm:$0xff]
        %v394 = vld [vmem:[%s219 + $0x268] sm:$0xff]
        %v395 = vld [vmem:[%s219 + $0x270] sm:$0xff]
        %v396 = vld [vmem:[%s219 + $0x278] sm:$0xff]
        %v397 = vld [vmem:[%s219 + $0x280] sm:$0xff]
        %v398 = vld [vmem:[%s219 + $0x288] sm:$0xff]
        %v399 = vld [vmem:[%s219 + $0x290] sm:$0xff]
        %v400 = vld [vmem:[%s219 + $0x298] sm:$0xff]
        %v401 = vld [vmem:[%s219 + $0x2a0] sm:$0xff]
        %v402 = vld [vmem:[%s219 + $0x2a8] sm:$0xff]
        %v403 = vld [vmem:[%s219 + $0x2b0] sm:$0xff]
        %v404 = vld [vmem:[%s219 + $0x2b8] sm:$0xff]
        %v405 = vld [vmem:[%s219 + $0x2c0] sm:$0xff]
        %v406 = vld [vmem:[%s219 + $0x2c8] sm:$0xff]
        %v407 = vld [vmem:[%s219 + $0x2d0] sm:$0xff]
        %v408 = vld [vmem:[%s219 + $0x2d8] sm:$0xff]
        %v409 = vld [vmem:[%s219 + $0x2e0] sm:$0xff]
        %v410 = vld [vmem:[%s219 + $0x2e8] sm:$0xff]
        %v411 = vld [vmem:[%s219 + $0x2f0] sm:$0xff]
        %v412 = vld [vmem:[%s219 + $0x2f8] sm:$0xff]
        %v413 = vpack.c.bf16 %v320, %v317
        %v414 = vpack.c.bf16 %v321, %v318
        %v415 = vpack.c.bf16 %v322, %v319
        %v416 = vpack.c.bf16 %v326, %v323
        %v417 = vpack.c.bf16 %v327, %v324
        %v418 = vpack.c.bf16 %v328, %v325
        %v419 = vpack.c.bf16 %v332, %v329
        %v420 = vpack.c.bf16 %v333, %v330
        %v421 = vpack.c.bf16 %v334, %v331
        %v422 = vpack.c.bf16 %v338, %v335
        %v423 = vpack.c.bf16 %v339, %v336
        %v424 = vpack.c.bf16 %v340, %v337
        %v425 = vpack.c.bf16 %v344, %v341
        %v426 = vpack.c.bf16 %v345, %v342
        %v427 = vpack.c.bf16 %v346, %v343
        %v428 = vpack.c.bf16 %v350, %v347
        %v429 = vpack.c.bf16 %v351, %v348
        %v430 = vpack.c.bf16 %v352, %v349
        %v431 = vpack.c.bf16 %v356, %v353
        %v432 = vpack.c.bf16 %v357, %v354
        %v433 = vpack.c.bf16 %v358, %v355
        %v434 = vpack.c.bf16 %v362, %v359
        %v435 = vpack.c.bf16 %v363, %v360
        %v436 = vpack.c.bf16 %v364, %v361
        %v437 = vpack.c.bf16 %v368, %v365
        %v438 = vpack.c.bf16 %v369, %v366
        %v439 = vpack.c.bf16 %v370, %v367
        %v440 = vpack.c.bf16 %v374, %v371
        %v441 = vpack.c.bf16 %v375, %v372
        %v442 = vpack.c.bf16 %v376, %v373
        %v443 = vpack.c.bf16 %v380, %v377
        %v444 = vpack.c.bf16 %v381, %v378
        %v445 = vpack.c.bf16 %v382, %v379
        %v446 = vpack.c.bf16 %v386, %v383
        %v447 = vpack.c.bf16 %v387, %v384
        %v448 = vpack.c.bf16 %v388, %v385
        %v449 = vpack.c.bf16 %v392, %v389
        %v450 = vpack.c.bf16 %v393, %v390
        %v451 = vpack.c.bf16 %v394, %v391
        %v452 = vpack.c.bf16 %v398, %v395
        %v453 = vpack.c.bf16 %v399, %v396
        %v454 = vpack.c.bf16 %v400, %v397
        %v455 = vpack.c.bf16 %v404, %v401
        %v456 = vpack.c.bf16 %v405, %v402
        %v457 = vpack.c.bf16 %v406, %v403
        %v458 = vpack.c.bf16 %v410, %v407
        %v459 = vpack.c.bf16 %v411, %v408
        %v460 = vpack.c.bf16 %v412, %v409
        %461 = vmatpush.bf16.msra.mxu0 %v434
        %462 = vmatpush.bf16.msra.mxu0 %v431
        %463 = vmatpush.bf16.msra.mxu0 %v428
        %464 = vmatpush.bf16.msra.mxu0 %v425
        %465 = vmatpush.bf16.msra.mxu0 %v422
        %466 = vmatpush.bf16.msra.mxu0 %v419
        %467 = vmatpush.bf16.msra.mxu0 %v416
        %468 = vmatpush.bf16.msra.mxu0 %v413
        %469 = vmatmul.bf16.gmra.mxu0 %v313
        %v470 = vpop.f32.mrf.mxu0
        %v471 = vadd.f32 0.0, %v470
        %v472 = vpop.f32.mrf.mxu0
        %v473 = vadd.f32 0.0, %v472
        %474 = vmatmul.bf16.gmra.mxu0 %v315
        %v475 = vpop.f32.mrf.mxu0
        %v476 = vadd.f32 0.0, %v475
        %v477 = vpop.f32.mrf.mxu0
        %v478 = vadd.f32 0.0, %v477
        %479 = vdwg.mxu0
        %480 = vmatpush.bf16.msra.mxu0 %v458
        %481 = vmatpush.bf16.msra.mxu0 %v455
        %482 = vmatpush.bf16.msra.mxu0 %v452
        %483 = vmatpush.bf16.msra.mxu0 %v449
        %484 = vmatpush.bf16.msra.mxu0 %v446
        %485 = vmatpush.bf16.msra.mxu0 %v443
        %486 = vmatpush.bf16.msra.mxu0 %v440
        %487 = vmatpush.bf16.msra.mxu0 %v437
        %488 = vmatmul.bf16.gmra.mxu0 %v314
        %v489 = vpop.f32.mrf.mxu0
        %v490 = vadd.f32 %v471, %v489
        %v491 = vpop.f32.mrf.mxu0
        %v492 = vadd.f32 %v473, %v491
        %493 = vmatmul.bf16.gmra.mxu0 %v316
        %v494 = vpop.f32.mrf.mxu0
        %v495 = vadd.f32 %v476, %v494
        %v496 = vpop.f32.mrf.mxu0
        %v497 = vadd.f32 %v478, %v496
        %498 = vdwg.mxu0
        %499 = vmatpush.bf16.msra.mxu0 %v435
        %500 = vmatpush.bf16.msra.mxu0 %v432
        %501 = vmatpush.bf16.msra.mxu0 %v429
        %502 = vmatpush.bf16.msra.mxu0 %v426
        %503 = vmatpush.bf16.msra.mxu0 %v423
        %504 = vmatpush.bf16.msra.mxu0 %v420
        %505 = vmatpush.bf16.msra.mxu0 %v417
        %506 = vmatpush.bf16.msra.mxu0 %v414
        %507 = vmatmul.bf16.gmra.mxu0 %v313
        %v508 = vpop.f32.mrf.mxu0
        %v509 = vadd.f32 0.0, %v508
        %v510 = vpop.f32.mrf.mxu0
        %v511 = vadd.f32 0.0, %v510
        %512 = vmatmul.bf16.gmra.mxu0 %v315
        %v513 = vpop.f32.mrf.mxu0
        %v514 = vadd.f32 0.0, %v513
        %v515 = vpop.f32.mrf.mxu0
        %v516 = vadd.f32 0.0, %v515
        %517 = vdwg.mxu0
        %518 = vmatpush.bf16.msra.mxu0 %v459
        %519 = vmatpush.bf16.msra.mxu0 %v456
        %520 = vmatpush.bf16.msra.mxu0 %v453
        %521 = vmatpush.bf16.msra.mxu0 %v450
        %522 = vmatpush.bf16.msra.mxu0 %v447
        %523 = vmatpush.bf16.msra.mxu0 %v444
        %524 = vmatpush.bf16.msra.mxu0 %v441
        %525 = vmatpush.bf16.msra.mxu0 %v438
        %526 = vmatmul.bf16.gmra.mxu0 %v314
        %v527 = vpop.f32.mrf.mxu0
        %v528 = vadd.f32 %v509, %v527
        %v529 = vpop.f32.mrf.mxu0
        %v530 = vadd.f32 %v511, %v529
        %531 = vmatmul.bf16.gmra.mxu0 %v316
        %v532 = vpop.f32.mrf.mxu0
        %v533 = vadd.f32 %v514, %v532
        %v534 = vpop.f32.mrf.mxu0
        %v535 = vadd.f32 %v516, %v534
        %536 = vdwg.mxu0
        %537 = vmatpush.bf16.msra.mxu0 %v436
        %538 = vmatpush.bf16.msra.mxu0 %v433
        %539 = vmatpush.bf16.msra.mxu0 %v430
        %540 = vmatpush.bf16.msra.mxu0 %v427
        %541 = vmatpush.bf16.msra.mxu0 %v424
        %542 = vmatpush.bf16.msra.mxu0 %v421
        %543 = vmatpush.bf16.msra.mxu0 %v418
        %544 = vmatpush.bf16.msra.mxu0 %v415
        %545 = vmatmul.bf16.gmra.mxu0 %v313
        %v546 = vpop.f32.mrf.mxu0
        %v547 = vadd.f32 0.0, %v546
        %v548 = vpop.f32.mrf.mxu0
        %v549 = vadd.f32 0.0, %v548
        %550 = vmatmul.bf16.gmra.mxu0 %v315
        %v551 = vpop.f32.mrf.mxu0
        %v552 = vadd.f32 0.0, %v551
        %v553 = vpop.f32.mrf.mxu0
        %v554 = vadd.f32 0.0, %v553
        %555 = vdwg.mxu0
        %556 = vmatpush.bf16.msra.mxu0 %v460
        %557 = vmatpush.bf16.msra.mxu0 %v457
        %558 = vmatpush.bf16.msra.mxu0 %v454
        %559 = vmatpush.bf16.msra.mxu0 %v451
        %560 = vmatpush.bf16.msra.mxu0 %v448
        %561 = vmatpush.bf16.msra.mxu0 %v445
        %562 = vmatpush.bf16.msra.mxu0 %v442
        %563 = vmatpush.bf16.msra.mxu0 %v439
        %564 = vmatmul.bf16.gmra.mxu0 %v314
        %v565 = vpop.f32.mrf.mxu0
        %v566 = vadd.f32 %v547, %v565
        %v567 = vpop.f32.mrf.mxu0
        %v568 = vadd.f32 %v549, %v567
        %569 = vmatmul.bf16.gmra.mxu0 %v316
        %v570 = vpop.f32.mrf.mxu0
        %v571 = vadd.f32 %v552, %v570
        %v572 = vpop.f32.mrf.mxu0
        %v573 = vadd.f32 %v554, %v572
        %574 = vdwg.mxu0
        %v575 = vadd.f32 %v293, %v490
        %v576 = vadd.f32 %v294, %v528
        %v577 = vadd.f32 %v295, %v566
        %v578 = vadd.f32 %v296, %v492
        %v579 = vadd.f32 %v297, %v530
        %v580 = vadd.f32 %v298, %v568
        %v581 = vadd.f32 %v299, %v495
        %v582 = vadd.f32 %v300, %v533
        %v583 = vadd.f32 %v301, %v571
        %v584 = vadd.f32 %v302, %v497
        %v585 = vadd.f32 %v303, %v535
        %v586 = vadd.f32 %v304, %v573
        %587 = vst [vmem:[#allocation2] sm:$0xff] %v575
        %588 = vst [vmem:[#allocation2 + $0x8] sm:$0xff] %v576
        %589 = vst [vmem:[#allocation2 + $0x10] sm:$0xff] %v577
        %590 = vst [vmem:[#allocation2 + $0x18] sm:$0xff] %v578
        %591 = vst [vmem:[#allocation2 + $0x20] sm:$0xff] %v579
        %592 = vst [vmem:[#allocation2 + $0x28] sm:$0xff] %v580
        %593 = vst [vmem:[#allocation2 + $0x30] sm:$0xff] %v581
        %594 = vst [vmem:[#allocation2 + $0x38] sm:$0xff] %v582
        %595 = vst [vmem:[#allocation2 + $0x40] sm:$0xff] %v583
        %596 = vst [vmem:[#allocation2 + $0x48] sm:$0xff] %v584
        %597 = vst [vmem:[#allocation2 + $0x50] sm:$0xff] %v585
        %598 = vst [vmem:[#allocation2 + $0x58] sm:$0xff] %v586
        // Predicated region
        $region41: #{transformer_forward.39} parent=31 // pred_check
          %p599 = pneg %p277
        $region42: #{transformer_forward.39} parent=31 // pred_check_branch
          %601 = sbr.rel (%p599) target = $region44
        $region43: #{transformer_forward.39} parent=31 // pred_region
          %v602 = vld [vmem:[#allocation2] sm:$0xff]
          %v603 = vld [vmem:[#allocation2 + $0x8] sm:$0xff]
          %v604 = vld [vmem:[#allocation2 + $0x10] sm:$0xff]
          %v605 = vld [vmem:[#allocation2 + $0x18] sm:$0xff]
          %v606 = vld [vmem:[#allocation2 + $0x20] sm:$0xff]
          %v607 = vld [vmem:[#allocation2 + $0x28] sm:$0xff]
          %v608 = vld [vmem:[#allocation2 + $0x30] sm:$0xff]
          %v609 = vld [vmem:[#allocation2 + $0x38] sm:$0xff]
          %v610 = vld [vmem:[#allocation2 + $0x40] sm:$0xff]
          %v611 = vld [vmem:[#allocation2 + $0x48] sm:$0xff]
          %v612 = vld [vmem:[#allocation2 + $0x50] sm:$0xff]
          %v613 = vld [vmem:[#allocation2 + $0x58] sm:$0xff]
          %v614 = vld [vmem:[%s273] sm:$0x7]
          %v616 = vperm.slane %v614, 0
          %v617 = vperm.slane %v614, 1
          %v618 = vperm.slane %v614, 2
          %v622 = vadd.f32 %v602, %v616
          %v623 = vadd.f32 %v603, %v617
          %v624 = vadd.f32 %v604, %v618
          %v625 = vadd.f32 %v605, %v616
          %v626 = vadd.f32 %v606, %v617
          %v627 = vadd.f32 %v607, %v618
          %v628 = vadd.f32 %v608, %v616
          %v629 = vadd.f32 %v609, %v617
          %v630 = vadd.f32 %v610, %v618
          %v631 = vadd.f32 %v611, %v616
          %v632 = vadd.f32 %v612, %v617
          %v633 = vadd.f32 %v613, %v618
          %634 = vst [vmem:[%s255] sm:$0xff] %v622
          %635 = vst [vmem:[%s255 + $0x8] sm:$0xff] %v623
          %636 = vst [vmem:[%s255 + $0x10] sm:$0xff] %v624
          %637 = vst [vmem:[%s255 + $0x18] sm:$0xff] %v625
          %638 = vst [vmem:[%s255 + $0x20] sm:$0xff] %v626
          %639 = vst [vmem:[%s255 + $0x28] sm:$0xff] %v627
          %640 = vst [vmem:[%s255 + $0x30] sm:$0xff] %v628
          %641 = vst [vmem:[%s255 + $0x38] sm:$0xff] %v629
          %642 = vst [vmem:[%s255 + $0x40] sm:$0xff] %v630
          %643 = vst [vmem:[%s255 + $0x48] sm:$0xff] %v631
          %644 = vst [vmem:[%s255 + $0x50] sm:$0xff] %v632
          %645 = vst [vmem:[%s255 + $0x58] sm:$0xff] %v633
        $region44: #{transformer_forward.39} parent=31 // pred_fallthru
          _
        %s646 = sand.u32 %s128, 1
        %s647 = sand.u32 %s128, 1
        %s648 = smul.addr %s647, 96
        %s649 = scalar_lea.vmem [#allocation5], %s648
        // Predicated region
        $region45: #{transformer_forward.39} parent=31 // pred_check
          %p650 = pneg %p138
        $region46: #{transformer_forward.39} parent=31 // pred_check_branch
          %652 = sbr.rel (%p650) target = $region48
        $region47: #{transformer_forward.39} parent=31 // pred_region
          %s653 = smul.u32 4, %s22
          %s654 = smul.u32 3, %s23
          %s655 = smul.addr %s653, 6
          %s656 = sadd.s32 %s654, %s655
          %s657 = smul.addr %s656, 8
          %s658 = scalar_lea.vmem %s3, %s657
          // Predicated region
          $region49: #{transformer_forward.39} parent=47 // pred_check
            _
          $region50: #{transformer_forward.39} parent=47 // pred_check_branch
            %660 = sbr.rel (0) target = $region52
          $region51: #{transformer_forward.39} parent=47 // pred_region
            // Predicated region
            $region53: #{transformer_forward.39} parent=51 // pred_check
              _
            $region54: #{transformer_forward.39} parent=51 // pred_check_branch
              %662 = sbr.rel (0) target = $region56
            $region55: #{transformer_forward.39} parent=51 // pred_region
              loop: start=0, step=1, limit=1
              $region57: #{transformer_forward.39} parent=55 // loop_pre_header
                _
              $region58: #{transformer_forward.39} parent=55 // loop_header
                %s664 = sphi 0, %s668
                %p665 = scmp.ge.s32.totalorder %s664, 1
                %s669 = sphi %s649, %s649
                %s670 = sphi %s658, %s658
              $region59: #{transformer_forward.39} parent=55 // loop_header_branch
                %667 = sbr.rel (%p665) target = $region63
              $region60: #{transformer_forward.39} parent=55 // loop_body
                %v671 = vld [vmem:[%s669] sm:$0xff]
                %672 = vst [vmem:[%s670] sm:$0xff] %v671
                %v673 = vld [vmem:[%s669 + $0x8] sm:$0xff]
                %674 = vst [vmem:[%s670 + $0x8] sm:$0xff] %v673
                %v675 = vld [vmem:[%s669 + $0x10] sm:$0xff]
                %676 = vst [vmem:[%s670 + $0x10] sm:$0xff] %v675
                %v677 = vld [vmem:[%s669 + $0x18] sm:$0xff]
                %678 = vst [vmem:[%s670 + $0x30] sm:$0xff] %v677
                %v679 = vld [vmem:[%s669 + $0x20] sm:$0xff]
                %680 = vst [vmem:[%s670 + $0x38] sm:$0xff] %v679
                %v681 = vld [vmem:[%s669 + $0x28] sm:$0xff]
                %682 = vst [vmem:[%s670 + $0x40] sm:$0xff] %v681
                %v683 = vld [vmem:[%s669 + $0x30] sm:$0xff]
                %684 = vst [vmem:[%s670 + $0x60] sm:$0xff] %v683
                %v685 = vld [vmem:[%s669 + $0x38] sm:$0xff]
                %686 = vst [vmem:[%s670 + $0x68] sm:$0xff] %v685
                %v687 = vld [vmem:[%s669 + $0x40] sm:$0xff]
                %688 = vst [vmem:[%s670 + $0x70] sm:$0xff] %v687
                %v689 = vld [vmem:[%s669 + $0x48] sm:$0xff]
                %690 = vst [vmem:[%s670 + $0x90] sm:$0xff] %v689
                %v691 = vld [vmem:[%s669 + $0x50] sm:$0xff]
                %692 = vst [vmem:[%s670 + $0x98] sm:$0xff] %v691
                %v693 = vld [vmem:[%s669 + $0x58] sm:$0xff]
                %694 = vst [vmem:[%s670 + $0xa0] sm:$0xff] %v693
              $region61: #{transformer_forward.39} parent=55 // loop_footer
                %s668 = sadd.s32 1, %s664
              $region62: #{transformer_forward.39} parent=55 // loop_footer_branch
                %663 = sbr.rel target = $region58
              $region63: #{transformer_forward.39} parent=55 // loop_exit
                _
            $region56: #{transformer_forward.39} parent=51 // pred_fallthru
              _
            // Predicated region
            $region64: #{transformer_forward.39} parent=51 // pred_check
              _
            $region65: #{transformer_forward.39} parent=51 // pred_check_branch
              %696 = sbr.rel target = $region67
            $region66: #{transformer_forward.39} parent=51 // pred_region
              _
            $region67: #{transformer_forward.39} parent=51 // pred_fallthru
              _
          $region52: #{transformer_forward.39} parent=47 // pred_fallthru
            _
          %697 = vnop
        $region48: #{transformer_forward.39} parent=31 // pred_fallthru
          _
      $region32: #{transformer_forward.39} parent=5 // pred_fallthru
        _
      %p698 = scmp.le.s32.totalorder 2, %s12
      // Predicated region
      $region68: #{transformer_forward.39} parent=5 // pred_check
        %p699 = pneg %p698
      $region69: #{transformer_forward.39} parent=5 // pred_check_branch
        %701 = sbr.rel (%p699) target = $region71
      $region70: #{transformer_forward.39} parent=5 // pred_region
        %s702 = ssub.s32 %s12, 2
        // Predicated region
        $region72: #{transformer_forward.39} parent=70 // pred_check
          %p703 = pneg %p144
        $region73: #{transformer_forward.39} parent=70 // pred_check_branch
          %705 = sbr.rel (%p703) target = $region75
        $region74: #{transformer_forward.39} parent=70 // pred_region
          %s706 = sand.u32 %s129, 1
          %s707 = sand.u32 %s129, 1
          %s708 = smul.addr %s707, 96
          %s709 = scalar_lea.vmem [#allocation5], %s708
        $region75: #{transformer_forward.39} parent=70 // pred_fallthru
          _
      $region71: #{transformer_forward.39} parent=5 // pred_fallthru
        _
    $region6: #{transformer_forward.39} parent=1 // loop_footer
      %s16 = sadd.s32 1, %s12
    $region7: #{transformer_forward.39} parent=1 // loop_footer_branch
      %11 = sbr.rel target = $region3
    $region8: #{transformer_forward.39} parent=1 // loop_exit
      _
    %710 = vsyncpa [#allocation4], 1
    %s711 = scalar_lea.sflag [#allocation4], 1
    %712 = vsyncpa %s711, 1

// kernel: transformer_forward.40
$region0: #{transformer_forward.40}
  #allocation0 [shape = 'u32[]', space=smem, size = 0x4, offset = 0x4, fixed_abs, tag = 'smem constant byte address 0x4 - core index']
  #allocation1 [shape = 'u32[72,128]{1,0:T(1,128)}', space=vmem, size = 0x9000, scoped, tag = 'internal scratch']
  #allocation2 [shape = 'f32[16,1]{1,0:T(8,128)}', space=vmem, size = 0x2000, scoped, tag = 'scratch operand']
  #allocation3 [shape = 'f32[16,1]{1,0:T(8,128)}', space=vmem, size = 0x2000, scoped, tag = 'scratch operand']
  #allocation4 [shape = 'f32[16,128]{1,0:T(8,128)}', space=vmem, size = 0x2000, scoped, tag = 'scratch operand']
  %s0 = inlined_call_operand.vmem [shape: f32[2,16,768], index: 0, kind: input, shape index: {}, may-alias: {0,1,2}]
  %s1 = inlined_call_operand.vmem [shape: f32[2,16,768], index: 1, kind: input, shape index: {}, may-alias: {0,1,2}]
  %s2 = inlined_call_operand.vmem [shape: f32[2,16,768], index: 2, kind: input, shape index: {}, may-alias: {0,1,2}]
  %s3 = inlined_call_operand.vmem [shape: f32[2,16,256], index: 3, kind: output, shape index: {}]
  %s4 = sld [smem:[#allocation0]]
  $region213: #{transformer_forward.40} parent=0
    _
  %s6 = ssub.s32 1, %s4
  %s7 = scalar_select 0, %s6, %s4
  $region1: #{transformer_forward.40} parent=0
    #allocation5 [shape = 'u8[16384]{0}', space=vmem, size = 0x4000, scoped, tag = 'input window, operand 0']
    #allocation6 [shape = 'u8[16384]{0}', space=vmem, size = 0x4000, scoped, tag = 'input window, operand 1']
    #allocation7 [shape = 'u8[16384]{0}', space=vmem, size = 0x4000, scoped, tag = 'input window, operand 2']
    #allocation8 [shape = 'u8[16384]{0}', space=vmem, size = 0x4000, scoped, tag = 'output window, operand 0']
    loop: start=0, step=1, limit=6
    $region2: #{transformer_forward.40} parent=1 // loop_pre_header
      _
    $region3: #{transformer_forward.40} parent=1 // loop_header
      %s9 = sphi 0, %s13
      %p10 = scmp.ge.s32.totalorder %s9, 6
      %s16 = sphi 0, %s42
      %s17 = sphi 0, %s38
      %s18 = sphi 0, %s34
      %s19 = sphi 0, %s30
      %s20 = sphi 0, %s16
      %s21 = sphi 0, %s17
      %s22 = sphi 0, %s18
      %s23 = sphi 0, %s19
      %s24 = sphi 0, %s20
      %s25 = sphi 0, %s21
      %s26 = sphi 0, %s22
      %s27 = sphi 0, %s23
      %s49 = sphi 0, %s51
      %s52 = sphi 0, %s49
      %s53 = sphi 0, %s52
      %s69 = sphi 0, %s53
      %s81 = sphi 0, %s83
      %s84 = sphi 0, %s81
      %s85 = sphi 0, %s84
      %s101 = sphi 0, %s85
      %s113 = sphi 0, %s115
      %s116 = sphi 0, %s113
      %s117 = sphi 0, %s116
      %s133 = sphi 0, %s117
      %s143 = sphi 0, %s145
      %s146 = sphi 0, %s143
      %s147 = sphi 0, %s146
      %s163 = sphi 0, %s147
    $region4: #{transformer_forward.40} parent=1 // loop_header_branch
      %12 = sbr.rel (%p10) target = $region8
    $region5: #{transformer_forward.40} parent=1 // loop_body
      %s14 = ssub.s32 %s9, 1
      %s15 = ssub.s32 %s9, 2
      %s28 = sadd.s32 1, %s19
      %p29 = scmp.ge.s32.totalorder %s28, 1
      %s30 = scalar_select %p29, 0, %s28
      %s31 = sadd.s32 1, %s18
      %s32 = scalar_select %p29, %s31, %s18
      %p33 = scmp.ge.s32.totalorder %s32, 1
      %s34 = scalar_select %p33, 0, %s32
      %s35 = sadd.s32 1, %s17
      %s36 = scalar_select %p33, %s35, %s17
      %p37 = scmp.ge.s32.totalorder %s36, 2
      %s38 = scalar_select %p37, 0, %s36
      %s39 = sadd.s32 1, %s16
      %s40 = scalar_select %p37, %s39, %s16
      %p41 = scmp.ge.s32.totalorder %s40, 2
      %s42 = scalar_select %p41, 0, %s40
      %s43 = ssub.s32 %s16, %s42
      %s44 = ssub.s32 %s18, %s34
      %s45 = sor.u32 %s43, %s44
      %s46 = ssub.s32 %s17, %s38
      %s47 = sor.u32 %s45, %s46
      %p48 = scmp.eq.s32.totalorder %s47, 0
      %s50 = sadd.s32 %s49, 1
      %s51 = scalar_select %p48, %s49, %s50
      %p54 = pneg %p48
      %p55 = scmp.eq.s32.totalorder %s9, 3
      %p56 = por %p54, %p55
      %p57 = scmp.ne.s32.totalorder %s49, %s52
      %p58 = scmp.eq.s32.totalorder %s9, 0
      %p59 = por %p57, %p58
      %p60 = scmp.ne.s32.totalorder %s49, %s52
      %p61 = scmp.eq.s32.totalorder %s14, 3
      %p62 = por %p60, %p61
      %p63 = scmp.ne.s32.totalorder %s52, %s53
      %p64 = scmp.eq.s32.totalorder %s14, 0
      %p65 = por %p63, %p64
      %p66 = scmp.ne.s32.totalorder %s52, %s53
      %p67 = scmp.eq.s32.totalorder %s15, 3
      %p68 = por %p66, %p67
      %p70 = scmp.ne.s32.totalorder %s53, %s69
      %p71 = scmp.eq.s32.totalorder %s15, 0
      %p72 = por %p70, %p71
      %s73 = sadd.s32 %s17, 2
      %s74 = sadd.s32 %s38, 2
      %s75 = ssub.s32 %s16, %s42
      %s76 = ssub.s32 %s19, %s30
      %s77 = sor.u32 %s75, %s76
      %s78 = ssub.s32 %s73, %s74
      %s79 = sor.u32 %s77, %s78
      %p80 = scmp.eq.s32.totalorder %s79, 0
      %s82 = sadd.s32 %s81, 1
      %s83 = scalar_select %p80, %s81, %s82
      %p86 = pneg %p80
      %p87 = scmp.eq.s32.totalorder %s9, 3
      %p88 = por %p86, %p87
      %p89 = scmp.ne.s32.totalorder %s81, %s84
      %p90 = scmp.eq.s32.totalorder %s9, 0
      %p91 = por %p89, %p90
      %p92 = scmp.ne.s32.totalorder %s81, %s84
      %p93 = scmp.eq.s32.totalorder %s14, 3
      %p94 = por %p92, %p93
      %p95 = scmp.ne.s32.totalorder %s84, %s85
      %p96 = scmp.eq.s32.totalorder %s14, 0
      %p97 = por %p95, %p96
      %p98 = scmp.ne.s32.totalorder %s84, %s85
      %p99 = scmp.eq.s32.totalorder %s15, 3
      %p100 = por %p98, %p99
      %p102 = scmp.ne.s32.totalorder %s85, %s101
      %p103 = scmp.eq.s32.totalorder %s15, 0
      %p104 = por %p102, %p103
      %s105 = sadd.s32 %s17, 4
      %s106 = sadd.s32 %s38, 4
      %s107 = ssub.s32 %s16, %s42
      %s108 = ssub.s32 %s19, %s30
      %s109 = sor.u32 %s107, %s108
      %s110 = ssub.s32 %s105, %s106
      %s111 = sor.u32 %s109, %s110
      %p112 = scmp.eq.s32.totalorder %s111, 0
      %s114 = sadd.s32 %s113, 1
      %s115 = scalar_select %p112, %s113, %s114
      %p118 = pneg %p112
      %p119 = scmp.eq.s32.totalorder %s9, 3
      %p120 = por %p118, %p119
      %p121 = scmp.ne.s32.totalorder %s113, %s116
      %p122 = scmp.eq.s32.totalorder %s9, 0
      %p123 = por %p121, %p122
      %p124 = scmp.ne.s32.totalorder %s113, %s116
      %p125 = scmp.eq.s32.totalorder %s14, 3
      %p126 = por %p124, %p125
      %p127 = scmp.ne.s32.totalorder %s116, %s117
      %p128 = scmp.eq.s32.totalorder %s14, 0
      %p129 = por %p127, %p128
      %p130 = scmp.ne.s32.totalorder %s116, %s117
      %p131 = scmp.eq.s32.totalorder %s15, 3
      %p132 = por %p130, %p131
      %p134 = scmp.ne.s32.totalorder %s117, %s133
      %p135 = scmp.eq.s32.totalorder %s15, 0
      %p136 = por %p134, %p135
      %s137 = ssub.s32 %s16, %s42
      %s138 = ssub.s32 %s18, %s34
      %s139 = sor.u32 %s137, %s138
      %s140 = ssub.s32 %s17, %s38
      %s141 = sor.u32 %s139, %s140
      %p142 = scmp.eq.s32.totalorder %s141, 0
      %s144 = sadd.s32 %s143, 1
      %s145 = scalar_select %p142, %s143, %s144
      %p148 = pneg %p142
      %p149 = scmp.eq.s32.totalorder %s9, 3
      %p150 = por %p148, %p149
      %p151 = scmp.ne.s32.totalorder %s143, %s146
      %p152 = scmp.eq.s32.totalorder %s9, 0
      %p153 = por %p151, %p152
      %p154 = scmp.ne.s32.totalorder %s143, %s146
      %p155 = scmp.eq.s32.totalorder %s14, 3
      %p156 = por %p154, %p155
      %p157 = scmp.ne.s32.totalorder %s146, %s147
      %p158 = scmp.eq.s32.totalorder %s14, 0
      %p159 = por %p157, %p158
      %p160 = scmp.ne.s32.totalorder %s146, %s147
      %p161 = scmp.eq.s32.totalorder %s15, 3
      %p162 = por %p160, %p161
      %p164 = scmp.ne.s32.totalorder %s147, %s163
      %p165 = scmp.eq.s32.totalorder %s15, 0
      %p166 = por %p164, %p165
      %p167 = scmp.le.s32.totalorder 1, %s9
      %p168 = scmp.lt.s32.totalorder %s9, 5
      %p169 = pnand %p167, %p168
      %p170 = pneg %p169
      // Predicated region
      $region9: #{transformer_forward.40} parent=5 // pred_check
        _
      $region10: #{transformer_forward.40} parent=5 // pred_check_branch
        %172 = sbr.rel (%p169) target = $region12
      $region11: #{transformer_forward.40} parent=5 // pred_region
        %s173 = ssub.s32 %s9, 1
      $region12: #{transformer_forward.40} parent=5 // pred_fallthru
        _
      %p174 = scmp.lt.s32.totalorder %s9, 4
      // Predicated region
      $region13: #{transformer_forward.40} parent=5 // pred_check
        %p175 = pneg %p174
      $region14: #{transformer_forward.40} parent=5 // pred_check_branch
        %177 = sbr.rel (%p175) target = $region16
      $region15: #{transformer_forward.40} parent=5 // pred_region
        // Predicated region
        $region17: #{transformer_forward.40} parent=15 // pred_check
          %p178 = pneg %p59
        $region18: #{transformer_forward.40} parent=15 // pred_check_branch
          %180 = sbr.rel (%p178) target = $region20
        $region19: #{transformer_forward.40} parent=15 // pred_region
          %s181 = sand.u32 %s49, 1
          %s182 = sand.u32 %s49, 1
          %s183 = smul.addr %s182, 16
          %s184 = scalar_lea.vmem [#allocation5], %s183
          %s185 = smul.u32 2, %s18
          %s186 = smul.addr %s185, 6
          %s187 = sadd.s32 %s17, %s186
          %s188 = smul.addr %s16, 12
          %s189 = sadd.s32 %s187, %s188
          %s190 = smul.addr %s189, 8
          %s191 = scalar_lea.vmem %s0, %s190
          // Predicated region
          $region21: #{transformer_forward.40} parent=19 // pred_check
            _
          $region22: #{transformer_forward.40} parent=19 // pred_check_branch
            %193 = sbr.rel (0) target = $region24
          $region23: #{transformer_forward.40} parent=19 // pred_region
            // Predicated region
            $region25: #{transformer_forward.40} parent=23 // pred_check
              _
            $region26: #{transformer_forward.40} parent=23 // pred_check_branch
              %195 = sbr.rel (0) target = $region28
            $region27: #{transformer_forward.40} parent=23 // pred_region
              // Predicated region
              $region40: #{transformer_forward.40} parent=27 // pred_check
                _
              $region41: #{transformer_forward.40} parent=27 // pred_check_branch
                %213 = sbr.rel (0) target = $region43
              $region42: #{transformer_forward.40} parent=27 // pred_region
                loop: start=0, step=1, limit=1
                $region44: #{transformer_forward.40} parent=42 // loop_pre_header
                  _
                $region45: #{transformer_forward.40} parent=42 // loop_header
                  %s215 = sphi 0, %s219
                  %p216 = scmp.ge.s32.totalorder %s215, 1
                  %s220 = sphi %s191, %s191
                  %s221 = sphi %s184, %s184
                $region46: #{transformer_forward.40} parent=42 // loop_header_branch
                  %218 = sbr.rel (%p216) target = $region50
                $region47: #{transformer_forward.40} parent=42 // loop_body
                  %v222 = vld [vmem:[%s220] sm:$0xff]
                  %223 = vst [vmem:[%s221] sm:$0xff] %v222
                  %v224 = vld [vmem:[%s220 + $0x30] sm:$0xff]
                  %225 = vst [vmem:[%s221 + $0x8] sm:$0xff] %v224
                $region48: #{transformer_forward.40} parent=42 // loop_footer
                  %s219 = sadd.s32 1, %s215
                $region49: #{transformer_forward.40} parent=42 // loop_footer_branch
                  %214 = sbr.rel target = $region45
                $region50: #{transformer_forward.40} parent=42 // loop_exit
                  _
              $region43: #{transformer_forward.40} parent=27 // pred_fallthru
                _
              // Predicated region
              $region51: #{transformer_forward.40} parent=27 // pred_check
                _
              $region52: #{transformer_forward.40} parent=27 // pred_check_branch
                %227 = sbr.rel target = $region54
              $region53: #{transformer_forward.40} parent=27 // pred_region
                _
              $region54: #{transformer_forward.40} parent=27 // pred_fallthru
                _
            $region28: #{transformer_forward.40} parent=23 // pred_fallthru
              _
            // Predicated region
            $region29: #{transformer_forward.40} parent=23 // pred_check
              _
            $region30: #{transformer_forward.40} parent=23 // pred_check_branch
              %197 = sbr.rel target = $region32
            $region31: #{transformer_forward.40} parent=23 // pred_region
              %s199 = ssub.s32 256, 1
              loop: start=0, step=1, limit=1
              $region33: #{transformer_forward.40} parent=31 // loop_pre_header
                _
              $region34: #{transformer_forward.40} parent=31 // loop_header
                %s201 = sphi 0, %s205
                %p202 = scmp.ge.s32.totalorder %s201, 1
                %s206 = sphi %s191, %s191
                %s207 = sphi %s184, %s184
              $region35: #{transformer_forward.40} parent=31 // loop_header_branch
                %204 = sbr.rel (%p202) target = $region39
              $region36: #{transformer_forward.40} parent=31 // loop_body
                %v208 = vld [vmem:[%s206] sm:%s199]
                %209 = vst [vmem:[%s207] sm:%s199] %v208
                %v210 = vld [vmem:[%s206 + $0x30] sm:%s199]
                %211 = vst [vmem:[%s207 + $0x8] sm:%s199] %v210
              $region37: #{transformer_forward.40} parent=31 // loop_footer
                %s205 = sadd.s32 1, %s201
              $region38: #{transformer_forward.40} parent=31 // loop_footer_branch
                %200 = sbr.rel target = $region34
              $region39: #{transformer_forward.40} parent=31 // loop_exit
                _
            $region32: #{transformer_forward.40} parent=23 // pred_fallthru
              _
          $region24: #{transformer_forward.40} parent=19 // pred_fallthru
            _
          %228 = vnop
        $region20: #{transformer_forward.40} parent=15 // pred_fallthru
          _
        // Predicated region
        $region55: #{transformer_forward.40} parent=15 // pred_check
          %p229 = pneg %p91
        $region56: #{transformer_forward.40} parent=15 // pred_check_branch
          %231 = sbr.rel (%p229) target = $region58
        $region57: #{transformer_forward.40} parent=15 // pred_region
          %s232 = sand.u32 %s81, 1
          %s233 = sand.u32 %s81, 1
          %s234 = smul.addr %s233, 16
          %s235 = scalar_lea.vmem [#allocation6], %s234
          %s236 = sadd.s32 %s17, 2
          %s237 = smul.u32 2, %s19
          %s238 = smul.addr %s237, 6
          %s239 = sadd.s32 %s236, %s238
          %s240 = smul.addr %s16, 12
          %s241 = sadd.s32 %s239, %s240
          %s242 = smul.addr %s241, 8
          %s243 = scalar_lea.vmem %s1, %s242
          // Predicated region
          $region59: #{transformer_forward.40} parent=57 // pred_check
            _
          $region60: #{transformer_forward.40} parent=57 // pred_check_branch
            %245 = sbr.rel (0) target = $region62
          $region61: #{transformer_forward.40} parent=57 // pred_region
            // Predicated region
            $region63: #{transformer_forward.40} parent=61 // pred_check
              _
            $region64: #{transformer_forward.40} parent=61 // pred_check_branch
              %247 = sbr.rel (0) target = $region66
            $region65: #{transformer_forward.40} parent=61 // pred_region
              // Predicated region
              $region78: #{transformer_forward.40} parent=65 // pred_check
                _
              $region79: #{transformer_forward.40} parent=65 // pred_check_branch
                %265 = sbr.rel (0) target = $region81
              $region80: #{transformer_forward.40} parent=65 // pred_region
                loop: start=0, step=1, limit=1
                $region82: #{transformer_forward.40} parent=80 // loop_pre_header
                  _
                $region83: #{transformer_forward.40} parent=80 // loop_header
                  %s267 = sphi 0, %s271
                  %p268 = scmp.ge.s32.totalorder %s267, 1
                  %s272 = sphi %s243, %s243
                  %s273 = sphi %s235, %s235
                $region84: #{transformer_forward.40} parent=80 // loop_header_branch
                  %270 = sbr.rel (%p268) target = $region88
                $region85: #{transformer_forward.40} parent=80 // loop_body
                  %v274 = vld [vmem:[%s272] sm:$0xff]
                  %275 = vst [vmem:[%s273] sm:$0xff] %v274
                  %v276 = vld [vmem:[%s272 + $0x30] sm:$0xff]
                  %277 = vst [vmem:[%s273 + $0x8] sm:$0xff] %v276
                $region86: #{transformer_forward.40} parent=80 // loop_footer
                  %s271 = sadd.s32 1, %s267
                $region87: #{transformer_forward.40} parent=80 // loop_footer_branch
                  %266 = sbr.rel target = $region83
                $region88: #{transformer_forward.40} parent=80 // loop_exit
                  _
              $region81: #{transformer_forward.40} parent=65 // pred_fallthru
                _
              // Predicated region
              $region89: #{transformer_forward.40} parent=65 // pred_check
                _
              $region90: #{transformer_forward.40} parent=65 // pred_check_branch
                %279 = sbr.rel target = $region92
              $region91: #{transformer_forward.40} parent=65 // pred_region
                _
              $region92: #{transformer_forward.40} parent=65 // pred_fallthru
                _
            $region66: #{transformer_forward.40} parent=61 // pred_fallthru
              _
            // Predicated region
            $region67: #{transformer_forward.40} parent=61 // pred_check
              _
            $region68: #{transformer_forward.40} parent=61 // pred_check_branch
              %249 = sbr.rel target = $region70
            $region69: #{transformer_forward.40} parent=61 // pred_region
              %s251 = ssub.s32 256, 1
              loop: start=0, step=1, limit=1
              $region71: #{transformer_forward.40} parent=69 // loop_pre_header
                _
              $region72: #{transformer_forward.40} parent=69 // loop_header
                %s253 = sphi 0, %s257
                %p254 = scmp.ge.s32.totalorder %s253, 1
                %s258 = sphi %s243, %s243
                %s259 = sphi %s235, %s235
              $region73: #{transformer_forward.40} parent=69 // loop_header_branch
                %256 = sbr.rel (%p254) target = $region77
              $region74: #{transformer_forward.40} parent=69 // loop_body
                %v260 = vld [vmem:[%s258] sm:%s251]
                %261 = vst [vmem:[%s259] sm:%s251] %v260
                %v262 = vld [vmem:[%s258 + $0x30] sm:%s251]
                %263 = vst [vmem:[%s259 + $0x8] sm:%s251] %v262
              $region75: #{transformer_forward.40} parent=69 // loop_footer
                %s257 = sadd.s32 1, %s253
              $region76: #{transformer_forward.40} parent=69 // loop_footer_branch
                %252 = sbr.rel target = $region72
              $region77: #{transformer_forward.40} parent=69 // loop_exit
                _
            $region70: #{transformer_forward.40} parent=61 // pred_fallthru
              _
          $region62: #{transformer_forward.40} parent=57 // pred_fallthru
            _
          %280 = vnop
        $region58: #{transformer_forward.40} parent=15 // pred_fallthru
          _
        // Predicated region
        $region93: #{transformer_forward.40} parent=15 // pred_check
          %p281 = pneg %p123
        $region94: #{transformer_forward.40} parent=15 // pred_check_branch
          %283 = sbr.rel (%p281) target = $region96
        $region95: #{transformer_forward.40} parent=15 // pred_region
          %s284 = sand.u32 %s113, 1
          %s285 = sand.u32 %s113, 1
          %s286 = smul.addr %s285, 16
          %s287 = scalar_lea.vmem [#allocation7], %s286
          %s288 = sadd.s32 %s17, 4
          %s289 = smul.u32 2, %s19
          %s290 = smul.addr %s289, 6
          %s291 = sadd.s32 %s288, %s290
          %s292 = smul.addr %s16, 12
          %s293 = sadd.s32 %s291, %s292
          %s294 = smul.addr %s293, 8
          %s295 = scalar_lea.vmem %s2, %s294
          // Predicated region
          $region97: #{transformer_forward.40} parent=95 // pred_check
            _
          $region98: #{transformer_forward.40} parent=95 // pred_check_branch
            %297 = sbr.rel (0) target = $region100
          $region99: #{transformer_forward.40} parent=95 // pred_region
            // Predicated region
            $region101: #{transformer_forward.40} parent=99 // pred_check
              _
            $region102: #{transformer_forward.40} parent=99 // pred_check_branch
              %299 = sbr.rel (0) target = $region104
            $region103: #{transformer_forward.40} parent=99 // pred_region
              // Predicated region
              $region116: #{transformer_forward.40} parent=103 // pred_check
                _
              $region117: #{transformer_forward.40} parent=103 // pred_check_branch
                %317 = sbr.rel (0) target = $region119
              $region118: #{transformer_forward.40} parent=103 // pred_region
                loop: start=0, step=1, limit=1
                $region120: #{transformer_forward.40} parent=118 // loop_pre_header
                  _
                $region121: #{transformer_forward.40} parent=118 // loop_header
                  %s319 = sphi 0, %s323
                  %p320 = scmp.ge.s32.totalorder %s319, 1
                  %s324 = sphi %s295, %s295
                  %s325 = sphi %s287, %s287
                $region122: #{transformer_forward.40} parent=118 // loop_header_branch
                  %322 = sbr.rel (%p320) target = $region126
                $region123: #{transformer_forward.40} parent=118 // loop_body
                  %v326 = vld [vmem:[%s324] sm:$0xff]
                  %327 = vst [vmem:[%s325] sm:$0xff] %v326
                  %v328 = vld [vmem:[%s324 + $0x30] sm:$0xff]
                  %329 = vst [vmem:[%s325 + $0x8] sm:$0xff] %v328
                $region124: #{transformer_forward.40} parent=118 // loop_footer
                  %s323 = sadd.s32 1, %s319
                $region125: #{transformer_forward.40} parent=118 // loop_footer_branch
                  %318 = sbr.rel target = $region121
                $region126: #{transformer_forward.40} parent=118 // loop_exit
                  _
              $region119: #{transformer_forward.40} parent=103 // pred_fallthru
                _
              // Predicated region
              $region127: #{transformer_forward.40} parent=103 // pred_check
                _
              $region128: #{transformer_forward.40} parent=103 // pred_check_branch
                %331 = sbr.rel target = $region130
              $region129: #{transformer_forward.40} parent=103 // pred_region
                _
              $region130: #{transformer_forward.40} parent=103 // pred_fallthru
                _
            $region104: #{transformer_forward.40} parent=99 // pred_fallthru
              _
            // Predicated region
            $region105: #{transformer_forward.40} parent=99 // pred_check
              _
            $region106: #{transformer_forward.40} parent=99 // pred_check_branch
              %301 = sbr.rel target = $region108
            $region107: #{transformer_forward.40} parent=99 // pred_region
              %s303 = ssub.s32 256, 1
              loop: start=0, step=1, limit=1
              $region109: #{transformer_forward.40} parent=107 // loop_pre_header
                _
              $region110: #{transformer_forward.40} parent=107 // loop_header
                %s305 = sphi 0, %s309
                %p306 = scmp.ge.s32.totalorder %s305, 1
                %s310 = sphi %s295, %s295
                %s311 = sphi %s287, %s287
              $region111: #{transformer_forward.40} parent=107 // loop_header_branch
                %308 = sbr.rel (%p306) target = $region115
              $region112: #{transformer_forward.40} parent=107 // loop_body
                %v312 = vld [vmem:[%s310] sm:%s303]
                %313 = vst [vmem:[%s311] sm:%s303] %v312
                %v314 = vld [vmem:[%s310 + $0x30] sm:%s303]
                %315 = vst [vmem:[%s311 + $0x8] sm:%s303] %v314
              $region113: #{transformer_forward.40} parent=107 // loop_footer
                %s309 = sadd.s32 1, %s305
              $region114: #{transformer_forward.40} parent=107 // loop_footer_branch
                %304 = sbr.rel target = $region110
              $region115: #{transformer_forward.40} parent=107 // loop_exit
                _
            $region108: #{transformer_forward.40} parent=99 // pred_fallthru
              _
          $region100: #{transformer_forward.40} parent=95 // pred_fallthru
            _
          %332 = vnop
        $region96: #{transformer_forward.40} parent=15 // pred_fallthru
          _
      $region16: #{transformer_forward.40} parent=5 // pred_fallthru
        _
      %p333 = scmp.le.s32.totalorder 1, %s9
      %p334 = scmp.lt.s32.totalorder %s9, 5
      %p335 = pnand %p333, %p334
      %p336 = pneg %p335
      // Predicated region
      $region131: #{transformer_forward.40} parent=5 // pred_check
        _
      $region132: #{transformer_forward.40} parent=5 // pred_check_branch
        %338 = sbr.rel (%p335) target = $region134
      $region133: #{transformer_forward.40} parent=5 // pred_region
        %s339 = ssub.s32 %s9, 1
        %s340 = sand.u32 %s52, 1
        %s341 = sand.u32 %s52, 1
        %s342 = smul.addr %s341, 16
        %s343 = scalar_lea.vmem [#allocation5], %s342
        // Predicated region
        $region135: #{transformer_forward.40} parent=133 // pred_check
          %p344 = pneg %p65
        $region136: #{transformer_forward.40} parent=133 // pred_check_branch
          %346 = sbr.rel (%p344) target = $region138
        $region137: #{transformer_forward.40} parent=133 // pred_region
          _
        $region138: #{transformer_forward.40} parent=133 // pred_fallthru
          _
        %s347 = sand.u32 %s84, 1
        %s348 = sand.u32 %s84, 1
        %s349 = smul.addr %s348, 16
        %s350 = scalar_lea.vmem [#allocation6], %s349
        // Predicated region
        $region139: #{transformer_forward.40} parent=133 // pred_check
          %p351 = pneg %p97
        $region140: #{transformer_forward.40} parent=133 // pred_check_branch
          %353 = sbr.rel (%p351) target = $region142
        $region141: #{transformer_forward.40} parent=133 // pred_region
          _
        $region142: #{transformer_forward.40} parent=133 // pred_fallthru
          _
        %s354 = sand.u32 %s116, 1
        %s355 = sand.u32 %s116, 1
        %s356 = smul.addr %s355, 16
        %s357 = scalar_lea.vmem [#allocation7], %s356
        // Predicated region
        $region143: #{transformer_forward.40} parent=133 // pred_check
          %p358 = pneg %p129
        $region144: #{transformer_forward.40} parent=133 // pred_check_branch
          %360 = sbr.rel (%p358) target = $region146
        $region145: #{transformer_forward.40} parent=133 // pred_region
          _
        $region146: #{transformer_forward.40} parent=133 // pred_fallthru
          _
        %s361 = sand.u32 %s52, 1
        %s362 = sand.u32 %s52, 1
        %s363 = smul.addr %s362, 16
        %s364 = scalar_lea.vmem [#allocation5], %s363
        %p365 = pneg %p65
        %p366 = pneg %p62
        %s367 = sand.u32 %s84, 1
        %s368 = sand.u32 %s84, 1
        %s369 = smul.addr %s368, 16
        %s370 = scalar_lea.vmem [#allocation6], %s369
        %p371 = pneg %p97
        %p372 = pneg %p94
        %s373 = sand.u32 %s116, 1
        %s374 = sand.u32 %s116, 1
        %s375 = smul.addr %s374, 16
        %s376 = scalar_lea.vmem [#allocation7], %s375
        %p377 = pneg %p129
        %p378 = pneg %p126
        %p379 = pneg %p159
        %p380 = pneg %p156
        %s381 = sand.u32 %s146, 1
        %s382 = sand.u32 %s146, 1
        %s383 = smul.addr %s382, 16
        %s384 = scalar_lea.vmem [#allocation8], %s383
        %s385 = smul.u32 2, %s22
        %s386 = sadd.s32 %s21, 2
        %s387 = smul.u32 2, %s23
        %s388 = sadd.s32 %s21, 4
        %s389 = smul.u32 2, %s23
        %s390 = smul.u32 2, %s22
        %p392 = scmp.eq.s32.totalorder %s23, 0
        // Predicated region
        $region147: #{transformer_forward.40} parent=133 // pred_check
          %p393 = pneg %p392
        $region148: #{transformer_forward.40} parent=133 // pred_check_branch
          %395 = sbr.rel (%p393) target = $region150
        $region149: #{transformer_forward.40} parent=133 // pred_region
          %vm396 = vcmask 7168
          %397 = vst.msk [vmem:[#allocation2] sm:$0xff] %vm396, -inf
          %398 = vst.msk [vmem:[#allocation2 + $0x8] sm:$0xff] %vm396, -inf
          %399 = vst.msk [vmem:[#allocation3] sm:$0xff] %vm396, 0.0
          %400 = vst.msk [vmem:[#allocation3 + $0x8] sm:$0xff] %vm396, 0.0
          %401 = vst [vmem:[#allocation4] sm:$0xff] 0.0
          %402 = vst [vmem:[#allocation4 + $0x8] sm:$0xff] 0.0
        $region150: #{transformer_forward.40} parent=133 // pred_fallthru
          _
        %v403 = vld [vmem:[%s343] sm:$0xff]
        %v404 = vld [vmem:[%s343 + $0x8] sm:$0xff]
        %v405 = vmul.f32 %v403, 0.088388346
        %v406 = vmul.f32 %v404, 0.088388346
        %v407 = vpack.c.bf16 %v406, %v405
        %v408 = vld [vmem:[%s350] sm:$0xff]
        %v409 = vld [vmem:[%s350 + $0x8] sm:$0xff]
        %v410 = vpack.c.bf16 %v409, %v408
        %v411 = vld [vmem:[%s357] sm:$0xff]
        %v412 = vld [vmem:[%s357 + $0x8] sm:$0xff]
        %s413 = smul.u32 %s22, 16
        %s414 = smul.u32 %s23, 16
        %s415 = sadd.s32 %s414, 16
        %p416 = scmp.le.s32.totalorder %s415, %s413
        %s417 = sadd.s32 %s413, 15
        %p418 = scmp.ge.s32.totalorder %s414, %s417
        // Predicated region
        $region151: #{transformer_forward.40} parent=133 // pred_check
          %p419 = pneg %p416
        $region152: #{transformer_forward.40} parent=133 // pred_check_branch
          %421 = sbr.rel (%p419) target = $region154
        $region153: #{transformer_forward.40} parent=133 // pred_region
          %v422 = vld [vmem:[#allocation2] sm:$0xff]
          %v423 = vld [vmem:[#allocation2 + $0x8] sm:$0xff]
          %v424 = vmax.f32 %v422, 0.0
          %v425 = vmax.f32 %v423, 0.0
          %v426 = vsub.f32 %v422, %v424
          %v427 = vsub.f32 %v423, %v425
          %v428 = vmul.f32 %v426, 1.442695
          %v429 = vpow.pop %v428
          %v430 = vmul.f32 %v427, 1.442695
          %v431 = vpow.pop %v430
          %v432 = vsub.f32 0.0, %v424
          %v433 = vsub.f32 0.0, %v425
          %v434 = vmul.f32 %v432, 1.442695
          %v435 = vpow.pop %v434
          %v436 = vmul.f32 %v433, 1.442695
          %v437 = vpow.pop %v436
          %v438 = vld [vmem:[#allocation3] sm:$0xff]
          %v439 = vld [vmem:[#allocation3 + $0x8] sm:$0xff]
          %v440 = vmul.f32 %v429, %v438
          %v441 = vmul.f32 %v431, %v439
          %v442 = vmul.f32 %v435, 16.0
          %v443 = vmul.f32 %v437, 16.0
          %v444 = vadd.f32 %v440, %v442
          %v445 = vadd.f32 %v441, %v443
          %vm446 = vcmask 7168
          %447 = vst.msk [vmem:[#allocation3] sm:$0xff] %vm446, %v444
          %448 = vst.msk [vmem:[#allocation3 + $0x8] sm:$0xff] %vm446, %v445
          %v449 = vadd.f32 %v411, %v412
          %v450 = vrot.slane %v449, 4
          %v451 = vadd.f32 %v449, %v450
          %v452 = vrot.slane %v451, 2
          %v453 = vadd.f32 %v451, %v452
          %v454 = vrot.slane %v453, 1
          %v455 = vadd.f32 %v453, %v454
          %v456 = vld [vmem:[#allocation4] sm:$0xff]
          %v457 = vld [vmem:[#allocation4 + $0x8] sm:$0xff]
          %459 = vset.pattern.permute.xlu0 0
          %460 = vperm.xlu0 %459, %v429
          %v461 = vpop.permute.xlu0 %460
          %464 = vset.pattern.permute.xlu0 0
          %465 = vperm.xlu0 %464, %v431
          %v466 = vpop.permute.xlu0 %465
          %v468 = vmul.f32 %v461, %v456
          %v469 = vmul.f32 %v466, %v457
          %471 = vset.pattern.permute.xlu0 0
          %472 = vperm.xlu0 %471, %v435
          %v473 = vpop.permute.xlu0 %472
          %476 = vset.pattern.permute.xlu0 0
          %477 = vperm.xlu0 %476, %v437
          %v478 = vpop.permute.xlu0 %477
          %v480 = vmul.f32 %v473, %v455
          %v481 = vmul.f32 %v478, %v455
          %v482 = vadd.f32 %v468, %v480
          %v483 = vadd.f32 %v469, %v481
          %484 = vst [vmem:[#allocation4] sm:$0xff] %v482
          %485 = vst [vmem:[#allocation4 + $0x8] sm:$0xff] %v483
          %486 = vst.msk [vmem:[#allocation2] sm:$0xff] %vm446, %v424
          %487 = vst.msk [vmem:[#allocation2 + $0x8] sm:$0xff] %vm446, %v425
        $region154: #{transformer_forward.40} parent=133 // pred_fallthru
          _
        %p488 = scmp.gt.s32.totalorder %s415, %s413
        %p489 = pnand %p488, %p418
        %p490 = pneg %p489
        // Predicated region
        $region155: #{transformer_forward.40} parent=133 // pred_check
          _
        $region156: #{transformer_forward.40} parent=133 // pred_check_branch
          %492 = sbr.rel (%p489) target = $region158
        $region157: #{transformer_forward.40} parent=133 // pred_region
          %493 = vmatpush.bf16.xpose.msra.mxu0 0
          %494 = vmatpush.bf16.xpose.msra.mxu0 0
          %495 = vmatpush.bf16.xpose.msra.mxu0 0
          %496 = vmatpush.bf16.xpose.msra.mxu0 0
          %497 = vmatpush.bf16.xpose.msra.mxu0 0
          %498 = vmatpush.bf16.xpose.msra.mxu0 0
          %499 = vmatpush.bf16.xpose.msra.mxu0 0
          %500 = vmatpush.bf16.xpose.msra.mxu0 %v410
          %501 = vmatmul.bf16.gmra.mxu0 %v407
          %v502 = vpop.f32.mrf.mxu0
          %v503 = vadd.f32 0.0, %v502
          %v504 = vpop.f32.mrf.mxu0
          %v505 = vadd.f32 0.0, %v504
          %506 = vdwg.mxu0
          %v507 = vld [vmem:[#allocation2] sm:$0xff]
          %v508 = vld [vmem:[#allocation2 + $0x8] sm:$0xff]
          %vm509 = vcmask 130048
          %v510 = vsel %vm509, %v503, -inf
          %511 = vmax.xlane.f32.xlu0 %v510
          %v512 = vpop.xlane.xlu0 %511
          %v513 = vsel %vm509, %v505, -inf
          %514 = vmax.xlane.f32.xlu0 %v513
          %v515 = vpop.xlane.xlu0 %514
          %v516 = vmax.f32 %v507, %v512
          %v517 = vmax.f32 %v508, %v515
          %v518 = vsub.f32 %v507, %v516
          %v519 = vsub.f32 %v508, %v517
          %v520 = vmul.f32 %v518, 1.442695
          %v521 = vpow.pop %v520
          %v522 = vmul.f32 %v519, 1.442695
          %v523 = vpow.pop %v522
          %525 = vset.pattern.permute.xlu0 0
          %526 = vperm.xlu0 %525, %v516
          %v527 = vpop.permute.xlu0 %526
          %530 = vset.pattern.permute.xlu0 0
          %531 = vperm.xlu0 %530, %v517
          %v532 = vpop.permute.xlu0 %531
          %v534 = vsub.f32 %v503, %v527
          %v535 = vsub.f32 %v505, %v532
          %v536 = vmul.f32 %v534, 1.442695
          %v537 = vpow.pop %v536
          %v538 = vmul.f32 %v535, 1.442695
          %v539 = vpow.pop %v538
          %v540 = vld [vmem:[#allocation3] sm:$0xff]
          %v541 = vld [vmem:[#allocation3 + $0x8] sm:$0xff]
          %v542 = vmul.f32 %v521, %v540
          %v543 = vmul.f32 %v523, %v541
          %v544 = vsel %vm509, %v537, 0.0
          %545 = vadd.xlane.f32.xlu0 %v544
          %v546 = vpop.xlane.xlu0 %545
          %v547 = vsel %vm509, %v539, 0.0
          %548 = vadd.xlane.f32.xlu0 %v547
          %v549 = vpop.xlane.xlu0 %548
          %v550 = vadd.f32 %v542, %v546
          %v551 = vadd.f32 %v543, %v549
          %vm552 = vcmask 7168
          %553 = vst.msk [vmem:[#allocation3] sm:$0xff] %vm552, %v550
          %554 = vst.msk [vmem:[#allocation3 + $0x8] sm:$0xff] %vm552, %v551
          %v555 = vld [vmem:[#allocation4] sm:$0xff]
          %v556 = vld [vmem:[#allocation4 + $0x8] sm:$0xff]
          %558 = vset.pattern.permute.xlu0 0
          %559 = vperm.xlu0 %558, %v521
          %v560 = vpop.permute.xlu0 %559
          %563 = vset.pattern.permute.xlu0 0
          %564 = vperm.xlu0 %563, %v523
          %v565 = vpop.permute.xlu0 %564
          %v567 = vmul.f32 %v560, %v555
          %v568 = vmul.f32 %v565, %v556
          %v569 = vpack.c.bf16 %v539, %v537
          %v570 = vpack.c.bf16 %v412, %v411
          %v572 = vsel %vm509, %v569, 0
          %574 = vmatpush.bf16.msra.mxu0 0
          %575 = vmatpush.bf16.msra.mxu0 0
          %576 = vmatpush.bf16.msra.mxu0 0
          %577 = vmatpush.bf16.msra.mxu0 0
          %578 = vmatpush.bf16.msra.mxu0 0
          %579 = vmatpush.bf16.msra.mxu0 0
          %580 = vmatpush.bf16.msra.mxu0 0
          %581 = vmatpush.bf16.msra.mxu0 %v570
          %582 = vmatmul.bf16.gmra.mxu0 %v572
          %v583 = vpop.f32.mrf.mxu0
          %v584 = vadd.f32 0.0, %v583
          %v585 = vpop.f32.mrf.mxu0
          %v586 = vadd.f32 0.0, %v585
          %587 = vdwg.mxu0
          %v588 = vadd.f32 %v567, %v584
          %v589 = vadd.f32 %v568, %v586
          %590 = vst [vmem:[#allocation4] sm:$0xff] %v588
          %591 = vst [vmem:[#allocation4 + $0x8] sm:$0xff] %v589
          %592 = vst.msk [vmem:[#allocation2] sm:$0xff] %vm552, %v516
          %593 = vst.msk [vmem:[#allocation2 + $0x8] sm:$0xff] %vm552, %v517
        $region158: #{transformer_forward.40} parent=133 // pred_fallthru
          _
        %p594 = scmp.lt.s32.totalorder %s414, %s417
        %p595 = pnand %p488, %p594
        %p596 = pneg %p595
        // Predicated region
        $region159: #{transformer_forward.40} parent=133 // pred_check
          _
        $region160: #{transformer_forward.40} parent=133 // pred_check_branch
          %598 = sbr.rel (%p595) target = $region162
        $region161: #{transformer_forward.40} parent=133 // pred_region
          %599 = vmatpush.bf16.xpose.msra.mxu0 0
          %600 = vmatpush.bf16.xpose.msra.mxu0 0
          %601 = vmatpush.bf16.xpose.msra.mxu0 0
          %602 = vmatpush.bf16.xpose.msra.mxu0 0
          %603 = vmatpush.bf16.xpose.msra.mxu0 0
          %604 = vmatpush.bf16.xpose.msra.mxu0 0
          %605 = vmatpush.bf16.xpose.msra.mxu0 0
          %606 = vmatpush.bf16.xpose.msra.mxu0 %v410
          %607 = vmatmul.bf16.gmra.mxu0 %v407
          %v608 = vpop.f32.mrf.mxu0
          %v609 = vadd.f32 0.0, %v608
          %v610 = vpop.f32.mrf.mxu0
          %v611 = vadd.f32 0.0, %v610
          %612 = vdwg.mxu0
          %v613 = vlaneseq
          %v614 = vshrl.u32 %v613, 7
          %v615 = vadd.s32 %v614, 8
          %v616 = vstv %s413
          %v617 = vadd.s32 %v616, %v614
          %v618 = vadd.s32 %v616, %v615
          %v619 = vlaneseq
          %v620 = vand.u32 %v619, 127
          %v621 = vstv %s414
          %v622 = vadd.s32 %v621, %v620
          %vm623 = vcmp.ge.s32.totalorder %v622, %v617
          %vm624 = vcmp.ge.s32.totalorder %v622, %v618
          %v625 = vsel %vm623, %v609, 0.0
          %v626 = vsel %vm624, %v611, 0.0
          %v627 = vld [vmem:[#allocation2] sm:$0xff]
          %v628 = vld [vmem:[#allocation2 + $0x8] sm:$0xff]
          %vm629 = vcmask 130048
          %v630 = vsel %vm629, %v625, -inf
          %631 = vmax.xlane.f32.xlu0 %v630
          %v632 = vpop.xlane.xlu0 %631
          %v633 = vsel %vm629, %v626, -inf
          %634 = vmax.xlane.f32.xlu0 %v633
          %v635 = vpop.xlane.xlu0 %634
          %v636 = vmax.f32 %v627, %v632
          %v637 = vmax.f32 %v628, %v635
          %v638 = vsub.f32 %v627, %v636
          %v639 = vsub.f32 %v628, %v637
          %v640 = vmul.f32 %v638, 1.442695
          %v641 = vpow.pop %v640
          %v642 = vmul.f32 %v639, 1.442695
          %v643 = vpow.pop %v642
          %645 = vset.pattern.permute.xlu0 0
          %646 = vperm.xlu0 %645, %v636
          %v647 = vpop.permute.xlu0 %646
          %650 = vset.pattern.permute.xlu0 0
          %651 = vperm.xlu0 %650, %v637
          %v652 = vpop.permute.xlu0 %651
          %v654 = vsub.f32 %v625, %v647
          %v655 = vsub.f32 %v626, %v652
          %v656 = vmul.f32 %v654, 1.442695
          %v657 = vpow.pop %v656
          %v658 = vmul.f32 %v655, 1.442695
          %v659 = vpow.pop %v658
          %v660 = vld [vmem:[#allocation3] sm:$0xff]
          %v661 = vld [vmem:[#allocation3 + $0x8] sm:$0xff]
          %v662 = vmul.f32 %v641, %v660
          %v663 = vmul.f32 %v643, %v661
          %v664 = vsel %vm629, %v657, 0.0
          %665 = vadd.xlane.f32.xlu0 %v664
          %v666 = vpop.xlane.xlu0 %665
          %v667 = vsel %vm629, %v659, 0.0
          %668 = vadd.xlane.f32.xlu0 %v667
          %v669 = vpop.xlane.xlu0 %668
          %v670 = vadd.f32 %v662, %v666
          %v671 = vadd.f32 %v663, %v669
          %vm672 = vcmask 7168
          %673 = vst.msk [vmem:[#allocation3] sm:$0xff] %vm672, %v670
          %674 = vst.msk [vmem:[#allocation3 + $0x8] sm:$0xff] %vm672, %v671
          %v675 = vld [vmem:[#allocation4] sm:$0xff]
          %v676 = vld [vmem:[#allocation4 + $0x8] sm:$0xff]
          %678 = vset.pattern.permute.xlu0 0
          %679 = vperm.xlu0 %678, %v641
          %v680 = vpop.permute.xlu0 %679
          %683 = vset.pattern.permute.xlu0 0
          %684 = vperm.xlu0 %683, %v643
          %v685 = vpop.permute.xlu0 %684
          %v687 = vmul.f32 %v680, %v675
          %v688 = vmul.f32 %v685, %v676
          %v689 = vpack.c.bf16 %v659, %v657
          %v690 = vpack.c.bf16 %v412, %v411
          %v692 = vsel %vm629, %v689, 0
          %694 = vmatpush.bf16.msra.mxu0 0
          %695 = vmatpush.bf16.msra.mxu0 0
          %696 = vmatpush.bf16.msra.mxu0 0
          %697 = vmatpush.bf16.msra.mxu0 0
          %698 = vmatpush.bf16.msra.mxu0 0
          %699 = vmatpush.bf16.msra.mxu0 0
          %700 = vmatpush.bf16.msra.mxu0 0
          %701 = vmatpush.bf16.msra.mxu0 %v690
          %702 = vmatmul.bf16.gmra.mxu0 %v692
          %v703 = vpop.f32.mrf.mxu0
          %v704 = vadd.f32 0.0, %v703
          %v705 = vpop.f32.mrf.mxu0
          %v706 = vadd.f32 0.0, %v705
          %707 = vdwg.mxu0
          %v708 = vadd.f32 %v687, %v704
          %v709 = vadd.f32 %v688, %v706
          %710 = vst [vmem:[#allocation4] sm:$0xff] %v708
          %711 = vst [vmem:[#allocation4 + $0x8] sm:$0xff] %v709
          %712 = vst.msk [vmem:[#allocation2] sm:$0xff] %vm672, %v636
          %713 = vst.msk [vmem:[#allocation2 + $0x8] sm:$0xff] %vm672, %v637
        $region162: #{transformer_forward.40} parent=133 // pred_fallthru
          _
        // Predicated region
        $region163: #{transformer_forward.40} parent=133 // pred_check
          %p714 = pneg %p392
        $region164: #{transformer_forward.40} parent=133 // pred_check_branch
          %716 = sbr.rel (%p714) target = $region166
        $region165: #{transformer_forward.40} parent=133 // pred_region
          %v717 = vld [vmem:[#allocation3] sm:$0xff]
          %v718 = vld [vmem:[#allocation3 + $0x8] sm:$0xff]
          %v719 = vrcp.pop %v717
          %v720 = vrcp.pop %v718
          %v721 = vld [vmem:[#allocation4] sm:$0xff]
          %v722 = vld [vmem:[#allocation4 + $0x8] sm:$0xff]
          %724 = vset.pattern.permute.xlu0 0
          %725 = vperm.xlu0 %724, %v719
          %v726 = vpop.permute.xlu0 %725
          %729 = vset.pattern.permute.xlu0 0
          %730 = vperm.xlu0 %729, %v720
          %v731 = vpop.permute.xlu0 %730
          %v733 = vmul.f32 %v721, %v726
          %v734 = vmul.f32 %v722, %v731
          %735 = vst [vmem:[%s384] sm:$0xff] %v733
          %736 = vst [vmem:[%s384 + $0x8] sm:$0xff] %v734
        $region166: #{transformer_forward.40} parent=133 // pred_fallthru
          _
        %s737 = sand.u32 %s146, 1
        %s738 = sand.u32 %s146, 1
        %s739 = smul.addr %s738, 16
        %s740 = scalar_lea.vmem [#allocation8], %s739
        // Predicated region
        $region167: #{transformer_forward.40} parent=133 // pred_check
          %p741 = pneg %p156
        $region168: #{transformer_forward.40} parent=133 // pred_check_branch
          %743 = sbr.rel (%p741) target = $region170
        $region169: #{transformer_forward.40} parent=133 // pred_region
          %s744 = smul.u32 2, %s22
          %s745 = smul.addr %s744, 2
          %s746 = sadd.s32 %s21, %s745
          %s747 = smul.addr %s20, 4
          %s748 = sadd.s32 %s746, %s747
          %s749 = smul.addr %s748, 8
          %s750 = scalar_lea.vmem %s3, %s749
          // Predicated region
          $region171: #{transformer_forward.40} parent=169 // pred_check
            _
          $region172: #{transformer_forward.40} parent=169 // pred_check_branch
            %752 = sbr.rel (0) target = $region174
          $region173: #{transformer_forward.40} parent=169 // pred_region
            // Predicated region
            $region175: #{transformer_forward.40} parent=173 // pred_check
              _
            $region176: #{transformer_forward.40} parent=173 // pred_check_branch
              %754 = sbr.rel (0) target = $region178
            $region177: #{transformer_forward.40} parent=173 // pred_region
              // Predicated region
              $region190: #{transformer_forward.40} parent=177 // pred_check
                _
              $region191: #{transformer_forward.40} parent=177 // pred_check_branch
                %772 = sbr.rel (0) target = $region193
              $region192: #{transformer_forward.40} parent=177 // pred_region
                loop: start=0, step=1, limit=1
                $region194: #{transformer_forward.40} parent=192 // loop_pre_header
                  _
                $region195: #{transformer_forward.40} parent=192 // loop_header
                  %s774 = sphi 0, %s778
                  %p775 = scmp.ge.s32.totalorder %s774, 1
                  %s779 = sphi %s740, %s740
                  %s780 = sphi %s750, %s750
                $region196: #{transformer_forward.40} parent=192 // loop_header_branch
                  %777 = sbr.rel (%p775) target = $region200
                $region197: #{transformer_forward.40} parent=192 // loop_body
                  %v781 = vld [vmem:[%s779] sm:$0xff]
                  %782 = vst [vmem:[%s780] sm:$0xff] %v781
                  %v783 = vld [vmem:[%s779 + $0x8] sm:$0xff]
                  %784 = vst [vmem:[%s780 + $0x10] sm:$0xff] %v783
                $region198: #{transformer_forward.40} parent=192 // loop_footer
                  %s778 = sadd.s32 1, %s774
                $region199: #{transformer_forward.40} parent=192 // loop_footer_branch
                  %773 = sbr.rel target = $region195
                $region200: #{transformer_forward.40} parent=192 // loop_exit
                  _
              $region193: #{transformer_forward.40} parent=177 // pred_fallthru
                _
              // Predicated region
              $region201: #{transformer_forward.40} parent=177 // pred_check
                _
              $region202: #{transformer_forward.40} parent=177 // pred_check_branch
                %786 = sbr.rel target = $region204
              $region203: #{transformer_forward.40} parent=177 // pred_region
                _
              $region204: #{transformer_forward.40} parent=177 // pred_fallthru
                _
            $region178: #{transformer_forward.40} parent=173 // pred_fallthru
              _
            // Predicated region
            $region179: #{transformer_forward.40} parent=173 // pred_check
              _
            $region180: #{transformer_forward.40} parent=173 // pred_check_branch
              %756 = sbr.rel target = $region182
            $region181: #{transformer_forward.40} parent=173 // pred_region
              %s758 = ssub.s32 256, 1
              loop: start=0, step=1, limit=1
              $region183: #{transformer_forward.40} parent=181 // loop_pre_header
                _
              $region184: #{transformer_forward.40} parent=181 // loop_header
                %s760 = sphi 0, %s764
                %p761 = scmp.ge.s32.totalorder %s760, 1
                %s765 = sphi %s740, %s740
                %s766 = sphi %s750, %s750
              $region185: #{transformer_forward.40} parent=181 // loop_header_branch
                %763 = sbr.rel (%p761) target = $region189
              $region186: #{transformer_forward.40} parent=181 // loop_body
                %v767 = vld [vmem:[%s765] sm:%s758]
                %768 = vst [vmem:[%s766] sm:%s758] %v767
                %v769 = vld [vmem:[%s765 + $0x8] sm:%s758]
                %770 = vst [vmem:[%s766 + $0x10] sm:%s758] %v769
              $region187: #{transformer_forward.40} parent=181 // loop_footer
                %s764 = sadd.s32 1, %s760
              $region188: #{transformer_forward.40} parent=181 // loop_footer_branch
                %759 = sbr.rel target = $region184
              $region189: #{transformer_forward.40} parent=181 // loop_exit
                _
            $region182: #{transformer_forward.40} parent=173 // pred_fallthru
              _
          $region174: #{transformer_forward.40} parent=169 // pred_fallthru
            _
          %787 = vnop
        $region170: #{transformer_forward.40} parent=133 // pred_fallthru
          _
      $region134: #{transformer_forward.40} parent=5 // pred_fallthru
        _
      %p788 = scmp.le.s32.totalorder 2, %s9
      // Predicated region
      $region205: #{transformer_forward.40} parent=5 // pred_check
        %p789 = pneg %p788
      $region206: #{transformer_forward.40} parent=5 // pred_check_branch
        %791 = sbr.rel (%p789) target = $region208
      $region207: #{transformer_forward.40} parent=5 // pred_region
        %s792 = ssub.s32 %s9, 2
        // Predicated region
        $region209: #{transformer_forward.40} parent=207 // pred_check
          %p793 = pneg %p162
        $region210: #{transformer_forward.40} parent=207 // pred_check_branch
          %795 = sbr.rel (%p793) target = $region212
        $region211: #{transformer_forward.40} parent=207 // pred_region
          %s796 = sand.u32 %s147, 1
          %s797 = sand.u32 %s147, 1
          %s798 = smul.addr %s797, 16
          %s799 = scalar_lea.vmem [#allocation8], %s798
        $region212: #{transformer_forward.40} parent=207 // pred_fallthru
          _
      $region208: #{transformer_forward.40} parent=5 // pred_fallthru
        _
    $region6: #{transformer_forward.40} parent=1 // loop_footer
      %s13 = sadd.s32 1, %s9
    $region7: #{transformer_forward.40} parent=1 // loop_footer_branch
      %8 = sbr.rel target = $region3
    $region8: #{transformer_forward.40} parent=1 // loop_exit
      _

// kernel: transformer_forward.41
$region0: #{transformer_forward.41}
  #allocation0 [shape = 'u32[]', space=smem, size = 0x4, offset = 0x4, fixed_abs, tag = 'smem constant byte address 0x4 - core index']
  #allocation1 [shape = 'u32[72,128]{1,0:T(1,128)}', space=vmem, size = 0x9000, scoped, tag = 'internal scratch']
  #allocation2 [shape = 'f32[32,256]{1,0:T(8,128)}', space=vmem, size = 0x8000, scoped, tag = 'scratch operand']
  %s0 = inlined_call_operand.vmem [shape: f32[32,256], index: 0, kind: input, shape index: {}]
  %s1 = inlined_call_operand.vmem [shape: f32[256,256], index: 1, kind: input, shape index: {}]
  %s2 = inlined_call_operand.vmem [shape: f32[1,256], index: 2, kind: input, shape index: {}]
  %s3 = inlined_call_operand.vmem [shape: f32[32,256], index: 3, kind: input, shape index: {}]
  %s4 = inlined_call_operand.vmem [shape: f32[1,256], index: 4, kind: input, shape index: {}]
  %s5 = inlined_call_operand.vmem [shape: f32[1,256], index: 5, kind: input, shape index: {}]
  %s6 = inlined_call_operand.vmem [shape: f32[32,256], index: 6, kind: output, shape index: {}]
  %s7 = sld [smem:[#allocation0]]
  $region42: #{transformer_forward.41} parent=0
    _
  %s9 = ssub.s32 1, %s7
  %s10 = scalar_select 0, %s9, %s7
  // Predicated region
  $region2: #{transformer_forward.41} parent=0 // pred_check
    _
  $region3: #{transformer_forward.41} parent=0 // pred_check_branch
    %12 = sbr.rel (0) target = $region5
  $region4: #{transformer_forward.41} parent=0 // pred_region
    _
  $region5: #{transformer_forward.41} parent=0 // pred_fallthru
    _
  // Predicated region
  $region6: #{transformer_forward.41} parent=0 // pred_check
    _
  $region7: #{transformer_forward.41} parent=0 // pred_check_branch
    %14 = sbr.rel (0) target = $region9
  $region8: #{transformer_forward.41} parent=0 // pred_region
    _
  $region9: #{transformer_forward.41} parent=0 // pred_fallthru
    _
  // Predicated region
  $region10: #{transformer_forward.41} parent=0 // pred_check
    _
  $region11: #{transformer_forward.41} parent=0 // pred_check_branch
    %16 = sbr.rel (0) target = $region13
  $region12: #{transformer_forward.41} parent=0 // pred_region
    _
  $region13: #{transformer_forward.41} parent=0 // pred_fallthru
    _
  // Predicated region
  $region14: #{transformer_forward.41} parent=0 // pred_check
    _
  $region15: #{transformer_forward.41} parent=0 // pred_check_branch
    %18 = sbr.rel (0) target = $region17
  $region16: #{transformer_forward.41} parent=0 // pred_region
    _
  $region17: #{transformer_forward.41} parent=0 // pred_fallthru
    _
  // Predicated region
  $region18: #{transformer_forward.41} parent=0 // pred_check
    _
  $region19: #{transformer_forward.41} parent=0 // pred_check_branch
    %20 = sbr.rel (0) target = $region21
  $region20: #{transformer_forward.41} parent=0 // pred_region
    _
  $region21: #{transformer_forward.41} parent=0 // pred_fallthru
    _
  // Predicated region
  $region22: #{transformer_forward.41} parent=0 // pred_check
    _
  $region23: #{transformer_forward.41} parent=0 // pred_check_branch
    %22 = sbr.rel (0) target = $region25
  $region24: #{transformer_forward.41} parent=0 // pred_region
    _
  $region25: #{transformer_forward.41} parent=0 // pred_fallthru
    _
  %p23 = scmp.eq.s32.totalorder 0, 0
  // Predicated region
  $region26: #{transformer_forward.41} parent=0 // pred_check
    %p24 = pneg %p23
  $region27: #{transformer_forward.41} parent=0 // pred_check_branch
    %26 = sbr.rel (%p24) target = $region29
  $region28: #{transformer_forward.41} parent=0 // pred_region
    %27 = vst [vmem:[#allocation2] sm:$0xff] 0.0
    %28 = vst [vmem:[#allocation2 + $0x8] sm:$0xff] 0.0
    %29 = vst [vmem:[#allocation2 + $0x10] sm:$0xff] 0.0
    %30 = vst [vmem:[#allocation2 + $0x18] sm:$0xff] 0.0
    %31 = vst [vmem:[#allocation2 + $0x20] sm:$0xff] 0.0
    %32 = vst [vmem:[#allocation2 + $0x28] sm:$0xff] 0.0
    %33 = vst [vmem:[#allocation2 + $0x30] sm:$0xff] 0.0
    %34 = vst [vmem:[#allocation2 + $0x38] sm:$0xff] 0.0
  $region29: #{transformer_forward.41} parent=0 // pred_fallthru
    _
  %v35 = vld [vmem:[#allocation2] sm:$0xff]
  %v36 = vld [vmem:[#allocation2 + $0x8] sm:$0xff]
  %v37 = vld [vmem:[#allocation2 + $0x10] sm:$0xff]
  %v38 = vld [vmem:[#allocation2 + $0x18] sm:$0xff]
  %v39 = vld [vmem:[#allocation2 + $0x20] sm:$0xff]
  %v40 = vld [vmem:[#allocation2 + $0x28] sm:$0xff]
  %v41 = vld [vmem:[#allocation2 + $0x30] sm:$0xff]
  %v42 = vld [vmem:[#allocation2 + $0x38] sm:$0xff]
  %v43 = vld [vmem:[%s0] sm:$0xff]
  %v44 = vld [vmem:[%s0 + $0x8] sm:$0xff]
  %v45 = vld [vmem:[%s0 + $0x10] sm:$0xff]
  %v46 = vld [vmem:[%s0 + $0x18] sm:$0xff]
  %v47 = vld [vmem:[%s0 + $0x20] sm:$0xff]
  %v48 = vld [vmem:[%s0 + $0x28] sm:$0xff]
  %v49 = vld [vmem:[%s0 + $0x30] sm:$0xff]
  %v50 = vld [vmem:[%s0 + $0x38] sm:$0xff]
  %v51 = vpack.c.bf16 %v45, %v43
  %v52 = vpack.c.bf16 %v46, %v44
  %v53 = vpack.c.bf16 %v49, %v47
  %v54 = vpack.c.bf16 %v50, %v48
  %v55 = vld [vmem:[%s1] sm:$0xff]
  %v56 = vld [vmem:[%s1 + $0x8] sm:$0xff]
  %v57 = vld [vmem:[%s1 + $0x10] sm:$0xff]
  %v58 = vld [vmem:[%s1 + $0x18] sm:$0xff]
  %v59 = vld [vmem:[%s1 + $0x20] sm:$0xff]
  %v60 = vld [vmem:[%s1 + $0x28] sm:$0xff]
  %v61 = vld [vmem:[%s1 + $0x30] sm:$0xff]
  %v62 = vld [vmem:[%s1 + $0x38] sm:$0xff]
  %v63 = vld [vmem:[%s1 + $0x40] sm:$0xff]
  %v64 = vld [vmem:[%s1 + $0x48] sm:$0xff]
  %v65 = vld [vmem:[%s1 + $0x50] sm:$0xff]
  %v66 = vld [vmem:[%s1 + $0x58] sm:$0xff]
  %v67 = vld [vmem:[%s1 + $0x60] sm:$0xff]
  %v68 = vld [vmem:[%s1 + $0x68] sm:$0xff]
  %v69 = vld [vmem:[%s1 + $0x70] sm:$0xff]
  %v70 = vld [vmem:[%s1 + $0x78] sm:$0xff]
  %v71 = vld [vmem:[%s1 + $0x80] sm:$0xff]
  %v72 = vld [vmem:[%s1 + $0x88] sm:$0xff]
  %v73 = vld [vmem:[%s1 + $0x90] sm:$0xff]
  %v74 = vld [vmem:[%s1 + $0x98] sm:$0xff]
  %v75 = vld [vmem:[%s1 + $0xa0] sm:$0xff]
  %v76 = vld [vmem:[%s1 + $0xa8] sm:$0xff]
  %v77 = vld [vmem:[%s1 + $0xb0] sm:$0xff]
  %v78 = vld [vmem:[%s1 + $0xb8] sm:$0xff]
  %v79 = vld [vmem:[%s1 + $0xc0] sm:$0xff]
  %v80 = vld [vmem:[%s1 + $0xc8] sm:$0xff]
  %v81 = vld [vmem:[%s1 + $0xd0] sm:$0xff]
  %v82 = vld [vmem:[%s1 + $0xd8] sm:$0xff]
  %v83 = vld [vmem:[%s1 + $0xe0] sm:$0xff]
  %v84 = vld [vmem:[%s1 + $0xe8] sm:$0xff]
  %v85 = vld [vmem:[%s1 + $0xf0] sm:$0xff]
  %v86 = vld [vmem:[%s1 + $0xf8] sm:$0xff]
  %v87 = vld [vmem:[%s1 + $0x100] sm:$0xff]
  %v88 = vld [vmem:[%s1 + $0x108] sm:$0xff]
  %v89 = vld [vmem:[%s1 + $0x110] sm:$0xff]
  %v90 = vld [vmem:[%s1 + $0x118] sm:$0xff]
  %v91 = vld [vmem:[%s1 + $0x120] sm:$0xff]
  %v92 = vld [vmem:[%s1 + $0x128] sm:$0xff]
  %v93 = vld [vmem:[%s1 + $0x130] sm:$0xff]
  %v94 = vld [vmem:[%s1 + $0x138] sm:$0xff]
  %v95 = vld [vmem:[%s1 + $0x140] sm:$0xff]
  %v96 = vld [vmem:[%s1 + $0x148] sm:$0xff]
  %v97 = vld [vmem:[%s1 + $0x150] sm:$0xff]
  %v98 = vld [vmem:[%s1 + $0x158] sm:$0xff]
  %v99 = vld [vmem:[%s1 + $0x160] sm:$0xff]
  %v100 = vld [vmem:[%s1 + $0x168] sm:$0xff]
  %v101 = vld [vmem:[%s1 + $0x170] sm:$0xff]
  %v102 = vld [vmem:[%s1 + $0x178] sm:$0xff]
  %v103 = vld [vmem:[%s1 + $0x180] sm:$0xff]
  %v104 = vld [vmem:[%s1 + $0x188] sm:$0xff]
  %v105 = vld [vmem:[%s1 + $0x190] sm:$0xff]
  %v106 = vld [vmem:[%s1 + $0x198] sm:$0xff]
  %v107 = vld [vmem:[%s1 + $0x1a0] sm:$0xff]
  %v108 = vld [vmem:[%s1 + $0x1a8] sm:$0xff]
  %v109 = vld [vmem:[%s1 + $0x1b0] sm:$0xff]
  %v110 = vld [vmem:[%s1 + $0x1b8] sm:$0xff]
  %v111 = vld [vmem:[%s1 + $0x1c0] sm:$0xff]
  %v112 = vld [vmem:[%s1 + $0x1c8] sm:$0xff]
  %v113 = vld [vmem:[%s1 + $0x1d0] sm:$0xff]
  %v114 = vld [vmem:[%s1 + $0x1d8] sm:$0xff]
  %v115 = vld [vmem:[%s1 + $0x1e0] sm:$0xff]
  %v116 = vld [vmem:[%s1 + $0x1e8] sm:$0xff]
  %v117 = vld [vmem:[%s1 + $0x1f0] sm:$0xff]
  %v118 = vld [vmem:[%s1 + $0x1f8] sm:$0xff]
  %v119 = vpack.c.bf16 %v57, %v55
  %v120 = vpack.c.bf16 %v58, %v56
  %v121 = vpack.c.bf16 %v61, %v59
  %v122 = vpack.c.bf16 %v62, %v60
  %v123 = vpack.c.bf16 %v65, %v63
  %v124 = vpack.c.bf16 %v66, %v64
  %v125 = vpack.c.bf16 %v69, %v67
  %v126 = vpack.c.bf16 %v70, %v68
  %v127 = vpack.c.bf16 %v73, %v71
  %v128 = vpack.c.bf16 %v74, %v72
  %v129 = vpack.c.bf16 %v77, %v75
  %v130 = vpack.c.bf16 %v78, %v76
  %v131 = vpack.c.bf16 %v81, %v79
  %v132 = vpack.c.bf16 %v82, %v80
  %v133 = vpack.c.bf16 %v85, %v83
  %v134 = vpack.c.bf16 %v86, %v84
  %v135 = vpack.c.bf16 %v89, %v87
  %v136 = vpack.c.bf16 %v90, %v88
  %v137 = vpack.c.bf16 %v93, %v91
  %v138 = vpack.c.bf16 %v94, %v92
  %v139 = vpack.c.bf16 %v97, %v95
  %v140 = vpack.c.bf16 %v98, %v96
  %v141 = vpack.c.bf16 %v101, %v99
  %v142 = vpack.c.bf16 %v102, %v100
  %v143 = vpack.c.bf16 %v105, %v103
  %v144 = vpack.c.bf16 %v106, %v104
  %v145 = vpack.c.bf16 %v109, %v107
  %v146 = vpack.c.bf16 %v110, %v108
  %v147 = vpack.c.bf16 %v113, %v111
  %v148 = vpack.c.bf16 %v114, %v112
  %v149 = vpack.c.bf16 %v117, %v115
  %v150 = vpack.c.bf16 %v118, %v116
  %151 = vmatpush.bf16.msra.mxu0 %v133
  %152 = vmatpush.bf16.msra.mxu0 %v131
  %153 = vmatpush.bf16.msra.mxu0 %v129
  %154 = vmatpush.bf16.msra.mxu0 %v127
  %155 = vmatpush.bf16.msra.mxu0 %v125
  %156 = vmatpush.bf16.msra.mxu0 %v123
  %157 = vmatpush.bf16.msra.mxu0 %v121
  %158 = vmatpush.bf16.msra.mxu0 %v119
  %159 = vmatmul.bf16.gmra.mxu0 %v51
  %v160 = vpop.f32.mrf.mxu0
  %v161 = vadd.f32 0.0, %v160
  %v162 = vpop.f32.mrf.mxu0
  %v163 = vadd.f32 0.0, %v162
  %164 = vmatmul.bf16.gmra.mxu0 %v53
  %v165 = vpop.f32.mrf.mxu0
  %v166 = vadd.f32 0.0, %v165
  %v167 = vpop.f32.mrf.mxu0
  %v168 = vadd.f32 0.0, %v167
  %169 = vdwg.mxu0
  %170 = vmatpush.bf16.msra.mxu0 %v149
  %171 = vmatpush.bf16.msra.mxu0 %v147
  %172 = vmatpush.bf16.msra.mxu0 %v145
  %173 = vmatpush.bf16.msra.mxu0 %v143
  %174 = vmatpush.bf16.msra.mxu0 %v141
  %175 = vmatpush.bf16.msra.mxu0 %v139
  %176 = vmatpush.bf16.msra.mxu0 %v137
  %177 = vmatpush.bf16.msra.mxu0 %v135
  %178 = vmatmul.bf16.gmra.mxu0 %v52
  %v179 = vpop.f32.mrf.mxu0
  %v180 = vadd.f32 %v161, %v179
  %v181 = vpop.f32.mrf.mxu0
  %v182 = vadd.f32 %v163, %v181
  %183 = vmatmul.bf16.gmra.mxu0 %v54
  %v184 = vpop.f32.mrf.mxu0
  %v185 = vadd.f32 %v166, %v184
  %v186 = vpop.f32.mrf.mxu0
  %v187 = vadd.f32 %v168, %v186
  %188 = vdwg.mxu0
  %189 = vmatpush.bf16.msra.mxu0 %v134
  %190 = vmatpush.bf16.msra.mxu0 %v132
  %191 = vmatpush.bf16.msra.mxu0 %v130
  %192 = vmatpush.bf16.msra.mxu0 %v128
  %193 = vmatpush.bf16.msra.mxu0 %v126
  %194 = vmatpush.bf16.msra.mxu0 %v124
  %195 = vmatpush.bf16.msra.mxu0 %v122
  %196 = vmatpush.bf16.msra.mxu0 %v120
  %197 = vmatmul.bf16.gmra.mxu0 %v51
  %v198 = vpop.f32.mrf.mxu0
  %v199 = vadd.f32 0.0, %v198
  %v200 = vpop.f32.mrf.mxu0
  %v201 = vadd.f32 0.0, %v200
  %202 = vmatmul.bf16.gmra.mxu0 %v53
  %v203 = vpop.f32.mrf.mxu0
  %v204 = vadd.f32 0.0, %v203
  %v205 = vpop.f32.mrf.mxu0
  %v206 = vadd.f32 0.0, %v205
  %207 = vdwg.mxu0
  %208 = vmatpush.bf16.msra.mxu0 %v150
  %209 = vmatpush.bf16.msra.mxu0 %v148
  %210 = vmatpush.bf16.msra.mxu0 %v146
  %211 = vmatpush.bf16.msra.mxu0 %v144
  %212 = vmatpush.bf16.msra.mxu0 %v142
  %213 = vmatpush.bf16.msra.mxu0 %v140
  %214 = vmatpush.bf16.msra.mxu0 %v138
  %215 = vmatpush.bf16.msra.mxu0 %v136
  %216 = vmatmul.bf16.gmra.mxu0 %v52
  %v217 = vpop.f32.mrf.mxu0
  %v218 = vadd.f32 %v199, %v217
  %v219 = vpop.f32.mrf.mxu0
  %v220 = vadd.f32 %v201, %v219
  %221 = vmatmul.bf16.gmra.mxu0 %v54
  %v222 = vpop.f32.mrf.mxu0
  %v223 = vadd.f32 %v204, %v222
  %v224 = vpop.f32.mrf.mxu0
  %v225 = vadd.f32 %v206, %v224
  %226 = vdwg.mxu0
  %v227 = vadd.f32 %v35, %v180
  %v228 = vadd.f32 %v36, %v218
  %v229 = vadd.f32 %v37, %v182
  %v230 = vadd.f32 %v38, %v220
  %v231 = vadd.f32 %v39, %v185
  %v232 = vadd.f32 %v40, %v223
  %v233 = vadd.f32 %v41, %v187
  %v234 = vadd.f32 %v42, %v225
  %235 = vst [vmem:[#allocation2] sm:$0xff] %v227
  %236 = vst [vmem:[#allocation2 + $0x8] sm:$0xff] %v228
  %237 = vst [vmem:[#allocation2 + $0x10] sm:$0xff] %v229
  %238 = vst [vmem:[#allocation2 + $0x18] sm:$0xff] %v230
  %239 = vst [vmem:[#allocation2 + $0x20] sm:$0xff] %v231
  %240 = vst [vmem:[#allocation2 + $0x28] sm:$0xff] %v232
  %241 = vst [vmem:[#allocation2 + $0x30] sm:$0xff] %v233
  %242 = vst [vmem:[#allocation2 + $0x38] sm:$0xff] %v234
  // Predicated region
  $region30: #{transformer_forward.41} parent=0 // pred_check
    %p243 = pneg %p23
  $region31: #{transformer_forward.41} parent=0 // pred_check_branch
    %245 = sbr.rel (%p243) target = $region33
  $region32: #{transformer_forward.41} parent=0 // pred_region
    %v246 = vld [vmem:[#allocation2] sm:$0xff]
    %v247 = vld [vmem:[#allocation2 + $0x8] sm:$0xff]
    %v248 = vld [vmem:[#allocation2 + $0x10] sm:$0xff]
    %v249 = vld [vmem:[#allocation2 + $0x18] sm:$0xff]
    %v250 = vld [vmem:[#allocation2 + $0x20] sm:$0xff]
    %v251 = vld [vmem:[#allocation2 + $0x28] sm:$0xff]
    %v252 = vld [vmem:[#allocation2 + $0x30] sm:$0xff]
    %v253 = vld [vmem:[#allocation2 + $0x38] sm:$0xff]
    %v254 = vld [vmem:[%s2] sm:$0x3]
    %v256 = vperm.slane %v254, 0
    %v257 = vperm.slane %v254, 1
    %v260 = vadd.f32 %v246, %v256
    %v261 = vadd.f32 %v247, %v257
    %v262 = vadd.f32 %v248, %v256
    %v263 = vadd.f32 %v249, %v257
    %v264 = vadd.f32 %v250, %v256
    %v265 = vadd.f32 %v251, %v257
    %v266 = vadd.f32 %v252, %v256
    %v267 = vadd.f32 %v253, %v257
    %v268 = vld [vmem:[%s3] sm:$0xff]
    %v269 = vld [vmem:[%s3 + $0x8] sm:$0xff]
    %v270 = vld [vmem:[%s3 + $0x10] sm:$0xff]
    %v271 = vld [vmem:[%s3 + $0x18] sm:$0xff]
    %v272 = vld [vmem:[%s3 + $0x20] sm:$0xff]
    %v273 = vld [vmem:[%s3 + $0x28] sm:$0xff]
    %v274 = vld [vmem:[%s3 + $0x30] sm:$0xff]
    %v275 = vld [vmem:[%s3 + $0x38] sm:$0xff]
    %v276 = vadd.f32 %v260, %v268
    %v277 = vadd.f32 %v261, %v269
    %v278 = vadd.f32 %v262, %v270
    %v279 = vadd.f32 %v263, %v271
    %v280 = vadd.f32 %v264, %v272
    %v281 = vadd.f32 %v265, %v273
    %v282 = vadd.f32 %v266, %v274
    %v283 = vadd.f32 %v267, %v275
    %v284 = vadd.f32 %v276, %v277
    %285 = vadd.xlane.f32.xlu0 %v284
    %v286 = vpop.xlane.xlu0 %285
    %v287 = vadd.f32 %v278, %v279
    %288 = vadd.xlane.f32.xlu0 %v287
    %v289 = vpop.xlane.xlu0 %288
    %v290 = vadd.f32 %v280, %v281
    %291 = vadd.xlane.f32.xlu0 %v290
    %v292 = vpop.xlane.xlu0 %291
    %v293 = vadd.f32 %v282, %v283
    %294 = vadd.xlane.f32.xlu0 %v293
    %v295 = vpop.xlane.xlu0 %294
    %v296 = vrcp.pop 256.0
    %v297 = vmul.f32 256.0, %v296
    %v298 = vsub.f32 1.0, %v297
    %v299 = vmul.f32 %v296, %v298
    %v300 = vadd.f32 %v296, %v299
    %vm301 = vweird.f32 %v296
    %v302 = vsel %vm301, %v296, %v300
    %v303 = vmul.f32 %v286, %v302
    %v304 = vmul.f32 %v289, %v302
    %v305 = vmul.f32 %v292, %v302
    %v306 = vmul.f32 %v295, %v302
    %v307 = vsub.f32 %v276, %v303
    %v308 = vsub.f32 %v277, %v303
    %v309 = vsub.f32 %v278, %v304
    %v310 = vsub.f32 %v279, %v304
    %v311 = vsub.f32 %v280, %v305
    %v312 = vsub.f32 %v281, %v305
    %v313 = vsub.f32 %v282, %v306
    %v314 = vsub.f32 %v283, %v306
    %v315 = vmul.f32 %v307, %v307
    %v316 = vmul.f32 %v308, %v308
    %v317 = vmul.f32 %v309, %v309
    %v318 = vmul.f32 %v310, %v310
    %v319 = vmul.f32 %v311, %v311
    %v320 = vmul.f32 %v312, %v312
    %v321 = vmul.f32 %v313, %v313
    %v322 = vmul.f32 %v314, %v314
    %v323 = vadd.f32 %v315, %v316
    %324 = vadd.xlane.f32.xlu0 %v323
    %v325 = vpop.xlane.xlu0 %324
    %v326 = vadd.f32 %v317, %v318
    %327 = vadd.xlane.f32.xlu0 %v326
    %v328 = vpop.xlane.xlu0 %327
    %v329 = vadd.f32 %v319, %v320
    %330 = vadd.xlane.f32.xlu0 %v329
    %v331 = vpop.xlane.xlu0 %330
    %v332 = vadd.f32 %v321, %v322
    %333 = vadd.xlane.f32.xlu0 %v332
    %v334 = vpop.xlane.xlu0 %333
    %v335 = vmul.f32 %v325, %v302
    %v336 = vmul.f32 %v328, %v302
    %v337 = vmul.f32 %v331, %v302
    %v338 = vmul.f32 %v334, %v302
    %v339 = vadd.f32 %v335, 1e-05
    %v340 = vadd.f32 %v336, 1e-05
    %v341 = vadd.f32 %v337, 1e-05
    %v342 = vadd.f32 %v338, 1e-05
    %v343 = vrsqrt.pop %v339
    %v344 = vmul.f32 %v343, %v339
    %v345 = vmul.f32 %v344, %v343
    %v346 = vmul.f32 0.5, %v345
    %v347 = vsub.f32 1.5, %v346
    %v348 = vmul.f32 %v343, %v347
    %vm349 = vweird.f32 %v339
    %vm350 = vweird.f32 %v343
    %vm351 = vmor %vm349, %vm350
    %v352 = vsel %vm351, %v343, %v348
    %v353 = vrsqrt.pop %v340
    %v354 = vmul.f32 %v353, %v340
    %v355 = vmul.f32 %v354, %v353
    %v356 = vmul.f32 0.5, %v355
    %v357 = vsub.f32 1.5, %v356
    %v358 = vmul.f32 %v353, %v357
    %vm359 = vweird.f32 %v340
    %vm360 = vweird.f32 %v353
    %vm361 = vmor %vm359, %vm360
    %v362 = vsel %vm361, %v353, %v358
    %v363 = vrsqrt.pop %v341
    %v364 = vmul.f32 %v363, %v341
    %v365 = vmul.f32 %v364, %v363
    %v366 = vmul.f32 0.5, %v365
    %v367 = vsub.f32 1.5, %v366
    %v368 = vmul.f32 %v363, %v367
    %vm369 = vweird.f32 %v341
    %vm370 = vweird.f32 %v363
    %vm371 = vmor %vm369, %vm370
    %v372 = vsel %vm371, %v363, %v368
    %v373 = vrsqrt.pop %v342
    %v374 = vmul.f32 %v373, %v342
    %v375 = vmul.f32 %v374, %v373
    %v376 = vmul.f32 0.5, %v375
    %v377 = vsub.f32 1.5, %v376
    %v378 = vmul.f32 %v373, %v377
    %vm379 = vweird.f32 %v342
    %vm380 = vweird.f32 %v373
    %vm381 = vmor %vm379, %vm380
    %v382 = vsel %vm381, %v373, %v378
    %v383 = vmul.f32 %v307, %v352
    %v384 = vmul.f32 %v308, %v352
    %v385 = vmul.f32 %v309, %v362
    %v386 = vmul.f32 %v310, %v362
    %v387 = vmul.f32 %v311, %v372
    %v388 = vmul.f32 %v312, %v372
    %v389 = vmul.f32 %v313, %v382
    %v390 = vmul.f32 %v314, %v382
    %v391 = vld [vmem:[%s4] sm:$0x3]
    %v393 = vperm.slane %v391, 0
    %v394 = vperm.slane %v391, 1
    %v397 = vmul.f32 %v383, %v393
    %v398 = vmul.f32 %v384, %v394
    %v399 = vmul.f32 %v385, %v393
    %v400 = vmul.f32 %v386, %v394
    %v401 = vmul.f32 %v387, %v393
    %v402 = vmul.f32 %v388, %v394
    %v403 = vmul.f32 %v389, %v393
    %v404 = vmul.f32 %v390, %v394
    %v405 = vld [vmem:[%s5] sm:$0x3]
    %v407 = vperm.slane %v405, 0
    %v408 = vperm.slane %v405, 1
    %v411 = vadd.f32 %v397, %v407
    %v412 = vadd.f32 %v398, %v408
    %v413 = vadd.f32 %v399, %v407
    %v414 = vadd.f32 %v400, %v408
    %v415 = vadd.f32 %v401, %v407
    %v416 = vadd.f32 %v402, %v408
    %v417 = vadd.f32 %v403, %v407
    %v418 = vadd.f32 %v404, %v408
    %419 = vst [vmem:[%s6] sm:$0xff] %v411
    %420 = vst [vmem:[%s6 + $0x8] sm:$0xff] %v412
    %421 = vst [vmem:[%s6 + $0x10] sm:$0xff] %v413
    %422 = vst [vmem:[%s6 + $0x18] sm:$0xff] %v414
    %423 = vst [vmem:[%s6 + $0x20] sm:$0xff] %v415
    %424 = vst [vmem:[%s6 + $0x28] sm:$0xff] %v416
    %425 = vst [vmem:[%s6 + $0x30] sm:$0xff] %v417
    %426 = vst [vmem:[%s6 + $0x38] sm:$0xff] %v418
  $region33: #{transformer_forward.41} parent=0 // pred_fallthru
    _
  // Predicated region
  $region34: #{transformer_forward.41} parent=0 // pred_check
    _
  $region35: #{transformer_forward.41} parent=0 // pred_check_branch
    %428 = sbr.rel (0) target = $region37
  $region36: #{transformer_forward.41} parent=0 // pred_region
    _
  $region37: #{transformer_forward.41} parent=0 // pred_fallthru
    _
  // Predicated region
  $region38: #{transformer_forward.41} parent=0 // pred_check
    _
  $region39: #{transformer_forward.41} parent=0 // pred_check_branch
    %430 = sbr.rel (0) target = $region41
  $region40: #{transformer_forward.41} parent=0 // pred_region
    _
  $region41: #{transformer_forward.41} parent=0 // pred_fallthru
    _

// kernel: transformer_forward.30
$region0: #{transformer_forward.30}
  #allocation0 [shape = 'u32[]', space=smem, size = 0x4, offset = 0x4, fixed_abs, tag = 'smem constant byte address 0x4 - core index']
  #allocation1 [shape = 'u32[72,128]{1,0:T(1,128)}', space=vmem, size = 0x9000, scoped, tag = 'internal scratch']
  #allocation2 [shape = 'f32[16,1]{1,0:T(8,128)}', space=vmem, size = 0x2000, scoped, tag = 'scratch operand']
  #allocation3 [shape = 'f32[16,1]{1,0:T(8,128)}', space=vmem, size = 0x2000, scoped, tag = 'scratch operand']
  #allocation4 [shape = 'f32[16,128]{1,0:T(8,128)}', space=vmem, size = 0x2000, scoped, tag = 'scratch operand']
  %s0 = inlined_call_operand.vmem [shape: f32[2,16,768], index: 0, kind: input, shape index: {}, may-alias: {0,1,2}]
  %s1 = inlined_call_operand.vmem [shape: f32[2,16,768], index: 1, kind: input, shape index: {}, may-alias: {0,1,2}]
  %s2 = inlined_call_operand.vmem [shape: f32[2,16,768], index: 2, kind: input, shape index: {}, may-alias: {0,1,2}]
  %s3 = inlined_call_operand.vmem [shape: f32[2,16,256], index: 3, kind: output, shape index: {}]
  %s4 = sld [smem:[#allocation0]]
  $region201: #{transformer_forward.30} parent=0
    _
  %s6 = ssub.s32 1, %s4
  %s7 = scalar_select 0, %s6, %s4
  $region1: #{transformer_forward.30} parent=0
    #allocation5 [shape = 'u8[16384]{0}', space=vmem, size = 0x4000, scoped, tag = 'input window, operand 0']
    #allocation6 [shape = 'u8[16384]{0}', space=vmem, size = 0x4000, scoped, tag = 'input window, operand 1']
    #allocation7 [shape = 'u8[16384]{0}', space=vmem, size = 0x4000, scoped, tag = 'input window, operand 2']
    #allocation8 [shape = 'u8[16384]{0}', space=vmem, size = 0x4000, scoped, tag = 'output window, operand 0']
    loop: start=0, step=1, limit=6
    $region2: #{transformer_forward.30} parent=1 // loop_pre_header
      _
    $region3: #{transformer_forward.30} parent=1 // loop_header
      %s9 = sphi 0, %s13
      %p10 = scmp.ge.s32.totalorder %s9, 6
      %s16 = sphi 0, %s42
      %s17 = sphi 0, %s38
      %s18 = sphi 0, %s34
      %s19 = sphi 0, %s30
      %s20 = sphi 0, %s16
      %s21 = sphi 0, %s17
      %s22 = sphi 0, %s18
      %s23 = sphi 0, %s19
      %s24 = sphi 0, %s20
      %s25 = sphi 0, %s21
      %s26 = sphi 0, %s22
      %s27 = sphi 0, %s23
      %s49 = sphi 0, %s51
      %s52 = sphi 0, %s49
      %s53 = sphi 0, %s52
      %s69 = sphi 0, %s53
      %s81 = sphi 0, %s83
      %s84 = sphi 0, %s81
      %s85 = sphi 0, %s84
      %s101 = sphi 0, %s85
      %s113 = sphi 0, %s115
      %s116 = sphi 0, %s113
      %s117 = sphi 0, %s116
      %s133 = sphi 0, %s117
      %s143 = sphi 0, %s145
      %s146 = sphi 0, %s143
      %s147 = sphi 0, %s146
      %s163 = sphi 0, %s147
    $region4: #{transformer_forward.30} parent=1 // loop_header_branch
      %12 = sbr.rel (%p10) target = $region8
    $region5: #{transformer_forward.30} parent=1 // loop_body
      %s14 = ssub.s32 %s9, 1
      %s15 = ssub.s32 %s9, 2
      %s28 = sadd.s32 1, %s19
      %p29 = scmp.ge.s32.totalorder %s28, 1
      %s30 = scalar_select %p29, 0, %s28
      %s31 = sadd.s32 1, %s18
      %s32 = scalar_select %p29, %s31, %s18
      %p33 = scmp.ge.s32.totalorder %s32, 1
      %s34 = scalar_select %p33, 0, %s32
      %s35 = sadd.s32 1, %s17
      %s36 = scalar_select %p33, %s35, %s17
      %p37 = scmp.ge.s32.totalorder %s36, 2
      %s38 = scalar_select %p37, 0, %s36
      %s39 = sadd.s32 1, %s16
      %s40 = scalar_select %p37, %s39, %s16
      %p41 = scmp.ge.s32.totalorder %s40, 2
      %s42 = scalar_select %p41, 0, %s40
      %s43 = ssub.s32 %s16, %s42
      %s44 = ssub.s32 %s18, %s34
      %s45 = sor.u32 %s43, %s44
      %s46 = ssub.s32 %s17, %s38
      %s47 = sor.u32 %s45, %s46
      %p48 = scmp.eq.s32.totalorder %s47, 0
      %s50 = sadd.s32 %s49, 1
      %s51 = scalar_select %p48, %s49, %s50
      %p54 = pneg %p48
      %p55 = scmp.eq.s32.totalorder %s9, 3
      %p56 = por %p54, %p55
      %p57 = scmp.ne.s32.totalorder %s49, %s52
      %p58 = scmp.eq.s32.totalorder %s9, 0
      %p59 = por %p57, %p58
      %p60 = scmp.ne.s32.totalorder %s49, %s52
      %p61 = scmp.eq.s32.totalorder %s14, 3
      %p62 = por %p60, %p61
      %p63 = scmp.ne.s32.totalorder %s52, %s53
      %p64 = scmp.eq.s32.totalorder %s14, 0
      %p65 = por %p63, %p64
      %p66 = scmp.ne.s32.totalorder %s52, %s53
      %p67 = scmp.eq.s32.totalorder %s15, 3
      %p68 = por %p66, %p67
      %p70 = scmp.ne.s32.totalorder %s53, %s69
      %p71 = scmp.eq.s32.totalorder %s15, 0
      %p72 = por %p70, %p71
      %s73 = sadd.s32 %s17, 2
      %s74 = sadd.s32 %s38, 2
      %s75 = ssub.s32 %s16, %s42
      %s76 = ssub.s32 %s19, %s30
      %s77 = sor.u32 %s75, %s76
      %s78 = ssub.s32 %s73, %s74
      %s79 = sor.u32 %s77, %s78
      %p80 = scmp.eq.s32.totalorder %s79, 0
      %s82 = sadd.s32 %s81, 1
      %s83 = scalar_select %p80, %s81, %s82
      %p86 = pneg %p80
      %p87 = scmp.eq.s32.totalorder %s9, 3
      %p88 = por %p86, %p87
      %p89 = scmp.ne.s32.totalorder %s81, %s84
      %p90 = scmp.eq.s32.totalorder %s9, 0
      %p91 = por %p89, %p90
      %p92 = scmp.ne.s32.totalorder %s81, %s84
      %p93 = scmp.eq.s32.totalorder %s14, 3
      %p94 = por %p92, %p93
      %p95 = scmp.ne.s32.totalorder %s84, %s85
      %p96 = scmp.eq.s32.totalorder %s14, 0
      %p97 = por %p95, %p96
      %p98 = scmp.ne.s32.totalorder %s84, %s85
      %p99 = scmp.eq.s32.totalorder %s15, 3
      %p100 = por %p98, %p99
      %p102 = scmp.ne.s32.totalorder %s85, %s101
      %p103 = scmp.eq.s32.totalorder %s15, 0
      %p104 = por %p102, %p103
      %s105 = sadd.s32 %s17, 4
      %s106 = sadd.s32 %s38, 4
      %s107 = ssub.s32 %s16, %s42
      %s108 = ssub.s32 %s19, %s30
      %s109 = sor.u32 %s107, %s108
      %s110 = ssub.s32 %s105, %s106
      %s111 = sor.u32 %s109, %s110
      %p112 = scmp.eq.s32.totalorder %s111, 0
      %s114 = sadd.s32 %s113, 1
      %s115 = scalar_select %p112, %s113, %s114
      %p118 = pneg %p112
      %p119 = scmp.eq.s32.totalorder %s9, 3
      %p120 = por %p118, %p119
      %p121 = scmp.ne.s32.totalorder %s113, %s116
      %p122 = scmp.eq.s32.totalorder %s9, 0
      %p123 = por %p121, %p122
      %p124 = scmp.ne.s32.totalorder %s113, %s116
      %p125 = scmp.eq.s32.totalorder %s14, 3
      %p126 = por %p124, %p125
      %p127 = scmp.ne.s32.totalorder %s116, %s117
      %p128 = scmp.eq.s32.totalorder %s14, 0
      %p129 = por %p127, %p128
      %p130 = scmp.ne.s32.totalorder %s116, %s117
      %p131 = scmp.eq.s32.totalorder %s15, 3
      %p132 = por %p130, %p131
      %p134 = scmp.ne.s32.totalorder %s117, %s133
      %p135 = scmp.eq.s32.totalorder %s15, 0
      %p136 = por %p134, %p135
      %s137 = ssub.s32 %s16, %s42
      %s138 = ssub.s32 %s18, %s34
      %s139 = sor.u32 %s137, %s138
      %s140 = ssub.s32 %s17, %s38
      %s141 = sor.u32 %s139, %s140
      %p142 = scmp.eq.s32.totalorder %s141, 0
      %s144 = sadd.s32 %s143, 1
      %s145 = scalar_select %p142, %s143, %s144
      %p148 = pneg %p142
      %p149 = scmp.eq.s32.totalorder %s9, 3
      %p150 = por %p148, %p149
      %p151 = scmp.ne.s32.totalorder %s143, %s146
      %p152 = scmp.eq.s32.totalorder %s9, 0
      %p153 = por %p151, %p152
      %p154 = scmp.ne.s32.totalorder %s143, %s146
      %p155 = scmp.eq.s32.totalorder %s14, 3
      %p156 = por %p154, %p155
      %p157 = scmp.ne.s32.totalorder %s146, %s147
      %p158 = scmp.eq.s32.totalorder %s14, 0
      %p159 = por %p157, %p158
      %p160 = scmp.ne.s32.totalorder %s146, %s147
      %p161 = scmp.eq.s32.totalorder %s15, 3
      %p162 = por %p160, %p161
      %p164 = scmp.ne.s32.totalorder %s147, %s163
      %p165 = scmp.eq.s32.totalorder %s15, 0
      %p166 = por %p164, %p165
      %p167 = scmp.le.s32.totalorder 1, %s9
      %p168 = scmp.lt.s32.totalorder %s9, 5
      %p169 = pnand %p167, %p168
      %p170 = pneg %p169
      // Predicated region
      $region9: #{transformer_forward.30} parent=5 // pred_check
        _
      $region10: #{transformer_forward.30} parent=5 // pred_check_branch
        %172 = sbr.rel (%p169) target = $region12
      $region11: #{transformer_forward.30} parent=5 // pred_region
        %s173 = ssub.s32 %s9, 1
      $region12: #{transformer_forward.30} parent=5 // pred_fallthru
        _
      %p174 = scmp.lt.s32.totalorder %s9, 4
      // Predicated region
      $region13: #{transformer_forward.30} parent=5 // pred_check
        %p175 = pneg %p174
      $region14: #{transformer_forward.30} parent=5 // pred_check_branch
        %177 = sbr.rel (%p175) target = $region16
      $region15: #{transformer_forward.30} parent=5 // pred_region
        // Predicated region
        $region17: #{transformer_forward.30} parent=15 // pred_check
          %p178 = pneg %p59
        $region18: #{transformer_forward.30} parent=15 // pred_check_branch
          %180 = sbr.rel (%p178) target = $region20
        $region19: #{transformer_forward.30} parent=15 // pred_region
          %s181 = sand.u32 %s49, 1
          %s182 = sand.u32 %s49, 1
          %s183 = smul.addr %s182, 16
          %s184 = scalar_lea.vmem [#allocation5], %s183
          %s185 = smul.u32 2, %s18
          %s186 = smul.addr %s185, 6
          %s187 = sadd.s32 %s17, %s186
          %s188 = smul.addr %s16, 12
          %s189 = sadd.s32 %s187, %s188
          %s190 = smul.addr %s189, 8
          %s191 = scalar_lea.vmem %s0, %s190
          // Predicated region
          $region21: #{transformer_forward.30} parent=19 // pred_check
            _
          $region22: #{transformer_forward.30} parent=19 // pred_check_branch
            %193 = sbr.rel (0) target = $region24
          $region23: #{transformer_forward.30} parent=19 // pred_region
            // Predicated region
            $region25: #{transformer_forward.30} parent=23 // pred_check
              _
            $region26: #{transformer_forward.30} parent=23 // pred_check_branch
              %195 = sbr.rel (0) target = $region28
            $region27: #{transformer_forward.30} parent=23 // pred_region
              // Predicated region
              $region40: #{transformer_forward.30} parent=27 // pred_check
                _
              $region41: #{transformer_forward.30} parent=27 // pred_check_branch
                %213 = sbr.rel (0) target = $region43
              $region42: #{transformer_forward.30} parent=27 // pred_region
                loop: start=0, step=1, limit=1
                $region44: #{transformer_forward.30} parent=42 // loop_pre_header
                  _
                $region45: #{transformer_forward.30} parent=42 // loop_header
                  %s215 = sphi 0, %s219
                  %p216 = scmp.ge.s32.totalorder %s215, 1
                  %s220 = sphi %s191, %s191
                  %s221 = sphi %s184, %s184
                $region46: #{transformer_forward.30} parent=42 // loop_header_branch
                  %218 = sbr.rel (%p216) target = $region50
                $region47: #{transformer_forward.30} parent=42 // loop_body
                  %v222 = vld [vmem:[%s220] sm:$0xff]
                  %223 = vst [vmem:[%s221] sm:$0xff] %v222
                  %v224 = vld [vmem:[%s220 + $0x30] sm:$0xff]
                  %225 = vst [vmem:[%s221 + $0x8] sm:$0xff] %v224
                $region48: #{transformer_forward.30} parent=42 // loop_footer
                  %s219 = sadd.s32 1, %s215
                $region49: #{transformer_forward.30} parent=42 // loop_footer_branch
                  %214 = sbr.rel target = $region45
                $region50: #{transformer_forward.30} parent=42 // loop_exit
                  _
              $region43: #{transformer_forward.30} parent=27 // pred_fallthru
                _
              // Predicated region
              $region51: #{transformer_forward.30} parent=27 // pred_check
                _
              $region52: #{transformer_forward.30} parent=27 // pred_check_branch
                %227 = sbr.rel target = $region54
              $region53: #{transformer_forward.30} parent=27 // pred_region
                _
              $region54: #{transformer_forward.30} parent=27 // pred_fallthru
                _
            $region28: #{transformer_forward.30} parent=23 // pred_fallthru
              _
            // Predicated region
            $region29: #{transformer_forward.30} parent=23 // pred_check
              _
            $region30: #{transformer_forward.30} parent=23 // pred_check_branch
              %197 = sbr.rel target = $region32
            $region31: #{transformer_forward.30} parent=23 // pred_region
              %s199 = ssub.s32 256, 1
              loop: start=0, step=1, limit=1
              $region33: #{transformer_forward.30} parent=31 // loop_pre_header
                _
              $region34: #{transformer_forward.30} parent=31 // loop_header
                %s201 = sphi 0, %s205
                %p202 = scmp.ge.s32.totalorder %s201, 1
                %s206 = sphi %s191, %s191
                %s207 = sphi %s184, %s184
              $region35: #{transformer_forward.30} parent=31 // loop_header_branch
                %204 = sbr.rel (%p202) target = $region39
              $region36: #{transformer_forward.30} parent=31 // loop_body
                %v208 = vld [vmem:[%s206] sm:%s199]
                %209 = vst [vmem:[%s207] sm:%s199] %v208
                %v210 = vld [vmem:[%s206 + $0x30] sm:%s199]
                %211 = vst [vmem:[%s207 + $0x8] sm:%s199] %v210
              $region37: #{transformer_forward.30} parent=31 // loop_footer
                %s205 = sadd.s32 1, %s201
              $region38: #{transformer_forward.30} parent=31 // loop_footer_branch
                %200 = sbr.rel target = $region34
              $region39: #{transformer_forward.30} parent=31 // loop_exit
                _
            $region32: #{transformer_forward.30} parent=23 // pred_fallthru
              _
          $region24: #{transformer_forward.30} parent=19 // pred_fallthru
            _
          %228 = vnop
        $region20: #{transformer_forward.30} parent=15 // pred_fallthru
          _
        // Predicated region
        $region55: #{transformer_forward.30} parent=15 // pred_check
          %p229 = pneg %p91
        $region56: #{transformer_forward.30} parent=15 // pred_check_branch
          %231 = sbr.rel (%p229) target = $region58
        $region57: #{transformer_forward.30} parent=15 // pred_region
          %s232 = sand.u32 %s81, 1
          %s233 = sand.u32 %s81, 1
          %s234 = smul.addr %s233, 16
          %s235 = scalar_lea.vmem [#allocation6], %s234
          %s236 = sadd.s32 %s17, 2
          %s237 = smul.u32 2, %s19
          %s238 = smul.addr %s237, 6
          %s239 = sadd.s32 %s236, %s238
          %s240 = smul.addr %s16, 12
          %s241 = sadd.s32 %s239, %s240
          %s242 = smul.addr %s241, 8
          %s243 = scalar_lea.vmem %s1, %s242
          // Predicated region
          $region59: #{transformer_forward.30} parent=57 // pred_check
            _
          $region60: #{transformer_forward.30} parent=57 // pred_check_branch
            %245 = sbr.rel (0) target = $region62
          $region61: #{transformer_forward.30} parent=57 // pred_region
            // Predicated region
            $region63: #{transformer_forward.30} parent=61 // pred_check
              _
            $region64: #{transformer_forward.30} parent=61 // pred_check_branch
              %247 = sbr.rel (0) target = $region66
            $region65: #{transformer_forward.30} parent=61 // pred_region
              // Predicated region
              $region78: #{transformer_forward.30} parent=65 // pred_check
                _
              $region79: #{transformer_forward.30} parent=65 // pred_check_branch
                %265 = sbr.rel (0) target = $region81
              $region80: #{transformer_forward.30} parent=65 // pred_region
                loop: start=0, step=1, limit=1
                $region82: #{transformer_forward.30} parent=80 // loop_pre_header
                  _
                $region83: #{transformer_forward.30} parent=80 // loop_header
                  %s267 = sphi 0, %s271
                  %p268 = scmp.ge.s32.totalorder %s267, 1
                  %s272 = sphi %s243, %s243
                  %s273 = sphi %s235, %s235
                $region84: #{transformer_forward.30} parent=80 // loop_header_branch
                  %270 = sbr.rel (%p268) target = $region88
                $region85: #{transformer_forward.30} parent=80 // loop_body
                  %v274 = vld [vmem:[%s272] sm:$0xff]
                  %275 = vst [vmem:[%s273] sm:$0xff] %v274
                  %v276 = vld [vmem:[%s272 + $0x30] sm:$0xff]
                  %277 = vst [vmem:[%s273 + $0x8] sm:$0xff] %v276
                $region86: #{transformer_forward.30} parent=80 // loop_footer
                  %s271 = sadd.s32 1, %s267
                $region87: #{transformer_forward.30} parent=80 // loop_footer_branch
                  %266 = sbr.rel target = $region83
                $region88: #{transformer_forward.30} parent=80 // loop_exit
                  _
              $region81: #{transformer_forward.30} parent=65 // pred_fallthru
                _
              // Predicated region
              $region89: #{transformer_forward.30} parent=65 // pred_check
                _
              $region90: #{transformer_forward.30} parent=65 // pred_check_branch
                %279 = sbr.rel target = $region92
              $region91: #{transformer_forward.30} parent=65 // pred_region
                _
              $region92: #{transformer_forward.30} parent=65 // pred_fallthru
                _
            $region66: #{transformer_forward.30} parent=61 // pred_fallthru
              _
            // Predicated region
            $region67: #{transformer_forward.30} parent=61 // pred_check
              _
            $region68: #{transformer_forward.30} parent=61 // pred_check_branch
              %249 = sbr.rel target = $region70
            $region69: #{transformer_forward.30} parent=61 // pred_region
              %s251 = ssub.s32 256, 1
              loop: start=0, step=1, limit=1
              $region71: #{transformer_forward.30} parent=69 // loop_pre_header
                _
              $region72: #{transformer_forward.30} parent=69 // loop_header
                %s253 = sphi 0, %s257
                %p254 = scmp.ge.s32.totalorder %s253, 1
                %s258 = sphi %s243, %s243
                %s259 = sphi %s235, %s235
              $region73: #{transformer_forward.30} parent=69 // loop_header_branch
                %256 = sbr.rel (%p254) target = $region77
              $region74: #{transformer_forward.30} parent=69 // loop_body
                %v260 = vld [vmem:[%s258] sm:%s251]
                %261 = vst [vmem:[%s259] sm:%s251] %v260
                %v262 = vld [vmem:[%s258 + $0x30] sm:%s251]
                %263 = vst [vmem:[%s259 + $0x8] sm:%s251] %v262
              $region75: #{transformer_forward.30} parent=69 // loop_footer
                %s257 = sadd.s32 1, %s253
              $region76: #{transformer_forward.30} parent=69 // loop_footer_branch
                %252 = sbr.rel target = $region72
              $region77: #{transformer_forward.30} parent=69 // loop_exit
                _
            $region70: #{transformer_forward.30} parent=61 // pred_fallthru
              _
          $region62: #{transformer_forward.30} parent=57 // pred_fallthru
            _
          %280 = vnop
        $region58: #{transformer_forward.30} parent=15 // pred_fallthru
          _
        // Predicated region
        $region93: #{transformer_forward.30} parent=15 // pred_check
          %p281 = pneg %p123
        $region94: #{transformer_forward.30} parent=15 // pred_check_branch
          %283 = sbr.rel (%p281) target = $region96
        $region95: #{transformer_forward.30} parent=15 // pred_region
          %s284 = sand.u32 %s113, 1
          %s285 = sand.u32 %s113, 1
          %s286 = smul.addr %s285, 16
          %s287 = scalar_lea.vmem [#allocation7], %s286
          %s288 = sadd.s32 %s17, 4
          %s289 = smul.u32 2, %s19
          %s290 = smul.addr %s289, 6
          %s291 = sadd.s32 %s288, %s290
          %s292 = smul.addr %s16, 12
          %s293 = sadd.s32 %s291, %s292
          %s294 = smul.addr %s293, 8
          %s295 = scalar_lea.vmem %s2, %s294
          // Predicated region
          $region97: #{transformer_forward.30} parent=95 // pred_check
            _
          $region98: #{transformer_forward.30} parent=95 // pred_check_branch
            %297 = sbr.rel (0) target = $region100
          $region99: #{transformer_forward.30} parent=95 // pred_region
            // Predicated region
            $region101: #{transformer_forward.30} parent=99 // pred_check
              _
            $region102: #{transformer_forward.30} parent=99 // pred_check_branch
              %299 = sbr.rel (0) target = $region104
            $region103: #{transformer_forward.30} parent=99 // pred_region
              // Predicated region
              $region116: #{transformer_forward.30} parent=103 // pred_check
                _
              $region117: #{transformer_forward.30} parent=103 // pred_check_branch
                %317 = sbr.rel (0) target = $region119
              $region118: #{transformer_forward.30} parent=103 // pred_region
                loop: start=0, step=1, limit=1
                $region120: #{transformer_forward.30} parent=118 // loop_pre_header
                  _
                $region121: #{transformer_forward.30} parent=118 // loop_header
                  %s319 = sphi 0, %s323
                  %p320 = scmp.ge.s32.totalorder %s319, 1
                  %s324 = sphi %s295, %s295
                  %s325 = sphi %s287, %s287
                $region122: #{transformer_forward.30} parent=118 // loop_header_branch
                  %322 = sbr.rel (%p320) target = $region126
                $region123: #{transformer_forward.30} parent=118 // loop_body
                  %v326 = vld [vmem:[%s324] sm:$0xff]
                  %327 = vst [vmem:[%s325] sm:$0xff] %v326
                  %v328 = vld [vmem:[%s324 + $0x30] sm:$0xff]
                  %329 = vst [vmem:[%s325 + $0x8] sm:$0xff] %v328
                $region124: #{transformer_forward.30} parent=118 // loop_footer
                  %s323 = sadd.s32 1, %s319
                $region125: #{transformer_forward.30} parent=118 // loop_footer_branch
                  %318 = sbr.rel target = $region121
                $region126: #{transformer_forward.30} parent=118 // loop_exit
                  _
              $region119: #{transformer_forward.30} parent=103 // pred_fallthru
                _
              // Predicated region
              $region127: #{transformer_forward.30} parent=103 // pred_check
                _
              $region128: #{transformer_forward.30} parent=103 // pred_check_branch
                %331 = sbr.rel target = $region130
              $region129: #{transformer_forward.30} parent=103 // pred_region
                _
              $region130: #{transformer_forward.30} parent=103 // pred_fallthru
                _
            $region104: #{transformer_forward.30} parent=99 // pred_fallthru
              _
            // Predicated region
            $region105: #{transformer_forward.30} parent=99 // pred_check
              _
            $region106: #{transformer_forward.30} parent=99 // pred_check_branch
              %301 = sbr.rel target = $region108
            $region107: #{transformer_forward.30} parent=99 // pred_region
              %s303 = ssub.s32 256, 1
              loop: start=0, step=1, limit=1
              $region109: #{transformer_forward.30} parent=107 // loop_pre_header
                _
              $region110: #{transformer_forward.30} parent=107 // loop_header
                %s305 = sphi 0, %s309
                %p306 = scmp.ge.s32.totalorder %s305, 1
                %s310 = sphi %s295, %s295
                %s311 = sphi %s287, %s287
              $region111: #{transformer_forward.30} parent=107 // loop_header_branch
                %308 = sbr.rel (%p306) target = $region115
              $region112: #{transformer_forward.30} parent=107 // loop_body
                %v312 = vld [vmem:[%s310] sm:%s303]
                %313 = vst [vmem:[%s311] sm:%s303] %v312
                %v314 = vld [vmem:[%s310 + $0x30] sm:%s303]
                %315 = vst [vmem:[%s311 + $0x8] sm:%s303] %v314
              $region113: #{transformer_forward.30} parent=107 // loop_footer
                %s309 = sadd.s32 1, %s305
              $region114: #{transformer_forward.30} parent=107 // loop_footer_branch
                %304 = sbr.rel target = $region110
              $region115: #{transformer_forward.30} parent=107 // loop_exit
                _
            $region108: #{transformer_forward.30} parent=99 // pred_fallthru
              _
          $region100: #{transformer_forward.30} parent=95 // pred_fallthru
            _
          %332 = vnop
        $region96: #{transformer_forward.30} parent=15 // pred_fallthru
          _
      $region16: #{transformer_forward.30} parent=5 // pred_fallthru
        _
      %p333 = scmp.le.s32.totalorder 1, %s9
      %p334 = scmp.lt.s32.totalorder %s9, 5
      %p335 = pnand %p333, %p334
      %p336 = pneg %p335
      // Predicated region
      $region131: #{transformer_forward.30} parent=5 // pred_check
        _
      $region132: #{transformer_forward.30} parent=5 // pred_check_branch
        %338 = sbr.rel (%p335) target = $region134
      $region133: #{transformer_forward.30} parent=5 // pred_region
        %s339 = ssub.s32 %s9, 1
        %s340 = sand.u32 %s52, 1
        %s341 = sand.u32 %s52, 1
        %s342 = smul.addr %s341, 16
        %s343 = scalar_lea.vmem [#allocation5], %s342
        // Predicated region
        $region135: #{transformer_forward.30} parent=133 // pred_check
          %p344 = pneg %p65
        $region136: #{transformer_forward.30} parent=133 // pred_check_branch
          %346 = sbr.rel (%p344) target = $region138
        $region137: #{transformer_forward.30} parent=133 // pred_region
          _
        $region138: #{transformer_forward.30} parent=133 // pred_fallthru
          _
        %s347 = sand.u32 %s84, 1
        %s348 = sand.u32 %s84, 1
        %s349 = smul.addr %s348, 16
        %s350 = scalar_lea.vmem [#allocation6], %s349
        // Predicated region
        $region139: #{transformer_forward.30} parent=133 // pred_check
          %p351 = pneg %p97
        $region140: #{transformer_forward.30} parent=133 // pred_check_branch
          %353 = sbr.rel (%p351) target = $region142
        $region141: #{transformer_forward.30} parent=133 // pred_region
          _
        $region142: #{transformer_forward.30} parent=133 // pred_fallthru
          _
        %s354 = sand.u32 %s116, 1
        %s355 = sand.u32 %s116, 1
        %s356 = smul.addr %s355, 16
        %s357 = scalar_lea.vmem [#allocation7], %s356
        // Predicated region
        $region143: #{transformer_forward.30} parent=133 // pred_check
          %p358 = pneg %p129
        $region144: #{transformer_forward.30} parent=133 // pred_check_branch
          %360 = sbr.rel (%p358) target = $region146
        $region145: #{transformer_forward.30} parent=133 // pred_region
          _
        $region146: #{transformer_forward.30} parent=133 // pred_fallthru
          _
        %s361 = sand.u32 %s52, 1
        %s362 = sand.u32 %s52, 1
        %s363 = smul.addr %s362, 16
        %s364 = scalar_lea.vmem [#allocation5], %s363
        %p365 = pneg %p65
        %p366 = pneg %p62
        %s367 = sand.u32 %s84, 1
        %s368 = sand.u32 %s84, 1
        %s369 = smul.addr %s368, 16
        %s370 = scalar_lea.vmem [#allocation6], %s369
        %p371 = pneg %p97
        %p372 = pneg %p94
        %s373 = sand.u32 %s116, 1
        %s374 = sand.u32 %s116, 1
        %s375 = smul.addr %s374, 16
        %s376 = scalar_lea.vmem [#allocation7], %s375
        %p377 = pneg %p129
        %p378 = pneg %p126
        %p379 = pneg %p159
        %p380 = pneg %p156
        %s381 = sand.u32 %s146, 1
        %s382 = sand.u32 %s146, 1
        %s383 = smul.addr %s382, 16
        %s384 = scalar_lea.vmem [#allocation8], %s383
        %s385 = smul.u32 2, %s22
        %s386 = sadd.s32 %s21, 2
        %s387 = smul.u32 2, %s23
        %s388 = sadd.s32 %s21, 4
        %s389 = smul.u32 2, %s23
        %s390 = smul.u32 2, %s22
        %p392 = scmp.eq.s32.totalorder %s23, 0
        // Predicated region
        $region147: #{transformer_forward.30} parent=133 // pred_check
          %p393 = pneg %p392
        $region148: #{transformer_forward.30} parent=133 // pred_check_branch
          %395 = sbr.rel (%p393) target = $region150
        $region149: #{transformer_forward.30} parent=133 // pred_region
          %vm396 = vcmask 7168
          %397 = vst.msk [vmem:[#allocation2] sm:$0xff] %vm396, -inf
          %398 = vst.msk [vmem:[#allocation2 + $0x8] sm:$0xff] %vm396, -inf
          %399 = vst.msk [vmem:[#allocation3] sm:$0xff] %vm396, 0.0
          %400 = vst.msk [vmem:[#allocation3 + $0x8] sm:$0xff] %vm396, 0.0
          %401 = vst [vmem:[#allocation4] sm:$0xff] 0.0
          %402 = vst [vmem:[#allocation4 + $0x8] sm:$0xff] 0.0
        $region150: #{transformer_forward.30} parent=133 // pred_fallthru
          _
        %v403 = vld [vmem:[%s343] sm:$0xff]
        %v404 = vld [vmem:[%s343 + $0x8] sm:$0xff]
        %v405 = vmul.f32 %v403, 0.088388346
        %v406 = vmul.f32 %v404, 0.088388346
        %v407 = vpack.c.bf16 %v406, %v405
        %v408 = vld [vmem:[%s350] sm:$0xff]
        %v409 = vld [vmem:[%s350 + $0x8] sm:$0xff]
        %v410 = vpack.c.bf16 %v409, %v408
        %v411 = vld [vmem:[%s357] sm:$0xff]
        %v412 = vld [vmem:[%s357 + $0x8] sm:$0xff]
        %413 = vmatpush.bf16.xpose.msra.mxu0 0
        %414 = vmatpush.bf16.xpose.msra.mxu0 0
        %415 = vmatpush.bf16.xpose.msra.mxu0 0
        %416 = vmatpush.bf16.xpose.msra.mxu0 0
        %417 = vmatpush.bf16.xpose.msra.mxu0 0
        %418 = vmatpush.bf16.xpose.msra.mxu0 0
        %419 = vmatpush.bf16.xpose.msra.mxu0 0
        %420 = vmatpush.bf16.xpose.msra.mxu0 %v410
        %421 = vmatmul.bf16.gmra.mxu0 %v407
        %v422 = vpop.f32.mrf.mxu0
        %v423 = vadd.f32 0.0, %v422
        %v424 = vpop.f32.mrf.mxu0
        %v425 = vadd.f32 0.0, %v424
        %426 = vdwg.mxu0
        %v427 = vld [vmem:[#allocation2] sm:$0xff]
        %v428 = vld [vmem:[#allocation2 + $0x8] sm:$0xff]
        %vm429 = vcmask 130048
        %v430 = vsel %vm429, %v423, -inf
        %431 = vmax.xlane.f32.xlu0 %v430
        %v432 = vpop.xlane.xlu0 %431
        %v433 = vsel %vm429, %v425, -inf
        %434 = vmax.xlane.f32.xlu0 %v433
        %v435 = vpop.xlane.xlu0 %434
        %v436 = vmax.f32 %v427, %v432
        %v437 = vmax.f32 %v428, %v435
        %v438 = vsub.f32 %v427, %v436
        %v439 = vsub.f32 %v428, %v437
        %v440 = vmul.f32 %v438, 1.442695
        %v441 = vpow.pop %v440
        %v442 = vmul.f32 %v439, 1.442695
        %v443 = vpow.pop %v442
        %445 = vset.pattern.permute.xlu0 0
        %446 = vperm.xlu0 %445, %v436
        %v447 = vpop.permute.xlu0 %446
        %450 = vset.pattern.permute.xlu0 0
        %451 = vperm.xlu0 %450, %v437
        %v452 = vpop.permute.xlu0 %451
        %v454 = vsub.f32 %v423, %v447
        %v455 = vsub.f32 %v425, %v452
        %v456 = vmul.f32 %v454, 1.442695
        %v457 = vpow.pop %v456
        %v458 = vmul.f32 %v455, 1.442695
        %v459 = vpow.pop %v458
        %v460 = vld [vmem:[#allocation3] sm:$0xff]
        %v461 = vld [vmem:[#allocation3 + $0x8] sm:$0xff]
        %v462 = vmul.f32 %v441, %v460
        %v463 = vmul.f32 %v443, %v461
        %v464 = vsel %vm429, %v457, 0.0
        %465 = vadd.xlane.f32.xlu0 %v464
        %v466 = vpop.xlane.xlu0 %465
        %v467 = vsel %vm429, %v459, 0.0
        %468 = vadd.xlane.f32.xlu0 %v467
        %v469 = vpop.xlane.xlu0 %468
        %v470 = vadd.f32 %v462, %v466
        %v471 = vadd.f32 %v463, %v469
        %vm472 = vcmask 7168
        %473 = vst.msk [vmem:[#allocation3] sm:$0xff] %vm472, %v470
        %474 = vst.msk [vmem:[#allocation3 + $0x8] sm:$0xff] %vm472, %v471
        %v475 = vld [vmem:[#allocation4] sm:$0xff]
        %v476 = vld [vmem:[#allocation4 + $0x8] sm:$0xff]
        %478 = vset.pattern.permute.xlu0 0
        %479 = vperm.xlu0 %478, %v441
        %v480 = vpop.permute.xlu0 %479
        %483 = vset.pattern.permute.xlu0 0
        %484 = vperm.xlu0 %483, %v443
        %v485 = vpop.permute.xlu0 %484
        %v487 = vmul.f32 %v480, %v475
        %v488 = vmul.f32 %v485, %v476
        %v489 = vpack.c.bf16 %v459, %v457
        %v490 = vpack.c.bf16 %v412, %v411
        %v492 = vsel %vm429, %v489, 0
        %494 = vmatpush.bf16.msra.mxu0 0
        %495 = vmatpush.bf16.msra.mxu0 0
        %496 = vmatpush.bf16.msra.mxu0 0
        %497 = vmatpush.bf16.msra.mxu0 0
        %498 = vmatpush.bf16.msra.mxu0 0
        %499 = vmatpush.bf16.msra.mxu0 0
        %500 = vmatpush.bf16.msra.mxu0 0
        %501 = vmatpush.bf16.msra.mxu0 %v490
        %502 = vmatmul.bf16.gmra.mxu0 %v492
        %v503 = vpop.f32.mrf.mxu0
        %v504 = vadd.f32 0.0, %v503
        %v505 = vpop.f32.mrf.mxu0
        %v506 = vadd.f32 0.0, %v505
        %507 = vdwg.mxu0
        %v508 = vadd.f32 %v487, %v504
        %v509 = vadd.f32 %v488, %v506
        %510 = vst [vmem:[#allocation4] sm:$0xff] %v508
        %511 = vst [vmem:[#allocation4 + $0x8] sm:$0xff] %v509
        %512 = vst.msk [vmem:[#allocation2] sm:$0xff] %vm472, %v436
        %513 = vst.msk [vmem:[#allocation2 + $0x8] sm:$0xff] %vm472, %v437
        // Predicated region
        $region151: #{transformer_forward.30} parent=133 // pred_check
          %p514 = pneg %p392
        $region152: #{transformer_forward.30} parent=133 // pred_check_branch
          %516 = sbr.rel (%p514) target = $region154
        $region153: #{transformer_forward.30} parent=133 // pred_region
          %v517 = vld [vmem:[#allocation3] sm:$0xff]
          %v518 = vld [vmem:[#allocation3 + $0x8] sm:$0xff]
          %v519 = vrcp.pop %v517
          %v520 = vrcp.pop %v518
          %v521 = vld [vmem:[#allocation4] sm:$0xff]
          %v522 = vld [vmem:[#allocation4 + $0x8] sm:$0xff]
          %524 = vset.pattern.permute.xlu0 0
          %525 = vperm.xlu0 %524, %v519
          %v526 = vpop.permute.xlu0 %525
          %529 = vset.pattern.permute.xlu0 0
          %530 = vperm.xlu0 %529, %v520
          %v531 = vpop.permute.xlu0 %530
          %v533 = vmul.f32 %v521, %v526
          %v534 = vmul.f32 %v522, %v531
          %535 = vst [vmem:[%s384] sm:$0xff] %v533
          %536 = vst [vmem:[%s384 + $0x8] sm:$0xff] %v534
        $region154: #{transformer_forward.30} parent=133 // pred_fallthru
          _
        %s537 = sand.u32 %s146, 1
        %s538 = sand.u32 %s146, 1
        %s539 = smul.addr %s538, 16
        %s540 = scalar_lea.vmem [#allocation8], %s539
        // Predicated region
        $region155: #{transformer_forward.30} parent=133 // pred_check
          %p541 = pneg %p156
        $region156: #{transformer_forward.30} parent=133 // pred_check_branch
          %543 = sbr.rel (%p541) target = $region158
        $region157: #{transformer_forward.30} parent=133 // pred_region
          %s544 = smul.u32 2, %s22
          %s545 = smul.addr %s544, 2
          %s546 = sadd.s32 %s21, %s545
          %s547 = smul.addr %s20, 4
          %s548 = sadd.s32 %s546, %s547
          %s549 = smul.addr %s548, 8
          %s550 = scalar_lea.vmem %s3, %s549
          // Predicated region
          $region159: #{transformer_forward.30} parent=157 // pred_check
            _
          $region160: #{transformer_forward.30} parent=157 // pred_check_branch
            %552 = sbr.rel (0) target = $region162
          $region161: #{transformer_forward.30} parent=157 // pred_region
            // Predicated region
            $region163: #{transformer_forward.30} parent=161 // pred_check
              _
            $region164: #{transformer_forward.30} parent=161 // pred_check_branch
              %554 = sbr.rel (0) target = $region166
            $region165: #{transformer_forward.30} parent=161 // pred_region
              // Predicated region
              $region178: #{transformer_forward.30} parent=165 // pred_check
                _
              $region179: #{transformer_forward.30} parent=165 // pred_check_branch
                %572 = sbr.rel (0) target = $region181
              $region180: #{transformer_forward.30} parent=165 // pred_region
                loop: start=0, step=1, limit=1
                $region182: #{transformer_forward.30} parent=180 // loop_pre_header
                  _
                $region183: #{transformer_forward.30} parent=180 // loop_header
                  %s574 = sphi 0, %s578
                  %p575 = scmp.ge.s32.totalorder %s574, 1
                  %s579 = sphi %s540, %s540
                  %s580 = sphi %s550, %s550
                $region184: #{transformer_forward.30} parent=180 // loop_header_branch
                  %577 = sbr.rel (%p575) target = $region188
                $region185: #{transformer_forward.30} parent=180 // loop_body
                  %v581 = vld [vmem:[%s579] sm:$0xff]
                  %582 = vst [vmem:[%s580] sm:$0xff] %v581
                  %v583 = vld [vmem:[%s579 + $0x8] sm:$0xff]
                  %584 = vst [vmem:[%s580 + $0x10] sm:$0xff] %v583
                $region186: #{transformer_forward.30} parent=180 // loop_footer
                  %s578 = sadd.s32 1, %s574
                $region187: #{transformer_forward.30} parent=180 // loop_footer_branch
                  %573 = sbr.rel target = $region183
                $region188: #{transformer_forward.30} parent=180 // loop_exit
                  _
              $region181: #{transformer_forward.30} parent=165 // pred_fallthru
                _
              // Predicated region
              $region189: #{transformer_forward.30} parent=165 // pred_check
                _
              $region190: #{transformer_forward.30} parent=165 // pred_check_branch
                %586 = sbr.rel target = $region192
              $region191: #{transformer_forward.30} parent=165 // pred_region
                _
              $region192: #{transformer_forward.30} parent=165 // pred_fallthru
                _
            $region166: #{transformer_forward.30} parent=161 // pred_fallthru
              _
            // Predicated region
            $region167: #{transformer_forward.30} parent=161 // pred_check
              _
            $region168: #{transformer_forward.30} parent=161 // pred_check_branch
              %556 = sbr.rel target = $region170
            $region169: #{transformer_forward.30} parent=161 // pred_region
              %s558 = ssub.s32 256, 1
              loop: start=0, step=1, limit=1
              $region171: #{transformer_forward.30} parent=169 // loop_pre_header
                _
              $region172: #{transformer_forward.30} parent=169 // loop_header
                %s560 = sphi 0, %s564
                %p561 = scmp.ge.s32.totalorder %s560, 1
                %s565 = sphi %s540, %s540
                %s566 = sphi %s550, %s550
              $region173: #{transformer_forward.30} parent=169 // loop_header_branch
                %563 = sbr.rel (%p561) target = $region177
              $region174: #{transformer_forward.30} parent=169 // loop_body
                %v567 = vld [vmem:[%s565] sm:%s558]
                %568 = vst [vmem:[%s566] sm:%s558] %v567
                %v569 = vld [vmem:[%s565 + $0x8] sm:%s558]
                %570 = vst [vmem:[%s566 + $0x10] sm:%s558] %v569
              $region175: #{transformer_forward.30} parent=169 // loop_footer
                %s564 = sadd.s32 1, %s560
              $region176: #{transformer_forward.30} parent=169 // loop_footer_branch
                %559 = sbr.rel target = $region172
              $region177: #{transformer_forward.30} parent=169 // loop_exit
                _
            $region170: #{transformer_forward.30} parent=161 // pred_fallthru
              _
          $region162: #{transformer_forward.30} parent=157 // pred_fallthru
            _
          %587 = vnop
        $region158: #{transformer_forward.30} parent=133 // pred_fallthru
          _
      $region134: #{transformer_forward.30} parent=5 // pred_fallthru
        _
      %p588 = scmp.le.s32.totalorder 2, %s9
      // Predicated region
      $region193: #{transformer_forward.30} parent=5 // pred_check
        %p589 = pneg %p588
      $region194: #{transformer_forward.30} parent=5 // pred_check_branch
        %591 = sbr.rel (%p589) target = $region196
      $region195: #{transformer_forward.30} parent=5 // pred_region
        %s592 = ssub.s32 %s9, 2
        // Predicated region
        $region197: #{transformer_forward.30} parent=195 // pred_check
          %p593 = pneg %p162
        $region198: #{transformer_forward.30} parent=195 // pred_check_branch
          %595 = sbr.rel (%p593) target = $region200
        $region199: #{transformer_forward.30} parent=195 // pred_region
          %s596 = sand.u32 %s147, 1
          %s597 = sand.u32 %s147, 1
          %s598 = smul.addr %s597, 16
          %s599 = scalar_lea.vmem [#allocation8], %s598
        $region200: #{transformer_forward.30} parent=195 // pred_fallthru
          _
      $region196: #{transformer_forward.30} parent=5 // pred_fallthru
        _
    $region6: #{transformer_forward.30} parent=1 // loop_footer
      %s13 = sadd.s32 1, %s9
    $region7: #{transformer_forward.30} parent=1 // loop_footer_branch
      %8 = sbr.rel target = $region3
    $region8: #{transformer_forward.30} parent=1 // loop_exit
      _

// kernel: transformer_forward.31
$region0: #{transformer_forward.31}
  #allocation0 [shape = 'u32[]', space=smem, size = 0x4, offset = 0x4, fixed_abs, tag = 'smem constant byte address 0x4 - core index']
  #allocation1 [shape = 'u32[72,128]{1,0:T(1,128)}', space=vmem, size = 0x9000, scoped, tag = 'internal scratch']
  #allocation2 [shape = 'f32[32,256]{1,0:T(8,128)}', space=vmem, size = 0x8000, scoped, tag = 'scratch operand']
  %s0 = inlined_call_operand.vmem [shape: f32[32,256], index: 0, kind: input, shape index: {}]
  %s1 = inlined_call_operand.hbm [shape: f32[256,256], index: 1, kind: input, shape index: {}]
  %s2 = inlined_call_operand.vmem [shape: f32[1,256], index: 2, kind: input, shape index: {}]
  %s3 = inlined_call_operand.vmem [shape: f32[32,256], index: 3, kind: input, shape index: {}]
  %s4 = inlined_call_operand.vmem [shape: f32[1,256], index: 4, kind: input, shape index: {}]
  %s5 = inlined_call_operand.vmem [shape: f32[1,256], index: 5, kind: input, shape index: {}]
  %s6 = inlined_call_operand.vmem [shape: f32[32,256], index: 6, kind: output, shape index: {}]
  %s7 = sld [smem:[#allocation0]]
  $region46: #{transformer_forward.31} parent=0
    _
  %s9 = ssub.s32 1, %s7
  %s10 = scalar_select 0, %s9, %s7
  $region1: #{transformer_forward.31} parent=0
    #allocation3 [shape = 'u8[262144]{0}', space=vmem, size = 0x40000, scoped, tag = 'input window, operand 1, single buffered']
    #allocation4 [shape = 's32[1]{0}', space=sflag, size = 0x4, scoped, tag = 'scoped memory for transformer_forward.31']
    %11 = vsyncpa [#allocation4], 0
    // Predicated region
    $region2: #{transformer_forward.31} parent=1 // pred_check
      _
    $region3: #{transformer_forward.31} parent=1 // pred_check_branch
      %13 = sbr.rel (0) target = $region5
    $region4: #{transformer_forward.31} parent=1 // pred_region
      _
    $region5: #{transformer_forward.31} parent=1 // pred_fallthru
      _
    // Predicated region
    $region6: #{transformer_forward.31} parent=1 // pred_check
      _
    $region7: #{transformer_forward.31} parent=1 // pred_check_branch
      %15 = sbr.rel (0) target = $region9
    $region8: #{transformer_forward.31} parent=1 // pred_region
      %17 = vsyncadd [#allocation4], 0
      %s18 = sshll.u32 %s1, 4
      %s19 = int_to_ptr.hbm [resolvable:$true] %s18
      %s20 = sshll.u32 [#allocation3], 4
      %s21 = int_to_ptr.vmem [resolvable:$true] %s20
      %26 = dma.hbm_to_vmem [thread:$0]  %s19, 8192, %s21, [#allocation4], 256, 256, 16
    $region9: #{transformer_forward.31} parent=1 // pred_fallthru
      _
    // Predicated region
    $region10: #{transformer_forward.31} parent=1 // pred_check
      _
    $region11: #{transformer_forward.31} parent=1 // pred_check_branch
      %28 = sbr.rel (0) target = $region13
    $region12: #{transformer_forward.31} parent=1 // pred_region
      _
    $region13: #{transformer_forward.31} parent=1 // pred_fallthru
      _
    // Predicated region
    $region14: #{transformer_forward.31} parent=1 // pred_check
      _
    $region15: #{transformer_forward.31} parent=1 // pred_check_branch
      %30 = sbr.rel (0) target = $region17
    $region16: #{transformer_forward.31} parent=1 // pred_region
      _
    $region17: #{transformer_forward.31} parent=1 // pred_fallthru
      _
    // Predicated region
    $region18: #{transformer_forward.31} parent=1 // pred_check
      _
    $region19: #{transformer_forward.31} parent=1 // pred_check_branch
      %32 = sbr.rel (0) target = $region21
    $region20: #{transformer_forward.31} parent=1 // pred_region
      _
    $region21: #{transformer_forward.31} parent=1 // pred_fallthru
      _
    // Predicated region
    $region22: #{transformer_forward.31} parent=1 // pred_check
      _
    $region23: #{transformer_forward.31} parent=1 // pred_check_branch
      %34 = sbr.rel (0) target = $region25
    $region24: #{transformer_forward.31} parent=1 // pred_region
      _
    $region25: #{transformer_forward.31} parent=1 // pred_fallthru
      _
    // Predicated region
    $region26: #{transformer_forward.31} parent=1 // pred_check
      _
    $region27: #{transformer_forward.31} parent=1 // pred_check_branch
      %36 = sbr.rel (0) target = $region29
    $region28: #{transformer_forward.31} parent=1 // pred_region
      %38 = dma.done [#allocation4], 8192
    $region29: #{transformer_forward.31} parent=1 // pred_fallthru
      _
    %p39 = scmp.eq.s32.totalorder 0, 0
    // Predicated region
    $region30: #{transformer_forward.31} parent=1 // pred_check
      %p40 = pneg %p39
    $region31: #{transformer_forward.31} parent=1 // pred_check_branch
      %42 = sbr.rel (%p40) target = $region33
    $region32: #{transformer_forward.31} parent=1 // pred_region
      %43 = vst [vmem:[#allocation2] sm:$0xff] 0.0
      %44 = vst [vmem:[#allocation2 + $0x8] sm:$0xff] 0.0
      %45 = vst [vmem:[#allocation2 + $0x10] sm:$0xff] 0.0
      %46 = vst [vmem:[#allocation2 + $0x18] sm:$0xff] 0.0
      %47 = vst [vmem:[#allocation2 + $0x20] sm:$0xff] 0.0
      %48 = vst [vmem:[#allocation2 + $0x28] sm:$0xff] 0.0
      %49 = vst [vmem:[#allocation2 + $0x30] sm:$0xff] 0.0
      %50 = vst [vmem:[#allocation2 + $0x38] sm:$0xff] 0.0
    $region33: #{transformer_forward.31} parent=1 // pred_fallthru
      _
    %v51 = vld [vmem:[#allocation2] sm:$0xff]
    %v52 = vld [vmem:[#allocation2 + $0x8] sm:$0xff]
    %v53 = vld [vmem:[#allocation2 + $0x10] sm:$0xff]
    %v54 = vld [vmem:[#allocation2 + $0x18] sm:$0xff]
    %v55 = vld [vmem:[#allocation2 + $0x20] sm:$0xff]
    %v56 = vld [vmem:[#allocation2 + $0x28] sm:$0xff]
    %v57 = vld [vmem:[#allocation2 + $0x30] sm:$0xff]
    %v58 = vld [vmem:[#allocation2 + $0x38] sm:$0xff]
    %v59 = vld [vmem:[%s0] sm:$0xff]
    %v60 = vld [vmem:[%s0 + $0x8] sm:$0xff]
    %v61 = vld [vmem:[%s0 + $0x10] sm:$0xff]
    %v62 = vld [vmem:[%s0 + $0x18] sm:$0xff]
    %v63 = vld [vmem:[%s0 + $0x20] sm:$0xff]
    %v64 = vld [vmem:[%s0 + $0x28] sm:$0xff]
    %v65 = vld [vmem:[%s0 + $0x30] sm:$0xff]
    %v66 = vld [vmem:[%s0 + $0x38] sm:$0xff]
    %v67 = vpack.c.bf16 %v61, %v59
    %v68 = vpack.c.bf16 %v62, %v60
    %v69 = vpack.c.bf16 %v65, %v63
    %v70 = vpack.c.bf16 %v66, %v64
    %v71 = vld [vmem:[#allocation3] sm:$0xff]
    %v72 = vld [vmem:[#allocation3 + $0x8] sm:$0xff]
    %v73 = vld [vmem:[#allocation3 + $0x10] sm:$0xff]
    %v74 = vld [vmem:[#allocation3 + $0x18] sm:$0xff]
    %v75 = vld [vmem:[#allocation3 + $0x20] sm:$0xff]
    %v76 = vld [vmem:[#allocation3 + $0x28] sm:$0xff]
    %v77 = vld [vmem:[#allocation3 + $0x30] sm:$0xff]
    %v78 = vld [vmem:[#allocation3 + $0x38] sm:$0xff]
    %v79 = vld [vmem:[#allocation3 + $0x40] sm:$0xff]
    %v80 = vld [vmem:[#allocation3 + $0x48] sm:$0xff]
    %v81 = vld [vmem:[#allocation3 + $0x50] sm:$0xff]
    %v82 = vld [vmem:[#allocation3 + $0x58] sm:$0xff]
    %v83 = vld [vmem:[#allocation3 + $0x60] sm:$0xff]
    %v84 = vld [vmem:[#allocation3 + $0x68] sm:$0xff]
    %v85 = vld [vmem:[#allocation3 + $0x70] sm:$0xff]
    %v86 = vld [vmem:[#allocation3 + $0x78] sm:$0xff]
    %v87 = vld [vmem:[#allocation3 + $0x80] sm:$0xff]
    %v88 = vld [vmem:[#allocation3 + $0x88] sm:$0xff]
    %v89 = vld [vmem:[#allocation3 + $0x90] sm:$0xff]
    %v90 = vld [vmem:[#allocation3 + $0x98] sm:$0xff]
    %v91 = vld [vmem:[#allocation3 + $0xa0] sm:$0xff]
    %v92 = vld [vmem:[#allocation3 + $0xa8] sm:$0xff]
    %v93 = vld [vmem:[#allocation3 + $0xb0] sm:$0xff]
    %v94 = vld [vmem:[#allocation3 + $0xb8] sm:$0xff]
    %v95 = vld [vmem:[#allocation3 + $0xc0] sm:$0xff]
    %v96 = vld [vmem:[#allocation3 + $0xc8] sm:$0xff]
    %v97 = vld [vmem:[#allocation3 + $0xd0] sm:$0xff]
    %v98 = vld [vmem:[#allocation3 + $0xd8] sm:$0xff]
    %v99 = vld [vmem:[#allocation3 + $0xe0] sm:$0xff]
    %v100 = vld [vmem:[#allocation3 + $0xe8] sm:$0xff]
    %v101 = vld [vmem:[#allocation3 + $0xf0] sm:$0xff]
    %v102 = vld [vmem:[#allocation3 + $0xf8] sm:$0xff]
    %v103 = vld [vmem:[#allocation3 + $0x100] sm:$0xff]
    %v104 = vld [vmem:[#allocation3 + $0x108] sm:$0xff]
    %v105 = vld [vmem:[#allocation3 + $0x110] sm:$0xff]
    %v106 = vld [vmem:[#allocation3 + $0x118] sm:$0xff]
    %v107 = vld [vmem:[#allocation3 + $0x120] sm:$0xff]
    %v108 = vld [vmem:[#allocation3 + $0x128] sm:$0xff]
    %v109 = vld [vmem:[#allocation3 + $0x130] sm:$0xff]
    %v110 = vld [vmem:[#allocation3 + $0x138] sm:$0xff]
    %v111 = vld [vmem:[#allocation3 + $0x140] sm:$0xff]
    %v112 = vld [vmem:[#allocation3 + $0x148] sm:$0xff]
    %v113 = vld [vmem:[#allocation3 + $0x150] sm:$0xff]
    %v114 = vld [vmem:[#allocation3 + $0x158] sm:$0xff]
    %v115 = vld [vmem:[#allocation3 + $0x160] sm:$0xff]
    %v116 = vld [vmem:[#allocation3 + $0x168] sm:$0xff]
    %v117 = vld [vmem:[#allocation3 + $0x170] sm:$0xff]
    %v118 = vld [vmem:[#allocation3 + $0x178] sm:$0xff]
    %v119 = vld [vmem:[#allocation3 + $0x180] sm:$0xff]
    %v120 = vld [vmem:[#allocation3 + $0x188] sm:$0xff]
    %v121 = vld [vmem:[#allocation3 + $0x190] sm:$0xff]
    %v122 = vld [vmem:[#allocation3 + $0x198] sm:$0xff]
    %v123 = vld [vmem:[#allocation3 + $0x1a0] sm:$0xff]
    %v124 = vld [vmem:[#allocation3 + $0x1a8] sm:$0xff]
    %v125 = vld [vmem:[#allocation3 + $0x1b0] sm:$0xff]
    %v126 = vld [vmem:[#allocation3 + $0x1b8] sm:$0xff]
    %v127 = vld [vmem:[#allocation3 + $0x1c0] sm:$0xff]
    %v128 = vld [vmem:[#allocation3 + $0x1c8] sm:$0xff]
    %v129 = vld [vmem:[#allocation3 + $0x1d0] sm:$0xff]
    %v130 = vld [vmem:[#allocation3 + $0x1d8] sm:$0xff]
    %v131 = vld [vmem:[#allocation3 + $0x1e0] sm:$0xff]
    %v132 = vld [vmem:[#allocation3 + $0x1e8] sm:$0xff]
    %v133 = vld [vmem:[#allocation3 + $0x1f0] sm:$0xff]
    %v134 = vld [vmem:[#allocation3 + $0x1f8] sm:$0xff]
    %v135 = vpack.c.bf16 %v73, %v71
    %v136 = vpack.c.bf16 %v74, %v72
    %v137 = vpack.c.bf16 %v77, %v75
    %v138 = vpack.c.bf16 %v78, %v76
    %v139 = vpack.c.bf16 %v81, %v79
    %v140 = vpack.c.bf16 %v82, %v80
    %v141 = vpack.c.bf16 %v85, %v83
    %v142 = vpack.c.bf16 %v86, %v84
    %v143 = vpack.c.bf16 %v89, %v87
    %v144 = vpack.c.bf16 %v90, %v88
    %v145 = vpack.c.bf16 %v93, %v91
    %v146 = vpack.c.bf16 %v94, %v92
    %v147 = vpack.c.bf16 %v97, %v95
    %v148 = vpack.c.bf16 %v98, %v96
    %v149 = vpack.c.bf16 %v101, %v99
    %v150 = vpack.c.bf16 %v102, %v100
    %v151 = vpack.c.bf16 %v105, %v103
    %v152 = vpack.c.bf16 %v106, %v104
    %v153 = vpack.c.bf16 %v109, %v107
    %v154 = vpack.c.bf16 %v110, %v108
    %v155 = vpack.c.bf16 %v113, %v111
    %v156 = vpack.c.bf16 %v114, %v112
    %v157 = vpack.c.bf16 %v117, %v115
    %v158 = vpack.c.bf16 %v118, %v116
    %v159 = vpack.c.bf16 %v121, %v119
    %v160 = vpack.c.bf16 %v122, %v120
    %v161 = vpack.c.bf16 %v125, %v123
    %v162 = vpack.c.bf16 %v126, %v124
    %v163 = vpack.c.bf16 %v129, %v127
    %v164 = vpack.c.bf16 %v130, %v128
    %v165 = vpack.c.bf16 %v133, %v131
    %v166 = vpack.c.bf16 %v134, %v132
    %167 = vmatpush.bf16.msra.mxu0 %v149
    %168 = vmatpush.bf16.msra.mxu0 %v147
    %169 = vmatpush.bf16.msra.mxu0 %v145
    %170 = vmatpush.bf16.msra.mxu0 %v143
    %171 = vmatpush.bf16.msra.mxu0 %v141
    %172 = vmatpush.bf16.msra.mxu0 %v139
    %173 = vmatpush.bf16.msra.mxu0 %v137
    %174 = vmatpush.bf16.msra.mxu0 %v135
    %175 = vmatmul.bf16.gmra.mxu0 %v67
    %v176 = vpop.f32.mrf.mxu0
    %v177 = vadd.f32 0.0, %v176
    %v178 = vpop.f32.mrf.mxu0
    %v179 = vadd.f32 0.0, %v178
    %180 = vmatmul.bf16.gmra.mxu0 %v69
    %v181 = vpop.f32.mrf.mxu0
    %v182 = vadd.f32 0.0, %v181
    %v183 = vpop.f32.mrf.mxu0
    %v184 = vadd.f32 0.0, %v183
    %185 = vdwg.mxu0
    %186 = vmatpush.bf16.msra.mxu0 %v165
    %187 = vmatpush.bf16.msra.mxu0 %v163
    %188 = vmatpush.bf16.msra.mxu0 %v161
    %189 = vmatpush.bf16.msra.mxu0 %v159
    %190 = vmatpush.bf16.msra.mxu0 %v157
    %191 = vmatpush.bf16.msra.mxu0 %v155
    %192 = vmatpush.bf16.msra.mxu0 %v153
    %193 = vmatpush.bf16.msra.mxu0 %v151
    %194 = vmatmul.bf16.gmra.mxu0 %v68
    %v195 = vpop.f32.mrf.mxu0
    %v196 = vadd.f32 %v177, %v195
    %v197 = vpop.f32.mrf.mxu0
    %v198 = vadd.f32 %v179, %v197
    %199 = vmatmul.bf16.gmra.mxu0 %v70
    %v200 = vpop.f32.mrf.mxu0
    %v201 = vadd.f32 %v182, %v200
    %v202 = vpop.f32.mrf.mxu0
    %v203 = vadd.f32 %v184, %v202
    %204 = vdwg.mxu0
    %205 = vmatpush.bf16.msra.mxu0 %v150
    %206 = vmatpush.bf16.msra.mxu0 %v148
    %207 = vmatpush.bf16.msra.mxu0 %v146
    %208 = vmatpush.bf16.msra.mxu0 %v144
    %209 = vmatpush.bf16.msra.mxu0 %v142
    %210 = vmatpush.bf16.msra.mxu0 %v140
    %211 = vmatpush.bf16.msra.mxu0 %v138
    %212 = vmatpush.bf16.msra.mxu0 %v136
    %213 = vmatmul.bf16.gmra.mxu0 %v67
    %v214 = vpop.f32.mrf.mxu0
    %v215 = vadd.f32 0.0, %v214
    %v216 = vpop.f32.mrf.mxu0
    %v217 = vadd.f32 0.0, %v216
    %218 = vmatmul.bf16.gmra.mxu0 %v69
    %v219 = vpop.f32.mrf.mxu0
    %v220 = vadd.f32 0.0, %v219
    %v221 = vpop.f32.mrf.mxu0
    %v222 = vadd.f32 0.0, %v221
    %223 = vdwg.mxu0
    %224 = vmatpush.bf16.msra.mxu0 %v166
    %225 = vmatpush.bf16.msra.mxu0 %v164
    %226 = vmatpush.bf16.msra.mxu0 %v162
    %227 = vmatpush.bf16.msra.mxu0 %v160
    %228 = vmatpush.bf16.msra.mxu0 %v158
    %229 = vmatpush.bf16.msra.mxu0 %v156
    %230 = vmatpush.bf16.msra.mxu0 %v154
    %231 = vmatpush.bf16.msra.mxu0 %v152
    %232 = vmatmul.bf16.gmra.mxu0 %v68
    %v233 = vpop.f32.mrf.mxu0
    %v234 = vadd.f32 %v215, %v233
    %v235 = vpop.f32.mrf.mxu0
    %v236 = vadd.f32 %v217, %v235
    %237 = vmatmul.bf16.gmra.mxu0 %v70
    %v238 = vpop.f32.mrf.mxu0
    %v239 = vadd.f32 %v220, %v238
    %v240 = vpop.f32.mrf.mxu0
    %v241 = vadd.f32 %v222, %v240
    %242 = vdwg.mxu0
    %v243 = vadd.f32 %v51, %v196
    %v244 = vadd.f32 %v52, %v234
    %v245 = vadd.f32 %v53, %v198
    %v246 = vadd.f32 %v54, %v236
    %v247 = vadd.f32 %v55, %v201
    %v248 = vadd.f32 %v56, %v239
    %v249 = vadd.f32 %v57, %v203
    %v250 = vadd.f32 %v58, %v241
    %251 = vst [vmem:[#allocation2] sm:$0xff] %v243
    %252 = vst [vmem:[#allocation2 + $0x8] sm:$0xff] %v244
    %253 = vst [vmem:[#allocation2 + $0x10] sm:$0xff] %v245
    %254 = vst [vmem:[#allocation2 + $0x18] sm:$0xff] %v246
    %255 = vst [vmem:[#allocation2 + $0x20] sm:$0xff] %v247
    %256 = vst [vmem:[#allocation2 + $0x28] sm:$0xff] %v248
    %257 = vst [vmem:[#allocation2 + $0x30] sm:$0xff] %v249
    %258 = vst [vmem:[#allocation2 + $0x38] sm:$0xff] %v250
    // Predicated region
    $region34: #{transformer_forward.31} parent=1 // pred_check
      %p259 = pneg %p39
    $region35: #{transformer_forward.31} parent=1 // pred_check_branch
      %261 = sbr.rel (%p259) target = $region37
    $region36: #{transformer_forward.31} parent=1 // pred_region
      %v262 = vld [vmem:[#allocation2] sm:$0xff]
      %v263 = vld [vmem:[#allocation2 + $0x8] sm:$0xff]
      %v264 = vld [vmem:[#allocation2 + $0x10] sm:$0xff]
      %v265 = vld [vmem:[#allocation2 + $0x18] sm:$0xff]
      %v266 = vld [vmem:[#allocation2 + $0x20] sm:$0xff]
      %v267 = vld [vmem:[#allocation2 + $0x28] sm:$0xff]
      %v268 = vld [vmem:[#allocation2 + $0x30] sm:$0xff]
      %v269 = vld [vmem:[#allocation2 + $0x38] sm:$0xff]
      %v270 = vld [vmem:[%s2] sm:$0x3]
      %v272 = vperm.slane %v270, 0
      %v273 = vperm.slane %v270, 1
      %v276 = vadd.f32 %v262, %v272
      %v277 = vadd.f32 %v263, %v273
      %v278 = vadd.f32 %v264, %v272
      %v279 = vadd.f32 %v265, %v273
      %v280 = vadd.f32 %v266, %v272
      %v281 = vadd.f32 %v267, %v273
      %v282 = vadd.f32 %v268, %v272
      %v283 = vadd.f32 %v269, %v273
      %v284 = vld [vmem:[%s3] sm:$0xff]
      %v285 = vld [vmem:[%s3 + $0x8] sm:$0xff]
      %v286 = vld [vmem:[%s3 + $0x10] sm:$0xff]
      %v287 = vld [vmem:[%s3 + $0x18] sm:$0xff]
      %v288 = vld [vmem:[%s3 + $0x20] sm:$0xff]
      %v289 = vld [vmem:[%s3 + $0x28] sm:$0xff]
      %v290 = vld [vmem:[%s3 + $0x30] sm:$0xff]
      %v291 = vld [vmem:[%s3 + $0x38] sm:$0xff]
      %v292 = vadd.f32 %v276, %v284
      %v293 = vadd.f32 %v277, %v285
      %v294 = vadd.f32 %v278, %v286
      %v295 = vadd.f32 %v279, %v287
      %v296 = vadd.f32 %v280, %v288
      %v297 = vadd.f32 %v281, %v289
      %v298 = vadd.f32 %v282, %v290
      %v299 = vadd.f32 %v283, %v291
      %v300 = vadd.f32 %v292, %v293
      %301 = vadd.xlane.f32.xlu0 %v300
      %v302 = vpop.xlane.xlu0 %301
      %v303 = vadd.f32 %v294, %v295
      %304 = vadd.xlane.f32.xlu0 %v303
      %v305 = vpop.xlane.xlu0 %304
      %v306 = vadd.f32 %v296, %v297
      %307 = vadd.xlane.f32.xlu0 %v306
      %v308 = vpop.xlane.xlu0 %307
      %v309 = vadd.f32 %v298, %v299
      %310 = vadd.xlane.f32.xlu0 %v309
      %v311 = vpop.xlane.xlu0 %310
      %v312 = vrcp.pop 256.0
      %v313 = vmul.f32 256.0, %v312
      %v314 = vsub.f32 1.0, %v313
      %v315 = vmul.f32 %v312, %v314
      %v316 = vadd.f32 %v312, %v315
      %vm317 = vweird.f32 %v312
      %v318 = vsel %vm317, %v312, %v316
      %v319 = vmul.f32 %v302, %v318
      %v320 = vmul.f32 %v305, %v318
      %v321 = vmul.f32 %v308, %v318
      %v322 = vmul.f32 %v311, %v318
      %v323 = vsub.f32 %v292, %v319
      %v324 = vsub.f32 %v293, %v319
      %v325 = vsub.f32 %v294, %v320
      %v326 = vsub.f32 %v295, %v320
      %v327 = vsub.f32 %v296, %v321
      %v328 = vsub.f32 %v297, %v321
      %v329 = vsub.f32 %v298, %v322
      %v330 = vsub.f32 %v299, %v322
      %v331 = vmul.f32 %v323, %v323
      %v332 = vmul.f32 %v324, %v324
      %v333 = vmul.f32 %v325, %v325
      %v334 = vmul.f32 %v326, %v326
      %v335 = vmul.f32 %v327, %v327
      %v336 = vmul.f32 %v328, %v328
      %v337 = vmul.f32 %v329, %v329
      %v338 = vmul.f32 %v330, %v330
      %v339 = vadd.f32 %v331, %v332
      %340 = vadd.xlane.f32.xlu0 %v339
      %v341 = vpop.xlane.xlu0 %340
      %v342 = vadd.f32 %v333, %v334
      %343 = vadd.xlane.f32.xlu0 %v342
      %v344 = vpop.xlane.xlu0 %343
      %v345 = vadd.f32 %v335, %v336
      %346 = vadd.xlane.f32.xlu0 %v345
      %v347 = vpop.xlane.xlu0 %346
      %v348 = vadd.f32 %v337, %v338
      %349 = vadd.xlane.f32.xlu0 %v348
      %v350 = vpop.xlane.xlu0 %349
      %v351 = vmul.f32 %v341, %v318
      %v352 = vmul.f32 %v344, %v318
      %v353 = vmul.f32 %v347, %v318
      %v354 = vmul.f32 %v350, %v318
      %v355 = vadd.f32 %v351, 1e-05
      %v356 = vadd.f32 %v352, 1e-05
      %v357 = vadd.f32 %v353, 1e-05
      %v358 = vadd.f32 %v354, 1e-05
      %v359 = vrsqrt.pop %v355
      %v360 = vmul.f32 %v359, %v355
      %v361 = vmul.f32 %v360, %v359
      %v362 = vmul.f32 0.5, %v361
      %v363 = vsub.f32 1.5, %v362
      %v364 = vmul.f32 %v359, %v363
      %vm365 = vweird.f32 %v355
      %vm366 = vweird.f32 %v359
      %vm367 = vmor %vm365, %vm366
      %v368 = vsel %vm367, %v359, %v364
      %v369 = vrsqrt.pop %v356
      %v370 = vmul.f32 %v369, %v356
      %v371 = vmul.f32 %v370, %v369
      %v372 = vmul.f32 0.5, %v371
      %v373 = vsub.f32 1.5, %v372
      %v374 = vmul.f32 %v369, %v373
      %vm375 = vweird.f32 %v356
      %vm376 = vweird.f32 %v369
      %vm377 = vmor %vm375, %vm376
      %v378 = vsel %vm377, %v369, %v374
      %v379 = vrsqrt.pop %v357
      %v380 = vmul.f32 %v379, %v357
      %v381 = vmul.f32 %v380, %v379
      %v382 = vmul.f32 0.5, %v381
      %v383 = vsub.f32 1.5, %v382
      %v384 = vmul.f32 %v379, %v383
      %vm385 = vweird.f32 %v357
      %vm386 = vweird.f32 %v379
      %vm387 = vmor %vm385, %vm386
      %v388 = vsel %vm387, %v379, %v384
      %v389 = vrsqrt.pop %v358
      %v390 = vmul.f32 %v389, %v358
      %v391 = vmul.f32 %v390, %v389
      %v392 = vmul.f32 0.5, %v391
      %v393 = vsub.f32 1.5, %v392
      %v394 = vmul.f32 %v389, %v393
      %vm395 = vweird.f32 %v358
      %vm396 = vweird.f32 %v389
      %vm397 = vmor %vm395, %vm396
      %v398 = vsel %vm397, %v389, %v394
      %v399 = vmul.f32 %v323, %v368
      %v400 = vmul.f32 %v324, %v368
      %v401 = vmul.f32 %v325, %v378
      %v402 = vmul.f32 %v326, %v378
      %v403 = vmul.f32 %v327, %v388
      %v404 = vmul.f32 %v328, %v388
      %v405 = vmul.f32 %v329, %v398
      %v406 = vmul.f32 %v330, %v398
      %v407 = vld [vmem:[%s4] sm:$0x3]
      %v409 = vperm.slane %v407, 0
      %v410 = vperm.slane %v407, 1
      %v413 = vmul.f32 %v399, %v409
      %v414 = vmul.f32 %v400, %v410
      %v415 = vmul.f32 %v401, %v409
      %v416 = vmul.f32 %v402, %v410
      %v417 = vmul.f32 %v403, %v409
      %v418 = vmul.f32 %v404, %v410
      %v419 = vmul.f32 %v405, %v409
      %v420 = vmul.f32 %v406, %v410
      %v421 = vld [vmem:[%s5] sm:$0x3]
      %v423 = vperm.slane %v421, 0
      %v424 = vperm.slane %v421, 1
      %v427 = vadd.f32 %v413, %v423
      %v428 = vadd.f32 %v414, %v424
      %v429 = vadd.f32 %v415, %v423
      %v430 = vadd.f32 %v416, %v424
      %v431 = vadd.f32 %v417, %v423
      %v432 = vadd.f32 %v418, %v424
      %v433 = vadd.f32 %v419, %v423
      %v434 = vadd.f32 %v420, %v424
      %435 = vst [vmem:[%s6] sm:$0xff] %v427
      %436 = vst [vmem:[%s6 + $0x8] sm:$0xff] %v428
      %437 = vst [vmem:[%s6 + $0x10] sm:$0xff] %v429
      %438 = vst [vmem:[%s6 + $0x18] sm:$0xff] %v430
      %439 = vst [vmem:[%s6 + $0x20] sm:$0xff] %v431
      %440 = vst [vmem:[%s6 + $0x28] sm:$0xff] %v432
      %441 = vst [vmem:[%s6 + $0x30] sm:$0xff] %v433
      %442 = vst [vmem:[%s6 + $0x38] sm:$0xff] %v434
    $region37: #{transformer_forward.31} parent=1 // pred_fallthru
      _
    // Predicated region
    $region38: #{transformer_forward.31} parent=1 // pred_check
      _
    $region39: #{transformer_forward.31} parent=1 // pred_check_branch
      %444 = sbr.rel (0) target = $region41
    $region40: #{transformer_forward.31} parent=1 // pred_region
      _
    $region41: #{transformer_forward.31} parent=1 // pred_fallthru
      _
    // Predicated region
    $region42: #{transformer_forward.31} parent=1 // pred_check
      _
    $region43: #{transformer_forward.31} parent=1 // pred_check_branch
      %446 = sbr.rel (0) target = $region45
    $region44: #{transformer_forward.31} parent=1 // pred_region
      _
    $region45: #{transformer_forward.31} parent=1 // pred_fallthru
      _
    %447 = vsyncpa [#allocation4], 1

// kernel: transformer_forward.32
$region0: #{transformer_forward.32}
  #allocation0 [shape = 'u32[]', space=smem, size = 0x4, offset = 0x4, fixed_abs, tag = 'smem constant byte address 0x4 - core index']
  #allocation1 [shape = 'u32[72,128]{1,0:T(1,128)}', space=vmem, size = 0x9000, scoped, tag = 'internal scratch']
  #allocation2 [shape = 'f32[32,512]{1,0:T(8,128)}', space=vmem, size = 0x10000, scoped, tag = 'scratch operand']
  %s0 = inlined_call_operand.vmem [shape: f32[32,256], index: 0, kind: input, shape index: {}]
  %s1 = inlined_call_operand.vmem [shape: f32[256,512], index: 1, kind: input, shape index: {}]
  %s2 = inlined_call_operand.vmem [shape: f32[1,512], index: 2, kind: input, shape index: {}]
  %s3 = inlined_call_operand.vmem [shape: f32[32,512], index: 3, kind: output, shape index: {}]
  %s4 = sld [smem:[#allocation0]]
  $region30: #{transformer_forward.32} parent=0
    _
  %s6 = ssub.s32 1, %s4
  %s7 = scalar_select 0, %s6, %s4
  // Predicated region
  $region2: #{transformer_forward.32} parent=0 // pred_check
    _
  $region3: #{transformer_forward.32} parent=0 // pred_check_branch
    %9 = sbr.rel (0) target = $region5
  $region4: #{transformer_forward.32} parent=0 // pred_region
    _
  $region5: #{transformer_forward.32} parent=0 // pred_fallthru
    _
  // Predicated region
  $region6: #{transformer_forward.32} parent=0 // pred_check
    _
  $region7: #{transformer_forward.32} parent=0 // pred_check_branch
    %11 = sbr.rel (0) target = $region9
  $region8: #{transformer_forward.32} parent=0 // pred_region
    _
  $region9: #{transformer_forward.32} parent=0 // pred_fallthru
    _
  // Predicated region
  $region10: #{transformer_forward.32} parent=0 // pred_check
    _
  $region11: #{transformer_forward.32} parent=0 // pred_check_branch
    %13 = sbr.rel (0) target = $region13
  $region12: #{transformer_forward.32} parent=0 // pred_region
    _
  $region13: #{transformer_forward.32} parent=0 // pred_fallthru
    _
  %p14 = scmp.eq.s32.totalorder 0, 0
  // Predicated region
  $region14: #{transformer_forward.32} parent=0 // pred_check
    %p15 = pneg %p14
  $region15: #{transformer_forward.32} parent=0 // pred_check_branch
    %17 = sbr.rel (%p15) target = $region17
  $region16: #{transformer_forward.32} parent=0 // pred_region
    %18 = vst [vmem:[#allocation2] sm:$0xff] 0.0
    %19 = vst [vmem:[#allocation2 + $0x8] sm:$0xff] 0.0
    %20 = vst [vmem:[#allocation2 + $0x10] sm:$0xff] 0.0
    %21 = vst [vmem:[#allocation2 + $0x18] sm:$0xff] 0.0
    %22 = vst [vmem:[#allocation2 + $0x20] sm:$0xff] 0.0
    %23 = vst [vmem:[#allocation2 + $0x28] sm:$0xff] 0.0
    %24 = vst [vmem:[#allocation2 + $0x30] sm:$0xff] 0.0
    %25 = vst [vmem:[#allocation2 + $0x38] sm:$0xff] 0.0
    %26 = vst [vmem:[#allocation2 + $0x40] sm:$0xff] 0.0
    %27 = vst [vmem:[#allocation2 + $0x48] sm:$0xff] 0.0
    %28 = vst [vmem:[#allocation2 + $0x50] sm:$0xff] 0.0
    %29 = vst [vmem:[#allocation2 + $0x58] sm:$0xff] 0.0
    %30 = vst [vmem:[#allocation2 + $0x60] sm:$0xff] 0.0
    %31 = vst [vmem:[#allocation2 + $0x68] sm:$0xff] 0.0
    %32 = vst [vmem:[#allocation2 + $0x70] sm:$0xff] 0.0
    %33 = vst [vmem:[#allocation2 + $0x78] sm:$0xff] 0.0
  $region17: #{transformer_forward.32} parent=0 // pred_fallthru
    _
  %v34 = vld [vmem:[#allocation2] sm:$0xff]
  %v35 = vld [vmem:[#allocation2 + $0x8] sm:$0xff]
  %v36 = vld [vmem:[#allocation2 + $0x10] sm:$0xff]
  %v37 = vld [vmem:[#allocation2 + $0x18] sm:$0xff]
  %v38 = vld [vmem:[#allocation2 + $0x20] sm:$0xff]
  %v39 = vld [vmem:[#allocation2 + $0x28] sm:$0xff]
  %v40 = vld [vmem:[#allocation2 + $0x30] sm:$0xff]
  %v41 = vld [vmem:[#allocation2 + $0x38] sm:$0xff]
  %v42 = vld [vmem:[#allocation2 + $0x40] sm:$0xff]
  %v43 = vld [vmem:[#allocation2 + $0x48] sm:$0xff]
  %v44 = vld [vmem:[#allocation2 + $0x50] sm:$0xff]
  %v45 = vld [vmem:[#allocation2 + $0x58] sm:$0xff]
  %v46 = vld [vmem:[#allocation2 + $0x60] sm:$0xff]
  %v47 = vld [vmem:[#allocation2 + $0x68] sm:$0xff]
  %v48 = vld [vmem:[#allocation2 + $0x70] sm:$0xff]
  %v49 = vld [vmem:[#allocation2 + $0x78] sm:$0xff]
  %v50 = vld [vmem:[%s0] sm:$0xff]
  %v51 = vld [vmem:[%s0 + $0x8] sm:$0xff]
  %v52 = vld [vmem:[%s0 + $0x10] sm:$0xff]
  %v53 = vld [vmem:[%s0 + $0x18] sm:$0xff]
  %v54 = vld [vmem:[%s0 + $0x20] sm:$0xff]
  %v55 = vld [vmem:[%s0 + $0x28] sm:$0xff]
  %v56 = vld [vmem:[%s0 + $0x30] sm:$0xff]
  %v57 = vld [vmem:[%s0 + $0x38] sm:$0xff]
  %v58 = vpack.c.bf16 %v52, %v50
  %v59 = vpack.c.bf16 %v53, %v51
  %v60 = vpack.c.bf16 %v56, %v54
  %v61 = vpack.c.bf16 %v57, %v55
  %v62 = vld [vmem:[%s1] sm:$0xff]
  %v63 = vld [vmem:[%s1 + $0x8] sm:$0xff]
  %v64 = vld [vmem:[%s1 + $0x10] sm:$0xff]
  %v65 = vld [vmem:[%s1 + $0x18] sm:$0xff]
  %v66 = vld [vmem:[%s1 + $0x20] sm:$0xff]
  %v67 = vld [vmem:[%s1 + $0x28] sm:$0xff]
  %v68 = vld [vmem:[%s1 + $0x30] sm:$0xff]
  %v69 = vld [vmem:[%s1 + $0x38] sm:$0xff]
  %v70 = vld [vmem:[%s1 + $0x40] sm:$0xff]
  %v71 = vld [vmem:[%s1 + $0x48] sm:$0xff]
  %v72 = vld [vmem:[%s1 + $0x50] sm:$0xff]
  %v73 = vld [vmem:[%s1 + $0x58] sm:$0xff]
  %v74 = vld [vmem:[%s1 + $0x60] sm:$0xff]
  %v75 = vld [vmem:[%s1 + $0x68] sm:$0xff]
  %v76 = vld [vmem:[%s1 + $0x70] sm:$0xff]
  %v77 = vld [vmem:[%s1 + $0x78] sm:$0xff]
  %v78 = vld [vmem:[%s1 + $0x80] sm:$0xff]
  %v79 = vld [vmem:[%s1 + $0x88] sm:$0xff]
  %v80 = vld [vmem:[%s1 + $0x90] sm:$0xff]
  %v81 = vld [vmem:[%s1 + $0x98] sm:$0xff]
  %v82 = vld [vmem:[%s1 + $0xa0] sm:$0xff]
  %v83 = vld [vmem:[%s1 + $0xa8] sm:$0xff]
  %v84 = vld [vmem:[%s1 + $0xb0] sm:$0xff]
  %v85 = vld [vmem:[%s1 + $0xb8] sm:$0xff]
  %v86 = vld [vmem:[%s1 + $0xc0] sm:$0xff]
  %v87 = vld [vmem:[%s1 + $0xc8] sm:$0xff]
  %v88 = vld [vmem:[%s1 + $0xd0] sm:$0xff]
  %v89 = vld [vmem:[%s1 + $0xd8] sm:$0xff]
  %v90 = vld [vmem:[%s1 + $0xe0] sm:$0xff]
  %v91 = vld [vmem:[%s1 + $0xe8] sm:$0xff]
  %v92 = vld [vmem:[%s1 + $0xf0] sm:$0xff]
  %v93 = vld [vmem:[%s1 + $0xf8] sm:$0xff]
  %v94 = vld [vmem:[%s1 + $0x100] sm:$0xff]
  %v95 = vld [vmem:[%s1 + $0x108] sm:$0xff]
  %v96 = vld [vmem:[%s1 + $0x110] sm:$0xff]
  %v97 = vld [vmem:[%s1 + $0x118] sm:$0xff]
  %v98 = vld [vmem:[%s1 + $0x120] sm:$0xff]
  %v99 = vld [vmem:[%s1 + $0x128] sm:$0xff]
  %v100 = vld [vmem:[%s1 + $0x130] sm:$0xff]
  %v101 = vld [vmem:[%s1 + $0x138] sm:$0xff]
  %v102 = vld [vmem:[%s1 + $0x140] sm:$0xff]
  %v103 = vld [vmem:[%s1 + $0x148] sm:$0xff]
  %v104 = vld [vmem:[%s1 + $0x150] sm:$0xff]
  %v105 = vld [vmem:[%s1 + $0x158] sm:$0xff]
  %v106 = vld [vmem:[%s1 + $0x160] sm:$0xff]
  %v107 = vld [vmem:[%s1 + $0x168] sm:$0xff]
  %v108 = vld [vmem:[%s1 + $0x170] sm:$0xff]
  %v109 = vld [vmem:[%s1 + $0x178] sm:$0xff]
  %v110 = vld [vmem:[%s1 + $0x180] sm:$0xff]
  %v111 = vld [vmem:[%s1 + $0x188] sm:$0xff]
  %v112 = vld [vmem:[%s1 + $0x190] sm:$0xff]
  %v113 = vld [vmem:[%s1 + $0x198] sm:$0xff]
  %v114 = vld [vmem:[%s1 + $0x1a0] sm:$0xff]
  %v115 = vld [vmem:[%s1 + $0x1a8] sm:$0xff]
  %v116 = vld [vmem:[%s1 + $0x1b0] sm:$0xff]
  %v117 = vld [vmem:[%s1 + $0x1b8] sm:$0xff]
  %v118 = vld [vmem:[%s1 + $0x1c0] sm:$0xff]
  %v119 = vld [vmem:[%s1 + $0x1c8] sm:$0xff]
  %v120 = vld [vmem:[%s1 + $0x1d0] sm:$0xff]
  %v121 = vld [vmem:[%s1 + $0x1d8] sm:$0xff]
  %v122 = vld [vmem:[%s1 + $0x1e0] sm:$0xff]
  %v123 = vld [vmem:[%s1 + $0x1e8] sm:$0xff]
  %v124 = vld [vmem:[%s1 + $0x1f0] sm:$0xff]
  %v125 = vld [vmem:[%s1 + $0x1f8] sm:$0xff]
  %v126 = vld [vmem:[%s1 + $0x200] sm:$0xff]
  %v127 = vld [vmem:[%s1 + $0x208] sm:$0xff]
  %v128 = vld [vmem:[%s1 + $0x210] sm:$0xff]
  %v129 = vld [vmem:[%s1 + $0x218] sm:$0xff]
  %v130 = vld [vmem:[%s1 + $0x220] sm:$0xff]
  %v131 = vld [vmem:[%s1 + $0x228] sm:$0xff]
  %v132 = vld [vmem:[%s1 + $0x230] sm:$0xff]
  %v133 = vld [vmem:[%s1 + $0x238] sm:$0xff]
  %v134 = vld [vmem:[%s1 + $0x240] sm:$0xff]
  %v135 = vld [vmem:[%s1 + $0x248] sm:$0xff]
  %v136 = vld [vmem:[%s1 + $0x250] sm:$0xff]
  %v137 = vld [vmem:[%s1 + $0x258] sm:$0xff]
  %v138 = vld [vmem:[%s1 + $0x260] sm:$0xff]
  %v139 = vld [vmem:[%s1 + $0x268] sm:$0xff]
  %v140 = vld [vmem:[%s1 + $0x270] sm:$0xff]
  %v141 = vld [vmem:[%s1 + $0x278] sm:$0xff]
  %v142 = vld [vmem:[%s1 + $0x280] sm:$0xff]
  %v143 = vld [vmem:[%s1 + $0x288] sm:$0xff]
  %v144 = vld [vmem:[%s1 + $0x290] sm:$0xff]
  %v145 = vld [vmem:[%s1 + $0x298] sm:$0xff]
  %v146 = vld [vmem:[%s1 + $0x2a0] sm:$0xff]
  %v147 = vld [vmem:[%s1 + $0x2a8] sm:$0xff]
  %v148 = vld [vmem:[%s1 + $0x2b0] sm:$0xff]
  %v149 = vld [vmem:[%s1 + $0x2b8] sm:$0xff]
  %v150 = vld [vmem:[%s1 + $0x2c0] sm:$0xff]
  %v151 = vld [vmem:[%s1 + $0x2c8] sm:$0xff]
  %v152 = vld [vmem:[%s1 + $0x2d0] sm:$0xff]
  %v153 = vld [vmem:[%s1 + $0x2d8] sm:$0xff]
  %v154 = vld [vmem:[%s1 + $0x2e0] sm:$0xff]
  %v155 = vld [vmem:[%s1 + $0x2e8] sm:$0xff]
  %v156 = vld [vmem:[%s1 + $0x2f0] sm:$0xff]
  %v157 = vld [vmem:[%s1 + $0x2f8] sm:$0xff]
  %v158 = vld [vmem:[%s1 + $0x300] sm:$0xff]
  %v159 = vld [vmem:[%s1 + $0x308] sm:$0xff]
  %v160 = vld [vmem:[%s1 + $0x310] sm:$0xff]
  %v161 = vld [vmem:[%s1 + $0x318] sm:$0xff]
  %v162 = vld [vmem:[%s1 + $0x320] sm:$0xff]
  %v163 = vld [vmem:[%s1 + $0x328] sm:$0xff]
  %v164 = vld [vmem:[%s1 + $0x330] sm:$0xff]
  %v165 = vld [vmem:[%s1 + $0x338] sm:$0xff]
  %v166 = vld [vmem:[%s1 + $0x340] sm:$0xff]
  %v167 = vld [vmem:[%s1 + $0x348] sm:$0xff]
  %v168 = vld [vmem:[%s1 + $0x350] sm:$0xff]
  %v169 = vld [vmem:[%s1 + $0x358] sm:$0xff]
  %v170 = vld [vmem:[%s1 + $0x360] sm:$0xff]
  %v171 = vld [vmem:[%s1 + $0x368] sm:$0xff]
  %v172 = vld [vmem:[%s1 + $0x370] sm:$0xff]
  %v173 = vld [vmem:[%s1 + $0x378] sm:$0xff]
  %v174 = vld [vmem:[%s1 + $0x380] sm:$0xff]
  %v175 = vld [vmem:[%s1 + $0x388] sm:$0xff]
  %v176 = vld [vmem:[%s1 + $0x390] sm:$0xff]
  %v177 = vld [vmem:[%s1 + $0x398] sm:$0xff]
  %v178 = vld [vmem:[%s1 + $0x3a0] sm:$0xff]
  %v179 = vld [vmem:[%s1 + $0x3a8] sm:$0xff]
  %v180 = vld [vmem:[%s1 + $0x3b0] sm:$0xff]
  %v181 = vld [vmem:[%s1 + $0x3b8] sm:$0xff]
  %v182 = vld [vmem:[%s1 + $0x3c0] sm:$0xff]
  %v183 = vld [vmem:[%s1 + $0x3c8] sm:$0xff]
  %v184 = vld [vmem:[%s1 + $0x3d0] sm:$0xff]
  %v185 = vld [vmem:[%s1 + $0x3d8] sm:$0xff]
  %v186 = vld [vmem:[%s1 + $0x3e0] sm:$0xff]
  %v187 = vld [vmem:[%s1 + $0x3e8] sm:$0xff]
  %v188 = vld [vmem:[%s1 + $0x3f0] sm:$0xff]
  %v189 = vld [vmem:[%s1 + $0x3f8] sm:$0xff]
  %v190 = vpack.c.bf16 %v66, %v62
  %v191 = vpack.c.bf16 %v67, %v63
  %v192 = vpack.c.bf16 %v68, %v64
  %v193 = vpack.c.bf16 %v69, %v65
  %v194 = vpack.c.bf16 %v74, %v70
  %v195 = vpack.c.bf16 %v75, %v71
  %v196 = vpack.c.bf16 %v76, %v72
  %v197 = vpack.c.bf16 %v77, %v73
  %v198 = vpack.c.bf16 %v82, %v78
  %v199 = vpack.c.bf16 %v83, %v79
  %v200 = vpack.c.bf16 %v84, %v80
  %v201 = vpack.c.bf16 %v85, %v81
  %v202 = vpack.c.bf16 %v90, %v86
  %v203 = vpack.c.bf16 %v91, %v87
  %v204 = vpack.c.bf16 %v92, %v88
  %v205 = vpack.c.bf16 %v93, %v89
  %v206 = vpack.c.bf16 %v98, %v94
  %v207 = vpack.c.bf16 %v99, %v95
  %v208 = vpack.c.bf16 %v100, %v96
  %v209 = vpack.c.bf16 %v101, %v97
  %v210 = vpack.c.bf16 %v106, %v102
  %v211 = vpack.c.bf16 %v107, %v103
  %v212 = vpack.c.bf16 %v108, %v104
  %v213 = vpack.c.bf16 %v109, %v105
  %v214 = vpack.c.bf16 %v114, %v110
  %v215 = vpack.c.bf16 %v115, %v111
  %v216 = vpack.c.bf16 %v116, %v112
  %v217 = vpack.c.bf16 %v117, %v113
  %v218 = vpack.c.bf16 %v122, %v118
  %v219 = vpack.c.bf16 %v123, %v119
  %v220 = vpack.c.bf16 %v124, %v120
  %v221 = vpack.c.bf16 %v125, %v121
  %v222 = vpack.c.bf16 %v130, %v126
  %v223 = vpack.c.bf16 %v131, %v127
  %v224 = vpack.c.bf16 %v132, %v128
  %v225 = vpack.c.bf16 %v133, %v129
  %v226 = vpack.c.bf16 %v138, %v134
  %v227 = vpack.c.bf16 %v139, %v135
  %v228 = vpack.c.bf16 %v140, %v136
  %v229 = vpack.c.bf16 %v141, %v137
  %v230 = vpack.c.bf16 %v146, %v142
  %v231 = vpack.c.bf16 %v147, %v143
  %v232 = vpack.c.bf16 %v148, %v144
  %v233 = vpack.c.bf16 %v149, %v145
  %v234 = vpack.c.bf16 %v154, %v150
  %v235 = vpack.c.bf16 %v155, %v151
  %v236 = vpack.c.bf16 %v156, %v152
  %v237 = vpack.c.bf16 %v157, %v153
  %v238 = vpack.c.bf16 %v162, %v158
  %v239 = vpack.c.bf16 %v163, %v159
  %v240 = vpack.c.bf16 %v164, %v160
  %v241 = vpack.c.bf16 %v165, %v161
  %v242 = vpack.c.bf16 %v170, %v166
  %v243 = vpack.c.bf16 %v171, %v167
  %v244 = vpack.c.bf16 %v172, %v168
  %v245 = vpack.c.bf16 %v173, %v169
  %v246 = vpack.c.bf16 %v178, %v174
  %v247 = vpack.c.bf16 %v179, %v175
  %v248 = vpack.c.bf16 %v180, %v176
  %v249 = vpack.c.bf16 %v181, %v177
  %v250 = vpack.c.bf16 %v186, %v182
  %v251 = vpack.c.bf16 %v187, %v183
  %v252 = vpack.c.bf16 %v188, %v184
  %v253 = vpack.c.bf16 %v189, %v185
  %254 = vmatpush.bf16.msra.mxu0 %v218
  %255 = vmatpush.bf16.msra.mxu0 %v214
  %256 = vmatpush.bf16.msra.mxu0 %v210
  %257 = vmatpush.bf16.msra.mxu0 %v206
  %258 = vmatpush.bf16.msra.mxu0 %v202
  %259 = vmatpush.bf16.msra.mxu0 %v198
  %260 = vmatpush.bf16.msra.mxu0 %v194
  %261 = vmatpush.bf16.msra.mxu0 %v190
  %262 = vmatmul.bf16.gmra.mxu0 %v58
  %v263 = vpop.f32.mrf.mxu0
  %v264 = vadd.f32 0.0, %v263
  %v265 = vpop.f32.mrf.mxu0
  %v266 = vadd.f32 0.0, %v265
  %267 = vmatmul.bf16.gmra.mxu0 %v60
  %v268 = vpop.f32.mrf.mxu0
  %v269 = vadd.f32 0.0, %v268
  %v270 = vpop.f32.mrf.mxu0
  %v271 = vadd.f32 0.0, %v270
  %272 = vdwg.mxu0
  %273 = vmatpush.bf16.msra.mxu0 %v250
  %274 = vmatpush.bf16.msra.mxu0 %v246
  %275 = vmatpush.bf16.msra.mxu0 %v242
  %276 = vmatpush.bf16.msra.mxu0 %v238
  %277 = vmatpush.bf16.msra.mxu0 %v234
  %278 = vmatpush.bf16.msra.mxu0 %v230
  %279 = vmatpush.bf16.msra.mxu0 %v226
  %280 = vmatpush.bf16.msra.mxu0 %v222
  %281 = vmatmul.bf16.gmra.mxu0 %v59
  %v282 = vpop.f32.mrf.mxu0
  %v283 = vadd.f32 %v264, %v282
  %v284 = vpop.f32.mrf.mxu0
  %v285 = vadd.f32 %v266, %v284
  %286 = vmatmul.bf16.gmra.mxu0 %v61
  %v287 = vpop.f32.mrf.mxu0
  %v288 = vadd.f32 %v269, %v287
  %v289 = vpop.f32.mrf.mxu0
  %v290 = vadd.f32 %v271, %v289
  %291 = vdwg.mxu0
  %292 = vmatpush.bf16.msra.mxu0 %v219
  %293 = vmatpush.bf16.msra.mxu0 %v215
  %294 = vmatpush.bf16.msra.mxu0 %v211
  %295 = vmatpush.bf16.msra.mxu0 %v207
  %296 = vmatpush.bf16.msra.mxu0 %v203
  %297 = vmatpush.bf16.msra.mxu0 %v199
  %298 = vmatpush.bf16.msra.mxu0 %v195
  %299 = vmatpush.bf16.msra.mxu0 %v191
  %300 = vmatmul.bf16.gmra.mxu0 %v58
  %v301 = vpop.f32.mrf.mxu0
  %v302 = vadd.f32 0.0, %v301
  %v303 = vpop.f32.mrf.mxu0
  %v304 = vadd.f32 0.0, %v303
  %305 = vmatmul.bf16.gmra.mxu0 %v60
  %v306 = vpop.f32.mrf.mxu0
  %v307 = vadd.f32 0.0, %v306
  %v308 = vpop.f32.mrf.mxu0
  %v309 = vadd.f32 0.0, %v308
  %310 = vdwg.mxu0
  %311 = vmatpush.bf16.msra.mxu0 %v251
  %312 = vmatpush.bf16.msra.mxu0 %v247
  %313 = vmatpush.bf16.msra.mxu0 %v243
  %314 = vmatpush.bf16.msra.mxu0 %v239
  %315 = vmatpush.bf16.msra.mxu0 %v235
  %316 = vmatpush.bf16.msra.mxu0 %v231
  %317 = vmatpush.bf16.msra.mxu0 %v227
  %318 = vmatpush.bf16.msra.mxu0 %v223
  %319 = vmatmul.bf16.gmra.mxu0 %v59
  %v320 = vpop.f32.mrf.mxu0
  %v321 = vadd.f32 %v302, %v320
  %v322 = vpop.f32.mrf.mxu0
  %v323 = vadd.f32 %v304, %v322
  %324 = vmatmul.bf16.gmra.mxu0 %v61
  %v325 = vpop.f32.mrf.mxu0
  %v326 = vadd.f32 %v307, %v325
  %v327 = vpop.f32.mrf.mxu0
  %v328 = vadd.f32 %v309, %v327
  %329 = vdwg.mxu0
  %330 = vmatpush.bf16.msra.mxu0 %v220
  %331 = vmatpush.bf16.msra.mxu0 %v216
  %332 = vmatpush.bf16.msra.mxu0 %v212
  %333 = vmatpush.bf16.msra.mxu0 %v208
  %334 = vmatpush.bf16.msra.mxu0 %v204
  %335 = vmatpush.bf16.msra.mxu0 %v200
  %336 = vmatpush.bf16.msra.mxu0 %v196
  %337 = vmatpush.bf16.msra.mxu0 %v192
  %338 = vmatmul.bf16.gmra.mxu0 %v58
  %v339 = vpop.f32.mrf.mxu0
  %v340 = vadd.f32 0.0, %v339
  %v341 = vpop.f32.mrf.mxu0
  %v342 = vadd.f32 0.0, %v341
  %343 = vmatmul.bf16.gmra.mxu0 %v60
  %v344 = vpop.f32.mrf.mxu0
  %v345 = vadd.f32 0.0, %v344
  %v346 = vpop.f32.mrf.mxu0
  %v347 = vadd.f32 0.0, %v346
  %348 = vdwg.mxu0
  %349 = vmatpush.bf16.msra.mxu0 %v252
  %350 = vmatpush.bf16.msra.mxu0 %v248
  %351 = vmatpush.bf16.msra.mxu0 %v244
  %352 = vmatpush.bf16.msra.mxu0 %v240
  %353 = vmatpush.bf16.msra.mxu0 %v236
  %354 = vmatpush.bf16.msra.mxu0 %v232
  %355 = vmatpush.bf16.msra.mxu0 %v228
  %356 = vmatpush.bf16.msra.mxu0 %v224
  %357 = vmatmul.bf16.gmra.mxu0 %v59
  %v358 = vpop.f32.mrf.mxu0
  %v359 = vadd.f32 %v340, %v358
  %v360 = vpop.f32.mrf.mxu0
  %v361 = vadd.f32 %v342, %v360
  %362 = vmatmul.bf16.gmra.mxu0 %v61
  %v363 = vpop.f32.mrf.mxu0
  %v364 = vadd.f32 %v345, %v363
  %v365 = vpop.f32.mrf.mxu0
  %v366 = vadd.f32 %v347, %v365
  %367 = vdwg.mxu0
  %368 = vmatpush.bf16.msra.mxu0 %v221
  %369 = vmatpush.bf16.msra.mxu0 %v217
  %370 = vmatpush.bf16.msra.mxu0 %v213
  %371 = vmatpush.bf16.msra.mxu0 %v209
  %372 = vmatpush.bf16.msra.mxu0 %v205
  %373 = vmatpush.bf16.msra.mxu0 %v201
  %374 = vmatpush.bf16.msra.mxu0 %v197
  %375 = vmatpush.bf16.msra.mxu0 %v193
  %376 = vmatmul.bf16.gmra.mxu0 %v58
  %v377 = vpop.f32.mrf.mxu0
  %v378 = vadd.f32 0.0, %v377
  %v379 = vpop.f32.mrf.mxu0
  %v380 = vadd.f32 0.0, %v379
  %381 = vmatmul.bf16.gmra.mxu0 %v60
  %v382 = vpop.f32.mrf.mxu0
  %v383 = vadd.f32 0.0, %v382
  %v384 = vpop.f32.mrf.mxu0
  %v385 = vadd.f32 0.0, %v384
  %386 = vdwg.mxu0
  %387 = vmatpush.bf16.msra.mxu0 %v253
  %388 = vmatpush.bf16.msra.mxu0 %v249
  %389 = vmatpush.bf16.msra.mxu0 %v245
  %390 = vmatpush.bf16.msra.mxu0 %v241
  %391 = vmatpush.bf16.msra.mxu0 %v237
  %392 = vmatpush.bf16.msra.mxu0 %v233
  %393 = vmatpush.bf16.msra.mxu0 %v229
  %394 = vmatpush.bf16.msra.mxu0 %v225
  %395 = vmatmul.bf16.gmra.mxu0 %v59
  %v396 = vpop.f32.mrf.mxu0
  %v397 = vadd.f32 %v378, %v396
  %v398 = vpop.f32.mrf.mxu0
  %v399 = vadd.f32 %v380, %v398
  %400 = vmatmul.bf16.gmra.mxu0 %v61
  %v401 = vpop.f32.mrf.mxu0
  %v402 = vadd.f32 %v383, %v401
  %v403 = vpop.f32.mrf.mxu0
  %v404 = vadd.f32 %v385, %v403
  %405 = vdwg.mxu0
  %v406 = vadd.f32 %v34, %v283
  %v407 = vadd.f32 %v35, %v321
  %v408 = vadd.f32 %v36, %v359
  %v409 = vadd.f32 %v37, %v397
  %v410 = vadd.f32 %v38, %v285
  %v411 = vadd.f32 %v39, %v323
  %v412 = vadd.f32 %v40, %v361
  %v413 = vadd.f32 %v41, %v399
  %v414 = vadd.f32 %v42, %v288
  %v415 = vadd.f32 %v43, %v326
  %v416 = vadd.f32 %v44, %v364
  %v417 = vadd.f32 %v45, %v402
  %v418 = vadd.f32 %v46, %v290
  %v419 = vadd.f32 %v47, %v328
  %v420 = vadd.f32 %v48, %v366
  %v421 = vadd.f32 %v49, %v404
  %422 = vst [vmem:[#allocation2] sm:$0xff] %v406
  %423 = vst [vmem:[#allocation2 + $0x8] sm:$0xff] %v407
  %424 = vst [vmem:[#allocation2 + $0x10] sm:$0xff] %v408
  %425 = vst [vmem:[#allocation2 + $0x18] sm:$0xff] %v409
  %426 = vst [vmem:[#allocation2 + $0x20] sm:$0xff] %v410
  %427 = vst [vmem:[#allocation2 + $0x28] sm:$0xff] %v411
  %428 = vst [vmem:[#allocation2 + $0x30] sm:$0xff] %v412
  %429 = vst [vmem:[#allocation2 + $0x38] sm:$0xff] %v413
  %430 = vst [vmem:[#allocation2 + $0x40] sm:$0xff] %v414
  %431 = vst [vmem:[#allocation2 + $0x48] sm:$0xff] %v415
  %432 = vst [vmem:[#allocation2 + $0x50] sm:$0xff] %v416
  %433 = vst [vmem:[#allocation2 + $0x58] sm:$0xff] %v417
  %434 = vst [vmem:[#allocation2 + $0x60] sm:$0xff] %v418
  %435 = vst [vmem:[#allocation2 + $0x68] sm:$0xff] %v419
  %436 = vst [vmem:[#allocation2 + $0x70] sm:$0xff] %v420
  %437 = vst [vmem:[#allocation2 + $0x78] sm:$0xff] %v421
  // Predicated region
  $region18: #{transformer_forward.32} parent=0 // pred_check
    %p438 = pneg %p14
  $region19: #{transformer_forward.32} parent=0 // pred_check_branch
    %440 = sbr.rel (%p438) target = $region21
  $region20: #{transformer_forward.32} parent=0 // pred_region
    %v441 = vld [vmem:[#allocation2] sm:$0xff]
    %v442 = vld [vmem:[#allocation2 + $0x8] sm:$0xff]
    %v443 = vld [vmem:[#allocation2 + $0x10] sm:$0xff]
    %v444 = vld [vmem:[#allocation2 + $0x18] sm:$0xff]
    %v445 = vld [vmem:[#allocation2 + $0x20] sm:$0xff]
    %v446 = vld [vmem:[#allocation2 + $0x28] sm:$0xff]
    %v447 = vld [vmem:[#allocation2 + $0x30] sm:$0xff]
    %v448 = vld [vmem:[#allocation2 + $0x38] sm:$0xff]
    %v449 = vld [vmem:[#allocation2 + $0x40] sm:$0xff]
    %v450 = vld [vmem:[#allocation2 + $0x48] sm:$0xff]
    %v451 = vld [vmem:[#allocation2 + $0x50] sm:$0xff]
    %v452 = vld [vmem:[#allocation2 + $0x58] sm:$0xff]
    %v453 = vld [vmem:[#allocation2 + $0x60] sm:$0xff]
    %v454 = vld [vmem:[#allocation2 + $0x68] sm:$0xff]
    %v455 = vld [vmem:[#allocation2 + $0x70] sm:$0xff]
    %v456 = vld [vmem:[#allocation2 + $0x78] sm:$0xff]
    %v457 = vld [vmem:[%s2] sm:$0xf]
    %v459 = vperm.slane %v457, 0
    %v460 = vperm.slane %v457, 1
    %v461 = vperm.slane %v457, 2
    %v462 = vperm.slane %v457, 3
    %v467 = vadd.f32 %v441, %v459
    %v468 = vadd.f32 %v442, %v460
    %v469 = vadd.f32 %v443, %v461
    %v470 = vadd.f32 %v444, %v462
    %v471 = vadd.f32 %v445, %v459
    %v472 = vadd.f32 %v446, %v460
    %v473 = vadd.f32 %v447, %v461
    %v474 = vadd.f32 %v448, %v462
    %v475 = vadd.f32 %v449, %v459
    %v476 = vadd.f32 %v450, %v460
    %v477 = vadd.f32 %v451, %v461
    %v478 = vadd.f32 %v452, %v462
    %v479 = vadd.f32 %v453, %v459
    %v480 = vadd.f32 %v454, %v460
    %v481 = vadd.f32 %v455, %v461
    %v482 = vadd.f32 %v456, %v462
    %v483 = vmax.f32 %v467, 0.0
    %v484 = vmax.f32 %v468, 0.0
    %v485 = vmax.f32 %v469, 0.0
    %v486 = vmax.f32 %v470, 0.0
    %v487 = vmax.f32 %v471, 0.0
    %v488 = vmax.f32 %v472, 0.0
    %v489 = vmax.f32 %v473, 0.0
    %v490 = vmax.f32 %v474, 0.0
    %v491 = vmax.f32 %v475, 0.0
    %v492 = vmax.f32 %v476, 0.0
    %v493 = vmax.f32 %v477, 0.0
    %v494 = vmax.f32 %v478, 0.0
    %v495 = vmax.f32 %v479, 0.0
    %v496 = vmax.f32 %v480, 0.0
    %v497 = vmax.f32 %v481, 0.0
    %v498 = vmax.f32 %v482, 0.0
    %499 = vst [vmem:[%s3] sm:$0xff] %v483
    %500 = vst [vmem:[%s3 + $0x8] sm:$0xff] %v484
    %501 = vst [vmem:[%s3 + $0x10] sm:$0xff] %v485
    %502 = vst [vmem:[%s3 + $0x18] sm:$0xff] %v486
    %503 = vst [vmem:[%s3 + $0x20] sm:$0xff] %v487
    %504 = vst [vmem:[%s3 + $0x28] sm:$0xff] %v488
    %505 = vst [vmem:[%s3 + $0x30] sm:$0xff] %v489
    %506 = vst [vmem:[%s3 + $0x38] sm:$0xff] %v490
    %507 = vst [vmem:[%s3 + $0x40] sm:$0xff] %v491
    %508 = vst [vmem:[%s3 + $0x48] sm:$0xff] %v492
    %509 = vst [vmem:[%s3 + $0x50] sm:$0xff] %v493
    %510 = vst [vmem:[%s3 + $0x58] sm:$0xff] %v494
    %511 = vst [vmem:[%s3 + $0x60] sm:$0xff] %v495
    %512 = vst [vmem:[%s3 + $0x68] sm:$0xff] %v496
    %513 = vst [vmem:[%s3 + $0x70] sm:$0xff] %v497
    %514 = vst [vmem:[%s3 + $0x78] sm:$0xff] %v498
  $region21: #{transformer_forward.32} parent=0 // pred_fallthru
    _
  // Predicated region
  $region22: #{transformer_forward.32} parent=0 // pred_check
    _
  $region23: #{transformer_forward.32} parent=0 // pred_check_branch
    %516 = sbr.rel (0) target = $region25
  $region24: #{transformer_forward.32} parent=0 // pred_region
    _
  $region25: #{transformer_forward.32} parent=0 // pred_fallthru
    _
  // Predicated region
  $region26: #{transformer_forward.32} parent=0 // pred_check
    _
  $region27: #{transformer_forward.32} parent=0 // pred_check_branch
    %518 = sbr.rel (0) target = $region29
  $region28: #{transformer_forward.32} parent=0 // pred_region
    _
  $region29: #{transformer_forward.32} parent=0 // pred_fallthru
    _

// kernel: transformer_forward.33
$region0: #{transformer_forward.33}
  #allocation0 [shape = 'u32[]', space=smem, size = 0x4, offset = 0x4, fixed_abs, tag = 'smem constant byte address 0x4 - core index']
  #allocation1 [shape = 'u32[72,128]{1,0:T(1,128)}', space=vmem, size = 0x9000, scoped, tag = 'internal scratch']
  #allocation2 [shape = 'f32[32,256]{1,0:T(8,128)}', space=vmem, size = 0x8000, scoped, tag = 'scratch operand']
  %s0 = inlined_call_operand.vmem [shape: f32[32,512], index: 0, kind: input, shape index: {}]
  %s1 = inlined_call_operand.hbm [shape: f32[512,256], index: 1, kind: input, shape index: {}]
  %s2 = inlined_call_operand.vmem [shape: f32[1,256], index: 2, kind: input, shape index: {}]
  %s3 = inlined_call_operand.vmem [shape: f32[32,256], index: 3, kind: input, shape index: {}]
  %s4 = inlined_call_operand.vmem [shape: f32[1,256], index: 4, kind: input, shape index: {}]
  %s5 = inlined_call_operand.vmem [shape: f32[1,256], index: 5, kind: input, shape index: {}]
  %s6 = inlined_call_operand.vmem [shape: f32[32,256], index: 6, kind: output, shape index: {}]
  %s7 = sld [smem:[#allocation0]]
  $region46: #{transformer_forward.33} parent=0
    _
  %s9 = ssub.s32 1, %s7
  %s10 = scalar_select 0, %s9, %s7
  $region1: #{transformer_forward.33} parent=0
    #allocation3 [shape = 'u8[524288]{0}', space=vmem, size = 0x80000, scoped, tag = 'input window, operand 1, single buffered']
    #allocation4 [shape = 's32[1]{0}', space=sflag, size = 0x4, scoped, tag = 'scoped memory for transformer_forward.33']
    %11 = vsyncpa [#allocation4], 0
    // Predicated region
    $region2: #{transformer_forward.33} parent=1 // pred_check
      _
    $region3: #{transformer_forward.33} parent=1 // pred_check_branch
      %13 = sbr.rel (0) target = $region5
    $region4: #{transformer_forward.33} parent=1 // pred_region
      _
    $region5: #{transformer_forward.33} parent=1 // pred_fallthru
      _
    // Predicated region
    $region6: #{transformer_forward.33} parent=1 // pred_check
      _
    $region7: #{transformer_forward.33} parent=1 // pred_check_branch
      %15 = sbr.rel (0) target = $region9
    $region8: #{transformer_forward.33} parent=1 // pred_region
      %17 = vsyncadd [#allocation4], 0
      %s18 = sshll.u32 %s1, 4
      %s19 = int_to_ptr.hbm [resolvable:$true] %s18
      %s20 = sshll.u32 [#allocation3], 4
      %s21 = int_to_ptr.vmem [resolvable:$true] %s20
      %26 = dma.hbm_to_vmem [thread:$0]  %s19, 16384, %s21, [#allocation4], 256, 256, 16
    $region9: #{transformer_forward.33} parent=1 // pred_fallthru
      _
    // Predicated region
    $region10: #{transformer_forward.33} parent=1 // pred_check
      _
    $region11: #{transformer_forward.33} parent=1 // pred_check_branch
      %28 = sbr.rel (0) target = $region13
    $region12: #{transformer_forward.33} parent=1 // pred_region
      _
    $region13: #{transformer_forward.33} parent=1 // pred_fallthru
      _
    // Predicated region
    $region14: #{transformer_forward.33} parent=1 // pred_check
      _
    $region15: #{transformer_forward.33} parent=1 // pred_check_branch
      %30 = sbr.rel (0) target = $region17
    $region16: #{transformer_forward.33} parent=1 // pred_region
      _
    $region17: #{transformer_forward.33} parent=1 // pred_fallthru
      _
    // Predicated region
    $region18: #{transformer_forward.33} parent=1 // pred_check
      _
    $region19: #{transformer_forward.33} parent=1 // pred_check_branch
      %32 = sbr.rel (0) target = $region21
    $region20: #{transformer_forward.33} parent=1 // pred_region
      _
    $region21: #{transformer_forward.33} parent=1 // pred_fallthru
      _
    // Predicated region
    $region22: #{transformer_forward.33} parent=1 // pred_check
      _
    $region23: #{transformer_forward.33} parent=1 // pred_check_branch
      %34 = sbr.rel (0) target = $region25
    $region24: #{transformer_forward.33} parent=1 // pred_region
      _
    $region25: #{transformer_forward.33} parent=1 // pred_fallthru
      _
    // Predicated region
    $region26: #{transformer_forward.33} parent=1 // pred_check
      _
    $region27: #{transformer_forward.33} parent=1 // pred_check_branch
      %36 = sbr.rel (0) target = $region29
    $region28: #{transformer_forward.33} parent=1 // pred_region
      %38 = dma.done [#allocation4], 16384
    $region29: #{transformer_forward.33} parent=1 // pred_fallthru
      _
    %p39 = scmp.eq.s32.totalorder 0, 0
    // Predicated region
    $region30: #{transformer_forward.33} parent=1 // pred_check
      %p40 = pneg %p39
    $region31: #{transformer_forward.33} parent=1 // pred_check_branch
      %42 = sbr.rel (%p40) target = $region33
    $region32: #{transformer_forward.33} parent=1 // pred_region
      %43 = vst [vmem:[#allocation2] sm:$0xff] 0.0
      %44 = vst [vmem:[#allocation2 + $0x8] sm:$0xff] 0.0
      %45 = vst [vmem:[#allocation2 + $0x10] sm:$0xff] 0.0
      %46 = vst [vmem:[#allocation2 + $0x18] sm:$0xff] 0.0
      %47 = vst [vmem:[#allocation2 + $0x20] sm:$0xff] 0.0
      %48 = vst [vmem:[#allocation2 + $0x28] sm:$0xff] 0.0
      %49 = vst [vmem:[#allocation2 + $0x30] sm:$0xff] 0.0
      %50 = vst [vmem:[#allocation2 + $0x38] sm:$0xff] 0.0
    $region33: #{transformer_forward.33} parent=1 // pred_fallthru
      _
    %v51 = vld [vmem:[#allocation2] sm:$0xff]
    %v52 = vld [vmem:[#allocation2 + $0x8] sm:$0xff]
    %v53 = vld [vmem:[#allocation2 + $0x10] sm:$0xff]
    %v54 = vld [vmem:[#allocation2 + $0x18] sm:$0xff]
    %v55 = vld [vmem:[#allocation2 + $0x20] sm:$0xff]
    %v56 = vld [vmem:[#allocation2 + $0x28] sm:$0xff]
    %v57 = vld [vmem:[#allocation2 + $0x30] sm:$0xff]
    %v58 = vld [vmem:[#allocation2 + $0x38] sm:$0xff]
    %v59 = vld [vmem:[%s0] sm:$0xff]
    %v60 = vld [vmem:[%s0 + $0x8] sm:$0xff]
    %v61 = vld [vmem:[%s0 + $0x10] sm:$0xff]
    %v62 = vld [vmem:[%s0 + $0x18] sm:$0xff]
    %v63 = vld [vmem:[%s0 + $0x20] sm:$0xff]
    %v64 = vld [vmem:[%s0 + $0x28] sm:$0xff]
    %v65 = vld [vmem:[%s0 + $0x30] sm:$0xff]
    %v66 = vld [vmem:[%s0 + $0x38] sm:$0xff]
    %v67 = vld [vmem:[%s0 + $0x40] sm:$0xff]
    %v68 = vld [vmem:[%s0 + $0x48] sm:$0xff]
    %v69 = vld [vmem:[%s0 + $0x50] sm:$0xff]
    %v70 = vld [vmem:[%s0 + $0x58] sm:$0xff]
    %v71 = vld [vmem:[%s0 + $0x60] sm:$0xff]
    %v72 = vld [vmem:[%s0 + $0x68] sm:$0xff]
    %v73 = vld [vmem:[%s0 + $0x70] sm:$0xff]
    %v74 = vld [vmem:[%s0 + $0x78] sm:$0xff]
    %v75 = vpack.c.bf16 %v63, %v59
    %v76 = vpack.c.bf16 %v64, %v60
    %v77 = vpack.c.bf16 %v65, %v61
    %v78 = vpack.c.bf16 %v66, %v62
    %v79 = vpack.c.bf16 %v71, %v67
    %v80 = vpack.c.bf16 %v72, %v68
    %v81 = vpack.c.bf16 %v73, %v69
    %v82 = vpack.c.bf16 %v74, %v70
    %v83 = vld [vmem:[#allocation3] sm:$0xff]
    %v84 = vld [vmem:[#allocation3 + $0x8] sm:$0xff]
    %v85 = vld [vmem:[#allocation3 + $0x10] sm:$0xff]
    %v86 = vld [vmem:[#allocation3 + $0x18] sm:$0xff]
    %v87 = vld [vmem:[#allocation3 + $0x20] sm:$0xff]
    %v88 = vld [vmem:[#allocation3 + $0x28] sm:$0xff]
    %v89 = vld [vmem:[#allocation3 + $0x30] sm:$0xff]
    %v90 = vld [vmem:[#allocation3 + $0x38] sm:$0xff]
    %v91 = vld [vmem:[#allocation3 + $0x40] sm:$0xff]
    %v92 = vld [vmem:[#allocation3 + $0x48] sm:$0xff]
    %v93 = vld [vmem:[#allocation3 + $0x50] sm:$0xff]
    %v94 = vld [vmem:[#allocation3 + $0x58] sm:$0xff]
    %v95 = vld [vmem:[#allocation3 + $0x60] sm:$0xff]
    %v96 = vld [vmem:[#allocation3 + $0x68] sm:$0xff]
    %v97 = vld [vmem:[#allocation3 + $0x70] sm:$0xff]
    %v98 = vld [vmem:[#allocation3 + $0x78] sm:$0xff]
    %v99 = vld [vmem:[#allocation3 + $0x80] sm:$0xff]
    %v100 = vld [vmem:[#allocation3 + $0x88] sm:$0xff]
    %v101 = vld [vmem:[#allocation3 + $0x90] sm:$0xff]
    %v102 = vld [vmem:[#allocation3 + $0x98] sm:$0xff]
    %v103 = vld [vmem:[#allocation3 + $0xa0] sm:$0xff]
    %v104 = vld [vmem:[#allocation3 + $0xa8] sm:$0xff]
    %v105 = vld [vmem:[#allocation3 + $0xb0] sm:$0xff]
    %v106 = vld [vmem:[#allocation3 + $0xb8] sm:$0xff]
    %v107 = vld [vmem:[#allocation3 + $0xc0] sm:$0xff]
    %v108 = vld [vmem:[#allocation3 + $0xc8] sm:$0xff]
    %v109 = vld [vmem:[#allocation3 + $0xd0] sm:$0xff]
    %v110 = vld [vmem:[#allocation3 + $0xd8] sm:$0xff]
    %v111 = vld [vmem:[#allocation3 + $0xe0] sm:$0xff]
    %v112 = vld [vmem:[#allocation3 + $0xe8] sm:$0xff]
    %v113 = vld [vmem:[#allocation3 + $0xf0] sm:$0xff]
    %v114 = vld [vmem:[#allocation3 + $0xf8] sm:$0xff]
    %v115 = vld [vmem:[#allocation3 + $0x100] sm:$0xff]
    %v116 = vld [vmem:[#allocation3 + $0x108] sm:$0xff]
    %v117 = vld [vmem:[#allocation3 + $0x110] sm:$0xff]
    %v118 = vld [vmem:[#allocation3 + $0x118] sm:$0xff]
    %v119 = vld [vmem:[#allocation3 + $0x120] sm:$0xff]
    %v120 = vld [vmem:[#allocation3 + $0x128] sm:$0xff]
    %v121 = vld [vmem:[#allocation3 + $0x130] sm:$0xff]
    %v122 = vld [vmem:[#allocation3 + $0x138] sm:$0xff]
    %v123 = vld [vmem:[#allocation3 + $0x140] sm:$0xff]
    %v124 = vld [vmem:[#allocation3 + $0x148] sm:$0xff]
    %v125 = vld [vmem:[#allocation3 + $0x150] sm:$0xff]
    %v126 = vld [vmem:[#allocation3 + $0x158] sm:$0xff]
    %v127 = vld [vmem:[#allocation3 + $0x160] sm:$0xff]
    %v128 = vld [vmem:[#allocation3 + $0x168] sm:$0xff]
    %v129 = vld [vmem:[#allocation3 + $0x170] sm:$0xff]
    %v130 = vld [vmem:[#allocation3 + $0x178] sm:$0xff]
    %v131 = vld [vmem:[#allocation3 + $0x180] sm:$0xff]
    %v132 = vld [vmem:[#allocation3 + $0x188] sm:$0xff]
    %v133 = vld [vmem:[#allocation3 + $0x190] sm:$0xff]
    %v134 = vld [vmem:[#allocation3 + $0x198] sm:$0xff]
    %v135 = vld [vmem:[#allocation3 + $0x1a0] sm:$0xff]
    %v136 = vld [vmem:[#allocation3 + $0x1a8] sm:$0xff]
    %v137 = vld [vmem:[#allocation3 + $0x1b0] sm:$0xff]
    %v138 = vld [vmem:[#allocation3 + $0x1b8] sm:$0xff]
    %v139 = vld [vmem:[#allocation3 + $0x1c0] sm:$0xff]
    %v140 = vld [vmem:[#allocation3 + $0x1c8] sm:$0xff]
    %v141 = vld [vmem:[#allocation3 + $0x1d0] sm:$0xff]
    %v142 = vld [vmem:[#allocation3 + $0x1d8] sm:$0xff]
    %v143 = vld [vmem:[#allocation3 + $0x1e0] sm:$0xff]
    %v144 = vld [vmem:[#allocation3 + $0x1e8] sm:$0xff]
    %v145 = vld [vmem:[#allocation3 + $0x1f0] sm:$0xff]
    %v146 = vld [vmem:[#allocation3 + $0x1f8] sm:$0xff]
    %v147 = vld [vmem:[#allocation3 + $0x200] sm:$0xff]
    %v148 = vld [vmem:[#allocation3 + $0x208] sm:$0xff]
    %v149 = vld [vmem:[#allocation3 + $0x210] sm:$0xff]
    %v150 = vld [vmem:[#allocation3 + $0x218] sm:$0xff]
    %v151 = vld [vmem:[#allocation3 + $0x220] sm:$0xff]
    %v152 = vld [vmem:[#allocation3 + $0x228] sm:$0xff]
    %v153 = vld [vmem:[#allocation3 + $0x230] sm:$0xff]
    %v154 = vld [vmem:[#allocation3 + $0x238] sm:$0xff]
    %v155 = vld [vmem:[#allocation3 + $0x240] sm:$0xff]
    %v156 = vld [vmem:[#allocation3 + $0x248] sm:$0xff]
    %v157 = vld [vmem:[#allocation3 + $0x250] sm:$0xff]
    %v158 = vld [vmem:[#allocation3 + $0x258] sm:$0xff]
    %v159 = vld [vmem:[#allocation3 + $0x260] sm:$0xff]
    %v160 = vld [vmem:[#allocation3 + $0x268] sm:$0xff]
    %v161 = vld [vmem:[#allocation3 + $0x270] sm:$0xff]
    %v162 = vld [vmem:[#allocation3 + $0x278] sm:$0xff]
    %v163 = vld [vmem:[#allocation3 + $0x280] sm:$0xff]
    %v164 = vld [vmem:[#allocation3 + $0x288] sm:$0xff]
    %v165 = vld [vmem:[#allocation3 + $0x290] sm:$0xff]
    %v166 = vld [vmem:[#allocation3 + $0x298] sm:$0xff]
    %v167 = vld [vmem:[#allocation3 + $0x2a0] sm:$0xff]
    %v168 = vld [vmem:[#allocation3 + $0x2a8] sm:$0xff]
    %v169 = vld [vmem:[#allocation3 + $0x2b0] sm:$0xff]
    %v170 = vld [vmem:[#allocation3 + $0x2b8] sm:$0xff]
    %v171 = vld [vmem:[#allocation3 + $0x2c0] sm:$0xff]
    %v172 = vld [vmem:[#allocation3 + $0x2c8] sm:$0xff]
    %v173 = vld [vmem:[#allocation3 + $0x2d0] sm:$0xff]
    %v174 = vld [vmem:[#allocation3 + $0x2d8] sm:$0xff]
    %v175 = vld [vmem:[#allocation3 + $0x2e0] sm:$0xff]
    %v176 = vld [vmem:[#allocation3 + $0x2e8] sm:$0xff]
    %v177 = vld [vmem:[#allocation3 + $0x2f0] sm:$0xff]
    %v178 = vld [vmem:[#allocation3 + $0x2f8] sm:$0xff]
    %v179 = vld [vmem:[#allocation3 + $0x300] sm:$0xff]
    %v180 = vld [vmem:[#allocation3 + $0x308] sm:$0xff]
    %v181 = vld [vmem:[#allocation3 + $0x310] sm:$0xff]
    %v182 = vld [vmem:[#allocation3 + $0x318] sm:$0xff]
    %v183 = vld [vmem:[#allocation3 + $0x320] sm:$0xff]
    %v184 = vld [vmem:[#allocation3 + $0x328] sm:$0xff]
    %v185 = vld [vmem:[#allocation3 + $0x330] sm:$0xff]
    %v186 = vld [vmem:[#allocation3 + $0x338] sm:$0xff]
    %v187 = vld [vmem:[#allocation3 + $0x340] sm:$0xff]
    %v188 = vld [vmem:[#allocation3 + $0x348] sm:$0xff]
    %v189 = vld [vmem:[#allocation3 + $0x350] sm:$0xff]
    %v190 = vld [vmem:[#allocation3 + $0x358] sm:$0xff]
    %v191 = vld [vmem:[#allocation3 + $0x360] sm:$0xff]
    %v192 = vld [vmem:[#allocation3 + $0x368] sm:$0xff]
    %v193 = vld [vmem:[#allocation3 + $0x370] sm:$0xff]
    %v194 = vld [vmem:[#allocation3 + $0x378] sm:$0xff]
    %v195 = vld [vmem:[#allocation3 + $0x380] sm:$0xff]
    %v196 = vld [vmem:[#allocation3 + $0x388] sm:$0xff]
    %v197 = vld [vmem:[#allocation3 + $0x390] sm:$0xff]
    %v198 = vld [vmem:[#allocation3 + $0x398] sm:$0xff]
    %v199 = vld [vmem:[#allocation3 + $0x3a0] sm:$0xff]
    %v200 = vld [vmem:[#allocation3 + $0x3a8] sm:$0xff]
    %v201 = vld [vmem:[#allocation3 + $0x3b0] sm:$0xff]
    %v202 = vld [vmem:[#allocation3 + $0x3b8] sm:$0xff]
    %v203 = vld [vmem:[#allocation3 + $0x3c0] sm:$0xff]
    %v204 = vld [vmem:[#allocation3 + $0x3c8] sm:$0xff]
    %v205 = vld [vmem:[#allocation3 + $0x3d0] sm:$0xff]
    %v206 = vld [vmem:[#allocation3 + $0x3d8] sm:$0xff]
    %v207 = vld [vmem:[#allocation3 + $0x3e0] sm:$0xff]
    %v208 = vld [vmem:[#allocation3 + $0x3e8] sm:$0xff]
    %v209 = vld [vmem:[#allocation3 + $0x3f0] sm:$0xff]
    %v210 = vld [vmem:[#allocation3 + $0x3f8] sm:$0xff]
    %v211 = vpack.c.bf16 %v85, %v83
    %v212 = vpack.c.bf16 %v86, %v84
    %v213 = vpack.c.bf16 %v89, %v87
    %v214 = vpack.c.bf16 %v90, %v88
    %v215 = vpack.c.bf16 %v93, %v91
    %v216 = vpack.c.bf16 %v94, %v92
    %v217 = vpack.c.bf16 %v97, %v95
    %v218 = vpack.c.bf16 %v98, %v96
    %v219 = vpack.c.bf16 %v101, %v99
    %v220 = vpack.c.bf16 %v102, %v100
    %v221 = vpack.c.bf16 %v105, %v103
    %v222 = vpack.c.bf16 %v106, %v104
    %v223 = vpack.c.bf16 %v109, %v107
    %v224 = vpack.c.bf16 %v110, %v108
    %v225 = vpack.c.bf16 %v113, %v111
    %v226 = vpack.c.bf16 %v114, %v112
    %v227 = vpack.c.bf16 %v117, %v115
    %v228 = vpack.c.bf16 %v118, %v116
    %v229 = vpack.c.bf16 %v121, %v119
    %v230 = vpack.c.bf16 %v122, %v120
    %v231 = vpack.c.bf16 %v125, %v123
    %v232 = vpack.c.bf16 %v126, %v124
    %v233 = vpack.c.bf16 %v129, %v127
    %v234 = vpack.c.bf16 %v130, %v128
    %v235 = vpack.c.bf16 %v133, %v131
    %v236 = vpack.c.bf16 %v134, %v132
    %v237 = vpack.c.bf16 %v137, %v135
    %v238 = vpack.c.bf16 %v138, %v136
    %v239 = vpack.c.bf16 %v141, %v139
    %v240 = vpack.c.bf16 %v142, %v140
    %v241 = vpack.c.bf16 %v145, %v143
    %v242 = vpack.c.bf16 %v146, %v144
    %v243 = vpack.c.bf16 %v149, %v147
    %v244 = vpack.c.bf16 %v150, %v148
    %v245 = vpack.c.bf16 %v153, %v151
    %v246 = vpack.c.bf16 %v154, %v152
    %v247 = vpack.c.bf16 %v157, %v155
    %v248 = vpack.c.bf16 %v158, %v156
    %v249 = vpack.c.bf16 %v161, %v159
    %v250 = vpack.c.bf16 %v162, %v160
    %v251 = vpack.c.bf16 %v165, %v163
    %v252 = vpack.c.bf16 %v166, %v164
    %v253 = vpack.c.bf16 %v169, %v167
    %v254 = vpack.c.bf16 %v170, %v168
    %v255 = vpack.c.bf16 %v173, %v171
    %v256 = vpack.c.bf16 %v174, %v172
    %v257 = vpack.c.bf16 %v177, %v175
    %v258 = vpack.c.bf16 %v178, %v176
    %v259 = vpack.c.bf16 %v181, %v179
    %v260 = vpack.c.bf16 %v182, %v180
    %v261 = vpack.c.bf16 %v185, %v183
    %v262 = vpack.c.bf16 %v186, %v184
    %v263 = vpack.c.bf16 %v189, %v187
    %v264 = vpack.c.bf16 %v190, %v188
    %v265 = vpack.c.bf16 %v193, %v191
    %v266 = vpack.c.bf16 %v194, %v192
    %v267 = vpack.c.bf16 %v197, %v195
    %v268 = vpack.c.bf16 %v198, %v196
    %v269 = vpack.c.bf16 %v201, %v199
    %v270 = vpack.c.bf16 %v202, %v200
    %v271 = vpack.c.bf16 %v205, %v203
    %v272 = vpack.c.bf16 %v206, %v204
    %v273 = vpack.c.bf16 %v209, %v207
    %v274 = vpack.c.bf16 %v210, %v208
    %275 = vmatpush.bf16.msra.mxu0 %v225
    %276 = vmatpush.bf16.msra.mxu0 %v223
    %277 = vmatpush.bf16.msra.mxu0 %v221
    %278 = vmatpush.bf16.msra.mxu0 %v219
    %279 = vmatpush.bf16.msra.mxu0 %v217
    %280 = vmatpush.bf16.msra.mxu0 %v215
    %281 = vmatpush.bf16.msra.mxu0 %v213
    %282 = vmatpush.bf16.msra.mxu0 %v211
    %283 = vmatmul.bf16.gmra.mxu0 %v75
    %v284 = vpop.f32.mrf.mxu0
    %v285 = vadd.f32 0.0, %v284
    %v286 = vpop.f32.mrf.mxu0
    %v287 = vadd.f32 0.0, %v286
    %288 = vmatmul.bf16.gmra.mxu0 %v79
    %v289 = vpop.f32.mrf.mxu0
    %v290 = vadd.f32 0.0, %v289
    %v291 = vpop.f32.mrf.mxu0
    %v292 = vadd.f32 0.0, %v291
    %293 = vdwg.mxu0
    %294 = vmatpush.bf16.msra.mxu0 %v241
    %295 = vmatpush.bf16.msra.mxu0 %v239
    %296 = vmatpush.bf16.msra.mxu0 %v237
    %297 = vmatpush.bf16.msra.mxu0 %v235
    %298 = vmatpush.bf16.msra.mxu0 %v233
    %299 = vmatpush.bf16.msra.mxu0 %v231
    %300 = vmatpush.bf16.msra.mxu0 %v229
    %301 = vmatpush.bf16.msra.mxu0 %v227
    %302 = vmatmul.bf16.gmra.mxu0 %v76
    %v303 = vpop.f32.mrf.mxu0
    %v304 = vadd.f32 %v285, %v303
    %v305 = vpop.f32.mrf.mxu0
    %v306 = vadd.f32 %v287, %v305
    %307 = vmatmul.bf16.gmra.mxu0 %v80
    %v308 = vpop.f32.mrf.mxu0
    %v309 = vadd.f32 %v290, %v308
    %v310 = vpop.f32.mrf.mxu0
    %v311 = vadd.f32 %v292, %v310
    %312 = vdwg.mxu0
    %313 = vmatpush.bf16.msra.mxu0 %v257
    %314 = vmatpush.bf16.msra.mxu0 %v255
    %315 = vmatpush.bf16.msra.mxu0 %v253
    %316 = vmatpush.bf16.msra.mxu0 %v251
    %317 = vmatpush.bf16.msra.mxu0 %v249
    %318 = vmatpush.bf16.msra.mxu0 %v247
    %319 = vmatpush.bf16.msra.mxu0 %v245
    %320 = vmatpush.bf16.msra.mxu0 %v243
    %321 = vmatmul.bf16.gmra.mxu0 %v77
    %v322 = vpop.f32.mrf.mxu0
    %v323 = vadd.f32 %v304, %v322
    %v324 = vpop.f32.mrf.mxu0
    %v325 = vadd.f32 %v306, %v324
    %326 = vmatmul.bf16.gmra.mxu0 %v81
    %v327 = vpop.f32.mrf.mxu0
    %v328 = vadd.f32 %v309, %v327
    %v329 = vpop.f32.mrf.mxu0
    %v330 = vadd.f32 %v311, %v329
    %331 = vdwg.mxu0
    %332 = vmatpush.bf16.msra.mxu0 %v273
    %333 = vmatpush.bf16.msra.mxu0 %v271
    %334 = vmatpush.bf16.msra.mxu0 %v269
    %335 = vmatpush.bf16.msra.mxu0 %v267
    %336 = vmatpush.bf16.msra.mxu0 %v265
    %337 = vmatpush.bf16.msra.mxu0 %v263
    %338 = vmatpush.bf16.msra.mxu0 %v261
    %339 = vmatpush.bf16.msra.mxu0 %v259
    %340 = vmatmul.bf16.gmra.mxu0 %v78
    %v341 = vpop.f32.mrf.mxu0
    %v342 = vadd.f32 %v323, %v341
    %v343 = vpop.f32.mrf.mxu0
    %v344 = vadd.f32 %v325, %v343
    %345 = vmatmul.bf16.gmra.mxu0 %v82
    %v346 = vpop.f32.mrf.mxu0
    %v347 = vadd.f32 %v328, %v346
    %v348 = vpop.f32.mrf.mxu0
    %v349 = vadd.f32 %v330, %v348
    %350 = vdwg.mxu0
    %351 = vmatpush.bf16.msra.mxu0 %v226
    %352 = vmatpush.bf16.msra.mxu0 %v224
    %353 = vmatpush.bf16.msra.mxu0 %v222
    %354 = vmatpush.bf16.msra.mxu0 %v220
    %355 = vmatpush.bf16.msra.mxu0 %v218
    %356 = vmatpush.bf16.msra.mxu0 %v216
    %357 = vmatpush.bf16.msra.mxu0 %v214
    %358 = vmatpush.bf16.msra.mxu0 %v212
    %359 = vmatmul.bf16.gmra.mxu0 %v75
    %v360 = vpop.f32.mrf.mxu0
    %v361 = vadd.f32 0.0, %v360
    %v362 = vpop.f32.mrf.mxu0
    %v363 = vadd.f32 0.0, %v362
    %364 = vmatmul.bf16.gmra.mxu0 %v79
    %v365 = vpop.f32.mrf.mxu0
    %v366 = vadd.f32 0.0, %v365
    %v367 = vpop.f32.mrf.mxu0
    %v368 = vadd.f32 0.0, %v367
    %369 = vdwg.mxu0
    %370 = vmatpush.bf16.msra.mxu0 %v242
    %371 = vmatpush.bf16.msra.mxu0 %v240
    %372 = vmatpush.bf16.msra.mxu0 %v238
    %373 = vmatpush.bf16.msra.mxu0 %v236
    %374 = vmatpush.bf16.msra.mxu0 %v234
    %375 = vmatpush.bf16.msra.mxu0 %v232
    %376 = vmatpush.bf16.msra.mxu0 %v230
    %377 = vmatpush.bf16.msra.mxu0 %v228
    %378 = vmatmul.bf16.gmra.mxu0 %v76
    %v379 = vpop.f32.mrf.mxu0
    %v380 = vadd.f32 %v361, %v379
    %v381 = vpop.f32.mrf.mxu0
    %v382 = vadd.f32 %v363, %v381
    %383 = vmatmul.bf16.gmra.mxu0 %v80
    %v384 = vpop.f32.mrf.mxu0
    %v385 = vadd.f32 %v366, %v384
    %v386 = vpop.f32.mrf.mxu0
    %v387 = vadd.f32 %v368, %v386
    %388 = vdwg.mxu0
    %389 = vmatpush.bf16.msra.mxu0 %v258
    %390 = vmatpush.bf16.msra.mxu0 %v256
    %391 = vmatpush.bf16.msra.mxu0 %v254
    %392 = vmatpush.bf16.msra.mxu0 %v252
    %393 = vmatpush.bf16.msra.mxu0 %v250
    %394 = vmatpush.bf16.msra.mxu0 %v248
    %395 = vmatpush.bf16.msra.mxu0 %v246
    %396 = vmatpush.bf16.msra.mxu0 %v244
    %397 = vmatmul.bf16.gmra.mxu0 %v77
    %v398 = vpop.f32.mrf.mxu0
    %v399 = vadd.f32 %v380, %v398
    %v400 = vpop.f32.mrf.mxu0
    %v401 = vadd.f32 %v382, %v400
    %402 = vmatmul.bf16.gmra.mxu0 %v81
    %v403 = vpop.f32.mrf.mxu0
    %v404 = vadd.f32 %v385, %v403
    %v405 = vpop.f32.mrf.mxu0
    %v406 = vadd.f32 %v387, %v405
    %407 = vdwg.mxu0
    %408 = vmatpush.bf16.msra.mxu0 %v274
    %409 = vmatpush.bf16.msra.mxu0 %v272
    %410 = vmatpush.bf16.msra.mxu0 %v270
    %411 = vmatpush.bf16.msra.mxu0 %v268
    %412 = vmatpush.bf16.msra.mxu0 %v266
    %413 = vmatpush.bf16.msra.mxu0 %v264
    %414 = vmatpush.bf16.msra.mxu0 %v262
    %415 = vmatpush.bf16.msra.mxu0 %v260
    %416 = vmatmul.bf16.gmra.mxu0 %v78
    %v417 = vpop.f32.mrf.mxu0
    %v418 = vadd.f32 %v399, %v417
    %v419 = vpop.f32.mrf.mxu0
    %v420 = vadd.f32 %v401, %v419
    %421 = vmatmul.bf16.gmra.mxu0 %v82
    %v422 = vpop.f32.mrf.mxu0
    %v423 = vadd.f32 %v404, %v422
    %v424 = vpop.f32.mrf.mxu0
    %v425 = vadd.f32 %v406, %v424
    %426 = vdwg.mxu0
    %v427 = vadd.f32 %v51, %v342
    %v428 = vadd.f32 %v52, %v418
    %v429 = vadd.f32 %v53, %v344
    %v430 = vadd.f32 %v54, %v420
    %v431 = vadd.f32 %v55, %v347
    %v432 = vadd.f32 %v56, %v423
    %v433 = vadd.f32 %v57, %v349
    %v434 = vadd.f32 %v58, %v425
    %435 = vst [vmem:[#allocation2] sm:$0xff] %v427
    %436 = vst [vmem:[#allocation2 + $0x8] sm:$0xff] %v428
    %437 = vst [vmem:[#allocation2 + $0x10] sm:$0xff] %v429
    %438 = vst [vmem:[#allocation2 + $0x18] sm:$0xff] %v430
    %439 = vst [vmem:[#allocation2 + $0x20] sm:$0xff] %v431
    %440 = vst [vmem:[#allocation2 + $0x28] sm:$0xff] %v432
    %441 = vst [vmem:[#allocation2 + $0x30] sm:$0xff] %v433
    %442 = vst [vmem:[#allocation2 + $0x38] sm:$0xff] %v434
    // Predicated region
    $region34: #{transformer_forward.33} parent=1 // pred_check
      %p443 = pneg %p39
    $region35: #{transformer_forward.33} parent=1 // pred_check_branch
      %445 = sbr.rel (%p443) target = $region37
    $region36: #{transformer_forward.33} parent=1 // pred_region
      %v446 = vld [vmem:[#allocation2] sm:$0xff]
      %v447 = vld [vmem:[#allocation2 + $0x8] sm:$0xff]
      %v448 = vld [vmem:[#allocation2 + $0x10] sm:$0xff]
      %v449 = vld [vmem:[#allocation2 + $0x18] sm:$0xff]
      %v450 = vld [vmem:[#allocation2 + $0x20] sm:$0xff]
      %v451 = vld [vmem:[#allocation2 + $0x28] sm:$0xff]
      %v452 = vld [vmem:[#allocation2 + $0x30] sm:$0xff]
      %v453 = vld [vmem:[#allocation2 + $0x38] sm:$0xff]
      %v454 = vld [vmem:[%s2] sm:$0x3]
      %v456 = vperm.slane %v454, 0
      %v457 = vperm.slane %v454, 1
      %v460 = vadd.f32 %v446, %v456
      %v461 = vadd.f32 %v447, %v457
      %v462 = vadd.f32 %v448, %v456
      %v463 = vadd.f32 %v449, %v457
      %v464 = vadd.f32 %v450, %v456
      %v465 = vadd.f32 %v451, %v457
      %v466 = vadd.f32 %v452, %v456
      %v467 = vadd.f32 %v453, %v457
      %v468 = vld [vmem:[%s3] sm:$0xff]
      %v469 = vld [vmem:[%s3 + $0x8] sm:$0xff]
      %v470 = vld [vmem:[%s3 + $0x10] sm:$0xff]
      %v471 = vld [vmem:[%s3 + $0x18] sm:$0xff]
      %v472 = vld [vmem:[%s3 + $0x20] sm:$0xff]
      %v473 = vld [vmem:[%s3 + $0x28] sm:$0xff]
      %v474 = vld [vmem:[%s3 + $0x30] sm:$0xff]
      %v475 = vld [vmem:[%s3 + $0x38] sm:$0xff]
      %v476 = vadd.f32 %v460, %v468
      %v477 = vadd.f32 %v461, %v469
      %v478 = vadd.f32 %v462, %v470
      %v479 = vadd.f32 %v463, %v471
      %v480 = vadd.f32 %v464, %v472
      %v481 = vadd.f32 %v465, %v473
      %v482 = vadd.f32 %v466, %v474
      %v483 = vadd.f32 %v467, %v475
      %v484 = vadd.f32 %v476, %v477
      %485 = vadd.xlane.f32.xlu0 %v484
      %v486 = vpop.xlane.xlu0 %485
      %v487 = vadd.f32 %v478, %v479
      %488 = vadd.xlane.f32.xlu0 %v487
      %v489 = vpop.xlane.xlu0 %488
      %v490 = vadd.f32 %v480, %v481
      %491 = vadd.xlane.f32.xlu0 %v490
      %v492 = vpop.xlane.xlu0 %491
      %v493 = vadd.f32 %v482, %v483
      %494 = vadd.xlane.f32.xlu0 %v493
      %v495 = vpop.xlane.xlu0 %494
      %v496 = vrcp.pop 256.0
      %v497 = vmul.f32 256.0, %v496
      %v498 = vsub.f32 1.0, %v497
      %v499 = vmul.f32 %v496, %v498
      %v500 = vadd.f32 %v496, %v499
      %vm501 = vweird.f32 %v496
      %v502 = vsel %vm501, %v496, %v500
      %v503 = vmul.f32 %v486, %v502
      %v504 = vmul.f32 %v489, %v502
      %v505 = vmul.f32 %v492, %v502
      %v506 = vmul.f32 %v495, %v502
      %v507 = vsub.f32 %v476, %v503
      %v508 = vsub.f32 %v477, %v503
      %v509 = vsub.f32 %v478, %v504
      %v510 = vsub.f32 %v479, %v504
      %v511 = vsub.f32 %v480, %v505
      %v512 = vsub.f32 %v481, %v505
      %v513 = vsub.f32 %v482, %v506
      %v514 = vsub.f32 %v483, %v506
      %v515 = vmul.f32 %v507, %v507
      %v516 = vmul.f32 %v508, %v508
      %v517 = vmul.f32 %v509, %v509
      %v518 = vmul.f32 %v510, %v510
      %v519 = vmul.f32 %v511, %v511
      %v520 = vmul.f32 %v512, %v512
      %v521 = vmul.f32 %v513, %v513
      %v522 = vmul.f32 %v514, %v514
      %v523 = vadd.f32 %v515, %v516
      %524 = vadd.xlane.f32.xlu0 %v523
      %v525 = vpop.xlane.xlu0 %524
      %v526 = vadd.f32 %v517, %v518
      %527 = vadd.xlane.f32.xlu0 %v526
      %v528 = vpop.xlane.xlu0 %527
      %v529 = vadd.f32 %v519, %v520
      %530 = vadd.xlane.f32.xlu0 %v529
      %v531 = vpop.xlane.xlu0 %530
      %v532 = vadd.f32 %v521, %v522
      %533 = vadd.xlane.f32.xlu0 %v532
      %v534 = vpop.xlane.xlu0 %533
      %v535 = vmul.f32 %v525, %v502
      %v536 = vmul.f32 %v528, %v502
      %v537 = vmul.f32 %v531, %v502
      %v538 = vmul.f32 %v534, %v502
      %v539 = vadd.f32 %v535, 1e-05
      %v540 = vadd.f32 %v536, 1e-05
      %v541 = vadd.f32 %v537, 1e-05
      %v542 = vadd.f32 %v538, 1e-05
      %v543 = vrsqrt.pop %v539
      %v544 = vmul.f32 %v543, %v539
      %v545 = vmul.f32 %v544, %v543
      %v546 = vmul.f32 0.5, %v545
      %v547 = vsub.f32 1.5, %v546
      %v548 = vmul.f32 %v543, %v547
      %vm549 = vweird.f32 %v539
      %vm550 = vweird.f32 %v543
      %vm551 = vmor %vm549, %vm550
      %v552 = vsel %vm551, %v543, %v548
      %v553 = vrsqrt.pop %v540
      %v554 = vmul.f32 %v553, %v540
      %v555 = vmul.f32 %v554, %v553
      %v556 = vmul.f32 0.5, %v555
      %v557 = vsub.f32 1.5, %v556
      %v558 = vmul.f32 %v553, %v557
      %vm559 = vweird.f32 %v540
      %vm560 = vweird.f32 %v553
      %vm561 = vmor %vm559, %vm560
      %v562 = vsel %vm561, %v553, %v558
      %v563 = vrsqrt.pop %v541
      %v564 = vmul.f32 %v563, %v541
      %v565 = vmul.f32 %v564, %v563
      %v566 = vmul.f32 0.5, %v565
      %v567 = vsub.f32 1.5, %v566
      %v568 = vmul.f32 %v563, %v567
      %vm569 = vweird.f32 %v541
      %vm570 = vweird.f32 %v563
      %vm571 = vmor %vm569, %vm570
      %v572 = vsel %vm571, %v563, %v568
      %v573 = vrsqrt.pop %v542
      %v574 = vmul.f32 %v573, %v542
      %v575 = vmul.f32 %v574, %v573
      %v576 = vmul.f32 0.5, %v575
      %v577 = vsub.f32 1.5, %v576
      %v578 = vmul.f32 %v573, %v577
      %vm579 = vweird.f32 %v542
      %vm580 = vweird.f32 %v573
      %vm581 = vmor %vm579, %vm580
      %v582 = vsel %vm581, %v573, %v578
      %v583 = vmul.f32 %v507, %v552
      %v584 = vmul.f32 %v508, %v552
      %v585 = vmul.f32 %v509, %v562
      %v586 = vmul.f32 %v510, %v562
      %v587 = vmul.f32 %v511, %v572
      %v588 = vmul.f32 %v512, %v572
      %v589 = vmul.f32 %v513, %v582
      %v590 = vmul.f32 %v514, %v582
      %v591 = vld [vmem:[%s4] sm:$0x3]
      %v593 = vperm.slane %v591, 0
      %v594 = vperm.slane %v591, 1
      %v597 = vmul.f32 %v583, %v593
      %v598 = vmul.f32 %v584, %v594
      %v599 = vmul.f32 %v585, %v593
      %v600 = vmul.f32 %v586, %v594
      %v601 = vmul.f32 %v587, %v593
      %v602 = vmul.f32 %v588, %v594
      %v603 = vmul.f32 %v589, %v593
      %v604 = vmul.f32 %v590, %v594
      %v605 = vld [vmem:[%s5] sm:$0x3]
      %v607 = vperm.slane %v605, 0
      %v608 = vperm.slane %v605, 1
      %v611 = vadd.f32 %v597, %v607
      %v612 = vadd.f32 %v598, %v608
      %v613 = vadd.f32 %v599, %v607
      %v614 = vadd.f32 %v600, %v608
      %v615 = vadd.f32 %v601, %v607
      %v616 = vadd.f32 %v602, %v608
      %v617 = vadd.f32 %v603, %v607
      %v618 = vadd.f32 %v604, %v608
      %619 = vst [vmem:[%s6] sm:$0xff] %v611
      %620 = vst [vmem:[%s6 + $0x8] sm:$0xff] %v612
      %621 = vst [vmem:[%s6 + $0x10] sm:$0xff] %v613
      %622 = vst [vmem:[%s6 + $0x18] sm:$0xff] %v614
      %623 = vst [vmem:[%s6 + $0x20] sm:$0xff] %v615
      %624 = vst [vmem:[%s6 + $0x28] sm:$0xff] %v616
      %625 = vst [vmem:[%s6 + $0x30] sm:$0xff] %v617
      %626 = vst [vmem:[%s6 + $0x38] sm:$0xff] %v618
    $region37: #{transformer_forward.33} parent=1 // pred_fallthru
      _
    // Predicated region
    $region38: #{transformer_forward.33} parent=1 // pred_check
      _
    $region39: #{transformer_forward.33} parent=1 // pred_check_branch
      %628 = sbr.rel (0) target = $region41
    $region40: #{transformer_forward.33} parent=1 // pred_region
      _
    $region41: #{transformer_forward.33} parent=1 // pred_fallthru
      _
    // Predicated region
    $region42: #{transformer_forward.33} parent=1 // pred_check
      _
    $region43: #{transformer_forward.33} parent=1 // pred_check_branch
      %630 = sbr.rel (0) target = $region45
    $region44: #{transformer_forward.33} parent=1 // pred_region
      _
    $region45: #{transformer_forward.33} parent=1 // pred_fallthru
      _
    %631 = vsyncpa [#allocation4], 1

// kernel: transformer_forward.37
$region0: #{transformer_forward.37}
  #allocation0 [shape = 'u32[]', space=smem, size = 0x4, offset = 0x4, fixed_abs, tag = 'smem constant byte address 0x4 - core index']
  #allocation1 [shape = 'u32[72,128]{1,0:T(1,128)}', space=vmem, size = 0x9000, scoped, tag = 'internal scratch']
  #allocation2 [shape = 'f32[32,512]{1,0:T(8,128)}', space=vmem, size = 0x10000, scoped, tag = 'scratch operand']
  %s0 = inlined_call_operand.vmem [shape: f32[32,256], index: 0, kind: input, shape index: {}]
  %s1 = inlined_call_operand.hbm [shape: f32[256,512], index: 1, kind: input, shape index: {}]
  %s2 = inlined_call_operand.vmem [shape: f32[1,512], index: 2, kind: input, shape index: {}]
  %s3 = inlined_call_operand.vmem [shape: f32[32,512], index: 3, kind: output, shape index: {}]
  %s4 = sld [smem:[#allocation0]]
  $region34: #{transformer_forward.37} parent=0
    _
  %s6 = ssub.s32 1, %s4
  %s7 = scalar_select 0, %s6, %s4
  $region1: #{transformer_forward.37} parent=0
    #allocation3 [shape = 'u8[524288]{0}', space=vmem, size = 0x80000, scoped, tag = 'input window, operand 1, single buffered']
    #allocation4 [shape = 's32[1]{0}', space=sflag, size = 0x4, scoped, tag = 'scoped memory for transformer_forward.37']
    %8 = vsyncpa [#allocation4], 0
    // Predicated region
    $region2: #{transformer_forward.37} parent=1 // pred_check
      _
    $region3: #{transformer_forward.37} parent=1 // pred_check_branch
      %10 = sbr.rel (0) target = $region5
    $region4: #{transformer_forward.37} parent=1 // pred_region
      _
    $region5: #{transformer_forward.37} parent=1 // pred_fallthru
      _
    // Predicated region
    $region6: #{transformer_forward.37} parent=1 // pred_check
      _
    $region7: #{transformer_forward.37} parent=1 // pred_check_branch
      %12 = sbr.rel (0) target = $region9
    $region8: #{transformer_forward.37} parent=1 // pred_region
      %14 = vsyncadd [#allocation4], 0
      %s15 = sshll.u32 %s1, 4
      %s16 = int_to_ptr.hbm [resolvable:$true] %s15
      %s17 = sshll.u32 [#allocation3], 4
      %s18 = int_to_ptr.vmem [resolvable:$true] %s17
      %23 = dma.hbm_to_vmem [thread:$0]  %s16, 16384, %s18, [#allocation4], 512, 512, 32
    $region9: #{transformer_forward.37} parent=1 // pred_fallthru
      _
    // Predicated region
    $region10: #{transformer_forward.37} parent=1 // pred_check
      _
    $region11: #{transformer_forward.37} parent=1 // pred_check_branch
      %25 = sbr.rel (0) target = $region13
    $region12: #{transformer_forward.37} parent=1 // pred_region
      _
    $region13: #{transformer_forward.37} parent=1 // pred_fallthru
      _
    // Predicated region
    $region14: #{transformer_forward.37} parent=1 // pred_check
      _
    $region15: #{transformer_forward.37} parent=1 // pred_check_branch
      %27 = sbr.rel (0) target = $region17
    $region16: #{transformer_forward.37} parent=1 // pred_region
      %29 = dma.done [#allocation4], 16384
    $region17: #{transformer_forward.37} parent=1 // pred_fallthru
      _
    %p30 = scmp.eq.s32.totalorder 0, 0
    // Predicated region
    $region18: #{transformer_forward.37} parent=1 // pred_check
      %p31 = pneg %p30
    $region19: #{transformer_forward.37} parent=1 // pred_check_branch
      %33 = sbr.rel (%p31) target = $region21
    $region20: #{transformer_forward.37} parent=1 // pred_region
      %34 = vst [vmem:[#allocation2] sm:$0xff] 0.0
      %35 = vst [vmem:[#allocation2 + $0x8] sm:$0xff] 0.0
      %36 = vst [vmem:[#allocation2 + $0x10] sm:$0xff] 0.0
      %37 = vst [vmem:[#allocation2 + $0x18] sm:$0xff] 0.0
      %38 = vst [vmem:[#allocation2 + $0x20] sm:$0xff] 0.0
      %39 = vst [vmem:[#allocation2 + $0x28] sm:$0xff] 0.0
      %40 = vst [vmem:[#allocation2 + $0x30] sm:$0xff] 0.0
      %41 = vst [vmem:[#allocation2 + $0x38] sm:$0xff] 0.0
      %42 = vst [vmem:[#allocation2 + $0x40] sm:$0xff] 0.0
      %43 = vst [vmem:[#allocation2 + $0x48] sm:$0xff] 0.0
      %44 = vst [vmem:[#allocation2 + $0x50] sm:$0xff] 0.0
      %45 = vst [vmem:[#allocation2 + $0x58] sm:$0xff] 0.0
      %46 = vst [vmem:[#allocation2 + $0x60] sm:$0xff] 0.0
      %47 = vst [vmem:[#allocation2 + $0x68] sm:$0xff] 0.0
      %48 = vst [vmem:[#allocation2 + $0x70] sm:$0xff] 0.0
      %49 = vst [vmem:[#allocation2 + $0x78] sm:$0xff] 0.0
    $region21: #{transformer_forward.37} parent=1 // pred_fallthru
      _
    %v50 = vld [vmem:[#allocation2] sm:$0xff]
    %v51 = vld [vmem:[#allocation2 + $0x8] sm:$0xff]
    %v52 = vld [vmem:[#allocation2 + $0x10] sm:$0xff]
    %v53 = vld [vmem:[#allocation2 + $0x18] sm:$0xff]
    %v54 = vld [vmem:[#allocation2 + $0x20] sm:$0xff]
    %v55 = vld [vmem:[#allocation2 + $0x28] sm:$0xff]
    %v56 = vld [vmem:[#allocation2 + $0x30] sm:$0xff]
    %v57 = vld [vmem:[#allocation2 + $0x38] sm:$0xff]
    %v58 = vld [vmem:[#allocation2 + $0x40] sm:$0xff]
    %v59 = vld [vmem:[#allocation2 + $0x48] sm:$0xff]
    %v60 = vld [vmem:[#allocation2 + $0x50] sm:$0xff]
    %v61 = vld [vmem:[#allocation2 + $0x58] sm:$0xff]
    %v62 = vld [vmem:[#allocation2 + $0x60] sm:$0xff]
    %v63 = vld [vmem:[#allocation2 + $0x68] sm:$0xff]
    %v64 = vld [vmem:[#allocation2 + $0x70] sm:$0xff]
    %v65 = vld [vmem:[#allocation2 + $0x78] sm:$0xff]
    %v66 = vld [vmem:[%s0] sm:$0xff]
    %v67 = vld [vmem:[%s0 + $0x8] sm:$0xff]
    %v68 = vld [vmem:[%s0 + $0x10] sm:$0xff]
    %v69 = vld [vmem:[%s0 + $0x18] sm:$0xff]
    %v70 = vld [vmem:[%s0 + $0x20] sm:$0xff]
    %v71 = vld [vmem:[%s0 + $0x28] sm:$0xff]
    %v72 = vld [vmem:[%s0 + $0x30] sm:$0xff]
    %v73 = vld [vmem:[%s0 + $0x38] sm:$0xff]
    %v74 = vpack.c.bf16 %v68, %v66
    %v75 = vpack.c.bf16 %v69, %v67
    %v76 = vpack.c.bf16 %v72, %v70
    %v77 = vpack.c.bf16 %v73, %v71
    %v78 = vld [vmem:[#allocation3] sm:$0xff]
    %v79 = vld [vmem:[#allocation3 + $0x8] sm:$0xff]
    %v80 = vld [vmem:[#allocation3 + $0x10] sm:$0xff]
    %v81 = vld [vmem:[#allocation3 + $0x18] sm:$0xff]
    %v82 = vld [vmem:[#allocation3 + $0x20] sm:$0xff]
    %v83 = vld [vmem:[#allocation3 + $0x28] sm:$0xff]
    %v84 = vld [vmem:[#allocation3 + $0x30] sm:$0xff]
    %v85 = vld [vmem:[#allocation3 + $0x38] sm:$0xff]
    %v86 = vld [vmem:[#allocation3 + $0x40] sm:$0xff]
    %v87 = vld [vmem:[#allocation3 + $0x48] sm:$0xff]
    %v88 = vld [vmem:[#allocation3 + $0x50] sm:$0xff]
    %v89 = vld [vmem:[#allocation3 + $0x58] sm:$0xff]
    %v90 = vld [vmem:[#allocation3 + $0x60] sm:$0xff]
    %v91 = vld [vmem:[#allocation3 + $0x68] sm:$0xff]
    %v92 = vld [vmem:[#allocation3 + $0x70] sm:$0xff]
    %v93 = vld [vmem:[#allocation3 + $0x78] sm:$0xff]
    %v94 = vld [vmem:[#allocation3 + $0x80] sm:$0xff]
    %v95 = vld [vmem:[#allocation3 + $0x88] sm:$0xff]
    %v96 = vld [vmem:[#allocation3 + $0x90] sm:$0xff]
    %v97 = vld [vmem:[#allocation3 + $0x98] sm:$0xff]
    %v98 = vld [vmem:[#allocation3 + $0xa0] sm:$0xff]
    %v99 = vld [vmem:[#allocation3 + $0xa8] sm:$0xff]
    %v100 = vld [vmem:[#allocation3 + $0xb0] sm:$0xff]
    %v101 = vld [vmem:[#allocation3 + $0xb8] sm:$0xff]
    %v102 = vld [vmem:[#allocation3 + $0xc0] sm:$0xff]
    %v103 = vld [vmem:[#allocation3 + $0xc8] sm:$0xff]
    %v104 = vld [vmem:[#allocation3 + $0xd0] sm:$0xff]
    %v105 = vld [vmem:[#allocation3 + $0xd8] sm:$0xff]
    %v106 = vld [vmem:[#allocation3 + $0xe0] sm:$0xff]
    %v107 = vld [vmem:[#allocation3 + $0xe8] sm:$0xff]
    %v108 = vld [vmem:[#allocation3 + $0xf0] sm:$0xff]
    %v109 = vld [vmem:[#allocation3 + $0xf8] sm:$0xff]
    %v110 = vld [vmem:[#allocation3 + $0x100] sm:$0xff]
    %v111 = vld [vmem:[#allocation3 + $0x108] sm:$0xff]
    %v112 = vld [vmem:[#allocation3 + $0x110] sm:$0xff]
    %v113 = vld [vmem:[#allocation3 + $0x118] sm:$0xff]
    %v114 = vld [vmem:[#allocation3 + $0x120] sm:$0xff]
    %v115 = vld [vmem:[#allocation3 + $0x128] sm:$0xff]
    %v116 = vld [vmem:[#allocation3 + $0x130] sm:$0xff]
    %v117 = vld [vmem:[#allocation3 + $0x138] sm:$0xff]
    %v118 = vld [vmem:[#allocation3 + $0x140] sm:$0xff]
    %v119 = vld [vmem:[#allocation3 + $0x148] sm:$0xff]
    %v120 = vld [vmem:[#allocation3 + $0x150] sm:$0xff]
    %v121 = vld [vmem:[#allocation3 + $0x158] sm:$0xff]
    %v122 = vld [vmem:[#allocation3 + $0x160] sm:$0xff]
    %v123 = vld [vmem:[#allocation3 + $0x168] sm:$0xff]
    %v124 = vld [vmem:[#allocation3 + $0x170] sm:$0xff]
    %v125 = vld [vmem:[#allocation3 + $0x178] sm:$0xff]
    %v126 = vld [vmem:[#allocation3 + $0x180] sm:$0xff]
    %v127 = vld [vmem:[#allocation3 + $0x188] sm:$0xff]
    %v128 = vld [vmem:[#allocation3 + $0x190] sm:$0xff]
    %v129 = vld [vmem:[#allocation3 + $0x198] sm:$0xff]
    %v130 = vld [vmem:[#allocation3 + $0x1a0] sm:$0xff]
    %v131 = vld [vmem:[#allocation3 + $0x1a8] sm:$0xff]
    %v132 = vld [vmem:[#allocation3 + $0x1b0] sm:$0xff]
    %v133 = vld [vmem:[#allocation3 + $0x1b8] sm:$0xff]
    %v134 = vld [vmem:[#allocation3 + $0x1c0] sm:$0xff]
    %v135 = vld [vmem:[#allocation3 + $0x1c8] sm:$0xff]
    %v136 = vld [vmem:[#allocation3 + $0x1d0] sm:$0xff]
    %v137 = vld [vmem:[#allocation3 + $0x1d8] sm:$0xff]
    %v138 = vld [vmem:[#allocation3 + $0x1e0] sm:$0xff]
    %v139 = vld [vmem:[#allocation3 + $0x1e8] sm:$0xff]
    %v140 = vld [vmem:[#allocation3 + $0x1f0] sm:$0xff]
    %v141 = vld [vmem:[#allocation3 + $0x1f8] sm:$0xff]
    %v142 = vld [vmem:[#allocation3 + $0x200] sm:$0xff]
    %v143 = vld [vmem:[#allocation3 + $0x208] sm:$0xff]
    %v144 = vld [vmem:[#allocation3 + $0x210] sm:$0xff]
    %v145 = vld [vmem:[#allocation3 + $0x218] sm:$0xff]
    %v146 = vld [vmem:[#allocation3 + $0x220] sm:$0xff]
    %v147 = vld [vmem:[#allocation3 + $0x228] sm:$0xff]
    %v148 = vld [vmem:[#allocation3 + $0x230] sm:$0xff]
    %v149 = vld [vmem:[#allocation3 + $0x238] sm:$0xff]
    %v150 = vld [vmem:[#allocation3 + $0x240] sm:$0xff]
    %v151 = vld [vmem:[#allocation3 + $0x248] sm:$0xff]
    %v152 = vld [vmem:[#allocation3 + $0x250] sm:$0xff]
    %v153 = vld [vmem:[#allocation3 + $0x258] sm:$0xff]
    %v154 = vld [vmem:[#allocation3 + $0x260] sm:$0xff]
    %v155 = vld [vmem:[#allocation3 + $0x268] sm:$0xff]
    %v156 = vld [vmem:[#allocation3 + $0x270] sm:$0xff]
    %v157 = vld [vmem:[#allocation3 + $0x278] sm:$0xff]
    %v158 = vld [vmem:[#allocation3 + $0x280] sm:$0xff]
    %v159 = vld [vmem:[#allocation3 + $0x288] sm:$0xff]
    %v160 = vld [vmem:[#allocation3 + $0x290] sm:$0xff]
    %v161 = vld [vmem:[#allocation3 + $0x298] sm:$0xff]
    %v162 = vld [vmem:[#allocation3 + $0x2a0] sm:$0xff]
    %v163 = vld [vmem:[#allocation3 + $0x2a8] sm:$0xff]
    %v164 = vld [vmem:[#allocation3 + $0x2b0] sm:$0xff]
    %v165 = vld [vmem:[#allocation3 + $0x2b8] sm:$0xff]
    %v166 = vld [vmem:[#allocation3 + $0x2c0] sm:$0xff]
    %v167 = vld [vmem:[#allocation3 + $0x2c8] sm:$0xff]
    %v168 = vld [vmem:[#allocation3 + $0x2d0] sm:$0xff]
    %v169 = vld [vmem:[#allocation3 + $0x2d8] sm:$0xff]
    %v170 = vld [vmem:[#allocation3 + $0x2e0] sm:$0xff]
    %v171 = vld [vmem:[#allocation3 + $0x2e8] sm:$0xff]
    %v172 = vld [vmem:[#allocation3 + $0x2f0] sm:$0xff]
    %v173 = vld [vmem:[#allocation3 + $0x2f8] sm:$0xff]
    %v174 = vld [vmem:[#allocation3 + $0x300] sm:$0xff]
    %v175 = vld [vmem:[#allocation3 + $0x308] sm:$0xff]
    %v176 = vld [vmem:[#allocation3 + $0x310] sm:$0xff]
    %v177 = vld [vmem:[#allocation3 + $0x318] sm:$0xff]
    %v178 = vld [vmem:[#allocation3 + $0x320] sm:$0xff]
    %v179 = vld [vmem:[#allocation3 + $0x328] sm:$0xff]
    %v180 = vld [vmem:[#allocation3 + $0x330] sm:$0xff]
    %v181 = vld [vmem:[#allocation3 + $0x338] sm:$0xff]
    %v182 = vld [vmem:[#allocation3 + $0x340] sm:$0xff]
    %v183 = vld [vmem:[#allocation3 + $0x348] sm:$0xff]
    %v184 = vld [vmem:[#allocation3 + $0x350] sm:$0xff]
    %v185 = vld [vmem:[#allocation3 + $0x358] sm:$0xff]
    %v186 = vld [vmem:[#allocation3 + $0x360] sm:$0xff]
    %v187 = vld [vmem:[#allocation3 + $0x368] sm:$0xff]
    %v188 = vld [vmem:[#allocation3 + $0x370] sm:$0xff]
    %v189 = vld [vmem:[#allocation3 + $0x378] sm:$0xff]
    %v190 = vld [vmem:[#allocation3 + $0x380] sm:$0xff]
    %v191 = vld [vmem:[#allocation3 + $0x388] sm:$0xff]
    %v192 = vld [vmem:[#allocation3 + $0x390] sm:$0xff]
    %v193 = vld [vmem:[#allocation3 + $0x398] sm:$0xff]
    %v194 = vld [vmem:[#allocation3 + $0x3a0] sm:$0xff]
    %v195 = vld [vmem:[#allocation3 + $0x3a8] sm:$0xff]
    %v196 = vld [vmem:[#allocation3 + $0x3b0] sm:$0xff]
    %v197 = vld [vmem:[#allocation3 + $0x3b8] sm:$0xff]
    %v198 = vld [vmem:[#allocation3 + $0x3c0] sm:$0xff]
    %v199 = vld [vmem:[#allocation3 + $0x3c8] sm:$0xff]
    %v200 = vld [vmem:[#allocation3 + $0x3d0] sm:$0xff]
    %v201 = vld [vmem:[#allocation3 + $0x3d8] sm:$0xff]
    %v202 = vld [vmem:[#allocation3 + $0x3e0] sm:$0xff]
    %v203 = vld [vmem:[#allocation3 + $0x3e8] sm:$0xff]
    %v204 = vld [vmem:[#allocation3 + $0x3f0] sm:$0xff]
    %v205 = vld [vmem:[#allocation3 + $0x3f8] sm:$0xff]
    %v206 = vpack.c.bf16 %v82, %v78
    %v207 = vpack.c.bf16 %v83, %v79
    %v208 = vpack.c.bf16 %v84, %v80
    %v209 = vpack.c.bf16 %v85, %v81
    %v210 = vpack.c.bf16 %v90, %v86
    %v211 = vpack.c.bf16 %v91, %v87
    %v212 = vpack.c.bf16 %v92, %v88
    %v213 = vpack.c.bf16 %v93, %v89
    %v214 = vpack.c.bf16 %v98, %v94
    %v215 = vpack.c.bf16 %v99, %v95
    %v216 = vpack.c.bf16 %v100, %v96
    %v217 = vpack.c.bf16 %v101, %v97
    %v218 = vpack.c.bf16 %v106, %v102
    %v219 = vpack.c.bf16 %v107, %v103
    %v220 = vpack.c.bf16 %v108, %v104
    %v221 = vpack.c.bf16 %v109, %v105
    %v222 = vpack.c.bf16 %v114, %v110
    %v223 = vpack.c.bf16 %v115, %v111
    %v224 = vpack.c.bf16 %v116, %v112
    %v225 = vpack.c.bf16 %v117, %v113
    %v226 = vpack.c.bf16 %v122, %v118
    %v227 = vpack.c.bf16 %v123, %v119
    %v228 = vpack.c.bf16 %v124, %v120
    %v229 = vpack.c.bf16 %v125, %v121
    %v230 = vpack.c.bf16 %v130, %v126
    %v231 = vpack.c.bf16 %v131, %v127
    %v232 = vpack.c.bf16 %v132, %v128
    %v233 = vpack.c.bf16 %v133, %v129
    %v234 = vpack.c.bf16 %v138, %v134
    %v235 = vpack.c.bf16 %v139, %v135
    %v236 = vpack.c.bf16 %v140, %v136
    %v237 = vpack.c.bf16 %v141, %v137
    %v238 = vpack.c.bf16 %v146, %v142
    %v239 = vpack.c.bf16 %v147, %v143
    %v240 = vpack.c.bf16 %v148, %v144
    %v241 = vpack.c.bf16 %v149, %v145
    %v242 = vpack.c.bf16 %v154, %v150
    %v243 = vpack.c.bf16 %v155, %v151
    %v244 = vpack.c.bf16 %v156, %v152
    %v245 = vpack.c.bf16 %v157, %v153
    %v246 = vpack.c.bf16 %v162, %v158
    %v247 = vpack.c.bf16 %v163, %v159
    %v248 = vpack.c.bf16 %v164, %v160
    %v249 = vpack.c.bf16 %v165, %v161
    %v250 = vpack.c.bf16 %v170, %v166
    %v251 = vpack.c.bf16 %v171, %v167
    %v252 = vpack.c.bf16 %v172, %v168
    %v253 = vpack.c.bf16 %v173, %v169
    %v254 = vpack.c.bf16 %v178, %v174
    %v255 = vpack.c.bf16 %v179, %v175
    %v256 = vpack.c.bf16 %v180, %v176
    %v257 = vpack.c.bf16 %v181, %v177
    %v258 = vpack.c.bf16 %v186, %v182
    %v259 = vpack.c.bf16 %v187, %v183
    %v260 = vpack.c.bf16 %v188, %v184
    %v261 = vpack.c.bf16 %v189, %v185
    %v262 = vpack.c.bf16 %v194, %v190
    %v263 = vpack.c.bf16 %v195, %v191
    %v264 = vpack.c.bf16 %v196, %v192
    %v265 = vpack.c.bf16 %v197, %v193
    %v266 = vpack.c.bf16 %v202, %v198
    %v267 = vpack.c.bf16 %v203, %v199
    %v268 = vpack.c.bf16 %v204, %v200
    %v269 = vpack.c.bf16 %v205, %v201
    %270 = vmatpush.bf16.msra.mxu0 %v234
    %271 = vmatpush.bf16.msra.mxu0 %v230
    %272 = vmatpush.bf16.msra.mxu0 %v226
    %273 = vmatpush.bf16.msra.mxu0 %v222
    %274 = vmatpush.bf16.msra.mxu0 %v218
    %275 = vmatpush.bf16.msra.mxu0 %v214
    %276 = vmatpush.bf16.msra.mxu0 %v210
    %277 = vmatpush.bf16.msra.mxu0 %v206
    %278 = vmatmul.bf16.gmra.mxu0 %v74
    %v279 = vpop.f32.mrf.mxu0
    %v280 = vadd.f32 0.0, %v279
    %v281 = vpop.f32.mrf.mxu0
    %v282 = vadd.f32 0.0, %v281
    %283 = vmatmul.bf16.gmra.mxu0 %v76
    %v284 = vpop.f32.mrf.mxu0
    %v285 = vadd.f32 0.0, %v284
    %v286 = vpop.f32.mrf.mxu0
    %v287 = vadd.f32 0.0, %v286
    %288 = vdwg.mxu0
    %289 = vmatpush.bf16.msra.mxu0 %v266
    %290 = vmatpush.bf16.msra.mxu0 %v262
    %291 = vmatpush.bf16.msra.mxu0 %v258
    %292 = vmatpush.bf16.msra.mxu0 %v254
    %293 = vmatpush.bf16.msra.mxu0 %v250
    %294 = vmatpush.bf16.msra.mxu0 %v246
    %295 = vmatpush.bf16.msra.mxu0 %v242
    %296 = vmatpush.bf16.msra.mxu0 %v238
    %297 = vmatmul.bf16.gmra.mxu0 %v75
    %v298 = vpop.f32.mrf.mxu0
    %v299 = vadd.f32 %v280, %v298
    %v300 = vpop.f32.mrf.mxu0
    %v301 = vadd.f32 %v282, %v300
    %302 = vmatmul.bf16.gmra.mxu0 %v77
    %v303 = vpop.f32.mrf.mxu0
    %v304 = vadd.f32 %v285, %v303
    %v305 = vpop.f32.mrf.mxu0
    %v306 = vadd.f32 %v287, %v305
    %307 = vdwg.mxu0
    %308 = vmatpush.bf16.msra.mxu0 %v235
    %309 = vmatpush.bf16.msra.mxu0 %v231
    %310 = vmatpush.bf16.msra.mxu0 %v227
    %311 = vmatpush.bf16.msra.mxu0 %v223
    %312 = vmatpush.bf16.msra.mxu0 %v219
    %313 = vmatpush.bf16.msra.mxu0 %v215
    %314 = vmatpush.bf16.msra.mxu0 %v211
    %315 = vmatpush.bf16.msra.mxu0 %v207
    %316 = vmatmul.bf16.gmra.mxu0 %v74
    %v317 = vpop.f32.mrf.mxu0
    %v318 = vadd.f32 0.0, %v317
    %v319 = vpop.f32.mrf.mxu0
    %v320 = vadd.f32 0.0, %v319
    %321 = vmatmul.bf16.gmra.mxu0 %v76
    %v322 = vpop.f32.mrf.mxu0
    %v323 = vadd.f32 0.0, %v322
    %v324 = vpop.f32.mrf.mxu0
    %v325 = vadd.f32 0.0, %v324
    %326 = vdwg.mxu0
    %327 = vmatpush.bf16.msra.mxu0 %v267
    %328 = vmatpush.bf16.msra.mxu0 %v263
    %329 = vmatpush.bf16.msra.mxu0 %v259
    %330 = vmatpush.bf16.msra.mxu0 %v255
    %331 = vmatpush.bf16.msra.mxu0 %v251
    %332 = vmatpush.bf16.msra.mxu0 %v247
    %333 = vmatpush.bf16.msra.mxu0 %v243
    %334 = vmatpush.bf16.msra.mxu0 %v239
    %335 = vmatmul.bf16.gmra.mxu0 %v75
    %v336 = vpop.f32.mrf.mxu0
    %v337 = vadd.f32 %v318, %v336
    %v338 = vpop.f32.mrf.mxu0
    %v339 = vadd.f32 %v320, %v338
    %340 = vmatmul.bf16.gmra.mxu0 %v77
    %v341 = vpop.f32.mrf.mxu0
    %v342 = vadd.f32 %v323, %v341
    %v343 = vpop.f32.mrf.mxu0
    %v344 = vadd.f32 %v325, %v343
    %345 = vdwg.mxu0
    %346 = vmatpush.bf16.msra.mxu0 %v236
    %347 = vmatpush.bf16.msra.mxu0 %v232
    %348 = vmatpush.bf16.msra.mxu0 %v228
    %349 = vmatpush.bf16.msra.mxu0 %v224
    %350 = vmatpush.bf16.msra.mxu0 %v220
    %351 = vmatpush.bf16.msra.mxu0 %v216
    %352 = vmatpush.bf16.msra.mxu0 %v212
    %353 = vmatpush.bf16.msra.mxu0 %v208
    %354 = vmatmul.bf16.gmra.mxu0 %v74
    %v355 = vpop.f32.mrf.mxu0
    %v356 = vadd.f32 0.0, %v355
    %v357 = vpop.f32.mrf.mxu0
    %v358 = vadd.f32 0.0, %v357
    %359 = vmatmul.bf16.gmra.mxu0 %v76
    %v360 = vpop.f32.mrf.mxu0
    %v361 = vadd.f32 0.0, %v360
    %v362 = vpop.f32.mrf.mxu0
    %v363 = vadd.f32 0.0, %v362
    %364 = vdwg.mxu0
    %365 = vmatpush.bf16.msra.mxu0 %v268
    %366 = vmatpush.bf16.msra.mxu0 %v264
    %367 = vmatpush.bf16.msra.mxu0 %v260
    %368 = vmatpush.bf16.msra.mxu0 %v256
    %369 = vmatpush.bf16.msra.mxu0 %v252
    %370 = vmatpush.bf16.msra.mxu0 %v248
    %371 = vmatpush.bf16.msra.mxu0 %v244
    %372 = vmatpush.bf16.msra.mxu0 %v240
    %373 = vmatmul.bf16.gmra.mxu0 %v75
    %v374 = vpop.f32.mrf.mxu0
    %v375 = vadd.f32 %v356, %v374
    %v376 = vpop.f32.mrf.mxu0
    %v377 = vadd.f32 %v358, %v376
    %378 = vmatmul.bf16.gmra.mxu0 %v77
    %v379 = vpop.f32.mrf.mxu0
    %v380 = vadd.f32 %v361, %v379
    %v381 = vpop.f32.mrf.mxu0
    %v382 = vadd.f32 %v363, %v381
    %383 = vdwg.mxu0
    %384 = vmatpush.bf16.msra.mxu0 %v237
    %385 = vmatpush.bf16.msra.mxu0 %v233
    %386 = vmatpush.bf16.msra.mxu0 %v229
    %387 = vmatpush.bf16.msra.mxu0 %v225
    %388 = vmatpush.bf16.msra.mxu0 %v221
    %389 = vmatpush.bf16.msra.mxu0 %v217
    %390 = vmatpush.bf16.msra.mxu0 %v213
    %391 = vmatpush.bf16.msra.mxu0 %v209
    %392 = vmatmul.bf16.gmra.mxu0 %v74
    %v393 = vpop.f32.mrf.mxu0
    %v394 = vadd.f32 0.0, %v393
    %v395 = vpop.f32.mrf.mxu0
    %v396 = vadd.f32 0.0, %v395
    %397 = vmatmul.bf16.gmra.mxu0 %v76
    %v398 = vpop.f32.mrf.mxu0
    %v399 = vadd.f32 0.0, %v398
    %v400 = vpop.f32.mrf.mxu0
    %v401 = vadd.f32 0.0, %v400
    %402 = vdwg.mxu0
    %403 = vmatpush.bf16.msra.mxu0 %v269
    %404 = vmatpush.bf16.msra.mxu0 %v265
    %405 = vmatpush.bf16.msra.mxu0 %v261
    %406 = vmatpush.bf16.msra.mxu0 %v257
    %407 = vmatpush.bf16.msra.mxu0 %v253
    %408 = vmatpush.bf16.msra.mxu0 %v249
    %409 = vmatpush.bf16.msra.mxu0 %v245
    %410 = vmatpush.bf16.msra.mxu0 %v241
    %411 = vmatmul.bf16.gmra.mxu0 %v75
    %v412 = vpop.f32.mrf.mxu0
    %v413 = vadd.f32 %v394, %v412
    %v414 = vpop.f32.mrf.mxu0
    %v415 = vadd.f32 %v396, %v414
    %416 = vmatmul.bf16.gmra.mxu0 %v77
    %v417 = vpop.f32.mrf.mxu0
    %v418 = vadd.f32 %v399, %v417
    %v419 = vpop.f32.mrf.mxu0
    %v420 = vadd.f32 %v401, %v419
    %421 = vdwg.mxu0
    %v422 = vadd.f32 %v50, %v299
    %v423 = vadd.f32 %v51, %v337
    %v424 = vadd.f32 %v52, %v375
    %v425 = vadd.f32 %v53, %v413
    %v426 = vadd.f32 %v54, %v301
    %v427 = vadd.f32 %v55, %v339
    %v428 = vadd.f32 %v56, %v377
    %v429 = vadd.f32 %v57, %v415
    %v430 = vadd.f32 %v58, %v304
    %v431 = vadd.f32 %v59, %v342
    %v432 = vadd.f32 %v60, %v380
    %v433 = vadd.f32 %v61, %v418
    %v434 = vadd.f32 %v62, %v306
    %v435 = vadd.f32 %v63, %v344
    %v436 = vadd.f32 %v64, %v382
    %v437 = vadd.f32 %v65, %v420
    %438 = vst [vmem:[#allocation2] sm:$0xff] %v422
    %439 = vst [vmem:[#allocation2 + $0x8] sm:$0xff] %v423
    %440 = vst [vmem:[#allocation2 + $0x10] sm:$0xff] %v424
    %441 = vst [vmem:[#allocation2 + $0x18] sm:$0xff] %v425
    %442 = vst [vmem:[#allocation2 + $0x20] sm:$0xff] %v426
    %443 = vst [vmem:[#allocation2 + $0x28] sm:$0xff] %v427
    %444 = vst [vmem:[#allocation2 + $0x30] sm:$0xff] %v428
    %445 = vst [vmem:[#allocation2 + $0x38] sm:$0xff] %v429
    %446 = vst [vmem:[#allocation2 + $0x40] sm:$0xff] %v430
    %447 = vst [vmem:[#allocation2 + $0x48] sm:$0xff] %v431
    %448 = vst [vmem:[#allocation2 + $0x50] sm:$0xff] %v432
    %449 = vst [vmem:[#allocation2 + $0x58] sm:$0xff] %v433
    %450 = vst [vmem:[#allocation2 + $0x60] sm:$0xff] %v434
    %451 = vst [vmem:[#allocation2 + $0x68] sm:$0xff] %v435
    %452 = vst [vmem:[#allocation2 + $0x70] sm:$0xff] %v436
    %453 = vst [vmem:[#allocation2 + $0x78] sm:$0xff] %v437
    // Predicated region
    $region22: #{transformer_forward.37} parent=1 // pred_check
      %p454 = pneg %p30
    $region23: #{transformer_forward.37} parent=1 // pred_check_branch
      %456 = sbr.rel (%p454) target = $region25
    $region24: #{transformer_forward.37} parent=1 // pred_region
      %v457 = vld [vmem:[#allocation2] sm:$0xff]
      %v458 = vld [vmem:[#allocation2 + $0x8] sm:$0xff]
      %v459 = vld [vmem:[#allocation2 + $0x10] sm:$0xff]
      %v460 = vld [vmem:[#allocation2 + $0x18] sm:$0xff]
      %v461 = vld [vmem:[#allocation2 + $0x20] sm:$0xff]
      %v462 = vld [vmem:[#allocation2 + $0x28] sm:$0xff]
      %v463 = vld [vmem:[#allocation2 + $0x30] sm:$0xff]
      %v464 = vld [vmem:[#allocation2 + $0x38] sm:$0xff]
      %v465 = vld [vmem:[#allocation2 + $0x40] sm:$0xff]
      %v466 = vld [vmem:[#allocation2 + $0x48] sm:$0xff]
      %v467 = vld [vmem:[#allocation2 + $0x50] sm:$0xff]
      %v468 = vld [vmem:[#allocation2 + $0x58] sm:$0xff]
      %v469 = vld [vmem:[#allocation2 + $0x60] sm:$0xff]
      %v470 = vld [vmem:[#allocation2 + $0x68] sm:$0xff]
      %v471 = vld [vmem:[#allocation2 + $0x70] sm:$0xff]
      %v472 = vld [vmem:[#allocation2 + $0x78] sm:$0xff]
      %v473 = vld [vmem:[%s2] sm:$0xf]
      %v475 = vperm.slane %v473, 0
      %v476 = vperm.slane %v473, 1
      %v477 = vperm.slane %v473, 2
      %v478 = vperm.slane %v473, 3
      %v483 = vadd.f32 %v457, %v475
      %v484 = vadd.f32 %v458, %v476
      %v485 = vadd.f32 %v459, %v477
      %v486 = vadd.f32 %v460, %v478
      %v487 = vadd.f32 %v461, %v475
      %v488 = vadd.f32 %v462, %v476
      %v489 = vadd.f32 %v463, %v477
      %v490 = vadd.f32 %v464, %v478
      %v491 = vadd.f32 %v465, %v475
      %v492 = vadd.f32 %v466, %v476
      %v493 = vadd.f32 %v467, %v477
      %v494 = vadd.f32 %v468, %v478
      %v495 = vadd.f32 %v469, %v475
      %v496 = vadd.f32 %v470, %v476
      %v497 = vadd.f32 %v471, %v477
      %v498 = vadd.f32 %v472, %v478
      %v499 = vmax.f32 %v483, 0.0
      %v500 = vmax.f32 %v484, 0.0
      %v501 = vmax.f32 %v485, 0.0
      %v502 = vmax.f32 %v486, 0.0
      %v503 = vmax.f32 %v487, 0.0
      %v504 = vmax.f32 %v488, 0.0
      %v505 = vmax.f32 %v489, 0.0
      %v506 = vmax.f32 %v490, 0.0
      %v507 = vmax.f32 %v491, 0.0
      %v508 = vmax.f32 %v492, 0.0
      %v509 = vmax.f32 %v493, 0.0
      %v510 = vmax.f32 %v494, 0.0
      %v511 = vmax.f32 %v495, 0.0
      %v512 = vmax.f32 %v496, 0.0
      %v513 = vmax.f32 %v497, 0.0
      %v514 = vmax.f32 %v498, 0.0
      %515 = vst [vmem:[%s3] sm:$0xff] %v499
      %516 = vst [vmem:[%s3 + $0x8] sm:$0xff] %v500
      %517 = vst [vmem:[%s3 + $0x10] sm:$0xff] %v501
      %518 = vst [vmem:[%s3 + $0x18] sm:$0xff] %v502
      %519 = vst [vmem:[%s3 + $0x20] sm:$0xff] %v503
      %520 = vst [vmem:[%s3 + $0x28] sm:$0xff] %v504
      %521 = vst [vmem:[%s3 + $0x30] sm:$0xff] %v505
      %522 = vst [vmem:[%s3 + $0x38] sm:$0xff] %v506
      %523 = vst [vmem:[%s3 + $0x40] sm:$0xff] %v507
      %524 = vst [vmem:[%s3 + $0x48] sm:$0xff] %v508
      %525 = vst [vmem:[%s3 + $0x50] sm:$0xff] %v509
      %526 = vst [vmem:[%s3 + $0x58] sm:$0xff] %v510
      %527 = vst [vmem:[%s3 + $0x60] sm:$0xff] %v511
      %528 = vst [vmem:[%s3 + $0x68] sm:$0xff] %v512
      %529 = vst [vmem:[%s3 + $0x70] sm:$0xff] %v513
      %530 = vst [vmem:[%s3 + $0x78] sm:$0xff] %v514
    $region25: #{transformer_forward.37} parent=1 // pred_fallthru
      _
    // Predicated region
    $region26: #{transformer_forward.37} parent=1 // pred_check
      _
    $region27: #{transformer_forward.37} parent=1 // pred_check_branch
      %532 = sbr.rel (0) target = $region29
    $region28: #{transformer_forward.37} parent=1 // pred_region
      _
    $region29: #{transformer_forward.37} parent=1 // pred_fallthru
      _
    // Predicated region
    $region30: #{transformer_forward.37} parent=1 // pred_check
      _
    $region31: #{transformer_forward.37} parent=1 // pred_check_branch
      %534 = sbr.rel (0) target = $region33
    $region32: #{transformer_forward.37} parent=1 // pred_region
      _
    $region33: #{transformer_forward.37} parent=1 // pred_fallthru
      _
    %535 = vsyncpa [#allocation4], 1

// kernel: transformer_forward.43
$region0: #{transformer_forward.43}
  #allocation0 [shape = 'u32[]', space=smem, size = 0x4, offset = 0x4, fixed_abs, tag = 'smem constant byte address 0x4 - core index']
  #allocation1 [shape = 'u32[72,128]{1,0:T(1,128)}', space=vmem, size = 0x9000, scoped, tag = 'internal scratch']
  #allocation2 [shape = 'f32[32,512]{1,0:T(8,128)}', space=vmem, size = 0x10000, scoped, tag = 'scratch operand']
  %s0 = inlined_call_operand.vmem [shape: f32[32,256], index: 0, kind: input, shape index: {}]
  %s1 = inlined_call_operand.hbm [shape: f32[256,512], index: 1, kind: input, shape index: {}]
  %s2 = inlined_call_operand.vmem [shape: f32[1,512], index: 2, kind: input, shape index: {}]
  %s3 = inlined_call_operand.vmem [shape: f32[32,512], index: 3, kind: output, shape index: {}]
  %s4 = sld [smem:[#allocation0]]
  $region34: #{transformer_forward.43} parent=0
    _
  %s6 = ssub.s32 1, %s4
  %s7 = scalar_select 0, %s6, %s4
  $region1: #{transformer_forward.43} parent=0
    #allocation3 [shape = 'u8[524288]{0}', space=vmem, size = 0x80000, scoped, tag = 'input window, operand 1, single buffered']
    #allocation4 [shape = 's32[1]{0}', space=sflag, size = 0x4, scoped, tag = 'scoped memory for transformer_forward.43']
    %8 = vsyncpa [#allocation4], 0
    // Predicated region
    $region2: #{transformer_forward.43} parent=1 // pred_check
      _
    $region3: #{transformer_forward.43} parent=1 // pred_check_branch
      %10 = sbr.rel (0) target = $region5
    $region4: #{transformer_forward.43} parent=1 // pred_region
      _
    $region5: #{transformer_forward.43} parent=1 // pred_fallthru
      _
    // Predicated region
    $region6: #{transformer_forward.43} parent=1 // pred_check
      _
    $region7: #{transformer_forward.43} parent=1 // pred_check_branch
      %12 = sbr.rel (0) target = $region9
    $region8: #{transformer_forward.43} parent=1 // pred_region
      %14 = vsyncadd [#allocation4], 0
      %s15 = sshll.u32 %s1, 4
      %s16 = int_to_ptr.hbm [resolvable:$true] %s15
      %s17 = sshll.u32 [#allocation3], 4
      %s18 = int_to_ptr.vmem [resolvable:$true] %s17
      %23 = dma.hbm_to_vmem [thread:$0]  %s16, 16384, %s18, [#allocation4], 512, 512, 32
    $region9: #{transformer_forward.43} parent=1 // pred_fallthru
      _
    // Predicated region
    $region10: #{transformer_forward.43} parent=1 // pred_check
      _
    $region11: #{transformer_forward.43} parent=1 // pred_check_branch
      %25 = sbr.rel (0) target = $region13
    $region12: #{transformer_forward.43} parent=1 // pred_region
      _
    $region13: #{transformer_forward.43} parent=1 // pred_fallthru
      _
    // Predicated region
    $region14: #{transformer_forward.43} parent=1 // pred_check
      _
    $region15: #{transformer_forward.43} parent=1 // pred_check_branch
      %27 = sbr.rel (0) target = $region17
    $region16: #{transformer_forward.43} parent=1 // pred_region
      %29 = dma.done [#allocation4], 16384
    $region17: #{transformer_forward.43} parent=1 // pred_fallthru
      _
    %p30 = scmp.eq.s32.totalorder 0, 0
    // Predicated region
    $region18: #{transformer_forward.43} parent=1 // pred_check
      %p31 = pneg %p30
    $region19: #{transformer_forward.43} parent=1 // pred_check_branch
      %33 = sbr.rel (%p31) target = $region21
    $region20: #{transformer_forward.43} parent=1 // pred_region
      %34 = vst [vmem:[#allocation2] sm:$0xff] 0.0
      %35 = vst [vmem:[#allocation2 + $0x8] sm:$0xff] 0.0
      %36 = vst [vmem:[#allocation2 + $0x10] sm:$0xff] 0.0
      %37 = vst [vmem:[#allocation2 + $0x18] sm:$0xff] 0.0
      %38 = vst [vmem:[#allocation2 + $0x20] sm:$0xff] 0.0
      %39 = vst [vmem:[#allocation2 + $0x28] sm:$0xff] 0.0
      %40 = vst [vmem:[#allocation2 + $0x30] sm:$0xff] 0.0
      %41 = vst [vmem:[#allocation2 + $0x38] sm:$0xff] 0.0
      %42 = vst [vmem:[#allocation2 + $0x40] sm:$0xff] 0.0
      %43 = vst [vmem:[#allocation2 + $0x48] sm:$0xff] 0.0
      %44 = vst [vmem:[#allocation2 + $0x50] sm:$0xff] 0.0
      %45 = vst [vmem:[#allocation2 + $0x58] sm:$0xff] 0.0
      %46 = vst [vmem:[#allocation2 + $0x60] sm:$0xff] 0.0
      %47 = vst [vmem:[#allocation2 + $0x68] sm:$0xff] 0.0
      %48 = vst [vmem:[#allocation2 + $0x70] sm:$0xff] 0.0
      %49 = vst [vmem:[#allocation2 + $0x78] sm:$0xff] 0.0
    $region21: #{transformer_forward.43} parent=1 // pred_fallthru
      _
    %v50 = vld [vmem:[#allocation2] sm:$0xff]
    %v51 = vld [vmem:[#allocation2 + $0x8] sm:$0xff]
    %v52 = vld [vmem:[#allocation2 + $0x10] sm:$0xff]
    %v53 = vld [vmem:[#allocation2 + $0x18] sm:$0xff]
    %v54 = vld [vmem:[#allocation2 + $0x20] sm:$0xff]
    %v55 = vld [vmem:[#allocation2 + $0x28] sm:$0xff]
    %v56 = vld [vmem:[#allocation2 + $0x30] sm:$0xff]
    %v57 = vld [vmem:[#allocation2 + $0x38] sm:$0xff]
    %v58 = vld [vmem:[#allocation2 + $0x40] sm:$0xff]
    %v59 = vld [vmem:[#allocation2 + $0x48] sm:$0xff]
    %v60 = vld [vmem:[#allocation2 + $0x50] sm:$0xff]
    %v61 = vld [vmem:[#allocation2 + $0x58] sm:$0xff]
    %v62 = vld [vmem:[#allocation2 + $0x60] sm:$0xff]
    %v63 = vld [vmem:[#allocation2 + $0x68] sm:$0xff]
    %v64 = vld [vmem:[#allocation2 + $0x70] sm:$0xff]
    %v65 = vld [vmem:[#allocation2 + $0x78] sm:$0xff]
    %v66 = vld [vmem:[%s0] sm:$0xff]
    %v67 = vld [vmem:[%s0 + $0x8] sm:$0xff]
    %v68 = vld [vmem:[%s0 + $0x10] sm:$0xff]
    %v69 = vld [vmem:[%s0 + $0x18] sm:$0xff]
    %v70 = vld [vmem:[%s0 + $0x20] sm:$0xff]
    %v71 = vld [vmem:[%s0 + $0x28] sm:$0xff]
    %v72 = vld [vmem:[%s0 + $0x30] sm:$0xff]
    %v73 = vld [vmem:[%s0 + $0x38] sm:$0xff]
    %v74 = vpack.c.bf16 %v68, %v66
    %v75 = vpack.c.bf16 %v69, %v67
    %v76 = vpack.c.bf16 %v72, %v70
    %v77 = vpack.c.bf16 %v73, %v71
    %v78 = vld [vmem:[#allocation3] sm:$0xff]
    %v79 = vld [vmem:[#allocation3 + $0x8] sm:$0xff]
    %v80 = vld [vmem:[#allocation3 + $0x10] sm:$0xff]
    %v81 = vld [vmem:[#allocation3 + $0x18] sm:$0xff]
    %v82 = vld [vmem:[#allocation3 + $0x20] sm:$0xff]
    %v83 = vld [vmem:[#allocation3 + $0x28] sm:$0xff]
    %v84 = vld [vmem:[#allocation3 + $0x30] sm:$0xff]
    %v85 = vld [vmem:[#allocation3 + $0x38] sm:$0xff]
    %v86 = vld [vmem:[#allocation3 + $0x40] sm:$0xff]
    %v87 = vld [vmem:[#allocation3 + $0x48] sm:$0xff]
    %v88 = vld [vmem:[#allocation3 + $0x50] sm:$0xff]
    %v89 = vld [vmem:[#allocation3 + $0x58] sm:$0xff]
    %v90 = vld [vmem:[#allocation3 + $0x60] sm:$0xff]
    %v91 = vld [vmem:[#allocation3 + $0x68] sm:$0xff]
    %v92 = vld [vmem:[#allocation3 + $0x70] sm:$0xff]
    %v93 = vld [vmem:[#allocation3 + $0x78] sm:$0xff]
    %v94 = vld [vmem:[#allocation3 + $0x80] sm:$0xff]
    %v95 = vld [vmem:[#allocation3 + $0x88] sm:$0xff]
    %v96 = vld [vmem:[#allocation3 + $0x90] sm:$0xff]
    %v97 = vld [vmem:[#allocation3 + $0x98] sm:$0xff]
    %v98 = vld [vmem:[#allocation3 + $0xa0] sm:$0xff]
    %v99 = vld [vmem:[#allocation3 + $0xa8] sm:$0xff]
    %v100 = vld [vmem:[#allocation3 + $0xb0] sm:$0xff]
    %v101 = vld [vmem:[#allocation3 + $0xb8] sm:$0xff]
    %v102 = vld [vmem:[#allocation3 + $0xc0] sm:$0xff]
    %v103 = vld [vmem:[#allocation3 + $0xc8] sm:$0xff]
    %v104 = vld [vmem:[#allocation3 + $0xd0] sm:$0xff]
    %v105 = vld [vmem:[#allocation3 + $0xd8] sm:$0xff]
    %v106 = vld [vmem:[#allocation3 + $0xe0] sm:$0xff]
    %v107 = vld [vmem:[#allocation3 + $0xe8] sm:$0xff]
    %v108 = vld [vmem:[#allocation3 + $0xf0] sm:$0xff]
    %v109 = vld [vmem:[#allocation3 + $0xf8] sm:$0xff]
    %v110 = vld [vmem:[#allocation3 + $0x100] sm:$0xff]
    %v111 = vld [vmem:[#allocation3 + $0x108] sm:$0xff]
    %v112 = vld [vmem:[#allocation3 + $0x110] sm:$0xff]
    %v113 = vld [vmem:[#allocation3 + $0x118] sm:$0xff]
    %v114 = vld [vmem:[#allocation3 + $0x120] sm:$0xff]
    %v115 = vld [vmem:[#allocation3 + $0x128] sm:$0xff]
    %v116 = vld [vmem:[#allocation3 + $0x130] sm:$0xff]
    %v117 = vld [vmem:[#allocation3 + $0x138] sm:$0xff]
    %v118 = vld [vmem:[#allocation3 + $0x140] sm:$0xff]
    %v119 = vld [vmem:[#allocation3 + $0x148] sm:$0xff]
    %v120 = vld [vmem:[#allocation3 + $0x150] sm:$0xff]
    %v121 = vld [vmem:[#allocation3 + $0x158] sm:$0xff]
    %v122 = vld [vmem:[#allocation3 + $0x160] sm:$0xff]
    %v123 = vld [vmem:[#allocation3 + $0x168] sm:$0xff]
    %v124 = vld [vmem:[#allocation3 + $0x170] sm:$0xff]
    %v125 = vld [vmem:[#allocation3 + $0x178] sm:$0xff]
    %v126 = vld [vmem:[#allocation3 + $0x180] sm:$0xff]
    %v127 = vld [vmem:[#allocation3 + $0x188] sm:$0xff]
    %v128 = vld [vmem:[#allocation3 + $0x190] sm:$0xff]
    %v129 = vld [vmem:[#allocation3 + $0x198] sm:$0xff]
    %v130 = vld [vmem:[#allocation3 + $0x1a0] sm:$0xff]
    %v131 = vld [vmem:[#allocation3 + $0x1a8] sm:$0xff]
    %v132 = vld [vmem:[#allocation3 + $0x1b0] sm:$0xff]
    %v133 = vld [vmem:[#allocation3 + $0x1b8] sm:$0xff]
    %v134 = vld [vmem:[#allocation3 + $0x1c0] sm:$0xff]
    %v135 = vld [vmem:[#allocation3 + $0x1c8] sm:$0xff]
    %v136 = vld [vmem:[#allocation3 + $0x1d0] sm:$0xff]
    %v137 = vld [vmem:[#allocation3 + $0x1d8] sm:$0xff]
    %v138 = vld [vmem:[#allocation3 + $0x1e0] sm:$0xff]
    %v139 = vld [vmem:[#allocation3 + $0x1e8] sm:$0xff]
    %v140 = vld [vmem:[#allocation3 + $0x1f0] sm:$0xff]
    %v141 = vld [vmem:[#allocation3 + $0x1f8] sm:$0xff]
    %v142 = vld [vmem:[#allocation3 + $0x200] sm:$0xff]
    %v143 = vld [vmem:[#allocation3 + $0x208] sm:$0xff]
    %v144 = vld [vmem:[#allocation3 + $0x210] sm:$0xff]
    %v145 = vld [vmem:[#allocation3 + $0x218] sm:$0xff]
    %v146 = vld [vmem:[#allocation3 + $0x220] sm:$0xff]
    %v147 = vld [vmem:[#allocation3 + $0x228] sm:$0xff]
    %v148 = vld [vmem:[#allocation3 + $0x230] sm:$0xff]
    %v149 = vld [vmem:[#allocation3 + $0x238] sm:$0xff]
    %v150 = vld [vmem:[#allocation3 + $0x240] sm:$0xff]
    %v151 = vld [vmem:[#allocation3 + $0x248] sm:$0xff]
    %v152 = vld [vmem:[#allocation3 + $0x250] sm:$0xff]
    %v153 = vld [vmem:[#allocation3 + $0x258] sm:$0xff]
    %v154 = vld [vmem:[#allocation3 + $0x260] sm:$0xff]
    %v155 = vld [vmem:[#allocation3 + $0x268] sm:$0xff]
    %v156 = vld [vmem:[#allocation3 + $0x270] sm:$0xff]
    %v157 = vld [vmem:[#allocation3 + $0x278] sm:$0xff]
    %v158 = vld [vmem:[#allocation3 + $0x280] sm:$0xff]
    %v159 = vld [vmem:[#allocation3 + $0x288] sm:$0xff]
    %v160 = vld [vmem:[#allocation3 + $0x290] sm:$0xff]
    %v161 = vld [vmem:[#allocation3 + $0x298] sm:$0xff]
    %v162 = vld [vmem:[#allocation3 + $0x2a0] sm:$0xff]
    %v163 = vld [vmem:[#allocation3 + $0x2a8] sm:$0xff]
    %v164 = vld [vmem:[#allocation3 + $0x2b0] sm:$0xff]
    %v165 = vld [vmem:[#allocation3 + $0x2b8] sm:$0xff]
    %v166 = vld [vmem:[#allocation3 + $0x2c0] sm:$0xff]
    %v167 = vld [vmem:[#allocation3 + $0x2c8] sm:$0xff]
    %v168 = vld [vmem:[#allocation3 + $0x2d0] sm:$0xff]
    %v169 = vld [vmem:[#allocation3 + $0x2d8] sm:$0xff]
    %v170 = vld [vmem:[#allocation3 + $0x2e0] sm:$0xff]
    %v171 = vld [vmem:[#allocation3 + $0x2e8] sm:$0xff]
    %v172 = vld [vmem:[#allocation3 + $0x2f0] sm:$0xff]
    %v173 = vld [vmem:[#allocation3 + $0x2f8] sm:$0xff]
    %v174 = vld [vmem:[#allocation3 + $0x300] sm:$0xff]
    %v175 = vld [vmem:[#allocation3 + $0x308] sm:$0xff]
    %v176 = vld [vmem:[#allocation3 + $0x310] sm:$0xff]
    %v177 = vld [vmem:[#allocation3 + $0x318] sm:$0xff]
    %v178 = vld [vmem:[#allocation3 + $0x320] sm:$0xff]
    %v179 = vld [vmem:[#allocation3 + $0x328] sm:$0xff]
    %v180 = vld [vmem:[#allocation3 + $0x330] sm:$0xff]
    %v181 = vld [vmem:[#allocation3 + $0x338] sm:$0xff]
    %v182 = vld [vmem:[#allocation3 + $0x340] sm:$0xff]
    %v183 = vld [vmem:[#allocation3 + $0x348] sm:$0xff]
    %v184 = vld [vmem:[#allocation3 + $0x350] sm:$0xff]
    %v185 = vld [vmem:[#allocation3 + $0x358] sm:$0xff]
    %v186 = vld [vmem:[#allocation3 + $0x360] sm:$0xff]
    %v187 = vld [vmem:[#allocation3 + $0x368] sm:$0xff]
    %v188 = vld [vmem:[#allocation3 + $0x370] sm:$0xff]
    %v189 = vld [vmem:[#allocation3 + $0x378] sm:$0xff]
    %v190 = vld [vmem:[#allocation3 + $0x380] sm:$0xff]
    %v191 = vld [vmem:[#allocation3 + $0x388] sm:$0xff]
    %v192 = vld [vmem:[#allocation3 + $0x390] sm:$0xff]
    %v193 = vld [vmem:[#allocation3 + $0x398] sm:$0xff]
    %v194 = vld [vmem:[#allocation3 + $0x3a0] sm:$0xff]
    %v195 = vld [vmem:[#allocation3 + $0x3a8] sm:$0xff]
    %v196 = vld [vmem:[#allocation3 + $0x3b0] sm:$0xff]
    %v197 = vld [vmem:[#allocation3 + $0x3b8] sm:$0xff]
    %v198 = vld [vmem:[#allocation3 + $0x3c0] sm:$0xff]
    %v199 = vld [vmem:[#allocation3 + $0x3c8] sm:$0xff]
    %v200 = vld [vmem:[#allocation3 + $0x3d0] sm:$0xff]
    %v201 = vld [vmem:[#allocation3 + $0x3d8] sm:$0xff]
    %v202 = vld [vmem:[#allocation3 + $0x3e0] sm:$0xff]
    %v203 = vld [vmem:[#allocation3 + $0x3e8] sm:$0xff]
    %v204 = vld [vmem:[#allocation3 + $0x3f0] sm:$0xff]
    %v205 = vld [vmem:[#allocation3 + $0x3f8] sm:$0xff]
    %v206 = vpack.c.bf16 %v82, %v78
    %v207 = vpack.c.bf16 %v83, %v79
    %v208 = vpack.c.bf16 %v84, %v80
    %v209 = vpack.c.bf16 %v85, %v81
    %v210 = vpack.c.bf16 %v90, %v86
    %v211 = vpack.c.bf16 %v91, %v87
    %v212 = vpack.c.bf16 %v92, %v88
    %v213 = vpack.c.bf16 %v93, %v89
    %v214 = vpack.c.bf16 %v98, %v94
    %v215 = vpack.c.bf16 %v99, %v95
    %v216 = vpack.c.bf16 %v100, %v96
    %v217 = vpack.c.bf16 %v101, %v97
    %v218 = vpack.c.bf16 %v106, %v102
    %v219 = vpack.c.bf16 %v107, %v103
    %v220 = vpack.c.bf16 %v108, %v104
    %v221 = vpack.c.bf16 %v109, %v105
    %v222 = vpack.c.bf16 %v114, %v110
    %v223 = vpack.c.bf16 %v115, %v111
    %v224 = vpack.c.bf16 %v116, %v112
    %v225 = vpack.c.bf16 %v117, %v113
    %v226 = vpack.c.bf16 %v122, %v118
    %v227 = vpack.c.bf16 %v123, %v119
    %v228 = vpack.c.bf16 %v124, %v120
    %v229 = vpack.c.bf16 %v125, %v121
    %v230 = vpack.c.bf16 %v130, %v126
    %v231 = vpack.c.bf16 %v131, %v127
    %v232 = vpack.c.bf16 %v132, %v128
    %v233 = vpack.c.bf16 %v133, %v129
    %v234 = vpack.c.bf16 %v138, %v134
    %v235 = vpack.c.bf16 %v139, %v135
    %v236 = vpack.c.bf16 %v140, %v136
    %v237 = vpack.c.bf16 %v141, %v137
    %v238 = vpack.c.bf16 %v146, %v142
    %v239 = vpack.c.bf16 %v147, %v143
    %v240 = vpack.c.bf16 %v148, %v144
    %v241 = vpack.c.bf16 %v149, %v145
    %v242 = vpack.c.bf16 %v154, %v150
    %v243 = vpack.c.bf16 %v155, %v151
    %v244 = vpack.c.bf16 %v156, %v152
    %v245 = vpack.c.bf16 %v157, %v153
    %v246 = vpack.c.bf16 %v162, %v158
    %v247 = vpack.c.bf16 %v163, %v159
    %v248 = vpack.c.bf16 %v164, %v160
    %v249 = vpack.c.bf16 %v165, %v161
    %v250 = vpack.c.bf16 %v170, %v166
    %v251 = vpack.c.bf16 %v171, %v167
    %v252 = vpack.c.bf16 %v172, %v168
    %v253 = vpack.c.bf16 %v173, %v169
    %v254 = vpack.c.bf16 %v178, %v174
    %v255 = vpack.c.bf16 %v179, %v175
    %v256 = vpack.c.bf16 %v180, %v176
    %v257 = vpack.c.bf16 %v181, %v177
    %v258 = vpack.c.bf16 %v186, %v182
    %v259 = vpack.c.bf16 %v187, %v183
    %v260 = vpack.c.bf16 %v188, %v184
    %v261 = vpack.c.bf16 %v189, %v185
    %v262 = vpack.c.bf16 %v194, %v190
    %v263 = vpack.c.bf16 %v195, %v191
    %v264 = vpack.c.bf16 %v196, %v192
    %v265 = vpack.c.bf16 %v197, %v193
    %v266 = vpack.c.bf16 %v202, %v198
    %v267 = vpack.c.bf16 %v203, %v199
    %v268 = vpack.c.bf16 %v204, %v200
    %v269 = vpack.c.bf16 %v205, %v201
    %270 = vmatpush.bf16.msra.mxu0 %v234
    %271 = vmatpush.bf16.msra.mxu0 %v230
    %272 = vmatpush.bf16.msra.mxu0 %v226
    %273 = vmatpush.bf16.msra.mxu0 %v222
    %274 = vmatpush.bf16.msra.mxu0 %v218
    %275 = vmatpush.bf16.msra.mxu0 %v214
    %276 = vmatpush.bf16.msra.mxu0 %v210
    %277 = vmatpush.bf16.msra.mxu0 %v206
    %278 = vmatmul.bf16.gmra.mxu0 %v74
    %v279 = vpop.f32.mrf.mxu0
    %v280 = vadd.f32 0.0, %v279
    %v281 = vpop.f32.mrf.mxu0
    %v282 = vadd.f32 0.0, %v281
    %283 = vmatmul.bf16.gmra.mxu0 %v76
    %v284 = vpop.f32.mrf.mxu0
    %v285 = vadd.f32 0.0, %v284
    %v286 = vpop.f32.mrf.mxu0
    %v287 = vadd.f32 0.0, %v286
    %288 = vdwg.mxu0
    %289 = vmatpush.bf16.msra.mxu0 %v266
    %290 = vmatpush.bf16.msra.mxu0 %v262
    %291 = vmatpush.bf16.msra.mxu0 %v258
    %292 = vmatpush.bf16.msra.mxu0 %v254
    %293 = vmatpush.bf16.msra.mxu0 %v250
    %294 = vmatpush.bf16.msra.mxu0 %v246
    %295 = vmatpush.bf16.msra.mxu0 %v242
    %296 = vmatpush.bf16.msra.mxu0 %v238
    %297 = vmatmul.bf16.gmra.mxu0 %v75
    %v298 = vpop.f32.mrf.mxu0
    %v299 = vadd.f32 %v280, %v298
    %v300 = vpop.f32.mrf.mxu0
    %v301 = vadd.f32 %v282, %v300
    %302 = vmatmul.bf16.gmra.mxu0 %v77
    %v303 = vpop.f32.mrf.mxu0
    %v304 = vadd.f32 %v285, %v303
    %v305 = vpop.f32.mrf.mxu0
    %v306 = vadd.f32 %v287, %v305
    %307 = vdwg.mxu0
    %308 = vmatpush.bf16.msra.mxu0 %v235
    %309 = vmatpush.bf16.msra.mxu0 %v231
    %310 = vmatpush.bf16.msra.mxu0 %v227
    %311 = vmatpush.bf16.msra.mxu0 %v223
    %312 = vmatpush.bf16.msra.mxu0 %v219
    %313 = vmatpush.bf16.msra.mxu0 %v215
    %314 = vmatpush.bf16.msra.mxu0 %v211
    %315 = vmatpush.bf16.msra.mxu0 %v207
    %316 = vmatmul.bf16.gmra.mxu0 %v74
    %v317 = vpop.f32.mrf.mxu0
    %v318 = vadd.f32 0.0, %v317
    %v319 = vpop.f32.mrf.mxu0
    %v320 = vadd.f32 0.0, %v319
    %321 = vmatmul.bf16.gmra.mxu0 %v76
    %v322 = vpop.f32.mrf.mxu0
    %v323 = vadd.f32 0.0, %v322
    %v324 = vpop.f32.mrf.mxu0
    %v325 = vadd.f32 0.0, %v324
    %326 = vdwg.mxu0
    %327 = vmatpush.bf16.msra.mxu0 %v267
    %328 = vmatpush.bf16.msra.mxu0 %v263
    %329 = vmatpush.bf16.msra.mxu0 %v259
    %330 = vmatpush.bf16.msra.mxu0 %v255
    %331 = vmatpush.bf16.msra.mxu0 %v251
    %332 = vmatpush.bf16.msra.mxu0 %v247
    %333 = vmatpush.bf16.msra.mxu0 %v243
    %334 = vmatpush.bf16.msra.mxu0 %v239
    %335 = vmatmul.bf16.gmra.mxu0 %v75
    %v336 = vpop.f32.mrf.mxu0
    %v337 = vadd.f32 %v318, %v336
    %v338 = vpop.f32.mrf.mxu0
    %v339 = vadd.f32 %v320, %v338
    %340 = vmatmul.bf16.gmra.mxu0 %v77
    %v341 = vpop.f32.mrf.mxu0
    %v342 = vadd.f32 %v323, %v341
    %v343 = vpop.f32.mrf.mxu0
    %v344 = vadd.f32 %v325, %v343
    %345 = vdwg.mxu0
    %346 = vmatpush.bf16.msra.mxu0 %v236
    %347 = vmatpush.bf16.msra.mxu0 %v232
    %348 = vmatpush.bf16.msra.mxu0 %v228
    %349 = vmatpush.bf16.msra.mxu0 %v224
    %350 = vmatpush.bf16.msra.mxu0 %v220
    %351 = vmatpush.bf16.msra.mxu0 %v216
    %352 = vmatpush.bf16.msra.mxu0 %v212
    %353 = vmatpush.bf16.msra.mxu0 %v208
    %354 = vmatmul.bf16.gmra.mxu0 %v74
    %v355 = vpop.f32.mrf.mxu0
    %v356 = vadd.f32 0.0, %v355
    %v357 = vpop.f32.mrf.mxu0
    %v358 = vadd.f32 0.0, %v357
    %359 = vmatmul.bf16.gmra.mxu0 %v76
    %v360 = vpop.f32.mrf.mxu0
    %v361 = vadd.f32 0.0, %v360
    %v362 = vpop.f32.mrf.mxu0
    %v363 = vadd.f32 0.0, %v362
    %364 = vdwg.mxu0
    %365 = vmatpush.bf16.msra.mxu0 %v268
    %366 = vmatpush.bf16.msra.mxu0 %v264
    %367 = vmatpush.bf16.msra.mxu0 %v260
    %368 = vmatpush.bf16.msra.mxu0 %v256
    %369 = vmatpush.bf16.msra.mxu0 %v252
    %370 = vmatpush.bf16.msra.mxu0 %v248
    %371 = vmatpush.bf16.msra.mxu0 %v244
    %372 = vmatpush.bf16.msra.mxu0 %v240
    %373 = vmatmul.bf16.gmra.mxu0 %v75
    %v374 = vpop.f32.mrf.mxu0
    %v375 = vadd.f32 %v356, %v374
    %v376 = vpop.f32.mrf.mxu0
    %v377 = vadd.f32 %v358, %v376
    %378 = vmatmul.bf16.gmra.mxu0 %v77
    %v379 = vpop.f32.mrf.mxu0
    %v380 = vadd.f32 %v361, %v379
    %v381 = vpop.f32.mrf.mxu0
    %v382 = vadd.f32 %v363, %v381
    %383 = vdwg.mxu0
    %384 = vmatpush.bf16.msra.mxu0 %v237
    %385 = vmatpush.bf16.msra.mxu0 %v233
    %386 = vmatpush.bf16.msra.mxu0 %v229
    %387 = vmatpush.bf16.msra.mxu0 %v225
    %388 = vmatpush.bf16.msra.mxu0 %v221
    %389 = vmatpush.bf16.msra.mxu0 %v217
    %390 = vmatpush.bf16.msra.mxu0 %v213
    %391 = vmatpush.bf16.msra.mxu0 %v209
    %392 = vmatmul.bf16.gmra.mxu0 %v74
    %v393 = vpop.f32.mrf.mxu0
    %v394 = vadd.f32 0.0, %v393
    %v395 = vpop.f32.mrf.mxu0
    %v396 = vadd.f32 0.0, %v395
    %397 = vmatmul.bf16.gmra.mxu0 %v76
    %v398 = vpop.f32.mrf.mxu0
    %v399 = vadd.f32 0.0, %v398
    %v400 = vpop.f32.mrf.mxu0
    %v401 = vadd.f32 0.0, %v400
    %402 = vdwg.mxu0
    %403 = vmatpush.bf16.msra.mxu0 %v269
    %404 = vmatpush.bf16.msra.mxu0 %v265
    %405 = vmatpush.bf16.msra.mxu0 %v261
    %406 = vmatpush.bf16.msra.mxu0 %v257
    %407 = vmatpush.bf16.msra.mxu0 %v253
    %408 = vmatpush.bf16.msra.mxu0 %v249
    %409 = vmatpush.bf16.msra.mxu0 %v245
    %410 = vmatpush.bf16.msra.mxu0 %v241
    %411 = vmatmul.bf16.gmra.mxu0 %v75
    %v412 = vpop.f32.mrf.mxu0
    %v413 = vadd.f32 %v394, %v412
    %v414 = vpop.f32.mrf.mxu0
    %v415 = vadd.f32 %v396, %v414
    %416 = vmatmul.bf16.gmra.mxu0 %v77
    %v417 = vpop.f32.mrf.mxu0
    %v418 = vadd.f32 %v399, %v417
    %v419 = vpop.f32.mrf.mxu0
    %v420 = vadd.f32 %v401, %v419
    %421 = vdwg.mxu0
    %v422 = vadd.f32 %v50, %v299
    %v423 = vadd.f32 %v51, %v337
    %v424 = vadd.f32 %v52, %v375
    %v425 = vadd.f32 %v53, %v413
    %v426 = vadd.f32 %v54, %v301
    %v427 = vadd.f32 %v55, %v339
    %v428 = vadd.f32 %v56, %v377
    %v429 = vadd.f32 %v57, %v415
    %v430 = vadd.f32 %v58, %v304
    %v431 = vadd.f32 %v59, %v342
    %v432 = vadd.f32 %v60, %v380
    %v433 = vadd.f32 %v61, %v418
    %v434 = vadd.f32 %v62, %v306
    %v435 = vadd.f32 %v63, %v344
    %v436 = vadd.f32 %v64, %v382
    %v437 = vadd.f32 %v65, %v420
    %438 = vst [vmem:[#allocation2] sm:$0xff] %v422
    %439 = vst [vmem:[#allocation2 + $0x8] sm:$0xff] %v423
    %440 = vst [vmem:[#allocation2 + $0x10] sm:$0xff] %v424
    %441 = vst [vmem:[#allocation2 + $0x18] sm:$0xff] %v425
    %442 = vst [vmem:[#allocation2 + $0x20] sm:$0xff] %v426
    %443 = vst [vmem:[#allocation2 + $0x28] sm:$0xff] %v427
    %444 = vst [vmem:[#allocation2 + $0x30] sm:$0xff] %v428
    %445 = vst [vmem:[#allocation2 + $0x38] sm:$0xff] %v429
    %446 = vst [vmem:[#allocation2 + $0x40] sm:$0xff] %v430
    %447 = vst [vmem:[#allocation2 + $0x48] sm:$0xff] %v431
    %448 = vst [vmem:[#allocation2 + $0x50] sm:$0xff] %v432
    %449 = vst [vmem:[#allocation2 + $0x58] sm:$0xff] %v433
    %450 = vst [vmem:[#allocation2 + $0x60] sm:$0xff] %v434
    %451 = vst [vmem:[#allocation2 + $0x68] sm:$0xff] %v435
    %452 = vst [vmem:[#allocation2 + $0x70] sm:$0xff] %v436
    %453 = vst [vmem:[#allocation2 + $0x78] sm:$0xff] %v437
    // Predicated region
    $region22: #{transformer_forward.43} parent=1 // pred_check
      %p454 = pneg %p30
    $region23: #{transformer_forward.43} parent=1 // pred_check_branch
      %456 = sbr.rel (%p454) target = $region25
    $region24: #{transformer_forward.43} parent=1 // pred_region
      %v457 = vld [vmem:[#allocation2] sm:$0xff]
      %v458 = vld [vmem:[#allocation2 + $0x8] sm:$0xff]
      %v459 = vld [vmem:[#allocation2 + $0x10] sm:$0xff]
      %v460 = vld [vmem:[#allocation2 + $0x18] sm:$0xff]
      %v461 = vld [vmem:[#allocation2 + $0x20] sm:$0xff]
      %v462 = vld [vmem:[#allocation2 + $0x28] sm:$0xff]
      %v463 = vld [vmem:[#allocation2 + $0x30] sm:$0xff]
      %v464 = vld [vmem:[#allocation2 + $0x38] sm:$0xff]
      %v465 = vld [vmem:[#allocation2 + $0x40] sm:$0xff]
      %v466 = vld [vmem:[#allocation2 + $0x48] sm:$0xff]
      %v467 = vld [vmem:[#allocation2 + $0x50] sm:$0xff]
      %v468 = vld [vmem:[#allocation2 + $0x58] sm:$0xff]
      %v469 = vld [vmem:[#allocation2 + $0x60] sm:$0xff]
      %v470 = vld [vmem:[#allocation2 + $0x68] sm:$0xff]
      %v471 = vld [vmem:[#allocation2 + $0x70] sm:$0xff]
      %v472 = vld [vmem:[#allocation2 + $0x78] sm:$0xff]
      %v473 = vld [vmem:[%s2] sm:$0xf]
      %v475 = vperm.slane %v473, 0
      %v476 = vperm.slane %v473, 1
      %v477 = vperm.slane %v473, 2
      %v478 = vperm.slane %v473, 3
      %v483 = vadd.f32 %v457, %v475
      %v484 = vadd.f32 %v458, %v476
      %v485 = vadd.f32 %v459, %v477
      %v486 = vadd.f32 %v460, %v478
      %v487 = vadd.f32 %v461, %v475
      %v488 = vadd.f32 %v462, %v476
      %v489 = vadd.f32 %v463, %v477
      %v490 = vadd.f32 %v464, %v478
      %v491 = vadd.f32 %v465, %v475
      %v492 = vadd.f32 %v466, %v476
      %v493 = vadd.f32 %v467, %v477
      %v494 = vadd.f32 %v468, %v478
      %v495 = vadd.f32 %v469, %v475
      %v496 = vadd.f32 %v470, %v476
      %v497 = vadd.f32 %v471, %v477
      %v498 = vadd.f32 %v472, %v478
      %499 = vst [vmem:[%s3] sm:$0xff] %v483
      %500 = vst [vmem:[%s3 + $0x8] sm:$0xff] %v484
      %501 = vst [vmem:[%s3 + $0x10] sm:$0xff] %v485
      %502 = vst [vmem:[%s3 + $0x18] sm:$0xff] %v486
      %503 = vst [vmem:[%s3 + $0x20] sm:$0xff] %v487
      %504 = vst [vmem:[%s3 + $0x28] sm:$0xff] %v488
      %505 = vst [vmem:[%s3 + $0x30] sm:$0xff] %v489
      %506 = vst [vmem:[%s3 + $0x38] sm:$0xff] %v490
      %507 = vst [vmem:[%s3 + $0x40] sm:$0xff] %v491
      %508 = vst [vmem:[%s3 + $0x48] sm:$0xff] %v492
      %509 = vst [vmem:[%s3 + $0x50] sm:$0xff] %v493
      %510 = vst [vmem:[%s3 + $0x58] sm:$0xff] %v494
      %511 = vst [vmem:[%s3 + $0x60] sm:$0xff] %v495
      %512 = vst [vmem:[%s3 + $0x68] sm:$0xff] %v496
      %513 = vst [vmem:[%s3 + $0x70] sm:$0xff] %v497
      %514 = vst [vmem:[%s3 + $0x78] sm:$0xff] %v498
    $region25: #{transformer_forward.43} parent=1 // pred_fallthru
      _
    // Predicated region
    $region26: #{transformer_forward.43} parent=1 // pred_check
      _
    $region27: #{transformer_forward.43} parent=1 // pred_check_branch
      %516 = sbr.rel (0) target = $region29
    $region28: #{transformer_forward.43} parent=1 // pred_region
      _
    $region29: #{transformer_forward.43} parent=1 // pred_fallthru
      _
    // Predicated region
    $region30: #{transformer_forward.43} parent=1 // pred_check
      _
    $region31: #{transformer_forward.43} parent=1 // pred_check_branch
      %518 = sbr.rel (0) target = $region33
    $region32: #{transformer_forward.43} parent=1 // pred_region
      _
    $region33: #{transformer_forward.43} parent=1 // pred_fallthru
      _
    %519 = vsyncpa [#allocation4], 1

// kernel: transformer_forward.44
$region0: #{transformer_forward.44}
  #allocation0 [shape = 'u32[]', space=smem, size = 0x4, offset = 0x4, fixed_abs, tag = 'smem constant byte address 0x4 - core index']
  #allocation1 [shape = 'u32[72,128]{1,0:T(1,128)}', space=vmem, size = 0x9000, scoped, tag = 'internal scratch']
  #allocation2 [shape = 'f32[16,1]{1,0:T(8,128)}', space=vmem, size = 0x2000, scoped, tag = 'scratch operand']
  #allocation3 [shape = 'f32[16,1]{1,0:T(8,128)}', space=vmem, size = 0x2000, scoped, tag = 'scratch operand']
  #allocation4 [shape = 'f32[16,128]{1,0:T(8,128)}', space=vmem, size = 0x2000, scoped, tag = 'scratch operand']
  %s0 = inlined_call_operand.vmem [shape: f32[2,16,256], index: 0, kind: input, shape index: {}]
  %s1 = inlined_call_operand.vmem [shape: f32[2,16,512], index: 1, kind: input, shape index: {}, may-alias: {1,2}]
  %s2 = inlined_call_operand.vmem [shape: f32[2,16,512], index: 2, kind: input, shape index: {}, may-alias: {1,2}]
  %s3 = inlined_call_operand.vmem [shape: f32[2,16,256], index: 3, kind: output, shape index: {}]
  %s4 = sld [smem:[#allocation0]]
  $region201: #{transformer_forward.44} parent=0
    _
  %s6 = ssub.s32 1, %s4
  %s7 = scalar_select 0, %s6, %s4
  $region1: #{transformer_forward.44} parent=0
    #allocation5 [shape = 'u8[16384]{0}', space=vmem, size = 0x4000, scoped, tag = 'input window, operand 0']
    #allocation6 [shape = 'u8[16384]{0}', space=vmem, size = 0x4000, scoped, tag = 'input window, operand 1']
    #allocation7 [shape = 'u8[16384]{0}', space=vmem, size = 0x4000, scoped, tag = 'input window, operand 2']
    #allocation8 [shape = 'u8[16384]{0}', space=vmem, size = 0x4000, scoped, tag = 'output window, operand 0']
    loop: start=0, step=1, limit=6
    $region2: #{transformer_forward.44} parent=1 // loop_pre_header
      _
    $region3: #{transformer_forward.44} parent=1 // loop_header
      %s9 = sphi 0, %s13
      %p10 = scmp.ge.s32.totalorder %s9, 6
      %s16 = sphi 0, %s42
      %s17 = sphi 0, %s38
      %s18 = sphi 0, %s34
      %s19 = sphi 0, %s30
      %s20 = sphi 0, %s16
      %s21 = sphi 0, %s17
      %s22 = sphi 0, %s18
      %s23 = sphi 0, %s19
      %s24 = sphi 0, %s20
      %s25 = sphi 0, %s21
      %s26 = sphi 0, %s22
      %s27 = sphi 0, %s23
      %s49 = sphi 0, %s51
      %s52 = sphi 0, %s49
      %s53 = sphi 0, %s52
      %s69 = sphi 0, %s53
      %s79 = sphi 0, %s81
      %s82 = sphi 0, %s79
      %s83 = sphi 0, %s82
      %s99 = sphi 0, %s83
      %s111 = sphi 0, %s113
      %s114 = sphi 0, %s111
      %s115 = sphi 0, %s114
      %s131 = sphi 0, %s115
      %s141 = sphi 0, %s143
      %s144 = sphi 0, %s141
      %s145 = sphi 0, %s144
      %s161 = sphi 0, %s145
    $region4: #{transformer_forward.44} parent=1 // loop_header_branch
      %12 = sbr.rel (%p10) target = $region8
    $region5: #{transformer_forward.44} parent=1 // loop_body
      %s14 = ssub.s32 %s9, 1
      %s15 = ssub.s32 %s9, 2
      %s28 = sadd.s32 1, %s19
      %p29 = scmp.ge.s32.totalorder %s28, 1
      %s30 = scalar_select %p29, 0, %s28
      %s31 = sadd.s32 1, %s18
      %s32 = scalar_select %p29, %s31, %s18
      %p33 = scmp.ge.s32.totalorder %s32, 1
      %s34 = scalar_select %p33, 0, %s32
      %s35 = sadd.s32 1, %s17
      %s36 = scalar_select %p33, %s35, %s17
      %p37 = scmp.ge.s32.totalorder %s36, 2
      %s38 = scalar_select %p37, 0, %s36
      %s39 = sadd.s32 1, %s16
      %s40 = scalar_select %p37, %s39, %s16
      %p41 = scmp.ge.s32.totalorder %s40, 2
      %s42 = scalar_select %p41, 0, %s40
      %s43 = ssub.s32 %s16, %s42
      %s44 = ssub.s32 %s18, %s34
      %s45 = sor.u32 %s43, %s44
      %s46 = ssub.s32 %s17, %s38
      %s47 = sor.u32 %s45, %s46
      %p48 = scmp.eq.s32.totalorder %s47, 0
      %s50 = sadd.s32 %s49, 1
      %s51 = scalar_select %p48, %s49, %s50
      %p54 = pneg %p48
      %p55 = scmp.eq.s32.totalorder %s9, 3
      %p56 = por %p54, %p55
      %p57 = scmp.ne.s32.totalorder %s49, %s52
      %p58 = scmp.eq.s32.totalorder %s9, 0
      %p59 = por %p57, %p58
      %p60 = scmp.ne.s32.totalorder %s49, %s52
      %p61 = scmp.eq.s32.totalorder %s14, 3
      %p62 = por %p60, %p61
      %p63 = scmp.ne.s32.totalorder %s52, %s53
      %p64 = scmp.eq.s32.totalorder %s14, 0
      %p65 = por %p63, %p64
      %p66 = scmp.ne.s32.totalorder %s52, %s53
      %p67 = scmp.eq.s32.totalorder %s15, 3
      %p68 = por %p66, %p67
      %p70 = scmp.ne.s32.totalorder %s53, %s69
      %p71 = scmp.eq.s32.totalorder %s15, 0
      %p72 = por %p70, %p71
      %s73 = ssub.s32 %s16, %s42
      %s74 = ssub.s32 %s19, %s30
      %s75 = sor.u32 %s73, %s74
      %s76 = ssub.s32 %s17, %s38
      %s77 = sor.u32 %s75, %s76
      %p78 = scmp.eq.s32.totalorder %s77, 0
      %s80 = sadd.s32 %s79, 1
      %s81 = scalar_select %p78, %s79, %s80
      %p84 = pneg %p78
      %p85 = scmp.eq.s32.totalorder %s9, 3
      %p86 = por %p84, %p85
      %p87 = scmp.ne.s32.totalorder %s79, %s82
      %p88 = scmp.eq.s32.totalorder %s9, 0
      %p89 = por %p87, %p88
      %p90 = scmp.ne.s32.totalorder %s79, %s82
      %p91 = scmp.eq.s32.totalorder %s14, 3
      %p92 = por %p90, %p91
      %p93 = scmp.ne.s32.totalorder %s82, %s83
      %p94 = scmp.eq.s32.totalorder %s14, 0
      %p95 = por %p93, %p94
      %p96 = scmp.ne.s32.totalorder %s82, %s83
      %p97 = scmp.eq.s32.totalorder %s15, 3
      %p98 = por %p96, %p97
      %p100 = scmp.ne.s32.totalorder %s83, %s99
      %p101 = scmp.eq.s32.totalorder %s15, 0
      %p102 = por %p100, %p101
      %s103 = sadd.s32 %s17, 2
      %s104 = sadd.s32 %s38, 2
      %s105 = ssub.s32 %s16, %s42
      %s106 = ssub.s32 %s19, %s30
      %s107 = sor.u32 %s105, %s106
      %s108 = ssub.s32 %s103, %s104
      %s109 = sor.u32 %s107, %s108
      %p110 = scmp.eq.s32.totalorder %s109, 0
      %s112 = sadd.s32 %s111, 1
      %s113 = scalar_select %p110, %s111, %s112
      %p116 = pneg %p110
      %p117 = scmp.eq.s32.totalorder %s9, 3
      %p118 = por %p116, %p117
      %p119 = scmp.ne.s32.totalorder %s111, %s114
      %p120 = scmp.eq.s32.totalorder %s9, 0
      %p121 = por %p119, %p120
      %p122 = scmp.ne.s32.totalorder %s111, %s114
      %p123 = scmp.eq.s32.totalorder %s14, 3
      %p124 = por %p122, %p123
      %p125 = scmp.ne.s32.totalorder %s114, %s115
      %p126 = scmp.eq.s32.totalorder %s14, 0
      %p127 = por %p125, %p126
      %p128 = scmp.ne.s32.totalorder %s114, %s115
      %p129 = scmp.eq.s32.totalorder %s15, 3
      %p130 = por %p128, %p129
      %p132 = scmp.ne.s32.totalorder %s115, %s131
      %p133 = scmp.eq.s32.totalorder %s15, 0
      %p134 = por %p132, %p133
      %s135 = ssub.s32 %s16, %s42
      %s136 = ssub.s32 %s18, %s34
      %s137 = sor.u32 %s135, %s136
      %s138 = ssub.s32 %s17, %s38
      %s139 = sor.u32 %s137, %s138
      %p140 = scmp.eq.s32.totalorder %s139, 0
      %s142 = sadd.s32 %s141, 1
      %s143 = scalar_select %p140, %s141, %s142
      %p146 = pneg %p140
      %p147 = scmp.eq.s32.totalorder %s9, 3
      %p148 = por %p146, %p147
      %p149 = scmp.ne.s32.totalorder %s141, %s144
      %p150 = scmp.eq.s32.totalorder %s9, 0
      %p151 = por %p149, %p150
      %p152 = scmp.ne.s32.totalorder %s141, %s144
      %p153 = scmp.eq.s32.totalorder %s14, 3
      %p154 = por %p152, %p153
      %p155 = scmp.ne.s32.totalorder %s144, %s145
      %p156 = scmp.eq.s32.totalorder %s14, 0
      %p157 = por %p155, %p156
      %p158 = scmp.ne.s32.totalorder %s144, %s145
      %p159 = scmp.eq.s32.totalorder %s15, 3
      %p160 = por %p158, %p159
      %p162 = scmp.ne.s32.totalorder %s145, %s161
      %p163 = scmp.eq.s32.totalorder %s15, 0
      %p164 = por %p162, %p163
      %p165 = scmp.le.s32.totalorder 1, %s9
      %p166 = scmp.lt.s32.totalorder %s9, 5
      %p167 = pnand %p165, %p166
      %p168 = pneg %p167
      // Predicated region
      $region9: #{transformer_forward.44} parent=5 // pred_check
        _
      $region10: #{transformer_forward.44} parent=5 // pred_check_branch
        %170 = sbr.rel (%p167) target = $region12
      $region11: #{transformer_forward.44} parent=5 // pred_region
        %s171 = ssub.s32 %s9, 1
      $region12: #{transformer_forward.44} parent=5 // pred_fallthru
        _
      %p172 = scmp.lt.s32.totalorder %s9, 4
      // Predicated region
      $region13: #{transformer_forward.44} parent=5 // pred_check
        %p173 = pneg %p172
      $region14: #{transformer_forward.44} parent=5 // pred_check_branch
        %175 = sbr.rel (%p173) target = $region16
      $region15: #{transformer_forward.44} parent=5 // pred_region
        // Predicated region
        $region17: #{transformer_forward.44} parent=15 // pred_check
          %p176 = pneg %p59
        $region18: #{transformer_forward.44} parent=15 // pred_check_branch
          %178 = sbr.rel (%p176) target = $region20
        $region19: #{transformer_forward.44} parent=15 // pred_region
          %s179 = sand.u32 %s49, 1
          %s180 = sand.u32 %s49, 1
          %s181 = smul.addr %s180, 16
          %s182 = scalar_lea.vmem [#allocation5], %s181
          %s183 = smul.u32 2, %s18
          %s184 = smul.addr %s183, 2
          %s185 = sadd.s32 %s17, %s184
          %s186 = smul.addr %s16, 4
          %s187 = sadd.s32 %s185, %s186
          %s188 = smul.addr %s187, 8
          %s189 = scalar_lea.vmem %s0, %s188
          // Predicated region
          $region21: #{transformer_forward.44} parent=19 // pred_check
            _
          $region22: #{transformer_forward.44} parent=19 // pred_check_branch
            %191 = sbr.rel (0) target = $region24
          $region23: #{transformer_forward.44} parent=19 // pred_region
            // Predicated region
            $region25: #{transformer_forward.44} parent=23 // pred_check
              _
            $region26: #{transformer_forward.44} parent=23 // pred_check_branch
              %193 = sbr.rel (0) target = $region28
            $region27: #{transformer_forward.44} parent=23 // pred_region
              // Predicated region
              $region40: #{transformer_forward.44} parent=27 // pred_check
                _
              $region41: #{transformer_forward.44} parent=27 // pred_check_branch
                %211 = sbr.rel (0) target = $region43
              $region42: #{transformer_forward.44} parent=27 // pred_region
                loop: start=0, step=1, limit=1
                $region44: #{transformer_forward.44} parent=42 // loop_pre_header
                  _
                $region45: #{transformer_forward.44} parent=42 // loop_header
                  %s213 = sphi 0, %s217
                  %p214 = scmp.ge.s32.totalorder %s213, 1
                  %s218 = sphi %s189, %s189
                  %s219 = sphi %s182, %s182
                $region46: #{transformer_forward.44} parent=42 // loop_header_branch
                  %216 = sbr.rel (%p214) target = $region50
                $region47: #{transformer_forward.44} parent=42 // loop_body
                  %v220 = vld [vmem:[%s218] sm:$0xff]
                  %221 = vst [vmem:[%s219] sm:$0xff] %v220
                  %v222 = vld [vmem:[%s218 + $0x10] sm:$0xff]
                  %223 = vst [vmem:[%s219 + $0x8] sm:$0xff] %v222
                $region48: #{transformer_forward.44} parent=42 // loop_footer
                  %s217 = sadd.s32 1, %s213
                $region49: #{transformer_forward.44} parent=42 // loop_footer_branch
                  %212 = sbr.rel target = $region45
                $region50: #{transformer_forward.44} parent=42 // loop_exit
                  _
              $region43: #{transformer_forward.44} parent=27 // pred_fallthru
                _
              // Predicated region
              $region51: #{transformer_forward.44} parent=27 // pred_check
                _
              $region52: #{transformer_forward.44} parent=27 // pred_check_branch
                %225 = sbr.rel target = $region54
              $region53: #{transformer_forward.44} parent=27 // pred_region
                _
              $region54: #{transformer_forward.44} parent=27 // pred_fallthru
                _
            $region28: #{transformer_forward.44} parent=23 // pred_fallthru
              _
            // Predicated region
            $region29: #{transformer_forward.44} parent=23 // pred_check
              _
            $region30: #{transformer_forward.44} parent=23 // pred_check_branch
              %195 = sbr.rel target = $region32
            $region31: #{transformer_forward.44} parent=23 // pred_region
              %s197 = ssub.s32 256, 1
              loop: start=0, step=1, limit=1
              $region33: #{transformer_forward.44} parent=31 // loop_pre_header
                _
              $region34: #{transformer_forward.44} parent=31 // loop_header
                %s199 = sphi 0, %s203
                %p200 = scmp.ge.s32.totalorder %s199, 1
                %s204 = sphi %s189, %s189
                %s205 = sphi %s182, %s182
              $region35: #{transformer_forward.44} parent=31 // loop_header_branch
                %202 = sbr.rel (%p200) target = $region39
              $region36: #{transformer_forward.44} parent=31 // loop_body
                %v206 = vld [vmem:[%s204] sm:%s197]
                %207 = vst [vmem:[%s205] sm:%s197] %v206
                %v208 = vld [vmem:[%s204 + $0x10] sm:%s197]
                %209 = vst [vmem:[%s205 + $0x8] sm:%s197] %v208
              $region37: #{transformer_forward.44} parent=31 // loop_footer
                %s203 = sadd.s32 1, %s199
              $region38: #{transformer_forward.44} parent=31 // loop_footer_branch
                %198 = sbr.rel target = $region34
              $region39: #{transformer_forward.44} parent=31 // loop_exit
                _
            $region32: #{transformer_forward.44} parent=23 // pred_fallthru
              _
          $region24: #{transformer_forward.44} parent=19 // pred_fallthru
            _
          %226 = vnop
        $region20: #{transformer_forward.44} parent=15 // pred_fallthru
          _
        // Predicated region
        $region55: #{transformer_forward.44} parent=15 // pred_check
          %p227 = pneg %p89
        $region56: #{transformer_forward.44} parent=15 // pred_check_branch
          %229 = sbr.rel (%p227) target = $region58
        $region57: #{transformer_forward.44} parent=15 // pred_region
          %s230 = sand.u32 %s79, 1
          %s231 = sand.u32 %s79, 1
          %s232 = smul.addr %s231, 16
          %s233 = scalar_lea.vmem [#allocation6], %s232
          %s234 = smul.u32 2, %s19
          %s235 = smul.addr %s234, 4
          %s236 = sadd.s32 %s17, %s235
          %s237 = smul.addr %s16, 8
          %s238 = sadd.s32 %s236, %s237
          %s239 = smul.addr %s238, 8
          %s240 = scalar_lea.vmem %s1, %s239
          // Predicated region
          $region59: #{transformer_forward.44} parent=57 // pred_check
            _
          $region60: #{transformer_forward.44} parent=57 // pred_check_branch
            %242 = sbr.rel (0) target = $region62
          $region61: #{transformer_forward.44} parent=57 // pred_region
            // Predicated region
            $region63: #{transformer_forward.44} parent=61 // pred_check
              _
            $region64: #{transformer_forward.44} parent=61 // pred_check_branch
              %244 = sbr.rel (0) target = $region66
            $region65: #{transformer_forward.44} parent=61 // pred_region
              // Predicated region
              $region78: #{transformer_forward.44} parent=65 // pred_check
                _
              $region79: #{transformer_forward.44} parent=65 // pred_check_branch
                %262 = sbr.rel (0) target = $region81
              $region80: #{transformer_forward.44} parent=65 // pred_region
                loop: start=0, step=1, limit=1
                $region82: #{transformer_forward.44} parent=80 // loop_pre_header
                  _
                $region83: #{transformer_forward.44} parent=80 // loop_header
                  %s264 = sphi 0, %s268
                  %p265 = scmp.ge.s32.totalorder %s264, 1
                  %s269 = sphi %s240, %s240
                  %s270 = sphi %s233, %s233
                $region84: #{transformer_forward.44} parent=80 // loop_header_branch
                  %267 = sbr.rel (%p265) target = $region88
                $region85: #{transformer_forward.44} parent=80 // loop_body
                  %v271 = vld [vmem:[%s269] sm:$0xff]
                  %272 = vst [vmem:[%s270] sm:$0xff] %v271
                  %v273 = vld [vmem:[%s269 + $0x20] sm:$0xff]
                  %274 = vst [vmem:[%s270 + $0x8] sm:$0xff] %v273
                $region86: #{transformer_forward.44} parent=80 // loop_footer
                  %s268 = sadd.s32 1, %s264
                $region87: #{transformer_forward.44} parent=80 // loop_footer_branch
                  %263 = sbr.rel target = $region83
                $region88: #{transformer_forward.44} parent=80 // loop_exit
                  _
              $region81: #{transformer_forward.44} parent=65 // pred_fallthru
                _
              // Predicated region
              $region89: #{transformer_forward.44} parent=65 // pred_check
                _
              $region90: #{transformer_forward.44} parent=65 // pred_check_branch
                %276 = sbr.rel target = $region92
              $region91: #{transformer_forward.44} parent=65 // pred_region
                _
              $region92: #{transformer_forward.44} parent=65 // pred_fallthru
                _
            $region66: #{transformer_forward.44} parent=61 // pred_fallthru
              _
            // Predicated region
            $region67: #{transformer_forward.44} parent=61 // pred_check
              _
            $region68: #{transformer_forward.44} parent=61 // pred_check_branch
              %246 = sbr.rel target = $region70
            $region69: #{transformer_forward.44} parent=61 // pred_region
              %s248 = ssub.s32 256, 1
              loop: start=0, step=1, limit=1
              $region71: #{transformer_forward.44} parent=69 // loop_pre_header
                _
              $region72: #{transformer_forward.44} parent=69 // loop_header
                %s250 = sphi 0, %s254
                %p251 = scmp.ge.s32.totalorder %s250, 1
                %s255 = sphi %s240, %s240
                %s256 = sphi %s233, %s233
              $region73: #{transformer_forward.44} parent=69 // loop_header_branch
                %253 = sbr.rel (%p251) target = $region77
              $region74: #{transformer_forward.44} parent=69 // loop_body
                %v257 = vld [vmem:[%s255] sm:%s248]
                %258 = vst [vmem:[%s256] sm:%s248] %v257
                %v259 = vld [vmem:[%s255 + $0x20] sm:%s248]
                %260 = vst [vmem:[%s256 + $0x8] sm:%s248] %v259
              $region75: #{transformer_forward.44} parent=69 // loop_footer
                %s254 = sadd.s32 1, %s250
              $region76: #{transformer_forward.44} parent=69 // loop_footer_branch
                %249 = sbr.rel target = $region72
              $region77: #{transformer_forward.44} parent=69 // loop_exit
                _
            $region70: #{transformer_forward.44} parent=61 // pred_fallthru
              _
          $region62: #{transformer_forward.44} parent=57 // pred_fallthru
            _
          %277 = vnop
        $region58: #{transformer_forward.44} parent=15 // pred_fallthru
          _
        // Predicated region
        $region93: #{transformer_forward.44} parent=15 // pred_check
          %p278 = pneg %p121
        $region94: #{transformer_forward.44} parent=15 // pred_check_branch
          %280 = sbr.rel (%p278) target = $region96
        $region95: #{transformer_forward.44} parent=15 // pred_region
          %s281 = sand.u32 %s111, 1
          %s282 = sand.u32 %s111, 1
          %s283 = smul.addr %s282, 16
          %s284 = scalar_lea.vmem [#allocation7], %s283
          %s285 = sadd.s32 %s17, 2
          %s286 = smul.u32 2, %s19
          %s287 = smul.addr %s286, 4
          %s288 = sadd.s32 %s285, %s287
          %s289 = smul.addr %s16, 8
          %s290 = sadd.s32 %s288, %s289
          %s291 = smul.addr %s290, 8
          %s292 = scalar_lea.vmem %s2, %s291
          // Predicated region
          $region97: #{transformer_forward.44} parent=95 // pred_check
            _
          $region98: #{transformer_forward.44} parent=95 // pred_check_branch
            %294 = sbr.rel (0) target = $region100
          $region99: #{transformer_forward.44} parent=95 // pred_region
            // Predicated region
            $region101: #{transformer_forward.44} parent=99 // pred_check
              _
            $region102: #{transformer_forward.44} parent=99 // pred_check_branch
              %296 = sbr.rel (0) target = $region104
            $region103: #{transformer_forward.44} parent=99 // pred_region
              // Predicated region
              $region116: #{transformer_forward.44} parent=103 // pred_check
                _
              $region117: #{transformer_forward.44} parent=103 // pred_check_branch
                %314 = sbr.rel (0) target = $region119
              $region118: #{transformer_forward.44} parent=103 // pred_region
                loop: start=0, step=1, limit=1
                $region120: #{transformer_forward.44} parent=118 // loop_pre_header
                  _
                $region121: #{transformer_forward.44} parent=118 // loop_header
                  %s316 = sphi 0, %s320
                  %p317 = scmp.ge.s32.totalorder %s316, 1
                  %s321 = sphi %s292, %s292
                  %s322 = sphi %s284, %s284
                $region122: #{transformer_forward.44} parent=118 // loop_header_branch
                  %319 = sbr.rel (%p317) target = $region126
                $region123: #{transformer_forward.44} parent=118 // loop_body
                  %v323 = vld [vmem:[%s321] sm:$0xff]
                  %324 = vst [vmem:[%s322] sm:$0xff] %v323
                  %v325 = vld [vmem:[%s321 + $0x20] sm:$0xff]
                  %326 = vst [vmem:[%s322 + $0x8] sm:$0xff] %v325
                $region124: #{transformer_forward.44} parent=118 // loop_footer
                  %s320 = sadd.s32 1, %s316
                $region125: #{transformer_forward.44} parent=118 // loop_footer_branch
                  %315 = sbr.rel target = $region121
                $region126: #{transformer_forward.44} parent=118 // loop_exit
                  _
              $region119: #{transformer_forward.44} parent=103 // pred_fallthru
                _
              // Predicated region
              $region127: #{transformer_forward.44} parent=103 // pred_check
                _
              $region128: #{transformer_forward.44} parent=103 // pred_check_branch
                %328 = sbr.rel target = $region130
              $region129: #{transformer_forward.44} parent=103 // pred_region
                _
              $region130: #{transformer_forward.44} parent=103 // pred_fallthru
                _
            $region104: #{transformer_forward.44} parent=99 // pred_fallthru
              _
            // Predicated region
            $region105: #{transformer_forward.44} parent=99 // pred_check
              _
            $region106: #{transformer_forward.44} parent=99 // pred_check_branch
              %298 = sbr.rel target = $region108
            $region107: #{transformer_forward.44} parent=99 // pred_region
              %s300 = ssub.s32 256, 1
              loop: start=0, step=1, limit=1
              $region109: #{transformer_forward.44} parent=107 // loop_pre_header
                _
              $region110: #{transformer_forward.44} parent=107 // loop_header
                %s302 = sphi 0, %s306
                %p303 = scmp.ge.s32.totalorder %s302, 1
                %s307 = sphi %s292, %s292
                %s308 = sphi %s284, %s284
              $region111: #{transformer_forward.44} parent=107 // loop_header_branch
                %305 = sbr.rel (%p303) target = $region115
              $region112: #{transformer_forward.44} parent=107 // loop_body
                %v309 = vld [vmem:[%s307] sm:%s300]
                %310 = vst [vmem:[%s308] sm:%s300] %v309
                %v311 = vld [vmem:[%s307 + $0x20] sm:%s300]
                %312 = vst [vmem:[%s308 + $0x8] sm:%s300] %v311
              $region113: #{transformer_forward.44} parent=107 // loop_footer
                %s306 = sadd.s32 1, %s302
              $region114: #{transformer_forward.44} parent=107 // loop_footer_branch
                %301 = sbr.rel target = $region110
              $region115: #{transformer_forward.44} parent=107 // loop_exit
                _
            $region108: #{transformer_forward.44} parent=99 // pred_fallthru
              _
          $region100: #{transformer_forward.44} parent=95 // pred_fallthru
            _
          %329 = vnop
        $region96: #{transformer_forward.44} parent=15 // pred_fallthru
          _
      $region16: #{transformer_forward.44} parent=5 // pred_fallthru
        _
      %p330 = scmp.le.s32.totalorder 1, %s9
      %p331 = scmp.lt.s32.totalorder %s9, 5
      %p332 = pnand %p330, %p331
      %p333 = pneg %p332
      // Predicated region
      $region131: #{transformer_forward.44} parent=5 // pred_check
        _
      $region132: #{transformer_forward.44} parent=5 // pred_check_branch
        %335 = sbr.rel (%p332) target = $region134
      $region133: #{transformer_forward.44} parent=5 // pred_region
        %s336 = ssub.s32 %s9, 1
        %s337 = sand.u32 %s52, 1
        %s338 = sand.u32 %s52, 1
        %s339 = smul.addr %s338, 16
        %s340 = scalar_lea.vmem [#allocation5], %s339
        // Predicated region
        $region135: #{transformer_forward.44} parent=133 // pred_check
          %p341 = pneg %p65
        $region136: #{transformer_forward.44} parent=133 // pred_check_branch
          %343 = sbr.rel (%p341) target = $region138
        $region137: #{transformer_forward.44} parent=133 // pred_region
          _
        $region138: #{transformer_forward.44} parent=133 // pred_fallthru
          _
        %s344 = sand.u32 %s82, 1
        %s345 = sand.u32 %s82, 1
        %s346 = smul.addr %s345, 16
        %s347 = scalar_lea.vmem [#allocation6], %s346
        // Predicated region
        $region139: #{transformer_forward.44} parent=133 // pred_check
          %p348 = pneg %p95
        $region140: #{transformer_forward.44} parent=133 // pred_check_branch
          %350 = sbr.rel (%p348) target = $region142
        $region141: #{transformer_forward.44} parent=133 // pred_region
          _
        $region142: #{transformer_forward.44} parent=133 // pred_fallthru
          _
        %s351 = sand.u32 %s114, 1
        %s352 = sand.u32 %s114, 1
        %s353 = smul.addr %s352, 16
        %s354 = scalar_lea.vmem [#allocation7], %s353
        // Predicated region
        $region143: #{transformer_forward.44} parent=133 // pred_check
          %p355 = pneg %p127
        $region144: #{transformer_forward.44} parent=133 // pred_check_branch
          %357 = sbr.rel (%p355) target = $region146
        $region145: #{transformer_forward.44} parent=133 // pred_region
          _
        $region146: #{transformer_forward.44} parent=133 // pred_fallthru
          _
        %s358 = sand.u32 %s52, 1
        %s359 = sand.u32 %s52, 1
        %s360 = smul.addr %s359, 16
        %s361 = scalar_lea.vmem [#allocation5], %s360
        %p362 = pneg %p65
        %p363 = pneg %p62
        %s364 = sand.u32 %s82, 1
        %s365 = sand.u32 %s82, 1
        %s366 = smul.addr %s365, 16
        %s367 = scalar_lea.vmem [#allocation6], %s366
        %p368 = pneg %p95
        %p369 = pneg %p92
        %s370 = sand.u32 %s114, 1
        %s371 = sand.u32 %s114, 1
        %s372 = smul.addr %s371, 16
        %s373 = scalar_lea.vmem [#allocation7], %s372
        %p374 = pneg %p127
        %p375 = pneg %p124
        %p376 = pneg %p157
        %p377 = pneg %p154
        %s378 = sand.u32 %s144, 1
        %s379 = sand.u32 %s144, 1
        %s380 = smul.addr %s379, 16
        %s381 = scalar_lea.vmem [#allocation8], %s380
        %s382 = smul.u32 2, %s22
        %s383 = smul.u32 2, %s23
        %s384 = sadd.s32 %s21, 2
        %s385 = smul.u32 2, %s23
        %s386 = smul.u32 2, %s22
        %p388 = scmp.eq.s32.totalorder %s23, 0
        // Predicated region
        $region147: #{transformer_forward.44} parent=133 // pred_check
          %p389 = pneg %p388
        $region148: #{transformer_forward.44} parent=133 // pred_check_branch
          %391 = sbr.rel (%p389) target = $region150
        $region149: #{transformer_forward.44} parent=133 // pred_region
          %vm392 = vcmask 7168
          %393 = vst.msk [vmem:[#allocation2] sm:$0xff] %vm392, -inf
          %394 = vst.msk [vmem:[#allocation2 + $0x8] sm:$0xff] %vm392, -inf
          %395 = vst.msk [vmem:[#allocation3] sm:$0xff] %vm392, 0.0
          %396 = vst.msk [vmem:[#allocation3 + $0x8] sm:$0xff] %vm392, 0.0
          %397 = vst [vmem:[#allocation4] sm:$0xff] 0.0
          %398 = vst [vmem:[#allocation4 + $0x8] sm:$0xff] 0.0
        $region150: #{transformer_forward.44} parent=133 // pred_fallthru
          _
        %v399 = vld [vmem:[%s340] sm:$0xff]
        %v400 = vld [vmem:[%s340 + $0x8] sm:$0xff]
        %v401 = vmul.f32 %v399, 0.088388346
        %v402 = vmul.f32 %v400, 0.088388346
        %v403 = vpack.c.bf16 %v402, %v401
        %v404 = vld [vmem:[%s347] sm:$0xff]
        %v405 = vld [vmem:[%s347 + $0x8] sm:$0xff]
        %v406 = vpack.c.bf16 %v405, %v404
        %v407 = vld [vmem:[%s354] sm:$0xff]
        %v408 = vld [vmem:[%s354 + $0x8] sm:$0xff]
        %409 = vmatpush.bf16.xpose.msra.mxu0 0
        %410 = vmatpush.bf16.xpose.msra.mxu0 0
        %411 = vmatpush.bf16.xpose.msra.mxu0 0
        %412 = vmatpush.bf16.xpose.msra.mxu0 0
        %413 = vmatpush.bf16.xpose.msra.mxu0 0
        %414 = vmatpush.bf16.xpose.msra.mxu0 0
        %415 = vmatpush.bf16.xpose.msra.mxu0 0
        %416 = vmatpush.bf16.xpose.msra.mxu0 %v406
        %417 = vmatmul.bf16.gmra.mxu0 %v403
        %v418 = vpop.f32.mrf.mxu0
        %v419 = vadd.f32 0.0, %v418
        %v420 = vpop.f32.mrf.mxu0
        %v421 = vadd.f32 0.0, %v420
        %422 = vdwg.mxu0
        %v423 = vld [vmem:[#allocation2] sm:$0xff]
        %v424 = vld [vmem:[#allocation2 + $0x8] sm:$0xff]
        %vm425 = vcmask 130048
        %v426 = vsel %vm425, %v419, -inf
        %427 = vmax.xlane.f32.xlu0 %v426
        %v428 = vpop.xlane.xlu0 %427
        %v429 = vsel %vm425, %v421, -inf
        %430 = vmax.xlane.f32.xlu0 %v429
        %v431 = vpop.xlane.xlu0 %430
        %v432 = vmax.f32 %v423, %v428
        %v433 = vmax.f32 %v424, %v431
        %v434 = vsub.f32 %v423, %v432
        %v435 = vsub.f32 %v424, %v433
        %v436 = vmul.f32 %v434, 1.442695
        %v437 = vpow.pop %v436
        %v438 = vmul.f32 %v435, 1.442695
        %v439 = vpow.pop %v438
        %441 = vset.pattern.permute.xlu0 0
        %442 = vperm.xlu0 %441, %v432
        %v443 = vpop.permute.xlu0 %442
        %446 = vset.pattern.permute.xlu0 0
        %447 = vperm.xlu0 %446, %v433
        %v448 = vpop.permute.xlu0 %447
        %v450 = vsub.f32 %v419, %v443
        %v451 = vsub.f32 %v421, %v448
        %v452 = vmul.f32 %v450, 1.442695
        %v453 = vpow.pop %v452
        %v454 = vmul.f32 %v451, 1.442695
        %v455 = vpow.pop %v454
        %v456 = vld [vmem:[#allocation3] sm:$0xff]
        %v457 = vld [vmem:[#allocation3 + $0x8] sm:$0xff]
        %v458 = vmul.f32 %v437, %v456
        %v459 = vmul.f32 %v439, %v457
        %v460 = vsel %vm425, %v453, 0.0
        %461 = vadd.xlane.f32.xlu0 %v460
        %v462 = vpop.xlane.xlu0 %461
        %v463 = vsel %vm425, %v455, 0.0
        %464 = vadd.xlane.f32.xlu0 %v463
        %v465 = vpop.xlane.xlu0 %464
        %v466 = vadd.f32 %v458, %v462
        %v467 = vadd.f32 %v459, %v465
        %vm468 = vcmask 7168
        %469 = vst.msk [vmem:[#allocation3] sm:$0xff] %vm468, %v466
        %470 = vst.msk [vmem:[#allocation3 + $0x8] sm:$0xff] %vm468, %v467
        %v471 = vld [vmem:[#allocation4] sm:$0xff]
        %v472 = vld [vmem:[#allocation4 + $0x8] sm:$0xff]
        %474 = vset.pattern.permute.xlu0 0
        %475 = vperm.xlu0 %474, %v437
        %v476 = vpop.permute.xlu0 %475
        %479 = vset.pattern.permute.xlu0 0
        %480 = vperm.xlu0 %479, %v439
        %v481 = vpop.permute.xlu0 %480
        %v483 = vmul.f32 %v476, %v471
        %v484 = vmul.f32 %v481, %v472
        %v485 = vpack.c.bf16 %v455, %v453
        %v486 = vpack.c.bf16 %v408, %v407
        %v488 = vsel %vm425, %v485, 0
        %490 = vmatpush.bf16.msra.mxu0 0
        %491 = vmatpush.bf16.msra.mxu0 0
        %492 = vmatpush.bf16.msra.mxu0 0
        %493 = vmatpush.bf16.msra.mxu0 0
        %494 = vmatpush.bf16.msra.mxu0 0
        %495 = vmatpush.bf16.msra.mxu0 0
        %496 = vmatpush.bf16.msra.mxu0 0
        %497 = vmatpush.bf16.msra.mxu0 %v486
        %498 = vmatmul.bf16.gmra.mxu0 %v488
        %v499 = vpop.f32.mrf.mxu0
        %v500 = vadd.f32 0.0, %v499
        %v501 = vpop.f32.mrf.mxu0
        %v502 = vadd.f32 0.0, %v501
        %503 = vdwg.mxu0
        %v504 = vadd.f32 %v483, %v500
        %v505 = vadd.f32 %v484, %v502
        %506 = vst [vmem:[#allocation4] sm:$0xff] %v504
        %507 = vst [vmem:[#allocation4 + $0x8] sm:$0xff] %v505
        %508 = vst.msk [vmem:[#allocation2] sm:$0xff] %vm468, %v432
        %509 = vst.msk [vmem:[#allocation2 + $0x8] sm:$0xff] %vm468, %v433
        // Predicated region
        $region151: #{transformer_forward.44} parent=133 // pred_check
          %p510 = pneg %p388
        $region152: #{transformer_forward.44} parent=133 // pred_check_branch
          %512 = sbr.rel (%p510) target = $region154
        $region153: #{transformer_forward.44} parent=133 // pred_region
          %v513 = vld [vmem:[#allocation3] sm:$0xff]
          %v514 = vld [vmem:[#allocation3 + $0x8] sm:$0xff]
          %v515 = vrcp.pop %v513
          %v516 = vrcp.pop %v514
          %v517 = vld [vmem:[#allocation4] sm:$0xff]
          %v518 = vld [vmem:[#allocation4 + $0x8] sm:$0xff]
          %520 = vset.pattern.permute.xlu0 0
          %521 = vperm.xlu0 %520, %v515
          %v522 = vpop.permute.xlu0 %521
          %525 = vset.pattern.permute.xlu0 0
          %526 = vperm.xlu0 %525, %v516
          %v527 = vpop.permute.xlu0 %526
          %v529 = vmul.f32 %v517, %v522
          %v530 = vmul.f32 %v518, %v527
          %531 = vst [vmem:[%s381] sm:$0xff] %v529
          %532 = vst [vmem:[%s381 + $0x8] sm:$0xff] %v530
        $region154: #{transformer_forward.44} parent=133 // pred_fallthru
          _
        %s533 = sand.u32 %s144, 1
        %s534 = sand.u32 %s144, 1
        %s535 = smul.addr %s534, 16
        %s536 = scalar_lea.vmem [#allocation8], %s535
        // Predicated region
        $region155: #{transformer_forward.44} parent=133 // pred_check
          %p537 = pneg %p154
        $region156: #{transformer_forward.44} parent=133 // pred_check_branch
          %539 = sbr.rel (%p537) target = $region158
        $region157: #{transformer_forward.44} parent=133 // pred_region
          %s540 = smul.u32 2, %s22
          %s541 = smul.addr %s540, 2
          %s542 = sadd.s32 %s21, %s541
          %s543 = smul.addr %s20, 4
          %s544 = sadd.s32 %s542, %s543
          %s545 = smul.addr %s544, 8
          %s546 = scalar_lea.vmem %s3, %s545
          // Predicated region
          $region159: #{transformer_forward.44} parent=157 // pred_check
            _
          $region160: #{transformer_forward.44} parent=157 // pred_check_branch
            %548 = sbr.rel (0) target = $region162
          $region161: #{transformer_forward.44} parent=157 // pred_region
            // Predicated region
            $region163: #{transformer_forward.44} parent=161 // pred_check
              _
            $region164: #{transformer_forward.44} parent=161 // pred_check_branch
              %550 = sbr.rel (0) target = $region166
            $region165: #{transformer_forward.44} parent=161 // pred_region
              // Predicated region
              $region178: #{transformer_forward.44} parent=165 // pred_check
                _
              $region179: #{transformer_forward.44} parent=165 // pred_check_branch
                %568 = sbr.rel (0) target = $region181
              $region180: #{transformer_forward.44} parent=165 // pred_region
                loop: start=0, step=1, limit=1
                $region182: #{transformer_forward.44} parent=180 // loop_pre_header
                  _
                $region183: #{transformer_forward.44} parent=180 // loop_header
                  %s570 = sphi 0, %s574
                  %p571 = scmp.ge.s32.totalorder %s570, 1
                  %s575 = sphi %s536, %s536
                  %s576 = sphi %s546, %s546
                $region184: #{transformer_forward.44} parent=180 // loop_header_branch
                  %573 = sbr.rel (%p571) target = $region188
                $region185: #{transformer_forward.44} parent=180 // loop_body
                  %v577 = vld [vmem:[%s575] sm:$0xff]
                  %578 = vst [vmem:[%s576] sm:$0xff] %v577
                  %v579 = vld [vmem:[%s575 + $0x8] sm:$0xff]
                  %580 = vst [vmem:[%s576 + $0x10] sm:$0xff] %v579
                $region186: #{transformer_forward.44} parent=180 // loop_footer
                  %s574 = sadd.s32 1, %s570
                $region187: #{transformer_forward.44} parent=180 // loop_footer_branch
                  %569 = sbr.rel target = $region183
                $region188: #{transformer_forward.44} parent=180 // loop_exit
                  _
              $region181: #{transformer_forward.44} parent=165 // pred_fallthru
                _
              // Predicated region
              $region189: #{transformer_forward.44} parent=165 // pred_check
                _
              $region190: #{transformer_forward.44} parent=165 // pred_check_branch
                %582 = sbr.rel target = $region192
              $region191: #{transformer_forward.44} parent=165 // pred_region
                _
              $region192: #{transformer_forward.44} parent=165 // pred_fallthru
                _
            $region166: #{transformer_forward.44} parent=161 // pred_fallthru
              _
            // Predicated region
            $region167: #{transformer_forward.44} parent=161 // pred_check
              _
            $region168: #{transformer_forward.44} parent=161 // pred_check_branch
              %552 = sbr.rel target = $region170
            $region169: #{transformer_forward.44} parent=161 // pred_region
              %s554 = ssub.s32 256, 1
              loop: start=0, step=1, limit=1
              $region171: #{transformer_forward.44} parent=169 // loop_pre_header
                _
              $region172: #{transformer_forward.44} parent=169 // loop_header
                %s556 = sphi 0, %s560
                %p557 = scmp.ge.s32.totalorder %s556, 1
                %s561 = sphi %s536, %s536
                %s562 = sphi %s546, %s546
              $region173: #{transformer_forward.44} parent=169 // loop_header_branch
                %559 = sbr.rel (%p557) target = $region177
              $region174: #{transformer_forward.44} parent=169 // loop_body
                %v563 = vld [vmem:[%s561] sm:%s554]
                %564 = vst [vmem:[%s562] sm:%s554] %v563
                %v565 = vld [vmem:[%s561 + $0x8] sm:%s554]
                %566 = vst [vmem:[%s562 + $0x10] sm:%s554] %v565
              $region175: #{transformer_forward.44} parent=169 // loop_footer
                %s560 = sadd.s32 1, %s556
              $region176: #{transformer_forward.44} parent=169 // loop_footer_branch
                %555 = sbr.rel target = $region172
              $region177: #{transformer_forward.44} parent=169 // loop_exit
                _
            $region170: #{transformer_forward.44} parent=161 // pred_fallthru
              _
          $region162: #{transformer_forward.44} parent=157 // pred_fallthru
            _
          %583 = vnop
        $region158: #{transformer_forward.44} parent=133 // pred_fallthru
          _
      $region134: #{transformer_forward.44} parent=5 // pred_fallthru
        _
      %p584 = scmp.le.s32.totalorder 2, %s9
      // Predicated region
      $region193: #{transformer_forward.44} parent=5 // pred_check
        %p585 = pneg %p584
      $region194: #{transformer_forward.44} parent=5 // pred_check_branch
        %587 = sbr.rel (%p585) target = $region196
      $region195: #{transformer_forward.44} parent=5 // pred_region
        %s588 = ssub.s32 %s9, 2
        // Predicated region
        $region197: #{transformer_forward.44} parent=195 // pred_check
          %p589 = pneg %p160
        $region198: #{transformer_forward.44} parent=195 // pred_check_branch
          %591 = sbr.rel (%p589) target = $region200
        $region199: #{transformer_forward.44} parent=195 // pred_region
          %s592 = sand.u32 %s145, 1
          %s593 = sand.u32 %s145, 1
          %s594 = smul.addr %s593, 16
          %s595 = scalar_lea.vmem [#allocation8], %s594
        $region200: #{transformer_forward.44} parent=195 // pred_fallthru
          _
      $region196: #{transformer_forward.44} parent=5 // pred_fallthru
        _
    $region6: #{transformer_forward.44} parent=1 // loop_footer
      %s13 = sadd.s32 1, %s9
    $region7: #{transformer_forward.44} parent=1 // loop_footer_branch
      %8 = sbr.rel target = $region3
    $region8: #{transformer_forward.44} parent=1 // loop_exit
      _

// kernel: transformer_forward.57
$region0: #{transformer_forward.57}
  #allocation0 [shape = 'u32[]', space=smem, size = 0x4, offset = 0x4, fixed_abs, tag = 'smem constant byte address 0x4 - core index']
  #allocation1 [shape = 'u32[72,128]{1,0:T(1,128)}', space=vmem, size = 0x9000, scoped, tag = 'internal scratch']
  #allocation2 [shape = 'f32[32,128]{1,0:T(8,128)}', space=vmem, size = 0x4000, scoped, tag = 'scratch operand']
  %s0 = inlined_call_operand.vmem [shape: f32[32,256], index: 0, kind: input, shape index: {}]
  %s1 = inlined_call_operand.hbm [shape: f32[256,128], index: 1, kind: input, shape index: {}]
  %s2 = inlined_call_operand.vmem [shape: f32[1,128], index: 2, kind: input, shape index: {}]
  %s3 = inlined_call_operand.hbm [shape: f32[32,128], index: 3, kind: output, shape index: {}]
  %s4 = sld [smem:[#allocation0]]
  $region34: #{transformer_forward.57} parent=0
    _
  %s6 = ssub.s32 1, %s4
  %s7 = scalar_select 0, %s6, %s4
  $region1: #{transformer_forward.57} parent=0
    #allocation3 [shape = 'u8[131072]{0}', space=vmem, size = 0x20000, scoped, tag = 'input window, operand 1, single buffered']
    #allocation4 [shape = 's32[1]{0}', space=sflag, size = 0x4, scoped, tag = 'scoped memory for transformer_forward.57']
    #allocation5 [shape = 's32[1]{0}', space=sflag, size = 0x4, scoped, tag = 'scoped memory for transformer_forward.57']
    #allocation6 [shape = 'u8[16384]{0}', space=vmem, size = 0x4000, scoped, tag = 'output window, operand 0, single buffered']
    %8 = vsyncpa [#allocation4], 0
    %9 = vsyncpa [#allocation5], 0
    // Predicated region
    $region2: #{transformer_forward.57} parent=1 // pred_check
      _
    $region3: #{transformer_forward.57} parent=1 // pred_check_branch
      %11 = sbr.rel (0) target = $region5
    $region4: #{transformer_forward.57} parent=1 // pred_region
      _
    $region5: #{transformer_forward.57} parent=1 // pred_fallthru
      _
    // Predicated region
    $region6: #{transformer_forward.57} parent=1 // pred_check
      _
    $region7: #{transformer_forward.57} parent=1 // pred_check_branch
      %13 = sbr.rel (0) target = $region9
    $region8: #{transformer_forward.57} parent=1 // pred_region
      %15 = vsyncadd [#allocation4], 0
      %s16 = sshll.u32 %s1, 4
      %s17 = int_to_ptr.hbm [resolvable:$true] %s16
      %s18 = sshll.u32 [#allocation3], 4
      %s19 = int_to_ptr.vmem [resolvable:$true] %s18
      %24 = dma.hbm_to_vmem [thread:$0]  %s17, 4096, %s19, [#allocation4], 128, 128, 8
    $region9: #{transformer_forward.57} parent=1 // pred_fallthru
      _
    // Predicated region
    $region10: #{transformer_forward.57} parent=1 // pred_check
      _
    $region11: #{transformer_forward.57} parent=1 // pred_check_branch
      %26 = sbr.rel (0) target = $region13
    $region12: #{transformer_forward.57} parent=1 // pred_region
      _
    $region13: #{transformer_forward.57} parent=1 // pred_fallthru
      _
    // Predicated region
    $region14: #{transformer_forward.57} parent=1 // pred_check
      _
    $region15: #{transformer_forward.57} parent=1 // pred_check_branch
      %28 = sbr.rel (0) target = $region17
    $region16: #{transformer_forward.57} parent=1 // pred_region
      %30 = dma.done [#allocation4], 4096
    $region17: #{transformer_forward.57} parent=1 // pred_fallthru
      _
    %p31 = scmp.eq.s32.totalorder 0, 0
    // Predicated region
    $region18: #{transformer_forward.57} parent=1 // pred_check
      %p32 = pneg %p31
    $region19: #{transformer_forward.57} parent=1 // pred_check_branch
      %34 = sbr.rel (%p32) target = $region21
    $region20: #{transformer_forward.57} parent=1 // pred_region
      %35 = vst [vmem:[#allocation2] sm:$0xff] 0.0
      %36 = vst [vmem:[#allocation2 + $0x8] sm:$0xff] 0.0
      %37 = vst [vmem:[#allocation2 + $0x10] sm:$0xff] 0.0
      %38 = vst [vmem:[#allocation2 + $0x18] sm:$0xff] 0.0
    $region21: #{transformer_forward.57} parent=1 // pred_fallthru
      _
    %v39 = vld [vmem:[#allocation2] sm:$0xff]
    %v40 = vld [vmem:[#allocation2 + $0x8] sm:$0xff]
    %v41 = vld [vmem:[#allocation2 + $0x10] sm:$0xff]
    %v42 = vld [vmem:[#allocation2 + $0x18] sm:$0xff]
    %v43 = vld [vmem:[%s0] sm:$0xff]
    %v44 = vld [vmem:[%s0 + $0x8] sm:$0xff]
    %v45 = vld [vmem:[%s0 + $0x10] sm:$0xff]
    %v46 = vld [vmem:[%s0 + $0x18] sm:$0xff]
    %v47 = vld [vmem:[%s0 + $0x20] sm:$0xff]
    %v48 = vld [vmem:[%s0 + $0x28] sm:$0xff]
    %v49 = vld [vmem:[%s0 + $0x30] sm:$0xff]
    %v50 = vld [vmem:[%s0 + $0x38] sm:$0xff]
    %v51 = vpack.c.bf16 %v45, %v43
    %v52 = vpack.c.bf16 %v46, %v44
    %v53 = vpack.c.bf16 %v49, %v47
    %v54 = vpack.c.bf16 %v50, %v48
    %v55 = vld [vmem:[#allocation3] sm:$0xff]
    %v56 = vld [vmem:[#allocation3 + $0x8] sm:$0xff]
    %v57 = vld [vmem:[#allocation3 + $0x10] sm:$0xff]
    %v58 = vld [vmem:[#allocation3 + $0x18] sm:$0xff]
    %v59 = vld [vmem:[#allocation3 + $0x20] sm:$0xff]
    %v60 = vld [vmem:[#allocation3 + $0x28] sm:$0xff]
    %v61 = vld [vmem:[#allocation3 + $0x30] sm:$0xff]
    %v62 = vld [vmem:[#allocation3 + $0x38] sm:$0xff]
    %v63 = vld [vmem:[#allocation3 + $0x40] sm:$0xff]
    %v64 = vld [vmem:[#allocation3 + $0x48] sm:$0xff]
    %v65 = vld [vmem:[#allocation3 + $0x50] sm:$0xff]
    %v66 = vld [vmem:[#allocation3 + $0x58] sm:$0xff]
    %v67 = vld [vmem:[#allocation3 + $0x60] sm:$0xff]
    %v68 = vld [vmem:[#allocation3 + $0x68] sm:$0xff]
    %v69 = vld [vmem:[#allocation3 + $0x70] sm:$0xff]
    %v70 = vld [vmem:[#allocation3 + $0x78] sm:$0xff]
    %v71 = vld [vmem:[#allocation3 + $0x80] sm:$0xff]
    %v72 = vld [vmem:[#allocation3 + $0x88] sm:$0xff]
    %v73 = vld [vmem:[#allocation3 + $0x90] sm:$0xff]
    %v74 = vld [vmem:[#allocation3 + $0x98] sm:$0xff]
    %v75 = vld [vmem:[#allocation3 + $0xa0] sm:$0xff]
    %v76 = vld [vmem:[#allocation3 + $0xa8] sm:$0xff]
    %v77 = vld [vmem:[#allocation3 + $0xb0] sm:$0xff]
    %v78 = vld [vmem:[#allocation3 + $0xb8] sm:$0xff]
    %v79 = vld [vmem:[#allocation3 + $0xc0] sm:$0xff]
    %v80 = vld [vmem:[#allocation3 + $0xc8] sm:$0xff]
    %v81 = vld [vmem:[#allocation3 + $0xd0] sm:$0xff]
    %v82 = vld [vmem:[#allocation3 + $0xd8] sm:$0xff]
    %v83 = vld [vmem:[#allocation3 + $0xe0] sm:$0xff]
    %v84 = vld [vmem:[#allocation3 + $0xe8] sm:$0xff]
    %v85 = vld [vmem:[#allocation3 + $0xf0] sm:$0xff]
    %v86 = vld [vmem:[#allocation3 + $0xf8] sm:$0xff]
    %v87 = vpack.c.bf16 %v56, %v55
    %v88 = vpack.c.bf16 %v58, %v57
    %v89 = vpack.c.bf16 %v60, %v59
    %v90 = vpack.c.bf16 %v62, %v61
    %v91 = vpack.c.bf16 %v64, %v63
    %v92 = vpack.c.bf16 %v66, %v65
    %v93 = vpack.c.bf16 %v68, %v67
    %v94 = vpack.c.bf16 %v70, %v69
    %v95 = vpack.c.bf16 %v72, %v71
    %v96 = vpack.c.bf16 %v74, %v73
    %v97 = vpack.c.bf16 %v76, %v75
    %v98 = vpack.c.bf16 %v78, %v77
    %v99 = vpack.c.bf16 %v80, %v79
    %v100 = vpack.c.bf16 %v82, %v81
    %v101 = vpack.c.bf16 %v84, %v83
    %v102 = vpack.c.bf16 %v86, %v85
    %103 = vmatpush.bf16.msra.mxu0 %v94
    %104 = vmatpush.bf16.msra.mxu0 %v93
    %105 = vmatpush.bf16.msra.mxu0 %v92
    %106 = vmatpush.bf16.msra.mxu0 %v91
    %107 = vmatpush.bf16.msra.mxu0 %v90
    %108 = vmatpush.bf16.msra.mxu0 %v89
    %109 = vmatpush.bf16.msra.mxu0 %v88
    %110 = vmatpush.bf16.msra.mxu0 %v87
    %111 = vmatmul.bf16.gmra.mxu0 %v51
    %v112 = vpop.f32.mrf.mxu0
    %v113 = vadd.f32 0.0, %v112
    %v114 = vpop.f32.mrf.mxu0
    %v115 = vadd.f32 0.0, %v114
    %116 = vmatmul.bf16.gmra.mxu0 %v53
    %v117 = vpop.f32.mrf.mxu0
    %v118 = vadd.f32 0.0, %v117
    %v119 = vpop.f32.mrf.mxu0
    %v120 = vadd.f32 0.0, %v119
    %121 = vdwg.mxu0
    %122 = vmatpush.bf16.msra.mxu0 %v102
    %123 = vmatpush.bf16.msra.mxu0 %v101
    %124 = vmatpush.bf16.msra.mxu0 %v100
    %125 = vmatpush.bf16.msra.mxu0 %v99
    %126 = vmatpush.bf16.msra.mxu0 %v98
    %127 = vmatpush.bf16.msra.mxu0 %v97
    %128 = vmatpush.bf16.msra.mxu0 %v96
    %129 = vmatpush.bf16.msra.mxu0 %v95
    %130 = vmatmul.bf16.gmra.mxu0 %v52
    %v131 = vpop.f32.mrf.mxu0
    %v132 = vadd.f32 %v113, %v131
    %v133 = vpop.f32.mrf.mxu0
    %v134 = vadd.f32 %v115, %v133
    %135 = vmatmul.bf16.gmra.mxu0 %v54
    %v136 = vpop.f32.mrf.mxu0
    %v137 = vadd.f32 %v118, %v136
    %v138 = vpop.f32.mrf.mxu0
    %v139 = vadd.f32 %v120, %v138
    %140 = vdwg.mxu0
    %v141 = vadd.f32 %v39, %v132
    %v142 = vadd.f32 %v40, %v134
    %v143 = vadd.f32 %v41, %v137
    %v144 = vadd.f32 %v42, %v139
    %145 = vst [vmem:[#allocation2] sm:$0xff] %v141
    %146 = vst [vmem:[#allocation2 + $0x8] sm:$0xff] %v142
    %147 = vst [vmem:[#allocation2 + $0x10] sm:$0xff] %v143
    %148 = vst [vmem:[#allocation2 + $0x18] sm:$0xff] %v144
    // Predicated region
    $region22: #{transformer_forward.57} parent=1 // pred_check
      %p149 = pneg %p31
    $region23: #{transformer_forward.57} parent=1 // pred_check_branch
      %151 = sbr.rel (%p149) target = $region25
    $region24: #{transformer_forward.57} parent=1 // pred_region
      %v152 = vld [vmem:[#allocation2] sm:$0xff]
      %v153 = vld [vmem:[#allocation2 + $0x8] sm:$0xff]
      %v154 = vld [vmem:[#allocation2 + $0x10] sm:$0xff]
      %v155 = vld [vmem:[#allocation2 + $0x18] sm:$0xff]
      %v156 = vld [vmem:[%s2] sm:$0x1]
      %v158 = vperm.slane %v156, 0
      %v160 = vadd.f32 %v152, %v158
      %v161 = vadd.f32 %v153, %v158
      %v162 = vadd.f32 %v154, %v158
      %v163 = vadd.f32 %v155, %v158
      %164 = vst [vmem:[#allocation6] sm:$0xff] %v160
      %165 = vst [vmem:[#allocation6 + $0x8] sm:$0xff] %v161
      %166 = vst [vmem:[#allocation6 + $0x10] sm:$0xff] %v162
      %167 = vst [vmem:[#allocation6 + $0x18] sm:$0xff] %v163
    $region25: #{transformer_forward.57} parent=1 // pred_fallthru
      _
    // Predicated region
    $region26: #{transformer_forward.57} parent=1 // pred_check
      _
    $region27: #{transformer_forward.57} parent=1 // pred_check_branch
      %169 = sbr.rel (0) target = $region29
    $region28: #{transformer_forward.57} parent=1 // pred_region
      %171 = vsyncadd [#allocation5], 0
      %s172 = sshll.u32 [#allocation6], 4
      %s173 = int_to_ptr.vmem [resolvable:$true] %s172
      %s174 = sshll.u32 %s3, 4
      %s175 = int_to_ptr.hbm [resolvable:$true] %s174
      %180 = dma.vmem_to_hbm [thread:$0]  %s173, 512, %s175, [#allocation5], 128, 128, 8
    $region29: #{transformer_forward.57} parent=1 // pred_fallthru
      _
    // Predicated region
    $region30: #{transformer_forward.57} parent=1 // pred_check
      _
    $region31: #{transformer_forward.57} parent=1 // pred_check_branch
      %182 = sbr.rel (0) target = $region33
    $region32: #{transformer_forward.57} parent=1 // pred_region
      %184 = dma.done [#allocation5], 512
    $region33: #{transformer_forward.57} parent=1 // pred_fallthru
      _
    %185 = vsyncpa [#allocation4], 1
    %186 = vsyncpa [#allocation5], 1

</llo_original>
